<compile_context>
chip_gen: v6e
topology: v6e:2x2x1
jax: 0.10.0
libtpu: 0.0.40
codegen_flags: <defaults>
</compile_context>

<pallas_src>
import jax
import jax.numpy as jnp
from jax.experimental import pallas as pl
from jax.experimental.pallas import tpu as pltpu

EPS = 1e-5
_VMEM_LIMIT = 32 * 1024 * 1024  # explicit scoped-VMEM budget (safe on v5e..v7x)


def _compiler_params(semantics):
    return pltpu.CompilerParams(dimension_semantics=semantics,
                                vmem_limit_bytes=_VMEM_LIMIT)


def _pick_tile_m(m):
    """Largest row tile (multiple of 8) dividing m that leaves >=4 grid steps."""
    candidates = (2048, 1024, 512, 256, 128, 64, 32, 16, 8)
    for t in candidates:
        if m % t == 0 and m // t >= 4:
            return t
    for t in candidates:
        if m % t == 0:
            return t
    return m


# ---------------------------------------------------------------------------
# Pallas kernels
# ---------------------------------------------------------------------------
def _conv1_stats_kernel(x_ref, w1_ref, b1_ref, y_ref, st_ref):
    # conv1 (1x1x1) == channel matmul; bf16 operands, f32 MXU accumulation.
    y = jnp.dot(x_ref[...].astype(jnp.bfloat16), w1_ref[...],
                preferred_element_type=jnp.float32) + b1_ref[...]
    y_ref[...] = y
    # per-tile partial statistics for the *global* BatchNorm over N*D*H*W
    # (row 0 = sum, row 1 = sum of squares; rows 2..7 are padding).
    s = jnp.sum(y, axis=0, keepdims=True)
    sq = jnp.sum(y * y, axis=0, keepdims=True)
    st_ref[...] = jnp.concatenate(
        [s, sq, jnp.zeros((6, y.shape[1]), jnp.float32)], axis=0)


def _conv2_stats_kernel(h0_ref, h1_ref, h2_ref, mask_ref, sc1_ref, sh1_ref,
                        w2_ref, b2_ref, y2_ref, st_ref):
    # h{0,1,2}_ref: three depth halo slabs (kd = 0,1,2) of the zero-padded
    # *pre-BN* conv1 output, each (H+2, W+2, Cmid).  BN1 + ReLU are applied
    # here with the globally-computed scale/shift; padding positions are then
    # re-zeroed (hw mask for the H/W border, program_id test for depth).
    d = pl.program_id(1)
    n_d = pl.num_programs(1)                       # == D
    hp2, wp2, cmid = h0_ref.shape
    hh, ww = hp2 - 2, wp2 - 2
    cout = y2_ref.shape[-1]

    mask = mask_ref[...]
    sc1 = sc1_ref[...]                             # (1, Cmid)
    sh1 = sh1_ref[...]

    slabs = []
    for kd, h_ref in enumerate((h0_ref, h1_ref, h2_ref)):
        h = jnp.maximum(h_ref[...] * sc1 + sh1, 0.0) * mask
        depth_ok = jnp.logical_and(d + kd >= 1, d + kd <= n_d)
        h = h * depth_ok.astype(jnp.float32)       # zero depth-pad slabs
        slabs.append(h.astype(jnp.bfloat16))

    # Fold the 3 depth taps into the contraction axis: K = 3*Cmid.
    hcat = jnp.concatenate(slabs, axis=-1)         # (H+2, W+2, 3*Cmid)

    acc = jnp.zeros((hh * ww, cout), jnp.float32)
    for kh in range(3):                            # 9 shifted matmuls, K=3*Cmid
        for kw in range(3):
            tap = hcat[kh:kh + hh, kw:kw + ww, :].reshape(hh * ww, 3 * cmid)
            acc = acc + jnp.dot(tap, w2_ref[kh, kw],
                                preferred_element_type=jnp.float32)
    y2 = acc + b2_ref[...]
    y2_ref[...] = y2.reshape(hh, ww, cout)

    s = jnp.sum(y2, axis=0, keepdims=True)
    sq = jnp.sum(y2 * y2, axis=0, keepdims=True)
    st_ref[...] = jnp.concatenate(
        [s, sq, jnp.zeros((6, cout), jnp.float32)], axis=0)


def _bn2_res_conv3_kernel(y2_ref, x_ref, sc2_ref, sh2_ref, w3_ref, b3_ref,
                          o_ref):
    # BN2 (global scale/shift) + ReLU + residual add + conv3 (1x1x1 matmul).
    z = x_ref[...] + jnp.maximum(y2_ref[...] * sc2_ref[...] + sh2_ref[...], 0.0)
    o_ref[...] = jnp.dot(z.astype(jnp.bfloat16), w3_ref[...],
                         preferred_element_type=jnp.float32) + b3_ref[...]


# ---------------------------------------------------------------------------
# Glue: turn per-tile (sum, sum_sq) partials into BN scale / shift
# ---------------------------------------------------------------------------
def _bn_scale_shift(stats, count, gamma, beta):
    st = stats.reshape(-1, 8, stats.shape[-1])
    total = jnp.sum(st[:, 0, :], axis=0)
    total_sq = jnp.sum(st[:, 1, :], axis=0)
    mean = total / count
    var = jnp.maximum(total_sq / count - mean * mean, 0.0)
    scale = gamma * jax.lax.rsqrt(var + EPS)
    shift = beta - mean * scale
    return (scale.reshape(1, -1).astype(jnp.float32),
            shift.reshape(1, -1).astype(jnp.float32))


# ---------------------------------------------------------------------------
# Wrapper
# ---------------------------------------------------------------------------
def resnet3d_block(x, params, down_sample=False):
    """ResNet3DBlock forward.  x: (N, C, D, H, W) float32 (PyTorch NCDHW)."""
    assert x.ndim == 5
    N, C, D, H, W = x.shape
    Cmid = params["w1"].shape[1]
    Cout2 = params["w2"].shape[-1]
    Cout3 = params["w3"].shape[1]
    assert Cout2 == C, "residual add needs conv2 out-channels == in-channels"
    M = N * D * H * W
    TM = _pick_tile_m(M)
    GM = M // TM

    row = lambda v: v.reshape(1, -1).astype(jnp.float32)
    x2d = jnp.transpose(x, (0, 2, 3, 4, 1)).reshape(M, C)     # channels-last

    # bf16 weight copies for the MXU (activations are cast in-kernel).
    w1b = params["w1"].astype(jnp.bfloat16)                   # (C, Cmid)
    w3b = params["w3"].astype(jnp.bfloat16)                   # (C, Cout3)
    # conv2 weights (kd,kh,kw,Cmid,Cout) -> (kh,kw, 3*Cmid, Cout): depth taps
    # live on the contraction axis.
    w2b = jnp.transpose(params["w2"], (1, 2, 0, 3, 4))
    w2b = w2b.reshape(3, 3, 3 * Cmid, Cout2).astype(jnp.bfloat16)

    # ---- K1: conv1 (1x1x1) + partial BN1 stats, tiled over M --------------
    y1, st1 = pl.pallas_call(
        _conv1_stats_kernel,
        grid=(GM,),
        in_specs=[
            pl.BlockSpec((TM, C), lambda i: (i, 0)),
            pl.BlockSpec((C, Cmid), lambda i: (0, 0)),
            pl.BlockSpec((1, Cmid), lambda i: (0, 0)),
        ],
        out_specs=[
            pl.BlockSpec((TM, Cmid), lambda i: (i, 0)),
            pl.BlockSpec((None, 8, Cmid), lambda i: (i, 0, 0)),
        ],
        out_shape=[
            jax.ShapeDtypeStruct((M, Cmid), jnp.float32),
            jax.ShapeDtypeStruct((GM, 8, Cmid), jnp.float32),
        ],
        compiler_params=_compiler_params(("parallel",)),
    )(x2d, w1b, row(params["b1"]))
    scale1, shift1 = _bn_scale_shift(st1, M, params["g1"], params["be1"])

    # ---- K2: BN1+ReLU + conv2 (3x3x3, pad=1) + partial BN2 stats ----------
    # Zero-pad the *pre-BN* conv1 output spatially; the kernel re-zeroes pad
    # positions after affine+ReLU (mask for H/W borders, program_id for D).
    y1_pad = jnp.pad(y1.reshape(N, D, H, W, Cmid),
                     ((0, 0), (1, 1), (1, 1), (1, 1), (0, 0)))
    hw_mask = jnp.pad(jnp.ones((H, W, Cmid), jnp.float32),
                      ((1, 1), (1, 1), (0, 0)))

    def _slab_spec(kd):
        return pl.BlockSpec((None, None, H + 2, W + 2, Cmid),
                            lambda n, d, kd=kd: (n, d + kd, 0, 0, 0))

    y2, st2 = pl.pallas_call(
        _conv2_stats_kernel,
        grid=(N, D),
        in_specs=[
            _slab_spec(0), _slab_spec(1), _slab_spec(2),
            pl.BlockSpec((H + 2, W + 2, Cmid), lambda n, d: (0, 0, 0)),
            pl.BlockSpec((1, Cmid), lambda n, d: (0, 0)),
            pl.BlockSpec((1, Cmid), lambda n, d: (0, 0)),
            pl.BlockSpec((3, 3, 3 * Cmid, Cout2), lambda n, d: (0, 0, 0, 0)),
            pl.BlockSpec((1, Cout2), lambda n, d: (0, 0)),
        ],
        out_specs=[
            pl.BlockSpec((None, None, H, W, Cout2),
                         lambda n, d: (n, d, 0, 0, 0)),
            pl.BlockSpec((None, None, 8, Cout2), lambda n, d: (n, d, 0, 0)),
        ],
        out_shape=[
            jax.ShapeDtypeStruct((N, D, H, W, Cout2), jnp.float32),
            jax.ShapeDtypeStruct((N, D, 8, Cout2), jnp.float32),
        ],
        compiler_params=_compiler_params(("parallel", "parallel")),
    )(y1_pad, y1_pad, y1_pad, hw_mask, scale1, shift1, w2b, row(params["b2"]))
    scale2, shift2 = _bn_scale_shift(st2, M, params["g2"], params["be2"])

    # ---- K3: BN2+ReLU + residual + conv3 (1x1x1), tiled over M ------------
    out2d = pl.pallas_call(
        _bn2_res_conv3_kernel,
        grid=(GM,),
        in_specs=[
            pl.BlockSpec((TM, Cout2), lambda i: (i, 0)),
            pl.BlockSpec((TM, C), lambda i: (i, 0)),
            pl.BlockSpec((1, Cout2), lambda i: (0, 0)),
            pl.BlockSpec((1, Cout2), lambda i: (0, 0)),
            pl.BlockSpec((Cout2, Cout3), lambda i: (0, 0)),
            pl.BlockSpec((1, Cout3), lambda i: (0, 0)),
        ],
        out_specs=pl.BlockSpec((TM, Cout3), lambda i: (i, 0)),
        out_shape=jax.ShapeDtypeStruct((M, Cout3), jnp.float32),
        compiler_params=_compiler_params(("parallel",)),
    )(y2.reshape(M, Cout2), x2d, scale2, shift2, w3b, row(params["b3"]))

    out = out2d.reshape(N, D, H, W, Cout3)
    if down_sample:
        # TODO(synk): F.max_pool3d(k=3, s=2, p=1) runs as XLA reduce_window,
        # not as a Pallas kernel.
        out = jax.lax.reduce_window(
            out, -jnp.inf, jax.lax.max,
            window_dimensions=(1, 3, 3, 3, 1),
            window_strides=(1, 2, 2, 2, 1),
            padding=((0, 0), (1, 1), (1, 1), (1, 1), (0, 0)))
    return jnp.transpose(out, (0, 4, 1, 2, 3))                 # back to NCDHW


# ---------------------------------------------------------------------------
# Pure-JAX reference (matched matmul precision: bf16 operands, f32 accumulate)
# ---------------------------------------------------------------------------
def reference_forward(x, p):
    xc = jnp.transpose(x, (0, 2, 3, 4, 1))                     # NDHWC
    bf = lambda a: a.astype(jnp.bfloat16)

    def bn(y, g, b):
        mean = jnp.mean(y, axis=(0, 1, 2, 3), keepdims=True)
        var = jnp.mean((y - mean) ** 2, axis=(0, 1, 2, 3), keepdims=True)
        return (y - mean) * jax.lax.rsqrt(var + EPS) * g + b

    h = jnp.einsum("ndhwc,co->ndhwo", bf(xc), bf(p["w1"]),
                   preferred_element_type=jnp.float32) + p["b1"]
    h = jax.nn.relu(bn(h, p["g1"], p["be1"]))
    y = jax.lax.conv_general_dilated(
        bf(h), bf(p["w2"]), window_strides=(1, 1, 1), padding="SAME",
        dimension_numbers=("NDHWC", "DHWIO", "NDHWC"),
        preferred_element_type=jnp.float32) + p["b2"]
    y = jax.nn.relu(bn(y, p["g2"], p["be2"]))
    z = xc + y
    out = jnp.einsum("ndhwc,co->ndhwo", bf(z), bf(p["w3"]),
                     preferred_element_type=jnp.float32) + p["b3"]
    return jnp.transpose(out, (0, 4, 1, 2, 3))


# ---------------------------------------------------------------------------
def make_params(key, dim=256, factor=2, down_sample=False):
    cmid = dim // factor
    cout = dim * 2 if down_sample else dim
    ks = jax.random.split(key, 10)
    n = lambda k, s, sc=0.1: (sc * jax.random.normal(k, s)).astype(jnp.float32)
    return {
        "w1": n(ks[0], (dim, cmid)),            "b1": n(ks[1], (cmid,)),
        "g1": 1.0 + n(ks[2], (cmid,), 0.05),    "be1": n(ks[3], (cmid,), 0.05),
        "w2": n(ks[4], (3, 3, 3, cmid, dim)),   "b2": n(ks[5], (dim,)),
        "g2": 1.0 + n(ks[6], (dim,), 0.05),     "be2": n(ks[7], (dim,), 0.05),
        "w3": n(ks[8], (dim, cout)),            "b3": n(ks[9], (cout,)),
    }


if __name__ == "__main__":
    key = jax.random.PRNGKey(0)
    kx, kp = jax.random.split(key)

    # Module-default width dim=256, factor=2 -> lane-dense channel axes
    # (256 and 128); small spatial extent keeps the script fast.
    N, dim, D, H, W = 2, 256, 8, 8, 8
    x = jax.random.normal(kx, (N, dim, D, H, W), dtype=jnp.float32)
    params = make_params(kp, dim=dim, factor=2, down_sample=False)

    out = jax.block_until_ready(jax.jit(resnet3d_block)(x, params))
    ref = jax.block_until_ready(jax.jit(reference_forward)(x, params))

    assert out.shape == (N, dim, D, H, W)
    err = float(jnp.max(jnp.abs(out - ref)))
    # Both paths use bf16 matmul operands with f32 accumulation; remaining
    # differences are summation-order / BN-stat reduction-order effects.
    assert jnp.allclose(out, ref, atol=2e-2, rtol=2e-2), f"max abs err {err}"
    print("KERNEL_OK")
</pallas_src>

<mosaic_0001>
module attributes {stable_mosaic.version = 11 : i64} {
  func.func @_conv1_stats_kernel(%arg0: i32, %arg1: memref<256x256xf32, #tpu.memory_space<vmem>>, %arg2: memref<256x128xbf16, #tpu.memory_space<vmem>>, %arg3: memref<1x128xf32, #tpu.memory_space<vmem>>, %arg4: memref<256x128xf32, #tpu.memory_space<vmem>>, %arg5: memref<1x8x128xf32, #tpu.memory_space<vmem>>) attributes {dimension_semantics = [#tpu.dimension_semantics<parallel>], iteration_bounds = array<i64: 4>, scalar_prefetch = 0 : i64, scratch_operands = 0 : i64, tpu.core_type = #tpu.core_type<tc>, window_params = [{transform_indices = @transform_0, window_bounds = array<i64: 256, 256>}, {pipeline_mode = #tpu.pipeline_mode<synchronous>, transform_indices = @transform_1, window_bounds = array<i64: 256, 128>}, {pipeline_mode = #tpu.pipeline_mode<synchronous>, transform_indices = @transform_2, window_bounds = array<i64: 1, 128>}, {transform_indices = @transform_3, window_bounds = array<i64: 256, 128>}, {transform_indices = @transform_4, window_bounds = array<i64: 1, 8, 128>}]} {
    %c0 = arith.constant 0 : index
    %c0_0 = arith.constant 0 : index
    %0 = vector.load %arg1[%c0, %c0_0] : memref<256x256xf32, #tpu.memory_space<vmem>>, vector<256x256xf32>
    %1 = arith.truncf %0 : vector<256x256xf32> to vector<256x256xbf16>
    %c0_1 = arith.constant 0 : index
    %c0_2 = arith.constant 0 : index
    %2 = vector.load %arg2[%c0_1, %c0_2] : memref<256x128xbf16, #tpu.memory_space<vmem>>, vector<256x128xbf16>
    %cst = arith.constant dense<0.000000e+00> : vector<256x128xf32>
    %3 = tpu.matmul %1, %2, %cst {dimension_numbers = #tpu.dot_dimension_numbers<[1], [0], [0], [1], [0, 0, 1, 1], [], []>} : vector<256x256xbf16>, vector<256x128xbf16>, vector<256x128xf32> -> vector<256x128xf32>
    %c0_3 = arith.constant 0 : index
    %c0_4 = arith.constant 0 : index
    %4 = vector.load %arg3[%c0_3, %c0_4] : memref<1x128xf32, #tpu.memory_space<vmem>>, vector<1x128xf32>
    %5 = vector.broadcast %4 : vector<1x128xf32> to vector<256x128xf32>
    %6 = arith.addf %3, %5 : vector<256x128xf32>
    %c0_5 = arith.constant 0 : index
    %c0_6 = arith.constant 0 : index
    %7 = vector.load %arg4[%c0_5, %c0_6] : memref<256x128xf32, #tpu.memory_space<vmem>>, vector<256x128xf32>
    tpu.vector_store %arg4[%c0_5, %c0_6], %6 {strides = array<i32>} : memref<256x128xf32, #tpu.memory_space<vmem>>, vector<256x128xf32>,
    %cst_7 = arith.constant dense<0.000000e+00> : vector<128xf32>
    %8 = vector.multi_reduction <add>, %6, %cst_7 [0] : vector<256x128xf32> to vector<128xf32>
    %9 = vector.shape_cast %8 : vector<128xf32> to vector<1x128xf32>
    %10 = arith.mulf %6, %6 : vector<256x128xf32>
    %cst_8 = arith.constant dense<0.000000e+00> : vector<128xf32>
    %11 = vector.multi_reduction <add>, %10, %cst_8 [0] : vector<256x128xf32> to vector<128xf32>
    %12 = vector.shape_cast %11 : vector<128xf32> to vector<1x128xf32>
    %cst_9 = arith.constant 0.000000e+00 : f32
    %13 = vector.broadcast %cst_9 : f32 to vector<6x128xf32>
    %14 = tpu.concatenate %9, %12, %13 in 0 : vector<1x128xf32>, vector<1x128xf32>, vector<6x128xf32> -> vector<8x128xf32>
    %c0_10 = arith.constant 0 : index
    %c0_11 = arith.constant 0 : index
    %c0_12 = arith.constant 0 : index
    %15 = vector.load %arg5[%c0_10, %c0_11, %c0_12] : memref<1x8x128xf32, #tpu.memory_space<vmem>>, vector<1x8x128xf32>
    %16 = vector.shape_cast %15 : vector<1x8x128xf32> to vector<8x128xf32>
    %17 = vector.shape_cast %14 : vector<8x128xf32> to vector<1x8x128xf32>
    tpu.vector_store %arg5[%c0_10, %c0_11, %c0_12], %17 {strides = array<i32>} : memref<1x8x128xf32, #tpu.memory_space<vmem>>, vector<1x8x128xf32>,
    return
  }
  func.func @transform_0(%arg0: i32) -> (i32, i32) {
    %c0_i32 = arith.constant 0 : i32
    %c0_i32_0 = arith.constant 0 : i32
    return %arg0, %c0_i32 : i32, i32
  }
  func.func @transform_1(%arg0: i32) -> (i32, i32) {
    %c0_i32 = arith.constant 0 : i32
    %c0_i32_0 = arith.constant 0 : i32
    %c0_i32_1 = arith.constant 0 : i32
    return %c0_i32, %c0_i32_0 : i32, i32
  }
  func.func @transform_2(%arg0: i32) -> (i32, i32) {
    %c0_i32 = arith.constant 0 : i32
    %c0_i32_0 = arith.constant 0 : i32
    %c0_i32_1 = arith.constant 0 : i32
    return %c0_i32, %c0_i32_0 : i32, i32
  }
  func.func @transform_3(%arg0: i32) -> (i32, i32) {
    %c0_i32 = arith.constant 0 : i32
    %c0_i32_0 = arith.constant 0 : i32
    return %arg0, %c0_i32 : i32, i32
  }
  func.func @transform_4(%arg0: i32) -> (i32, i32, i32) {
    %c0_i32 = arith.constant 0 : i32
    %c0_i32_0 = arith.constant 0 : i32
    %c0_i32_1 = arith.constant 0 : i32
    return %arg0, %c0_i32, %c0_i32_0 : i32, i32, i32
  }
}

module attributes {stable_mosaic.version = 11 : i64} {
  func.func @_conv2_stats_kernel(%arg0: i32, %arg1: i32, %arg2: memref<1x1x10x10x128xf32, #tpu.memory_space<vmem>>, %arg3: memref<1x1x10x10x128xf32, #tpu.memory_space<vmem>>, %arg4: memref<1x1x10x10x128xf32, #tpu.memory_space<vmem>>, %arg5: memref<10x10x128xf32, #tpu.memory_space<vmem>>, %arg6: memref<1x128xf32, #tpu.memory_space<vmem>>, %arg7: memref<1x128xf32, #tpu.memory_space<vmem>>, %arg8: memref<3x3x384x256xbf16, #tpu.memory_space<vmem>>, %arg9: memref<1x256xf32, #tpu.memory_space<vmem>>, %arg10: memref<1x1x8x8x256xf32, #tpu.memory_space<vmem>>, %arg11: memref<1x1x8x256xf32, #tpu.memory_space<vmem>>) attributes {dimension_semantics = [#tpu.dimension_semantics<parallel>, #tpu.dimension_semantics<parallel>], iteration_bounds = array<i64: 2, 8>, scalar_prefetch = 0 : i64, scratch_operands = 0 : i64, tpu.core_type = #tpu.core_type<tc>, window_params = [{transform_indices = @transform_0, window_bounds = array<i64: 1, 1, 10, 10, 128>}, {transform_indices = @transform_1, window_bounds = array<i64: 1, 1, 10, 10, 128>}, {transform_indices = @transform_2, window_bounds = array<i64: 1, 1, 10, 10, 128>}, {pipeline_mode = #tpu.pipeline_mode<synchronous>, transform_indices = @transform_3, window_bounds = array<i64: 10, 10, 128>}, {pipeline_mode = #tpu.pipeline_mode<synchronous>, transform_indices = @transform_4, window_bounds = array<i64: 1, 128>}, {pipeline_mode = #tpu.pipeline_mode<synchronous>, transform_indices = @transform_5, window_bounds = array<i64: 1, 128>}, {pipeline_mode = #tpu.pipeline_mode<synchronous>, transform_indices = @transform_6, window_bounds = array<i64: 3, 3, 384, 256>}, {pipeline_mode = #tpu.pipeline_mode<synchronous>, transform_indices = @transform_7, window_bounds = array<i64: 1, 256>}, {transform_indices = @transform_8, window_bounds = array<i64: 1, 1, 8, 8, 256>}, {transform_indices = @transform_9, window_bounds = array<i64: 1, 1, 8, 256>}]} {
    %c0 = arith.constant 0 : index
    %c0_0 = arith.constant 0 : index
    %c0_1 = arith.constant 0 : index
    %0 = vector.load %arg5[%c0, %c0_0, %c0_1] : memref<10x10x128xf32, #tpu.memory_space<vmem>>, vector<10x10x128xf32>
    %c0_2 = arith.constant 0 : index
    %c0_3 = arith.constant 0 : index
    %1 = vector.load %arg6[%c0_2, %c0_3] : memref<1x128xf32, #tpu.memory_space<vmem>>, vector<1x128xf32>
    %c0_4 = arith.constant 0 : index
    %c0_5 = arith.constant 0 : index
    %2 = vector.load %arg7[%c0_4, %c0_5] : memref<1x128xf32, #tpu.memory_space<vmem>>, vector<1x128xf32>
    %c0_6 = arith.constant 0 : index
    %c0_7 = arith.constant 0 : index
    %c0_8 = arith.constant 0 : index
    %c0_9 = arith.constant 0 : index
    %c0_10 = arith.constant 0 : index
    %3 = vector.load %arg2[%c0_6, %c0_7, %c0_8, %c0_9, %c0_10] : memref<1x1x10x10x128xf32, #tpu.memory_space<vmem>>, vector<1x1x10x10x128xf32>
    %4 = vector.shape_cast %3 : vector<1x1x10x10x128xf32> to vector<10x10x128xf32>
    %5 = vector.shape_cast %1 : vector<1x128xf32> to vector<1x1x128xf32>
    %6 = vector.broadcast %5 : vector<1x1x128xf32> to vector<10x10x128xf32>
    %7 = arith.mulf %4, %6 : vector<10x10x128xf32>
    %8 = vector.shape_cast %2 : vector<1x128xf32> to vector<1x1x128xf32>
    %9 = vector.broadcast %8 : vector<1x1x128xf32> to vector<10x10x128xf32>
    %10 = arith.addf %7, %9 : vector<10x10x128xf32>
    %cst = arith.constant 0.000000e+00 : f32
    %11 = vector.broadcast %cst : f32 to vector<10x10x128xf32>
    %12 = arith.maximumf %10, %11 : vector<10x10x128xf32>
    %13 = arith.mulf %12, %0 : vector<10x10x128xf32>
    %c0_i32 = arith.constant 0 : i32
    %14 = arith.addi %arg1, %c0_i32 : i32
    %c1_i32 = arith.constant 1 : i32
    %15 = arith.cmpi sge, %14, %c1_i32 : i32
    %c0_i32_11 = arith.constant 0 : i32
    %16 = arith.addi %arg1, %c0_i32_11 : i32
    %c8_i32 = arith.constant 8 : i32
    %17 = arith.cmpi sle, %16, %c8_i32 : i32
    %18 = arith.andi %15, %17 : i1
    %19 = arith.extui %18 : i1 to i32
    %20 = arith.sitofp %19 : i32 to f32
    %21 = vector.broadcast %20 : f32 to vector<10x10x128xf32>
    %22 = arith.mulf %13, %21 : vector<10x10x128xf32>
    %23 = arith.truncf %22 : vector<10x10x128xf32> to vector<10x10x128xbf16>
    %c0_12 = arith.constant 0 : index
    %c0_13 = arith.constant 0 : index
    %c0_14 = arith.constant 0 : index
    %c0_15 = arith.constant 0 : index
    %c0_16 = arith.constant 0 : index
    %24 = vector.load %arg3[%c0_12, %c0_13, %c0_14, %c0_15, %c0_16] : memref<1x1x10x10x128xf32, #tpu.memory_space<vmem>>, vector<1x1x10x10x128xf32>
    %25 = vector.shape_cast %24 : vector<1x1x10x10x128xf32> to vector<10x10x128xf32>
    %26 = vector.shape_cast %1 : vector<1x128xf32> to vector<1x1x128xf32>
    %27 = vector.broadcast %26 : vector<1x1x128xf32> to vector<10x10x128xf32>
    %28 = arith.mulf %25, %27 : vector<10x10x128xf32>
    %29 = vector.shape_cast %2 : vector<1x128xf32> to vector<1x1x128xf32>
    %30 = vector.broadcast %29 : vector<1x1x128xf32> to vector<10x10x128xf32>
    %31 = arith.addf %28, %30 : vector<10x10x128xf32>
    %cst_17 = arith.constant 0.000000e+00 : f32
    %32 = vector.broadcast %cst_17 : f32 to vector<10x10x128xf32>
    %33 = arith.maximumf %31, %32 : vector<10x10x128xf32>
    %34 = arith.mulf %33, %0 : vector<10x10x128xf32>
    %c1_i32_18 = arith.constant 1 : i32
    %35 = arith.addi %arg1, %c1_i32_18 : i32
    %c1_i32_19 = arith.constant 1 : i32
    %36 = arith.cmpi sge, %35, %c1_i32_19 : i32
    %c1_i32_20 = arith.constant 1 : i32
    %37 = arith.addi %arg1, %c1_i32_20 : i32
    %c8_i32_21 = arith.constant 8 : i32
    %38 = arith.cmpi sle, %37, %c8_i32_21 : i32
    %39 = arith.andi %36, %38 : i1
    %40 = arith.extui %39 : i1 to i32
    %41 = arith.sitofp %40 : i32 to f32
    %42 = vector.broadcast %41 : f32 to vector<10x10x128xf32>
    %43 = arith.mulf %34, %42 : vector<10x10x128xf32>
    %44 = arith.truncf %43 : vector<10x10x128xf32> to vector<10x10x128xbf16>
    %c0_22 = arith.constant 0 : index
    %c0_23 = arith.constant 0 : index
    %c0_24 = arith.constant 0 : index
    %c0_25 = arith.constant 0 : index
    %c0_26 = arith.constant 0 : index
    %45 = vector.load %arg4[%c0_22, %c0_23, %c0_24, %c0_25, %c0_26] : memref<1x1x10x10x128xf32, #tpu.memory_space<vmem>>, vector<1x1x10x10x128xf32>
    %46 = vector.shape_cast %45 : vector<1x1x10x10x128xf32> to vector<10x10x128xf32>
    %47 = vector.shape_cast %1 : vector<1x128xf32> to vector<1x1x128xf32>
    %48 = vector.broadcast %47 : vector<1x1x128xf32> to vector<10x10x128xf32>
    %49 = arith.mulf %46, %48 : vector<10x10x128xf32>
    %50 = vector.shape_cast %2 : vector<1x128xf32> to vector<1x1x128xf32>
    %51 = vector.broadcast %50 : vector<1x1x128xf32> to vector<10x10x128xf32>
    %52 = arith.addf %49, %51 : vector<10x10x128xf32>
    %cst_27 = arith.constant 0.000000e+00 : f32
    %53 = vector.broadcast %cst_27 : f32 to vector<10x10x128xf32>
    %54 = arith.maximumf %52, %53 : vector<10x10x128xf32>
    %55 = arith.mulf %54, %0 : vector<10x10x128xf32>
    %c2_i32 = arith.constant 2 : i32
    %56 = arith.addi %arg1, %c2_i32 : i32
    %c1_i32_28 = arith.constant 1 : i32
    %57 = arith.cmpi sge, %56, %c1_i32_28 : i32
    %c2_i32_29 = arith.constant 2 : i32
    %58 = arith.addi %arg1, %c2_i32_29 : i32
    %c8_i32_30 = arith.constant 8 : i32
    %59 = arith.cmpi sle, %58, %c8_i32_30 : i32
    %60 = arith.andi %57, %59 : i1
    %61 = arith.extui %60 : i1 to i32
    %62 = arith.sitofp %61 : i32 to f32
    %63 = vector.broadcast %62 : f32 to vector<10x10x128xf32>
    %64 = arith.mulf %55, %63 : vector<10x10x128xf32>
    %65 = arith.truncf %64 : vector<10x10x128xf32> to vector<10x10x128xbf16>
    %66 = tpu.concatenate %23, %44, %65 in 2 : vector<10x10x128xbf16>, vector<10x10x128xbf16>, vector<10x10x128xbf16> -> vector<10x10x384xbf16>
    %cst_31 = arith.constant 0.000000e+00 : f32
    %67 = vector.broadcast %cst_31 : f32 to vector<64x256xf32>
    %68 = vector.extract_strided_slice %66 {offsets = [0, 0, 0], sizes = [8, 8, 384], strides = [1, 1, 1]} : vector<10x10x384xbf16> to vector<8x8x384xbf16>
    %69 = vector.shape_cast %68 : vector<8x8x384xbf16> to vector<64x384xbf16>
    %c0_32 = arith.constant 0 : index
    %c0_33 = arith.constant 0 : index
    %c0_34 = arith.constant 0 : index
    %c0_35 = arith.constant 0 : index
    %70 = vector.load %arg8[%c0_32, %c0_33, %c0_34, %c0_35] : memref<3x3x384x256xbf16, #tpu.memory_space<vmem>>, vector<1x1x384x256xbf16>
    %71 = vector.shape_cast %70 : vector<1x1x384x256xbf16> to vector<384x256xbf16>
    %cst_36 = arith.constant dense<0.000000e+00> : vector<64x256xf32>
    %72 = tpu.matmul %69, %71, %cst_36 {dimension_numbers = #tpu.dot_dimension_numbers<[1], [0], [0], [1], [0, 0, 1, 1], [], []>} : vector<64x384xbf16>, vector<384x256xbf16>, vector<64x256xf32> -> vector<64x256xf32>
    %73 = arith.addf %67, %72 : vector<64x256xf32>
    %74 = vector.extract_strided_slice %66 {offsets = [0, 1, 0], sizes = [8, 8, 384], strides = [1, 1, 1]} : vector<10x10x384xbf16> to vector<8x8x384xbf16>
    %75 = vector.shape_cast %74 : vector<8x8x384xbf16> to vector<64x384xbf16>
    %c0_37 = arith.constant 0 : index
    %c1 = arith.constant 1 : index
    %c0_38 = arith.constant 0 : index
    %c0_39 = arith.constant 0 : index
    %76 = vector.load %arg8[%c0_37, %c1, %c0_38, %c0_39] : memref<3x3x384x256xbf16, #tpu.memory_space<vmem>>, vector<1x1x384x256xbf16>
    %77 = vector.shape_cast %76 : vector<1x1x384x256xbf16> to vector<384x256xbf16>
    %cst_40 = arith.constant dense<0.000000e+00> : vector<64x256xf32>
    %78 = tpu.matmul %75, %77, %cst_40 {dimension_numbers = #tpu.dot_dimension_numbers<[1], [0], [0], [1], [0, 0, 1, 1], [], []>} : vector<64x384xbf16>, vector<384x256xbf16>, vector<64x256xf32> -> vector<64x256xf32>
    %79 = arith.addf %73, %78 : vector<64x256xf32>
    %80 = vector.extract_strided_slice %66 {offsets = [0, 2, 0], sizes = [8, 8, 384], strides = [1, 1, 1]} : vector<10x10x384xbf16> to vector<8x8x384xbf16>
    %81 = vector.shape_cast %80 : vector<8x8x384xbf16> to vector<64x384xbf16>
    %c0_41 = arith.constant 0 : index
    %c2 = arith.constant 2 : index
    %c0_42 = arith.constant 0 : index
    %c0_43 = arith.constant 0 : index
    %82 = vector.load %arg8[%c0_41, %c2, %c0_42, %c0_43] : memref<3x3x384x256xbf16, #tpu.memory_space<vmem>>, vector<1x1x384x256xbf16>
    %83 = vector.shape_cast %82 : vector<1x1x384x256xbf16> to vector<384x256xbf16>
    %cst_44 = arith.constant dense<0.000000e+00> : vector<64x256xf32>
    %84 = tpu.matmul %81, %83, %cst_44 {dimension_numbers = #tpu.dot_dimension_numbers<[1], [0], [0], [1], [0, 0, 1, 1], [], []>} : vector<64x384xbf16>, vector<384x256xbf16>, vector<64x256xf32> -> vector<64x256xf32>
    %85 = arith.addf %79, %84 : vector<64x256xf32>
    %86 = vector.extract_strided_slice %66 {offsets = [1, 0, 0], sizes = [8, 8, 384], strides = [1, 1, 1]} : vector<10x10x384xbf16> to vector<8x8x384xbf16>
    %87 = vector.shape_cast %86 : vector<8x8x384xbf16> to vector<64x384xbf16>
    %c1_45 = arith.constant 1 : index
    %c0_46 = arith.constant 0 : index
    %c0_47 = arith.constant 0 : index
    %c0_48 = arith.constant 0 : index
    %88 = vector.load %arg8[%c1_45, %c0_46, %c0_47, %c0_48] : memref<3x3x384x256xbf16, #tpu.memory_space<vmem>>, vector<1x1x384x256xbf16>
    %89 = vector.shape_cast %88 : vector<1x1x384x256xbf16> to vector<384x256xbf16>
    %cst_49 = arith.constant dense<0.000000e+00> : vector<64x256xf32>
    %90 = tpu.matmul %87, %89, %cst_49 {dimension_numbers = #tpu.dot_dimension_numbers<[1], [0], [0], [1], [0, 0, 1, 1], [], []>} : vector<64x384xbf16>, vector<384x256xbf16>, vector<64x256xf32> -> vector<64x256xf32>
    %91 = arith.addf %85, %90 : vector<64x256xf32>
    %92 = vector.extract_strided_slice %66 {offsets = [1, 1, 0], sizes = [8, 8, 384], strides = [1, 1, 1]} : vector<10x10x384xbf16> to vector<8x8x384xbf16>
    %93 = vector.shape_cast %92 : vector<8x8x384xbf16> to vector<64x384xbf16>
    %c1_50 = arith.constant 1 : index
    %c1_51 = arith.constant 1 : index
    %c0_52 = arith.constant 0 : index
    %c0_53 = arith.constant 0 : index
    %94 = vector.load %arg8[%c1_50, %c1_51, %c0_52, %c0_53] : memref<3x3x384x256xbf16, #tpu.memory_space<vmem>>, vector<1x1x384x256xbf16>
    %95 = vector.shape_cast %94 : vector<1x1x384x256xbf16> to vector<384x256xbf16>
    %cst_54 = arith.constant dense<0.000000e+00> : vector<64x256xf32>
    %96 = tpu.matmul %93, %95, %cst_54 {dimension_numbers = #tpu.dot_dimension_numbers<[1], [0], [0], [1], [0, 0, 1, 1], [], []>} : vector<64x384xbf16>, vector<384x256xbf16>, vector<64x256xf32> -> vector<64x256xf32>
    %97 = arith.addf %91, %96 : vector<64x256xf32>
    %98 = vector.extract_strided_slice %66 {offsets = [1, 2, 0], sizes = [8, 8, 384], strides = [1, 1, 1]} : vector<10x10x384xbf16> to vector<8x8x384xbf16>
    %99 = vector.shape_cast %98 : vector<8x8x384xbf16> to vector<64x384xbf16>
    %c1_55 = arith.constant 1 : index
    %c2_56 = arith.constant 2 : index
    %c0_57 = arith.constant 0 : index
    %c0_58 = arith.constant 0 : index
    %100 = vector.load %arg8[%c1_55, %c2_56, %c0_57, %c0_58] : memref<3x3x384x256xbf16, #tpu.memory_space<vmem>>, vector<1x1x384x256xbf16>
    %101 = vector.shape_cast %100 : vector<1x1x384x256xbf16> to vector<384x256xbf16>
    %cst_59 = arith.constant dense<0.000000e+00> : vector<64x256xf32>
    %102 = tpu.matmul %99, %101, %cst_59 {dimension_numbers = #tpu.dot_dimension_numbers<[1], [0], [0], [1], [0, 0, 1, 1], [], []>} : vector<64x384xbf16>, vector<384x256xbf16>, vector<64x256xf32> -> vector<64x256xf32>
    %103 = arith.addf %97, %102 : vector<64x256xf32>
    %104 = vector.extract_strided_slice %66 {offsets = [2, 0, 0], sizes = [8, 8, 384], strides = [1, 1, 1]} : vector<10x10x384xbf16> to vector<8x8x384xbf16>
    %105 = vector.shape_cast %104 : vector<8x8x384xbf16> to vector<64x384xbf16>
    %c2_60 = arith.constant 2 : index
    %c0_61 = arith.constant 0 : index
    %c0_62 = arith.constant 0 : index
    %c0_63 = arith.constant 0 : index
    %106 = vector.load %arg8[%c2_60, %c0_61, %c0_62, %c0_63] : memref<3x3x384x256xbf16, #tpu.memory_space<vmem>>, vector<1x1x384x256xbf16>
    %107 = vector.shape_cast %106 : vector<1x1x384x256xbf16> to vector<384x256xbf16>
    %cst_64 = arith.constant dense<0.000000e+00> : vector<64x256xf32>
    %108 = tpu.matmul %105, %107, %cst_64 {dimension_numbers = #tpu.dot_dimension_numbers<[1], [0], [0], [1], [0, 0, 1, 1], [], []>} : vector<64x384xbf16>, vector<384x256xbf16>, vector<64x256xf32> -> vector<64x256xf32>
    %109 = arith.addf %103, %108 : vector<64x256xf32>
    %110 = vector.extract_strided_slice %66 {offsets = [2, 1, 0], sizes = [8, 8, 384], strides = [1, 1, 1]} : vector<10x10x384xbf16> to vector<8x8x384xbf16>
    %111 = vector.shape_cast %110 : vector<8x8x384xbf16> to vector<64x384xbf16>
    %c2_65 = arith.constant 2 : index
    %c1_66 = arith.constant 1 : index
    %c0_67 = arith.constant 0 : index
    %c0_68 = arith.constant 0 : index
    %112 = vector.load %arg8[%c2_65, %c1_66, %c0_67, %c0_68] : memref<3x3x384x256xbf16, #tpu.memory_space<vmem>>, vector<1x1x384x256xbf16>
    %113 = vector.shape_cast %112 : vector<1x1x384x256xbf16> to vector<384x256xbf16>
    %cst_69 = arith.constant dense<0.000000e+00> : vector<64x256xf32>
    %114 = tpu.matmul %111, %113, %cst_69 {dimension_numbers = #tpu.dot_dimension_numbers<[1], [0], [0], [1], [0, 0, 1, 1], [], []>} : vector<64x384xbf16>, vector<384x256xbf16>, vector<64x256xf32> -> vector<64x256xf32>
    %115 = arith.addf %109, %114 : vector<64x256xf32>
    %116 = vector.extract_strided_slice %66 {offsets = [2, 2, 0], sizes = [8, 8, 384], strides = [1, 1, 1]} : vector<10x10x384xbf16> to vector<8x8x384xbf16>
    %117 = vector.shape_cast %116 : vector<8x8x384xbf16> to vector<64x384xbf16>
    %c2_70 = arith.constant 2 : index
    %c2_71 = arith.constant 2 : index
    %c0_72 = arith.constant 0 : index
    %c0_73 = arith.constant 0 : index
    %118 = vector.load %arg8[%c2_70, %c2_71, %c0_72, %c0_73] : memref<3x3x384x256xbf16, #tpu.memory_space<vmem>>, vector<1x1x384x256xbf16>
    %119 = vector.shape_cast %118 : vector<1x1x384x256xbf16> to vector<384x256xbf16>
    %cst_74 = arith.constant dense<0.000000e+00> : vector<64x256xf32>
    %120 = tpu.matmul %117, %119, %cst_74 {dimension_numbers = #tpu.dot_dimension_numbers<[1], [0], [0], [1], [0, 0, 1, 1], [], []>} : vector<64x384xbf16>, vector<384x256xbf16>, vector<64x256xf32> -> vector<64x256xf32>
    %121 = arith.addf %115, %120 : vector<64x256xf32>
    %c0_75 = arith.constant 0 : index
    %c0_76 = arith.constant 0 : index
    %122 = vector.load %arg9[%c0_75, %c0_76] : memref<1x256xf32, #tpu.memory_space<vmem>>, vector<1x256xf32>
    %123 = vector.broadcast %122 : vector<1x256xf32> to vector<64x256xf32>
    %124 = arith.addf %121, %123 : vector<64x256xf32>
    %125 = vector.shape_cast %124 : vector<64x256xf32> to vector<8x8x256xf32>
    %c0_77 = arith.constant 0 : index
    %c0_78 = arith.constant 0 : index
    %c0_79 = arith.constant 0 : index
    %c0_80 = arith.constant 0 : index
    %c0_81 = arith.constant 0 : index
    %126 = vector.load %arg10[%c0_77, %c0_78, %c0_79, %c0_80, %c0_81] : memref<1x1x8x8x256xf32, #tpu.memory_space<vmem>>, vector<1x1x8x8x256xf32>
    %127 = vector.shape_cast %126 : vector<1x1x8x8x256xf32> to vector<8x8x256xf32>
    %128 = vector.shape_cast %125 : vector<8x8x256xf32> to vector<1x1x8x8x256xf32>
    tpu.vector_store %arg10[%c0_77, %c0_78, %c0_79, %c0_80, %c0_81], %128 {strides = array<i32>} : memref<1x1x8x8x256xf32, #tpu.memory_space<vmem>>, vector<1x1x8x8x256xf32>,
    %cst_82 = arith.constant dense<0.000000e+00> : vector<256xf32>
    %129 = vector.multi_reduction <add>, %124, %cst_82 [0] : vector<64x256xf32> to vector<256xf32>
    %130 = vector.shape_cast %129 : vector<256xf32> to vector<1x256xf32>
    %131 = arith.mulf %124, %124 : vector<64x256xf32>
    %cst_83 = arith.constant dense<0.000000e+00> : vector<256xf32>
    %132 = vector.multi_reduction <add>, %131, %cst_83 [0] : vector<64x256xf32> to vector<256xf32>
    %133 = vector.shape_cast %132 : vector<256xf32> to vector<1x256xf32>
    %cst_84 = arith.constant 0.000000e+00 : f32
    %134 = vector.broadcast %cst_84 : f32 to vector<6x256xf32>
    %135 = tpu.concatenate %130, %133, %134 in 0 : vector<1x256xf32>, vector<1x256xf32>, vector<6x256xf32> -> vector<8x256xf32>
    %c0_85 = arith.constant 0 : index
    %c0_86 = arith.constant 0 : index
    %c0_87 = arith.constant 0 : index
    %c0_88 = arith.constant 0 : index
    %136 = vector.load %arg11[%c0_85, %c0_86, %c0_87, %c0_88] : memref<1x1x8x256xf32, #tpu.memory_space<vmem>>, vector<1x1x8x256xf32>
    %137 = vector.shape_cast %136 : vector<1x1x8x256xf32> to vector<8x256xf32>
    %138 = vector.shape_cast %135 : vector<8x256xf32> to vector<1x1x8x256xf32>
    tpu.vector_store %arg11[%c0_85, %c0_86, %c0_87, %c0_88], %138 {strides = array<i32>} : memref<1x1x8x256xf32, #tpu.memory_space<vmem>>, vector<1x1x8x256xf32>,
    return
  }
  func.func @transform_0(%arg0: i32, %arg1: i32) -> (i32, i32, i32, i32, i32) {
    %c0_i32 = arith.constant 0 : i32
    %0 = arith.addi %arg1, %c0_i32 : i32
    %c0_i32_0 = arith.constant 0 : i32
    %c0_i32_1 = arith.constant 0 : i32
    %c0_i32_2 = arith.constant 0 : i32
    %c0_i32_3 = arith.constant 0 : i32
    return %arg0, %0, %c0_i32_0, %c0_i32_1, %c0_i32_2 : i32, i32, i32, i32, i32
  }
  func.func @transform_1(%arg0: i32, %arg1: i32) -> (i32, i32, i32, i32, i32) {
    %c1_i32 = arith.constant 1 : i32
    %0 = arith.addi %arg1, %c1_i32 : i32
    %c0_i32 = arith.constant 0 : i32
    %c0_i32_0 = arith.constant 0 : i32
    %c0_i32_1 = arith.constant 0 : i32
    %c0_i32_2 = arith.constant 0 : i32
    return %arg0, %0, %c0_i32, %c0_i32_0, %c0_i32_1 : i32, i32, i32, i32, i32
  }
  func.func @transform_2(%arg0: i32, %arg1: i32) -> (i32, i32, i32, i32, i32) {
    %c2_i32 = arith.constant 2 : i32
    %0 = arith.addi %arg1, %c2_i32 : i32
    %c0_i32 = arith.constant 0 : i32
    %c0_i32_0 = arith.constant 0 : i32
    %c0_i32_1 = arith.constant 0 : i32
    %c0_i32_2 = arith.constant 0 : i32
    return %arg0, %0, %c0_i32, %c0_i32_0, %c0_i32_1 : i32, i32, i32, i32, i32
  }
  func.func @transform_3(%arg0: i32, %arg1: i32) -> (i32, i32, i32) {
    %c0_i32 = arith.constant 0 : i32
    %c0_i32_0 = arith.constant 0 : i32
    %c0_i32_1 = arith.constant 0 : i32
    %c0_i32_2 = arith.constant 0 : i32
    return %c0_i32, %c0_i32_0, %c0_i32_1 : i32, i32, i32
  }
  func.func @transform_4(%arg0: i32, %arg1: i32) -> (i32, i32) {
    %c0_i32 = arith.constant 0 : i32
    %c0_i32_0 = arith.constant 0 : i32
    %c0_i32_1 = arith.constant 0 : i32
    return %c0_i32, %c0_i32_0 : i32, i32
  }
  func.func @transform_5(%arg0: i32, %arg1: i32) -> (i32, i32) {
    %c0_i32 = arith.constant 0 : i32
    %c0_i32_0 = arith.constant 0 : i32
    %c0_i32_1 = arith.constant 0 : i32
    return %c0_i32, %c0_i32_0 : i32, i32
  }
  func.func @transform_6(%arg0: i32, %arg1: i32) -> (i32, i32, i32, i32) {
    %c0_i32 = arith.constant 0 : i32
    %c0_i32_0 = arith.constant 0 : i32
    %c0_i32_1 = arith.constant 0 : i32
    %c0_i32_2 = arith.constant 0 : i32
    %c0_i32_3 = arith.constant 0 : i32
    return %c0_i32, %c0_i32_0, %c0_i32_1, %c0_i32_2 : i32, i32, i32, i32
  }
  func.func @transform_7(%arg0: i32, %arg1: i32) -> (i32, i32) {
    %c0_i32 = arith.constant 0 : i32
    %c0_i32_0 = arith.constant 0 : i32
    %c0_i32_1 = arith.constant 0 : i32
    return %c0_i32, %c0_i32_0 : i32, i32
  }
  func.func @transform_8(%arg0: i32, %arg1: i32) -> (i32, i32, i32, i32, i32) {
    %c0_i32 = arith.constant 0 : i32
    %c0_i32_0 = arith.constant 0 : i32
    %c0_i32_1 = arith.constant 0 : i32
    %c0_i32_2 = arith.constant 0 : i32
    return %arg0, %arg1, %c0_i32, %c0_i32_0, %c0_i32_1 : i32, i32, i32, i32, i32
  }
  func.func @transform_9(%arg0: i32, %arg1: i32) -> (i32, i32, i32, i32) {
    %c0_i32 = arith.constant 0 : i32
    %c0_i32_0 = arith.constant 0 : i32
    %c0_i32_1 = arith.constant 0 : i32
    return %arg0, %arg1, %c0_i32, %c0_i32_0 : i32, i32, i32, i32
  }
}

module attributes {stable_mosaic.version = 11 : i64} {
  func.func @_bn2_res_conv3_kernel(%arg0: i32, %arg1: memref<256x256xf32, #tpu.memory_space<vmem>>, %arg2: memref<256x256xf32, #tpu.memory_space<vmem>>, %arg3: memref<1x256xf32, #tpu.memory_space<vmem>>, %arg4: memref<1x256xf32, #tpu.memory_space<vmem>>, %arg5: memref<256x256xbf16, #tpu.memory_space<vmem>>, %arg6: memref<1x256xf32, #tpu.memory_space<vmem>>, %arg7: memref<256x256xf32, #tpu.memory_space<vmem>>) attributes {dimension_semantics = [#tpu.dimension_semantics<parallel>], iteration_bounds = array<i64: 4>, scalar_prefetch = 0 : i64, scratch_operands = 0 : i64, tpu.core_type = #tpu.core_type<tc>, window_params = [{transform_indices = @transform_0, window_bounds = array<i64: 256, 256>}, {transform_indices = @transform_1, window_bounds = array<i64: 256, 256>}, {pipeline_mode = #tpu.pipeline_mode<synchronous>, transform_indices = @transform_2, window_bounds = array<i64: 1, 256>}, {pipeline_mode = #tpu.pipeline_mode<synchronous>, transform_indices = @transform_3, window_bounds = array<i64: 1, 256>}, {pipeline_mode = #tpu.pipeline_mode<synchronous>, transform_indices = @transform_4, window_bounds = array<i64: 256, 256>}, {pipeline_mode = #tpu.pipeline_mode<synchronous>, transform_indices = @transform_5, window_bounds = array<i64: 1, 256>}, {transform_indices = @transform_6, window_bounds = array<i64: 256, 256>}]} {
    %c0 = arith.constant 0 : index
    %c0_0 = arith.constant 0 : index
    %0 = vector.load %arg2[%c0, %c0_0] : memref<256x256xf32, #tpu.memory_space<vmem>>, vector<256x256xf32>
    %c0_1 = arith.constant 0 : index
    %c0_2 = arith.constant 0 : index
    %1 = vector.load %arg1[%c0_1, %c0_2] : memref<256x256xf32, #tpu.memory_space<vmem>>, vector<256x256xf32>
    %c0_3 = arith.constant 0 : index
    %c0_4 = arith.constant 0 : index
    %2 = vector.load %arg3[%c0_3, %c0_4] : memref<1x256xf32, #tpu.memory_space<vmem>>, vector<1x256xf32>
    %3 = vector.broadcast %2 : vector<1x256xf32> to vector<256x256xf32>
    %4 = arith.mulf %1, %3 : vector<256x256xf32>
    %c0_5 = arith.constant 0 : index
    %c0_6 = arith.constant 0 : index
    %5 = vector.load %arg4[%c0_5, %c0_6] : memref<1x256xf32, #tpu.memory_space<vmem>>, vector<1x256xf32>
    %6 = vector.broadcast %5 : vector<1x256xf32> to vector<256x256xf32>
    %7 = arith.addf %4, %6 : vector<256x256xf32>
    %cst = arith.constant 0.000000e+00 : f32
    %8 = vector.broadcast %cst : f32 to vector<256x256xf32>
    %9 = arith.maximumf %7, %8 : vector<256x256xf32>
    %10 = arith.addf %0, %9 : vector<256x256xf32>
    %11 = arith.truncf %10 : vector<256x256xf32> to vector<256x256xbf16>
    %c0_7 = arith.constant 0 : index
    %c0_8 = arith.constant 0 : index
    %12 = vector.load %arg5[%c0_7, %c0_8] : memref<256x256xbf16, #tpu.memory_space<vmem>>, vector<256x256xbf16>
    %cst_9 = arith.constant dense<0.000000e+00> : vector<256x256xf32>
    %13 = tpu.matmul %11, %12, %cst_9 {dimension_numbers = #tpu.dot_dimension_numbers<[1], [0], [0], [1], [0, 0, 1, 1], [], []>} : vector<256x256xbf16>, vector<256x256xbf16>, vector<256x256xf32> -> vector<256x256xf32>
    %c0_10 = arith.constant 0 : index
    %c0_11 = arith.constant 0 : index
    %14 = vector.load %arg6[%c0_10, %c0_11] : memref<1x256xf32, #tpu.memory_space<vmem>>, vector<1x256xf32>
    %15 = vector.broadcast %14 : vector<1x256xf32> to vector<256x256xf32>
    %16 = arith.addf %13, %15 : vector<256x256xf32>
    %c0_12 = arith.constant 0 : index
    %c0_13 = arith.constant 0 : index
    %17 = vector.load %arg7[%c0_12, %c0_13] : memref<256x256xf32, #tpu.memory_space<vmem>>, vector<256x256xf32>
    tpu.vector_store %arg7[%c0_12, %c0_13], %16 {strides = array<i32>} : memref<256x256xf32, #tpu.memory_space<vmem>>, vector<256x256xf32>,
    return
  }
  func.func @transform_0(%arg0: i32) -> (i32, i32) {
    %c0_i32 = arith.constant 0 : i32
    %c0_i32_0 = arith.constant 0 : i32
    return %arg0, %c0_i32 : i32, i32
  }
  func.func @transform_1(%arg0: i32) -> (i32, i32) {
    %c0_i32 = arith.constant 0 : i32
    %c0_i32_0 = arith.constant 0 : i32
    return %arg0, %c0_i32 : i32, i32
  }
  func.func @transform_2(%arg0: i32) -> (i32, i32) {
    %c0_i32 = arith.constant 0 : i32
    %c0_i32_0 = arith.constant 0 : i32
    %c0_i32_1 = arith.constant 0 : i32
    return %c0_i32, %c0_i32_0 : i32, i32
  }
  func.func @transform_3(%arg0: i32) -> (i32, i32) {
    %c0_i32 = arith.constant 0 : i32
    %c0_i32_0 = arith.constant 0 : i32
    %c0_i32_1 = arith.constant 0 : i32
    return %c0_i32, %c0_i32_0 : i32, i32
  }
  func.func @transform_4(%arg0: i32) -> (i32, i32) {
    %c0_i32 = arith.constant 0 : i32
    %c0_i32_0 = arith.constant 0 : i32
    %c0_i32_1 = arith.constant 0 : i32
    return %c0_i32, %c0_i32_0 : i32, i32
  }
  func.func @transform_5(%arg0: i32) -> (i32, i32) {
    %c0_i32 = arith.constant 0 : i32
    %c0_i32_0 = arith.constant 0 : i32
    %c0_i32_1 = arith.constant 0 : i32
    return %c0_i32, %c0_i32_0 : i32, i32
  }
  func.func @transform_6(%arg0: i32) -> (i32, i32) {
    %c0_i32 = arith.constant 0 : i32
    %c0_i32_0 = arith.constant 0 : i32
    return %arg0, %c0_i32 : i32, i32
  }
}

</mosaic_0001>

<llo_original>
// kernel: resnet3d_block.3
$region0: #{resnet3d_block.3}
  #allocation0 [shape = 'u32[]', space=smem, size = 0x4, offset = 0x4, fixed_abs, tag = 'smem constant byte address 0x4 - core index']
  #allocation1 [shape = 'u32[144,128]{1,0:T(1,128)}', space=vmem, size = 0x12000, scoped, tag = 'internal scratch']
  %s0 = inlined_call_operand.hbm [shape: f32[1024,256], index: 0, kind: input, shape index: {}]
  %s1 = inlined_call_operand.vmem [shape: bf16[256,128], index: 1, kind: input, shape index: {}]
  %s2 = inlined_call_operand.hbm [shape: f32[1,128], index: 2, kind: input, shape index: {}]
  %s3 = inlined_call_operand.vmem [shape: f32[1024,128], index: 3, kind: output, shape index: {0}]
  %s4 = inlined_call_operand.vmem [shape: f32[4,8,128], index: 4, kind: output, shape index: {1}]
  %5 = xla_tuple %s3, %s4
  %s6 = sld [smem:[#allocation0]]
  $region61: #{resnet3d_block.3} parent=0
    _
  %s8 = ssub.s32 1, %s6
  %s9 = scalar_select 0, %s8, %s6
  $region1: #{resnet3d_block.3} parent=0
    #allocation2 [shape = 'u8[524288]{0}', space=vmem, size = 0x80000, scoped, tag = 'input window, operand 0']
    #allocation3 [shape = 's32[2]{0}', space=sflag, size = 0x8, scoped, tag = 'scoped memory for resnet3d_block.3']
    #allocation4 [shape = 'u8[512]{0}', space=vmem, size = 0x400, scoped, tag = 'input window, operand 2, single buffered']
    #allocation5 [shape = 's32[1]{0}', space=sflag, size = 0x4, scoped, tag = 'scoped memory for resnet3d_block.3']
    %10 = vsyncpa [#allocation3], 0
    %s11 = scalar_lea.sflag [#allocation3], 1
    %12 = vsyncpa %s11, 0
    %13 = vsyncpa [#allocation5], 0
    loop: start=0, step=1, limit=6
    $region2: #{resnet3d_block.3} parent=1 // loop_pre_header
      _
    $region3: #{resnet3d_block.3} parent=1 // loop_header
      %s15 = sphi 0, %s19
      %p16 = scmp.ge.s32.totalorder %s15, 6
      %s25 = sphi 0, %s27
      %s28 = sphi 0, %s25
      %s29 = sphi 0, %s28
      %s45 = sphi 0, %s29
      %s49 = sphi 0, %s49
      %s51 = sphi 0, %s49
      %s52 = sphi 0, %s51
      %s66 = sphi 0, %s52
      %s70 = sphi 0, %s70
      %s72 = sphi 0, %s70
      %s73 = sphi 0, %s72
      %s87 = sphi 0, %s73
      %s93 = sphi 0, %s95
      %s96 = sphi 0, %s93
      %s97 = sphi 0, %s96
      %s113 = sphi 0, %s97
      %s119 = sphi 0, %s121
      %s122 = sphi 0, %s119
      %s123 = sphi 0, %s122
      %s139 = sphi 0, %s123
    $region4: #{resnet3d_block.3} parent=1 // loop_header_branch
      %18 = sbr.rel (%p16) target = $region8
    $region5: #{resnet3d_block.3} parent=1 // loop_body
      %s20 = ssub.s32 %s15, 1
      %s21 = ssub.s32 %s15, 2
      %s22 = sadd.s32 %s15, 1
      %s23 = ssub.s32 %s15, %s22
      %p24 = scmp.eq.s32.totalorder %s23, 0
      %s26 = sadd.s32 %s25, 1
      %s27 = scalar_select %p24, %s25, %s26
      %p30 = pneg %p24
      %p31 = scmp.eq.s32.totalorder %s15, 3
      %p32 = por %p30, %p31
      %p33 = scmp.ne.s32.totalorder %s25, %s28
      %p34 = scmp.eq.s32.totalorder %s15, 0
      %p35 = por %p33, %p34
      %p36 = scmp.ne.s32.totalorder %s25, %s28
      %p37 = scmp.eq.s32.totalorder %s20, 3
      %p38 = por %p36, %p37
      %p39 = scmp.ne.s32.totalorder %s28, %s29
      %p40 = scmp.eq.s32.totalorder %s20, 0
      %p41 = por %p39, %p40
      %p42 = scmp.ne.s32.totalorder %s28, %s29
      %p43 = scmp.eq.s32.totalorder %s21, 3
      %p44 = por %p42, %p43
      %p46 = scmp.ne.s32.totalorder %s29, %s45
      %p47 = scmp.eq.s32.totalorder %s21, 0
      %p48 = por %p46, %p47
      %s50 = sadd.s32 %s49, 1
      %p53 = scmp.eq.s32.totalorder %s15, 3
      %p54 = scmp.ne.s32.totalorder %s49, %s51
      %p55 = scmp.eq.s32.totalorder %s15, 0
      %p56 = por %p54, %p55
      %p57 = scmp.ne.s32.totalorder %s49, %s51
      %p58 = scmp.eq.s32.totalorder %s20, 3
      %p59 = por %p57, %p58
      %p60 = scmp.ne.s32.totalorder %s51, %s52
      %p61 = scmp.eq.s32.totalorder %s20, 0
      %p62 = por %p60, %p61
      %p63 = scmp.ne.s32.totalorder %s51, %s52
      %p64 = scmp.eq.s32.totalorder %s21, 3
      %p65 = por %p63, %p64
      %p67 = scmp.ne.s32.totalorder %s52, %s66
      %p68 = scmp.eq.s32.totalorder %s21, 0
      %p69 = por %p67, %p68
      %s71 = sadd.s32 %s70, 1
      %p74 = scmp.eq.s32.totalorder %s15, 3
      %p75 = scmp.ne.s32.totalorder %s70, %s72
      %p76 = scmp.eq.s32.totalorder %s15, 0
      %p77 = por %p75, %p76
      %p78 = scmp.ne.s32.totalorder %s70, %s72
      %p79 = scmp.eq.s32.totalorder %s20, 3
      %p80 = por %p78, %p79
      %p81 = scmp.ne.s32.totalorder %s72, %s73
      %p82 = scmp.eq.s32.totalorder %s20, 0
      %p83 = por %p81, %p82
      %p84 = scmp.ne.s32.totalorder %s72, %s73
      %p85 = scmp.eq.s32.totalorder %s21, 3
      %p86 = por %p84, %p85
      %p88 = scmp.ne.s32.totalorder %s73, %s87
      %p89 = scmp.eq.s32.totalorder %s21, 0
      %p90 = por %p88, %p89
      %s91 = ssub.s32 %s15, %s22
      %p92 = scmp.eq.s32.totalorder %s91, 0
      %s94 = sadd.s32 %s93, 1
      %s95 = scalar_select %p92, %s93, %s94
      %p98 = pneg %p92
      %p99 = scmp.eq.s32.totalorder %s15, 3
      %p100 = por %p98, %p99
      %p101 = scmp.ne.s32.totalorder %s93, %s96
      %p102 = scmp.eq.s32.totalorder %s15, 0
      %p103 = por %p101, %p102
      %p104 = scmp.ne.s32.totalorder %s93, %s96
      %p105 = scmp.eq.s32.totalorder %s20, 3
      %p106 = por %p104, %p105
      %p107 = scmp.ne.s32.totalorder %s96, %s97
      %p108 = scmp.eq.s32.totalorder %s20, 0
      %p109 = por %p107, %p108
      %p110 = scmp.ne.s32.totalorder %s96, %s97
      %p111 = scmp.eq.s32.totalorder %s21, 3
      %p112 = por %p110, %p111
      %p114 = scmp.ne.s32.totalorder %s97, %s113
      %p115 = scmp.eq.s32.totalorder %s21, 0
      %p116 = por %p114, %p115
      %s117 = ssub.s32 %s15, %s22
      %p118 = scmp.eq.s32.totalorder %s117, 0
      %s120 = sadd.s32 %s119, 1
      %s121 = scalar_select %p118, %s119, %s120
      %p124 = pneg %p118
      %p125 = scmp.eq.s32.totalorder %s15, 3
      %p126 = por %p124, %p125
      %p127 = scmp.ne.s32.totalorder %s119, %s122
      %p128 = scmp.eq.s32.totalorder %s15, 0
      %p129 = por %p127, %p128
      %p130 = scmp.ne.s32.totalorder %s119, %s122
      %p131 = scmp.eq.s32.totalorder %s20, 3
      %p132 = por %p130, %p131
      %p133 = scmp.ne.s32.totalorder %s122, %s123
      %p134 = scmp.eq.s32.totalorder %s20, 0
      %p135 = por %p133, %p134
      %p136 = scmp.ne.s32.totalorder %s122, %s123
      %p137 = scmp.eq.s32.totalorder %s21, 3
      %p138 = por %p136, %p137
      %p140 = scmp.ne.s32.totalorder %s123, %s139
      %p141 = scmp.eq.s32.totalorder %s21, 0
      %p142 = por %p140, %p141
      %p143 = scmp.le.s32.totalorder 1, %s15
      %p144 = scmp.lt.s32.totalorder %s15, 5
      %p145 = pnand %p143, %p144
      %p146 = pneg %p145
      // Predicated region
      $region9: #{resnet3d_block.3} parent=5 // pred_check
        _
      $region10: #{resnet3d_block.3} parent=5 // pred_check_branch
        %148 = sbr.rel (%p145) target = $region12
      $region11: #{resnet3d_block.3} parent=5 // pred_region
        %s149 = ssub.s32 %s15, 1
        // Predicated region
        $region13: #{resnet3d_block.3} parent=11 // pred_check
          %p150 = pneg %p62
        $region14: #{resnet3d_block.3} parent=11 // pred_check_branch
          %152 = sbr.rel (%p150) target = $region16
        $region15: #{resnet3d_block.3} parent=11 // pred_region
          _
        $region16: #{resnet3d_block.3} parent=11 // pred_fallthru
          _
        // Predicated region
        $region17: #{resnet3d_block.3} parent=11 // pred_check
          %p153 = pneg %p83
        $region18: #{resnet3d_block.3} parent=11 // pred_check_branch
          %155 = sbr.rel (%p153) target = $region20
        $region19: #{resnet3d_block.3} parent=11 // pred_region
          %s157 = ssub.s32 16, 16
          %158 = vsyncadd [#allocation5], %s157
          %s160 = sshll.u32 [#allocation4], 4
          %s161 = int_to_ptr.vmem [resolvable:$true] %s160
          %163 = dma.hbm_to_vmem [thread:$0]  %s2, 16, %s161, [#allocation5]
        $region20: #{resnet3d_block.3} parent=11 // pred_fallthru
          _
      $region12: #{resnet3d_block.3} parent=5 // pred_fallthru
        _
      %p164 = scmp.lt.s32.totalorder %s15, 4
      // Predicated region
      $region21: #{resnet3d_block.3} parent=5 // pred_check
        %p165 = pneg %p164
      $region22: #{resnet3d_block.3} parent=5 // pred_check_branch
        %167 = sbr.rel (%p165) target = $region24
      $region23: #{resnet3d_block.3} parent=5 // pred_region
        // Predicated region
        $region25: #{resnet3d_block.3} parent=23 // pred_check
          %p168 = pneg %p35
        $region26: #{resnet3d_block.3} parent=23 // pred_check_branch
          %170 = sbr.rel (%p168) target = $region28
        $region27: #{resnet3d_block.3} parent=23 // pred_region
          %s171 = sand.u32 %s25, 1
          %s172 = scalar_lea.sflag [#allocation3], %s171
          %s173 = sand.u32 %s25, 1
          %s174 = smul.addr %s173, 512
          %s175 = scalar_lea.vmem [#allocation2], %s174
          %s176 = smul.u32 32, %s15
          %s178 = ssub.s32 8192, 8192
          %179 = vsyncadd %s172, %s178
          %s180 = smul.addr %s176, 2
          %s181 = smul.addr %s180, 128
          %s182 = scalar_lea.hbm %s0, %s181
          %s183 = sshll.u32 %s175, 4
          %s184 = int_to_ptr.vmem [resolvable:$true] %s183
          %189 = dma.hbm_to_vmem [thread:$0]  %s182, 8192, %s184, %s172, 256, 256, 16
        $region28: #{resnet3d_block.3} parent=23 // pred_fallthru
          _
      $region24: #{resnet3d_block.3} parent=5 // pred_fallthru
        _
      %p190 = scmp.le.s32.totalorder 1, %s15
      %p191 = scmp.lt.s32.totalorder %s15, 5
      %p192 = pnand %p190, %p191
      %p193 = pneg %p192
      // Predicated region
      $region29: #{resnet3d_block.3} parent=5 // pred_check
        _
      $region30: #{resnet3d_block.3} parent=5 // pred_check_branch
        %195 = sbr.rel (%p192) target = $region32
      $region31: #{resnet3d_block.3} parent=5 // pred_region
        %s196 = ssub.s32 %s15, 1
        %s197 = sand.u32 %s28, 1
        %s198 = scalar_lea.sflag [#allocation3], %s197
        %s199 = sand.u32 %s28, 1
        %s200 = smul.addr %s199, 512
        %s201 = scalar_lea.vmem [#allocation2], %s200
        // Predicated region
        $region33: #{resnet3d_block.3} parent=31 // pred_check
          %p202 = pneg %p41
        $region34: #{resnet3d_block.3} parent=31 // pred_check_branch
          %204 = sbr.rel (%p202) target = $region36
        $region35: #{resnet3d_block.3} parent=31 // pred_region
          %205 = dma.done %s198, 8192
        $region36: #{resnet3d_block.3} parent=31 // pred_fallthru
          _
        // Predicated region
        $region37: #{resnet3d_block.3} parent=31 // pred_check
          %p206 = pneg %p83
        $region38: #{resnet3d_block.3} parent=31 // pred_check_branch
          %208 = sbr.rel (%p206) target = $region40
        $region39: #{resnet3d_block.3} parent=31 // pred_region
          %209 = dma.done [#allocation5], 16
        $region40: #{resnet3d_block.3} parent=31 // pred_fallthru
          _
        %s210 = sand.u32 %s28, 1
        %s211 = scalar_lea.sflag [#allocation3], %s210
        %s212 = sand.u32 %s28, 1
        %s213 = smul.addr %s212, 512
        %s214 = scalar_lea.vmem [#allocation2], %s213
        %p215 = pneg %p41
        %p216 = pneg %p38
        %p217 = pneg %p62
        %p218 = pneg %p59
        %p219 = pneg %p83
        %p220 = pneg %p80
        %p221 = pneg %p109
        %p222 = pneg %p106
        %s223 = smul.u32 32, %s20
        %p224 = scmp.lt.s32.totalorder %s223, 127
        %s225 = scalar_select %p224, %s223, 127
        %s226 = smul.addr %s225, 8
        %s227 = scalar_lea.vmem %s3, %s226
        %p228 = pneg %p135
        %p229 = pneg %p132
        %p230 = scmp.lt.s32.totalorder %s20, 3
        %s231 = scalar_select %p230, %s20, 3
        %s232 = smul.addr %s231, 8
        %s233 = scalar_lea.vmem %s4, %s232
        %s234 = smul.u32 32, %s20
        %s235 = smul.u32 32, %s20
        %p236 = scmp.lt.s32.totalorder %s235, 127
        %s237 = scalar_select %p236, %s235, 127
        %s238 = smul.addr %s237, 8
        %s239 = scalar_lea.vmem %s3, %s238
        %s240 = smul.u32 32, %s20
        %p241 = scmp.lt.s32.totalorder %s20, 3
        %s242 = scalar_select %p241, %s20, 3
        %s243 = smul.addr %s242, 8
        %s244 = scalar_lea.vmem %s4, %s243
        %v246 = vld [vmem:[%s201] sm:$0xff]
        %v247 = vld [vmem:[%s201 + $0x8] sm:$0xff]
        %v248 = vld [vmem:[%s201 + $0x10] sm:$0xff]
        %v249 = vld [vmem:[%s201 + $0x18] sm:$0xff]
        %v250 = vld [vmem:[%s201 + $0x20] sm:$0xff]
        %v251 = vld [vmem:[%s201 + $0x28] sm:$0xff]
        %v252 = vld [vmem:[%s201 + $0x30] sm:$0xff]
        %v253 = vld [vmem:[%s201 + $0x38] sm:$0xff]
        %v254 = vld [vmem:[%s201 + $0x40] sm:$0xff]
        %v255 = vld [vmem:[%s201 + $0x48] sm:$0xff]
        %v256 = vld [vmem:[%s201 + $0x50] sm:$0xff]
        %v257 = vld [vmem:[%s201 + $0x58] sm:$0xff]
        %v258 = vld [vmem:[%s201 + $0x60] sm:$0xff]
        %v259 = vld [vmem:[%s201 + $0x68] sm:$0xff]
        %v260 = vld [vmem:[%s201 + $0x70] sm:$0xff]
        %v261 = vld [vmem:[%s201 + $0x78] sm:$0xff]
        %v262 = vld [vmem:[%s201 + $0x80] sm:$0xff]
        %v263 = vld [vmem:[%s201 + $0x88] sm:$0xff]
        %v264 = vld [vmem:[%s201 + $0x90] sm:$0xff]
        %v265 = vld [vmem:[%s201 + $0x98] sm:$0xff]
        %v266 = vld [vmem:[%s201 + $0xa0] sm:$0xff]
        %v267 = vld [vmem:[%s201 + $0xa8] sm:$0xff]
        %v268 = vld [vmem:[%s201 + $0xb0] sm:$0xff]
        %v269 = vld [vmem:[%s201 + $0xb8] sm:$0xff]
        %v270 = vld [vmem:[%s201 + $0xc0] sm:$0xff]
        %v271 = vld [vmem:[%s201 + $0xc8] sm:$0xff]
        %v272 = vld [vmem:[%s201 + $0xd0] sm:$0xff]
        %v273 = vld [vmem:[%s201 + $0xd8] sm:$0xff]
        %v274 = vld [vmem:[%s201 + $0xe0] sm:$0xff]
        %v275 = vld [vmem:[%s201 + $0xe8] sm:$0xff]
        %v276 = vld [vmem:[%s201 + $0xf0] sm:$0xff]
        %v277 = vld [vmem:[%s201 + $0xf8] sm:$0xff]
        %v278 = vld [vmem:[%s201 + $0x100] sm:$0xff]
        %v279 = vld [vmem:[%s201 + $0x108] sm:$0xff]
        %v280 = vld [vmem:[%s201 + $0x110] sm:$0xff]
        %v281 = vld [vmem:[%s201 + $0x118] sm:$0xff]
        %v282 = vld [vmem:[%s201 + $0x120] sm:$0xff]
        %v283 = vld [vmem:[%s201 + $0x128] sm:$0xff]
        %v284 = vld [vmem:[%s201 + $0x130] sm:$0xff]
        %v285 = vld [vmem:[%s201 + $0x138] sm:$0xff]
        %v286 = vld [vmem:[%s201 + $0x140] sm:$0xff]
        %v287 = vld [vmem:[%s201 + $0x148] sm:$0xff]
        %v288 = vld [vmem:[%s201 + $0x150] sm:$0xff]
        %v289 = vld [vmem:[%s201 + $0x158] sm:$0xff]
        %v290 = vld [vmem:[%s201 + $0x160] sm:$0xff]
        %v291 = vld [vmem:[%s201 + $0x168] sm:$0xff]
        %v292 = vld [vmem:[%s201 + $0x170] sm:$0xff]
        %v293 = vld [vmem:[%s201 + $0x178] sm:$0xff]
        %v294 = vld [vmem:[%s201 + $0x180] sm:$0xff]
        %v295 = vld [vmem:[%s201 + $0x188] sm:$0xff]
        %v296 = vld [vmem:[%s201 + $0x190] sm:$0xff]
        %v297 = vld [vmem:[%s201 + $0x198] sm:$0xff]
        %v298 = vld [vmem:[%s201 + $0x1a0] sm:$0xff]
        %v299 = vld [vmem:[%s201 + $0x1a8] sm:$0xff]
        %v300 = vld [vmem:[%s201 + $0x1b0] sm:$0xff]
        %v301 = vld [vmem:[%s201 + $0x1b8] sm:$0xff]
        %v302 = vld [vmem:[%s201 + $0x1c0] sm:$0xff]
        %v303 = vld [vmem:[%s201 + $0x1c8] sm:$0xff]
        %v304 = vld [vmem:[%s201 + $0x1d0] sm:$0xff]
        %v305 = vld [vmem:[%s201 + $0x1d8] sm:$0xff]
        %v306 = vld [vmem:[%s201 + $0x1e0] sm:$0xff]
        %v307 = vld [vmem:[%s201 + $0x1e8] sm:$0xff]
        %v308 = vld [vmem:[%s201 + $0x1f0] sm:$0xff]
        %v309 = vld [vmem:[%s201 + $0x1f8] sm:$0xff]
        %v310 = vpack.c.bf16 %v248, %v246
        %v311 = vpack.c.bf16 %v249, %v247
        %v312 = vpack.c.bf16 %v252, %v250
        %v313 = vpack.c.bf16 %v253, %v251
        %v314 = vpack.c.bf16 %v256, %v254
        %v315 = vpack.c.bf16 %v257, %v255
        %v316 = vpack.c.bf16 %v260, %v258
        %v317 = vpack.c.bf16 %v261, %v259
        %v318 = vpack.c.bf16 %v264, %v262
        %v319 = vpack.c.bf16 %v265, %v263
        %v320 = vpack.c.bf16 %v268, %v266
        %v321 = vpack.c.bf16 %v269, %v267
        %v322 = vpack.c.bf16 %v272, %v270
        %v323 = vpack.c.bf16 %v273, %v271
        %v324 = vpack.c.bf16 %v276, %v274
        %v325 = vpack.c.bf16 %v277, %v275
        %v326 = vpack.c.bf16 %v280, %v278
        %v327 = vpack.c.bf16 %v281, %v279
        %v328 = vpack.c.bf16 %v284, %v282
        %v329 = vpack.c.bf16 %v285, %v283
        %v330 = vpack.c.bf16 %v288, %v286
        %v331 = vpack.c.bf16 %v289, %v287
        %v332 = vpack.c.bf16 %v292, %v290
        %v333 = vpack.c.bf16 %v293, %v291
        %v334 = vpack.c.bf16 %v296, %v294
        %v335 = vpack.c.bf16 %v297, %v295
        %v336 = vpack.c.bf16 %v300, %v298
        %v337 = vpack.c.bf16 %v301, %v299
        %v338 = vpack.c.bf16 %v304, %v302
        %v339 = vpack.c.bf16 %v305, %v303
        %v340 = vpack.c.bf16 %v308, %v306
        %v341 = vpack.c.bf16 %v309, %v307
        %v342 = vld [vmem:[%s1] sm:$0xf]
        %v343 = vld [vmem:[%s1 + $0x4] sm:$0xf]
        %v344 = vld [vmem:[%s1 + $0x8] sm:$0xf]
        %v345 = vld [vmem:[%s1 + $0xc] sm:$0xf]
        %v346 = vld [vmem:[%s1 + $0x10] sm:$0xf]
        %v347 = vld [vmem:[%s1 + $0x14] sm:$0xf]
        %v348 = vld [vmem:[%s1 + $0x18] sm:$0xf]
        %v349 = vld [vmem:[%s1 + $0x1c] sm:$0xf]
        %v350 = vld [vmem:[%s1 + $0x20] sm:$0xf]
        %v351 = vld [vmem:[%s1 + $0x24] sm:$0xf]
        %v352 = vld [vmem:[%s1 + $0x28] sm:$0xf]
        %v353 = vld [vmem:[%s1 + $0x2c] sm:$0xf]
        %v354 = vld [vmem:[%s1 + $0x30] sm:$0xf]
        %v355 = vld [vmem:[%s1 + $0x34] sm:$0xf]
        %v356 = vld [vmem:[%s1 + $0x38] sm:$0xf]
        %v357 = vld [vmem:[%s1 + $0x3c] sm:$0xf]
        %v358 = vld [vmem:[%s1 + $0x40] sm:$0xf]
        %v359 = vld [vmem:[%s1 + $0x44] sm:$0xf]
        %v360 = vld [vmem:[%s1 + $0x48] sm:$0xf]
        %v361 = vld [vmem:[%s1 + $0x4c] sm:$0xf]
        %v362 = vld [vmem:[%s1 + $0x50] sm:$0xf]
        %v363 = vld [vmem:[%s1 + $0x54] sm:$0xf]
        %v364 = vld [vmem:[%s1 + $0x58] sm:$0xf]
        %v365 = vld [vmem:[%s1 + $0x5c] sm:$0xf]
        %v366 = vld [vmem:[%s1 + $0x60] sm:$0xf]
        %v367 = vld [vmem:[%s1 + $0x64] sm:$0xf]
        %v368 = vld [vmem:[%s1 + $0x68] sm:$0xf]
        %v369 = vld [vmem:[%s1 + $0x6c] sm:$0xf]
        %v370 = vld [vmem:[%s1 + $0x70] sm:$0xf]
        %v371 = vld [vmem:[%s1 + $0x74] sm:$0xf]
        %v372 = vld [vmem:[%s1 + $0x78] sm:$0xf]
        %v373 = vld [vmem:[%s1 + $0x7c] sm:$0xf]
        %v374 = vld [vmem:[#allocation4] sm:$0x1]
        %v376 = vlaneseq
        %v377 = vshrl.u32 %v376, 7
        %v378 = vsub.s32 0, %v377
        %v379 = vrot.slane %v374, %v378
        %v413 = vunpack.c.l.b16 %v342
        %v414 = vunpack.c.l.b16 %v343
        %v415 = vunpack.c.l.b16 %v344
        %v416 = vunpack.c.l.b16 %v345
        %v417 = vunpack.c.l.b16 %v346
        %v418 = vunpack.c.l.b16 %v347
        %v419 = vunpack.c.l.b16 %v348
        %v420 = vunpack.c.l.b16 %v349
        %v421 = vunpack.c.l.b16 %v350
        %v422 = vunpack.c.l.b16 %v351
        %v423 = vunpack.c.l.b16 %v352
        %v424 = vunpack.c.l.b16 %v353
        %v425 = vunpack.c.l.b16 %v354
        %v426 = vunpack.c.l.b16 %v355
        %v427 = vunpack.c.l.b16 %v356
        %v428 = vunpack.c.l.b16 %v357
        %v429 = vunpack.c.l.b16 %v358
        %v430 = vunpack.c.l.b16 %v359
        %v431 = vunpack.c.l.b16 %v360
        %v432 = vunpack.c.l.b16 %v361
        %v433 = vunpack.c.l.b16 %v362
        %v434 = vunpack.c.l.b16 %v363
        %v435 = vunpack.c.l.b16 %v364
        %v436 = vunpack.c.l.b16 %v365
        %v437 = vunpack.c.l.b16 %v366
        %v438 = vunpack.c.l.b16 %v367
        %v439 = vunpack.c.l.b16 %v368
        %v440 = vunpack.c.l.b16 %v369
        %v441 = vunpack.c.l.b16 %v370
        %v442 = vunpack.c.l.b16 %v371
        %v443 = vunpack.c.l.b16 %v372
        %v444 = vunpack.c.l.b16 %v373
        %v445 = vpack.c.b16 %v414, %v413
        %v446 = vpack.c.b16 %v416, %v415
        %v447 = vpack.c.b16 %v418, %v417
        %v448 = vpack.c.b16 %v420, %v419
        %v449 = vpack.c.b16 %v422, %v421
        %v450 = vpack.c.b16 %v424, %v423
        %v451 = vpack.c.b16 %v426, %v425
        %v452 = vpack.c.b16 %v428, %v427
        %v453 = vpack.c.b16 %v430, %v429
        %v454 = vpack.c.b16 %v432, %v431
        %v455 = vpack.c.b16 %v434, %v433
        %v456 = vpack.c.b16 %v436, %v435
        %v457 = vpack.c.b16 %v438, %v437
        %v458 = vpack.c.b16 %v440, %v439
        %v459 = vpack.c.b16 %v442, %v441
        %v460 = vpack.c.b16 %v444, %v443
        %477 = vmatprep.subr.bf16.mxu0 0
        %478 = vmatpush1.bf16.msra.mxu0 %v452
        %479 = vmatprep.subr.bf16.mxu0 0
        %480 = vmatpush1.bf16.msra.mxu0 %v451
        %481 = vmatprep.subr.bf16.mxu0 0
        %482 = vmatpush1.bf16.msra.mxu0 %v450
        %483 = vmatprep.subr.bf16.mxu0 0
        %484 = vmatpush1.bf16.msra.mxu0 %v449
        %485 = vmatprep.subr.bf16.mxu0 0
        %486 = vmatpush1.bf16.msra.mxu0 %v448
        %487 = vmatprep.subr.bf16.mxu0 0
        %488 = vmatpush1.bf16.msra.mxu0 %v447
        %489 = vmatprep.subr.bf16.mxu0 0
        %490 = vmatpush1.bf16.msra.mxu0 %v446
        %491 = vmatprep.subr.bf16.mxu0 0
        %492 = vmatpush1.bf16.msra.mxu0 %v445
        %493 = vmatprep.subr.bf16.mxu0 0
        %494 = vmatpush2.bf16.msra.mxu0 %v460
        %495 = vmatprep.subr.bf16.mxu0 0
        %496 = vmatpush2.bf16.msra.mxu0 %v459
        %497 = vmatprep.subr.bf16.mxu0 0
        %498 = vmatpush2.bf16.msra.mxu0 %v458
        %499 = vmatprep.subr.bf16.mxu0 0
        %500 = vmatpush2.bf16.msra.mxu0 %v457
        %501 = vmatprep.subr.bf16.mxu0 0
        %502 = vmatpush2.bf16.msra.mxu0 %v456
        %503 = vmatprep.subr.bf16.mxu0 0
        %504 = vmatpush2.bf16.msra.mxu0 %v455
        %505 = vmatprep.subr.bf16.mxu0 0
        %506 = vmatpush2.bf16.msra.mxu0 %v454
        %507 = vmatprep.subr.bf16.mxu0 0
        %508 = vmatpush2.bf16.msra.mxu0 %v453
        %509 = vmatprep.mubr.bf16.mxu0 %v311
        %510 = vmatmul.mubr.bf16.gmra.mxu0 %v310
        %v511 = vpop.f32.mrf.mxu0
        %v512 = vadd.f32 %v379, %v511
        %v513 = vpop.f32.mrf.mxu0
        %v514 = vpop.f32.mrf.mxu0
        %v515 = vadd.f32 %v379, %v514
        %v516 = vpop.f32.mrf.mxu0
        %517 = vmatprep.mubr.bf16.mxu0 %v313
        %518 = vmatmul.mubr.bf16.gmra.mxu0 %v312
        %v519 = vpop.f32.mrf.mxu0
        %v520 = vadd.f32 %v379, %v519
        %v521 = vpop.f32.mrf.mxu0
        %v522 = vpop.f32.mrf.mxu0
        %v523 = vadd.f32 %v379, %v522
        %v524 = vpop.f32.mrf.mxu0
        %525 = vmatprep.mubr.bf16.mxu0 %v315
        %526 = vmatmul.mubr.bf16.gmra.mxu0 %v314
        %v527 = vpop.f32.mrf.mxu0
        %v528 = vadd.f32 %v379, %v527
        %v529 = vpop.f32.mrf.mxu0
        %v530 = vpop.f32.mrf.mxu0
        %v531 = vadd.f32 %v379, %v530
        %v532 = vpop.f32.mrf.mxu0
        %533 = vmatprep.mubr.bf16.mxu0 %v317
        %534 = vmatmul.mubr.bf16.gmra.mxu0 %v316
        %v535 = vpop.f32.mrf.mxu0
        %v536 = vadd.f32 %v379, %v535
        %v537 = vpop.f32.mrf.mxu0
        %v538 = vpop.f32.mrf.mxu0
        %v539 = vadd.f32 %v379, %v538
        %v540 = vpop.f32.mrf.mxu0
        %541 = vmatprep.mubr.bf16.mxu0 %v319
        %542 = vmatmul.mubr.bf16.gmra.mxu0 %v318
        %v543 = vpop.f32.mrf.mxu0
        %v544 = vadd.f32 %v379, %v543
        %v545 = vpop.f32.mrf.mxu0
        %v546 = vpop.f32.mrf.mxu0
        %v547 = vadd.f32 %v379, %v546
        %v548 = vpop.f32.mrf.mxu0
        %549 = vmatprep.mubr.bf16.mxu0 %v321
        %550 = vmatmul.mubr.bf16.gmra.mxu0 %v320
        %v551 = vpop.f32.mrf.mxu0
        %v552 = vadd.f32 %v379, %v551
        %v553 = vpop.f32.mrf.mxu0
        %v554 = vpop.f32.mrf.mxu0
        %v555 = vadd.f32 %v379, %v554
        %v556 = vpop.f32.mrf.mxu0
        %557 = vmatprep.mubr.bf16.mxu0 %v323
        %558 = vmatmul.mubr.bf16.gmra.mxu0 %v322
        %v559 = vpop.f32.mrf.mxu0
        %v560 = vadd.f32 %v379, %v559
        %v561 = vpop.f32.mrf.mxu0
        %v562 = vpop.f32.mrf.mxu0
        %v563 = vadd.f32 %v379, %v562
        %v564 = vpop.f32.mrf.mxu0
        %565 = vmatprep.mubr.bf16.mxu0 %v325
        %566 = vmatmul.mubr.bf16.gmra.mxu0 %v324
        %v567 = vpop.f32.mrf.mxu0
        %v568 = vadd.f32 %v379, %v567
        %v569 = vpop.f32.mrf.mxu0
        %v570 = vpop.f32.mrf.mxu0
        %v571 = vadd.f32 %v379, %v570
        %v572 = vpop.f32.mrf.mxu0
        %573 = vmatprep.mubr.bf16.mxu0 %v327
        %574 = vmatmul.mubr.bf16.gmra.mxu0 %v326
        %v575 = vpop.f32.mrf.mxu0
        %v576 = vadd.f32 %v379, %v575
        %v577 = vpop.f32.mrf.mxu0
        %v578 = vpop.f32.mrf.mxu0
        %v579 = vadd.f32 %v379, %v578
        %v580 = vpop.f32.mrf.mxu0
        %581 = vmatprep.mubr.bf16.mxu0 %v329
        %582 = vmatmul.mubr.bf16.gmra.mxu0 %v328
        %v583 = vpop.f32.mrf.mxu0
        %v584 = vadd.f32 %v379, %v583
        %v585 = vpop.f32.mrf.mxu0
        %v586 = vpop.f32.mrf.mxu0
        %v587 = vadd.f32 %v379, %v586
        %v588 = vpop.f32.mrf.mxu0
        %589 = vmatprep.mubr.bf16.mxu0 %v331
        %590 = vmatmul.mubr.bf16.gmra.mxu0 %v330
        %v591 = vpop.f32.mrf.mxu0
        %v592 = vadd.f32 %v379, %v591
        %v593 = vpop.f32.mrf.mxu0
        %v594 = vpop.f32.mrf.mxu0
        %v595 = vadd.f32 %v379, %v594
        %v596 = vpop.f32.mrf.mxu0
        %597 = vmatprep.mubr.bf16.mxu0 %v333
        %598 = vmatmul.mubr.bf16.gmra.mxu0 %v332
        %v599 = vpop.f32.mrf.mxu0
        %v600 = vadd.f32 %v379, %v599
        %v601 = vpop.f32.mrf.mxu0
        %v602 = vpop.f32.mrf.mxu0
        %v603 = vadd.f32 %v379, %v602
        %v604 = vpop.f32.mrf.mxu0
        %605 = vmatprep.mubr.bf16.mxu0 %v335
        %606 = vmatmul.mubr.bf16.gmra.mxu0 %v334
        %v607 = vpop.f32.mrf.mxu0
        %v608 = vadd.f32 %v379, %v607
        %v609 = vpop.f32.mrf.mxu0
        %v610 = vpop.f32.mrf.mxu0
        %v611 = vadd.f32 %v379, %v610
        %v612 = vpop.f32.mrf.mxu0
        %613 = vmatprep.mubr.bf16.mxu0 %v337
        %614 = vmatmul.mubr.bf16.gmra.mxu0 %v336
        %v615 = vpop.f32.mrf.mxu0
        %v616 = vadd.f32 %v379, %v615
        %v617 = vpop.f32.mrf.mxu0
        %v618 = vpop.f32.mrf.mxu0
        %v619 = vadd.f32 %v379, %v618
        %v620 = vpop.f32.mrf.mxu0
        %621 = vmatprep.mubr.bf16.mxu0 %v339
        %622 = vmatmul.mubr.bf16.gmra.mxu0 %v338
        %v623 = vpop.f32.mrf.mxu0
        %v624 = vadd.f32 %v379, %v623
        %v625 = vpop.f32.mrf.mxu0
        %v626 = vpop.f32.mrf.mxu0
        %v627 = vadd.f32 %v379, %v626
        %v628 = vpop.f32.mrf.mxu0
        %629 = vmatprep.mubr.bf16.mxu0 %v341
        %630 = vmatmul.mubr.bf16.gmra.mxu0 %v340
        %v631 = vpop.f32.mrf.mxu0
        %v632 = vadd.f32 %v379, %v631
        %v633 = vpop.f32.mrf.mxu0
        %v634 = vpop.f32.mrf.mxu0
        %v635 = vadd.f32 %v379, %v634
        %v636 = vpop.f32.mrf.mxu0
        %637 = vdwg.mxu0
        %638 = vst [vmem:[%s239] sm:$0xff] %v512
        %639 = vst [vmem:[%s239 + $0x8] sm:$0xff] %v515
        %640 = vst [vmem:[%s239 + $0x10] sm:$0xff] %v520
        %641 = vst [vmem:[%s239 + $0x18] sm:$0xff] %v523
        %642 = vst [vmem:[%s239 + $0x20] sm:$0xff] %v528
        %643 = vst [vmem:[%s239 + $0x28] sm:$0xff] %v531
        %644 = vst [vmem:[%s239 + $0x30] sm:$0xff] %v536
        %645 = vst [vmem:[%s239 + $0x38] sm:$0xff] %v539
        %646 = vst [vmem:[%s239 + $0x40] sm:$0xff] %v544
        %647 = vst [vmem:[%s239 + $0x48] sm:$0xff] %v547
        %648 = vst [vmem:[%s239 + $0x50] sm:$0xff] %v552
        %649 = vst [vmem:[%s239 + $0x58] sm:$0xff] %v555
        %650 = vst [vmem:[%s239 + $0x60] sm:$0xff] %v560
        %651 = vst [vmem:[%s239 + $0x68] sm:$0xff] %v563
        %652 = vst [vmem:[%s239 + $0x70] sm:$0xff] %v568
        %653 = vst [vmem:[%s239 + $0x78] sm:$0xff] %v571
        %654 = vst [vmem:[%s239 + $0x80] sm:$0xff] %v576
        %655 = vst [vmem:[%s239 + $0x88] sm:$0xff] %v579
        %656 = vst [vmem:[%s239 + $0x90] sm:$0xff] %v584
        %657 = vst [vmem:[%s239 + $0x98] sm:$0xff] %v587
        %658 = vst [vmem:[%s239 + $0xa0] sm:$0xff] %v592
        %659 = vst [vmem:[%s239 + $0xa8] sm:$0xff] %v595
        %660 = vst [vmem:[%s239 + $0xb0] sm:$0xff] %v600
        %661 = vst [vmem:[%s239 + $0xb8] sm:$0xff] %v603
        %662 = vst [vmem:[%s239 + $0xc0] sm:$0xff] %v608
        %663 = vst [vmem:[%s239 + $0xc8] sm:$0xff] %v611
        %664 = vst [vmem:[%s239 + $0xd0] sm:$0xff] %v616
        %665 = vst [vmem:[%s239 + $0xd8] sm:$0xff] %v619
        %666 = vst [vmem:[%s239 + $0xe0] sm:$0xff] %v624
        %667 = vst [vmem:[%s239 + $0xe8] sm:$0xff] %v627
        %668 = vst [vmem:[%s239 + $0xf0] sm:$0xff] %v632
        %669 = vst [vmem:[%s239 + $0xf8] sm:$0xff] %v635
        %v670 = vadd.f32 %v512, %v515
        %v671 = vadd.f32 %v670, %v520
        %v672 = vadd.f32 %v671, %v523
        %v673 = vadd.f32 %v672, %v528
        %v674 = vadd.f32 %v673, %v531
        %v675 = vadd.f32 %v674, %v536
        %v676 = vadd.f32 %v675, %v539
        %v677 = vadd.f32 %v676, %v544
        %v678 = vadd.f32 %v677, %v547
        %v679 = vadd.f32 %v678, %v552
        %v680 = vadd.f32 %v679, %v555
        %v681 = vadd.f32 %v680, %v560
        %v682 = vadd.f32 %v681, %v563
        %v683 = vadd.f32 %v682, %v568
        %v684 = vadd.f32 %v683, %v571
        %v685 = vadd.f32 %v684, %v576
        %v686 = vadd.f32 %v685, %v579
        %v687 = vadd.f32 %v686, %v584
        %v688 = vadd.f32 %v687, %v587
        %v689 = vadd.f32 %v688, %v592
        %v690 = vadd.f32 %v689, %v595
        %v691 = vadd.f32 %v690, %v600
        %v692 = vadd.f32 %v691, %v603
        %v693 = vadd.f32 %v692, %v608
        %v694 = vadd.f32 %v693, %v611
        %v695 = vadd.f32 %v694, %v616
        %v696 = vadd.f32 %v695, %v619
        %v697 = vadd.f32 %v696, %v624
        %v698 = vadd.f32 %v697, %v627
        %v699 = vadd.f32 %v698, %v632
        %v700 = vadd.f32 %v699, %v635
        %v701 = vrot.slane %v700, 4
        %v702 = vadd.f32 %v700, %v701
        %v703 = vrot.slane %v702, 2
        %v704 = vadd.f32 %v702, %v703
        %v705 = vrot.slane %v704, 1
        %v706 = vadd.f32 %v704, %v705
        %v707 = vmul.f32 %v512, %v512
        %v708 = vmul.f32 %v515, %v515
        %v709 = vmul.f32 %v520, %v520
        %v710 = vmul.f32 %v523, %v523
        %v711 = vmul.f32 %v528, %v528
        %v712 = vmul.f32 %v531, %v531
        %v713 = vmul.f32 %v536, %v536
        %v714 = vmul.f32 %v539, %v539
        %v715 = vmul.f32 %v544, %v544
        %v716 = vmul.f32 %v547, %v547
        %v717 = vmul.f32 %v552, %v552
        %v718 = vmul.f32 %v555, %v555
        %v719 = vmul.f32 %v560, %v560
        %v720 = vmul.f32 %v563, %v563
        %v721 = vmul.f32 %v568, %v568
        %v722 = vmul.f32 %v571, %v571
        %v723 = vmul.f32 %v576, %v576
        %v724 = vmul.f32 %v579, %v579
        %v725 = vmul.f32 %v584, %v584
        %v726 = vmul.f32 %v587, %v587
        %v727 = vmul.f32 %v592, %v592
        %v728 = vmul.f32 %v595, %v595
        %v729 = vmul.f32 %v600, %v600
        %v730 = vmul.f32 %v603, %v603
        %v731 = vmul.f32 %v608, %v608
        %v732 = vmul.f32 %v611, %v611
        %v733 = vmul.f32 %v616, %v616
        %v734 = vmul.f32 %v619, %v619
        %v735 = vmul.f32 %v624, %v624
        %v736 = vmul.f32 %v627, %v627
        %v737 = vmul.f32 %v632, %v632
        %v738 = vmul.f32 %v635, %v635
        %v739 = vadd.f32 %v707, %v708
        %v740 = vadd.f32 %v739, %v709
        %v741 = vadd.f32 %v740, %v710
        %v742 = vadd.f32 %v741, %v711
        %v743 = vadd.f32 %v742, %v712
        %v744 = vadd.f32 %v743, %v713
        %v745 = vadd.f32 %v744, %v714
        %v746 = vadd.f32 %v745, %v715
        %v747 = vadd.f32 %v746, %v716
        %v748 = vadd.f32 %v747, %v717
        %v749 = vadd.f32 %v748, %v718
        %v750 = vadd.f32 %v749, %v719
        %v751 = vadd.f32 %v750, %v720
        %v752 = vadd.f32 %v751, %v721
        %v753 = vadd.f32 %v752, %v722
        %v754 = vadd.f32 %v753, %v723
        %v755 = vadd.f32 %v754, %v724
        %v756 = vadd.f32 %v755, %v725
        %v757 = vadd.f32 %v756, %v726
        %v758 = vadd.f32 %v757, %v727
        %v759 = vadd.f32 %v758, %v728
        %v760 = vadd.f32 %v759, %v729
        %v761 = vadd.f32 %v760, %v730
        %v762 = vadd.f32 %v761, %v731
        %v763 = vadd.f32 %v762, %v732
        %v764 = vadd.f32 %v763, %v733
        %v765 = vadd.f32 %v764, %v734
        %v766 = vadd.f32 %v765, %v735
        %v767 = vadd.f32 %v766, %v736
        %v768 = vadd.f32 %v767, %v737
        %v769 = vadd.f32 %v768, %v738
        %v770 = vrot.slane %v769, 4
        %v771 = vadd.f32 %v769, %v770
        %v772 = vrot.slane %v771, 2
        %v773 = vadd.f32 %v771, %v772
        %v774 = vrot.slane %v773, 1
        %v775 = vadd.f32 %v773, %v774
        %vm776 = vcmask 1040384
        %v777 = vsel %vm776, %v706, %v775
        %vm778 = vcmask 1041408
        %v779 = vsel %vm778, %v777, 0.0
        %780 = vst [vmem:[%s244] sm:$0xff] %v779
        %s781 = smul.u32 32, %s20
        %p782 = scmp.lt.s32.totalorder %s781, 127
        %s783 = scalar_select %p782, %s781, 127
        %s784 = smul.addr %s783, 8
        %s785 = scalar_lea.vmem %s3, %s784
        %p786 = scmp.lt.s32.totalorder %s20, 3
        %s787 = scalar_select %p786, %s20, 3
        %s788 = smul.addr %s787, 8
        %s789 = scalar_lea.vmem %s4, %s788
        // Predicated region
        $region41: #{resnet3d_block.3} parent=31 // pred_check
          %p790 = pneg %p106
        $region42: #{resnet3d_block.3} parent=31 // pred_check_branch
          %792 = sbr.rel (%p790) target = $region44
        $region43: #{resnet3d_block.3} parent=31 // pred_region
          %s793 = smul.u32 32, %s20
        $region44: #{resnet3d_block.3} parent=31 // pred_fallthru
          _
        // Predicated region
        $region45: #{resnet3d_block.3} parent=31 // pred_check
          %p794 = pneg %p132
        $region46: #{resnet3d_block.3} parent=31 // pred_check_branch
          %796 = sbr.rel (%p794) target = $region48
        $region47: #{resnet3d_block.3} parent=31 // pred_region
          _
        $region48: #{resnet3d_block.3} parent=31 // pred_fallthru
          _
      $region32: #{resnet3d_block.3} parent=5 // pred_fallthru
        _
      %p797 = scmp.le.s32.totalorder 2, %s15
      // Predicated region
      $region49: #{resnet3d_block.3} parent=5 // pred_check
        %p798 = pneg %p797
      $region50: #{resnet3d_block.3} parent=5 // pred_check_branch
        %800 = sbr.rel (%p798) target = $region52
      $region51: #{resnet3d_block.3} parent=5 // pred_region
        %s801 = ssub.s32 %s15, 2
        // Predicated region
        $region53: #{resnet3d_block.3} parent=51 // pred_check
          %p802 = pneg %p112
        $region54: #{resnet3d_block.3} parent=51 // pred_check_branch
          %804 = sbr.rel (%p802) target = $region56
        $region55: #{resnet3d_block.3} parent=51 // pred_region
          %s805 = smul.u32 32, %s21
          %p806 = scmp.lt.s32.totalorder %s805, 127
          %s807 = scalar_select %p806, %s805, 127
          %s808 = smul.addr %s807, 8
          %s809 = scalar_lea.vmem %s3, %s808
        $region56: #{resnet3d_block.3} parent=51 // pred_fallthru
          _
        // Predicated region
        $region57: #{resnet3d_block.3} parent=51 // pred_check
          %p810 = pneg %p138
        $region58: #{resnet3d_block.3} parent=51 // pred_check_branch
          %812 = sbr.rel (%p810) target = $region60
        $region59: #{resnet3d_block.3} parent=51 // pred_region
          %p813 = scmp.lt.s32.totalorder %s21, 3
          %s814 = scalar_select %p813, %s21, 3
          %s815 = smul.addr %s814, 8
          %s816 = scalar_lea.vmem %s4, %s815
        $region60: #{resnet3d_block.3} parent=51 // pred_fallthru
          _
      $region52: #{resnet3d_block.3} parent=5 // pred_fallthru
        _
    $region6: #{resnet3d_block.3} parent=1 // loop_footer
      %s19 = sadd.s32 1, %s15
    $region7: #{resnet3d_block.3} parent=1 // loop_footer_branch
      %14 = sbr.rel target = $region3
    $region8: #{resnet3d_block.3} parent=1 // loop_exit
      _
    %817 = vsyncpa [#allocation3], 1
    %s818 = scalar_lea.sflag [#allocation3], 1
    %819 = vsyncpa %s818, 1
    %820 = vsyncpa [#allocation5], 1

// kernel: resnet3d_block.5
$region0: #{resnet3d_block.5}
  #allocation0 [shape = 'u32[]', space=smem, size = 0x4, offset = 0x4, fixed_abs, tag = 'smem constant byte address 0x4 - core index']
  #allocation1 [shape = 'u32[144,128]{1,0:T(1,128)}', space=vmem, size = 0x12000, scoped, tag = 'internal scratch']
  %s0 = inlined_call_operand.vmem [shape: f32[1024,256], index: 0, kind: input, shape index: {}]
  %s1 = inlined_call_operand.vmem [shape: f32[1024,256], index: 1, kind: input, shape index: {}]
  %s2 = inlined_call_operand.vmem [shape: f32[1,256], index: 2, kind: input, shape index: {}]
  %s3 = inlined_call_operand.vmem [shape: f32[1,256], index: 3, kind: input, shape index: {}]
  %s4 = inlined_call_operand.vmem [shape: bf16[256,256], index: 4, kind: input, shape index: {}]
  %s5 = inlined_call_operand.vmem [shape: f32[1,256], index: 5, kind: input, shape index: {}]
  %s6 = inlined_call_operand.hbm [shape: f32[1024,256], index: 6, kind: output, shape index: {}]
  %s7 = sld [smem:[#allocation0]]
  $region57: #{resnet3d_block.5} parent=0
    _
  %s9 = ssub.s32 1, %s7
  %s10 = scalar_select 0, %s9, %s7
  $region1: #{resnet3d_block.5} parent=0
    #allocation2 [shape = 'u8[524288]{0}', space=vmem, size = 0x80000, scoped, tag = 'output window, operand 0']
    #allocation3 [shape = 's32[2]{0}', space=sflag, size = 0x8, scoped, tag = 'scoped memory for resnet3d_block.5']
    %11 = vsyncpa [#allocation3], 0
    %s12 = scalar_lea.sflag [#allocation3], 1
    %13 = vsyncpa %s12, 0
    loop: start=0, step=1, limit=6
    $region2: #{resnet3d_block.5} parent=1 // loop_pre_header
      _
    $region3: #{resnet3d_block.5} parent=1 // loop_header
      %s15 = sphi 0, %s19
      %p16 = scmp.ge.s32.totalorder %s15, 6
      %s25 = sphi 0, %s27
      %s28 = sphi 0, %s25
      %s29 = sphi 0, %s28
      %s45 = sphi 0, %s29
      %s51 = sphi 0, %s53
      %s54 = sphi 0, %s51
      %s55 = sphi 0, %s54
      %s71 = sphi 0, %s55
      %s75 = sphi 0, %s75
      %s77 = sphi 0, %s75
      %s78 = sphi 0, %s77
      %s92 = sphi 0, %s78
      %s96 = sphi 0, %s96
      %s98 = sphi 0, %s96
      %s99 = sphi 0, %s98
      %s113 = sphi 0, %s99
      %s117 = sphi 0, %s117
      %s119 = sphi 0, %s117
      %s120 = sphi 0, %s119
      %s134 = sphi 0, %s120
      %s138 = sphi 0, %s138
      %s140 = sphi 0, %s138
      %s141 = sphi 0, %s140
      %s155 = sphi 0, %s141
      %s161 = sphi 0, %s163
      %s164 = sphi 0, %s161
      %s165 = sphi 0, %s164
      %s181 = sphi 0, %s165
    $region4: #{resnet3d_block.5} parent=1 // loop_header_branch
      %18 = sbr.rel (%p16) target = $region8
    $region5: #{resnet3d_block.5} parent=1 // loop_body
      %s20 = ssub.s32 %s15, 1
      %s21 = ssub.s32 %s15, 2
      %s22 = sadd.s32 %s15, 1
      %s23 = ssub.s32 %s15, %s22
      %p24 = scmp.eq.s32.totalorder %s23, 0
      %s26 = sadd.s32 %s25, 1
      %s27 = scalar_select %p24, %s25, %s26
      %p30 = pneg %p24
      %p31 = scmp.eq.s32.totalorder %s15, 3
      %p32 = por %p30, %p31
      %p33 = scmp.ne.s32.totalorder %s25, %s28
      %p34 = scmp.eq.s32.totalorder %s15, 0
      %p35 = por %p33, %p34
      %p36 = scmp.ne.s32.totalorder %s25, %s28
      %p37 = scmp.eq.s32.totalorder %s20, 3
      %p38 = por %p36, %p37
      %p39 = scmp.ne.s32.totalorder %s28, %s29
      %p40 = scmp.eq.s32.totalorder %s20, 0
      %p41 = por %p39, %p40
      %p42 = scmp.ne.s32.totalorder %s28, %s29
      %p43 = scmp.eq.s32.totalorder %s21, 3
      %p44 = por %p42, %p43
      %p46 = scmp.ne.s32.totalorder %s29, %s45
      %p47 = scmp.eq.s32.totalorder %s21, 0
      %p48 = por %p46, %p47
      %s49 = ssub.s32 %s15, %s22
      %p50 = scmp.eq.s32.totalorder %s49, 0
      %s52 = sadd.s32 %s51, 1
      %s53 = scalar_select %p50, %s51, %s52
      %p56 = pneg %p50
      %p57 = scmp.eq.s32.totalorder %s15, 3
      %p58 = por %p56, %p57
      %p59 = scmp.ne.s32.totalorder %s51, %s54
      %p60 = scmp.eq.s32.totalorder %s15, 0
      %p61 = por %p59, %p60
      %p62 = scmp.ne.s32.totalorder %s51, %s54
      %p63 = scmp.eq.s32.totalorder %s20, 3
      %p64 = por %p62, %p63
      %p65 = scmp.ne.s32.totalorder %s54, %s55
      %p66 = scmp.eq.s32.totalorder %s20, 0
      %p67 = por %p65, %p66
      %p68 = scmp.ne.s32.totalorder %s54, %s55
      %p69 = scmp.eq.s32.totalorder %s21, 3
      %p70 = por %p68, %p69
      %p72 = scmp.ne.s32.totalorder %s55, %s71
      %p73 = scmp.eq.s32.totalorder %s21, 0
      %p74 = por %p72, %p73
      %s76 = sadd.s32 %s75, 1
      %p79 = scmp.eq.s32.totalorder %s15, 3
      %p80 = scmp.ne.s32.totalorder %s75, %s77
      %p81 = scmp.eq.s32.totalorder %s15, 0
      %p82 = por %p80, %p81
      %p83 = scmp.ne.s32.totalorder %s75, %s77
      %p84 = scmp.eq.s32.totalorder %s20, 3
      %p85 = por %p83, %p84
      %p86 = scmp.ne.s32.totalorder %s77, %s78
      %p87 = scmp.eq.s32.totalorder %s20, 0
      %p88 = por %p86, %p87
      %p89 = scmp.ne.s32.totalorder %s77, %s78
      %p90 = scmp.eq.s32.totalorder %s21, 3
      %p91 = por %p89, %p90
      %p93 = scmp.ne.s32.totalorder %s78, %s92
      %p94 = scmp.eq.s32.totalorder %s21, 0
      %p95 = por %p93, %p94
      %s97 = sadd.s32 %s96, 1
      %p100 = scmp.eq.s32.totalorder %s15, 3
      %p101 = scmp.ne.s32.totalorder %s96, %s98
      %p102 = scmp.eq.s32.totalorder %s15, 0
      %p103 = por %p101, %p102
      %p104 = scmp.ne.s32.totalorder %s96, %s98
      %p105 = scmp.eq.s32.totalorder %s20, 3
      %p106 = por %p104, %p105
      %p107 = scmp.ne.s32.totalorder %s98, %s99
      %p108 = scmp.eq.s32.totalorder %s20, 0
      %p109 = por %p107, %p108
      %p110 = scmp.ne.s32.totalorder %s98, %s99
      %p111 = scmp.eq.s32.totalorder %s21, 3
      %p112 = por %p110, %p111
      %p114 = scmp.ne.s32.totalorder %s99, %s113
      %p115 = scmp.eq.s32.totalorder %s21, 0
      %p116 = por %p114, %p115
      %s118 = sadd.s32 %s117, 1
      %p121 = scmp.eq.s32.totalorder %s15, 3
      %p122 = scmp.ne.s32.totalorder %s117, %s119
      %p123 = scmp.eq.s32.totalorder %s15, 0
      %p124 = por %p122, %p123
      %p125 = scmp.ne.s32.totalorder %s117, %s119
      %p126 = scmp.eq.s32.totalorder %s20, 3
      %p127 = por %p125, %p126
      %p128 = scmp.ne.s32.totalorder %s119, %s120
      %p129 = scmp.eq.s32.totalorder %s20, 0
      %p130 = por %p128, %p129
      %p131 = scmp.ne.s32.totalorder %s119, %s120
      %p132 = scmp.eq.s32.totalorder %s21, 3
      %p133 = por %p131, %p132
      %p135 = scmp.ne.s32.totalorder %s120, %s134
      %p136 = scmp.eq.s32.totalorder %s21, 0
      %p137 = por %p135, %p136
      %s139 = sadd.s32 %s138, 1
      %p142 = scmp.eq.s32.totalorder %s15, 3
      %p143 = scmp.ne.s32.totalorder %s138, %s140
      %p144 = scmp.eq.s32.totalorder %s15, 0
      %p145 = por %p143, %p144
      %p146 = scmp.ne.s32.totalorder %s138, %s140
      %p147 = scmp.eq.s32.totalorder %s20, 3
      %p148 = por %p146, %p147
      %p149 = scmp.ne.s32.totalorder %s140, %s141
      %p150 = scmp.eq.s32.totalorder %s20, 0
      %p151 = por %p149, %p150
      %p152 = scmp.ne.s32.totalorder %s140, %s141
      %p153 = scmp.eq.s32.totalorder %s21, 3
      %p154 = por %p152, %p153
      %p156 = scmp.ne.s32.totalorder %s141, %s155
      %p157 = scmp.eq.s32.totalorder %s21, 0
      %p158 = por %p156, %p157
      %s159 = ssub.s32 %s15, %s22
      %p160 = scmp.eq.s32.totalorder %s159, 0
      %s162 = sadd.s32 %s161, 1
      %s163 = scalar_select %p160, %s161, %s162
      %p166 = pneg %p160
      %p167 = scmp.eq.s32.totalorder %s15, 3
      %p168 = por %p166, %p167
      %p169 = scmp.ne.s32.totalorder %s161, %s164
      %p170 = scmp.eq.s32.totalorder %s15, 0
      %p171 = por %p169, %p170
      %p172 = scmp.ne.s32.totalorder %s161, %s164
      %p173 = scmp.eq.s32.totalorder %s20, 3
      %p174 = por %p172, %p173
      %p175 = scmp.ne.s32.totalorder %s164, %s165
      %p176 = scmp.eq.s32.totalorder %s20, 0
      %p177 = por %p175, %p176
      %p178 = scmp.ne.s32.totalorder %s164, %s165
      %p179 = scmp.eq.s32.totalorder %s21, 3
      %p180 = por %p178, %p179
      %p182 = scmp.ne.s32.totalorder %s165, %s181
      %p183 = scmp.eq.s32.totalorder %s21, 0
      %p184 = por %p182, %p183
      %p185 = scmp.le.s32.totalorder 1, %s15
      %p186 = scmp.lt.s32.totalorder %s15, 5
      %p187 = pnand %p185, %p186
      %p188 = pneg %p187
      // Predicated region
      $region9: #{resnet3d_block.5} parent=5 // pred_check
        _
      $region10: #{resnet3d_block.5} parent=5 // pred_check_branch
        %190 = sbr.rel (%p187) target = $region12
      $region11: #{resnet3d_block.5} parent=5 // pred_region
        %s191 = ssub.s32 %s15, 1
        // Predicated region
        $region13: #{resnet3d_block.5} parent=11 // pred_check
          %p192 = pneg %p88
        $region14: #{resnet3d_block.5} parent=11 // pred_check_branch
          %194 = sbr.rel (%p192) target = $region16
        $region15: #{resnet3d_block.5} parent=11 // pred_region
          _
        $region16: #{resnet3d_block.5} parent=11 // pred_fallthru
          _
        // Predicated region
        $region17: #{resnet3d_block.5} parent=11 // pred_check
          %p195 = pneg %p109
        $region18: #{resnet3d_block.5} parent=11 // pred_check_branch
          %197 = sbr.rel (%p195) target = $region20
        $region19: #{resnet3d_block.5} parent=11 // pred_region
          _
        $region20: #{resnet3d_block.5} parent=11 // pred_fallthru
          _
        // Predicated region
        $region21: #{resnet3d_block.5} parent=11 // pred_check
          %p198 = pneg %p130
        $region22: #{resnet3d_block.5} parent=11 // pred_check_branch
          %200 = sbr.rel (%p198) target = $region24
        $region23: #{resnet3d_block.5} parent=11 // pred_region
          _
        $region24: #{resnet3d_block.5} parent=11 // pred_fallthru
          _
        // Predicated region
        $region25: #{resnet3d_block.5} parent=11 // pred_check
          %p201 = pneg %p151
        $region26: #{resnet3d_block.5} parent=11 // pred_check_branch
          %203 = sbr.rel (%p201) target = $region28
        $region27: #{resnet3d_block.5} parent=11 // pred_region
          _
        $region28: #{resnet3d_block.5} parent=11 // pred_fallthru
          _
      $region12: #{resnet3d_block.5} parent=5 // pred_fallthru
        _
      %p204 = scmp.lt.s32.totalorder %s15, 4
      // Predicated region
      $region29: #{resnet3d_block.5} parent=5 // pred_check
        %p205 = pneg %p204
      $region30: #{resnet3d_block.5} parent=5 // pred_check_branch
        %207 = sbr.rel (%p205) target = $region32
      $region31: #{resnet3d_block.5} parent=5 // pred_region
        // Predicated region
        $region33: #{resnet3d_block.5} parent=31 // pred_check
          %p208 = pneg %p35
        $region34: #{resnet3d_block.5} parent=31 // pred_check_branch
          %210 = sbr.rel (%p208) target = $region36
        $region35: #{resnet3d_block.5} parent=31 // pred_region
          %s211 = smul.u32 32, %s15
          %p212 = scmp.lt.s32.totalorder %s211, 127
          %s213 = scalar_select %p212, %s211, 127
          %s214 = smul.addr %s213, 2
          %s215 = smul.addr %s214, 8
          %s216 = scalar_lea.vmem %s0, %s215
          %s217 = smul.u32 32, %s15
        $region36: #{resnet3d_block.5} parent=31 // pred_fallthru
          _
        // Predicated region
        $region37: #{resnet3d_block.5} parent=31 // pred_check
          %p218 = pneg %p61
        $region38: #{resnet3d_block.5} parent=31 // pred_check_branch
          %220 = sbr.rel (%p218) target = $region40
        $region39: #{resnet3d_block.5} parent=31 // pred_region
          %s221 = smul.u32 32, %s15
          %p222 = scmp.lt.s32.totalorder %s221, 127
          %s223 = scalar_select %p222, %s221, 127
          %s224 = smul.addr %s223, 2
          %s225 = smul.addr %s224, 8
          %s226 = scalar_lea.vmem %s1, %s225
          %s227 = smul.u32 32, %s15
        $region40: #{resnet3d_block.5} parent=31 // pred_fallthru
          _
      $region32: #{resnet3d_block.5} parent=5 // pred_fallthru
        _
      %p228 = scmp.le.s32.totalorder 1, %s15
      %p229 = scmp.lt.s32.totalorder %s15, 5
      %p230 = pnand %p228, %p229
      %p231 = pneg %p230
      // Predicated region
      $region41: #{resnet3d_block.5} parent=5 // pred_check
        _
      $region42: #{resnet3d_block.5} parent=5 // pred_check_branch
        %233 = sbr.rel (%p230) target = $region44
      $region43: #{resnet3d_block.5} parent=5 // pred_region
        %s234 = ssub.s32 %s15, 1
        %s235 = smul.u32 32, %s20
        %p236 = scmp.lt.s32.totalorder %s235, 127
        %s237 = scalar_select %p236, %s235, 127
        %s238 = smul.addr %s237, 2
        %s239 = smul.addr %s238, 8
        %s240 = scalar_lea.vmem %s0, %s239
        %p241 = pneg %p41
        %p242 = pneg %p38
        %s243 = smul.u32 32, %s20
        %p244 = scmp.lt.s32.totalorder %s243, 127
        %s245 = scalar_select %p244, %s243, 127
        %s246 = smul.addr %s245, 2
        %s247 = smul.addr %s246, 8
        %s248 = scalar_lea.vmem %s1, %s247
        %p249 = pneg %p67
        %p250 = pneg %p64
        %p251 = pneg %p88
        %p252 = pneg %p85
        %p253 = pneg %p109
        %p254 = pneg %p106
        %p255 = pneg %p130
        %p256 = pneg %p127
        %p257 = pneg %p151
        %p258 = pneg %p148
        %p259 = pneg %p177
        %p260 = pneg %p174
        %s261 = sand.u32 %s164, 1
        %s262 = scalar_lea.sflag [#allocation3], %s261
        %s263 = sand.u32 %s164, 1
        %s264 = smul.addr %s263, 512
        %s265 = scalar_lea.vmem [#allocation2], %s264
        %s266 = smul.u32 32, %s20
        %p267 = scmp.lt.s32.totalorder %s266, 127
        %s268 = scalar_select %p267, %s266, 127
        %s269 = smul.addr %s268, 2
        %s270 = smul.addr %s269, 8
        %s271 = scalar_lea.vmem %s0, %s270
        %s272 = smul.u32 32, %s20
        %s273 = smul.u32 32, %s20
        %p274 = scmp.lt.s32.totalorder %s273, 127
        %s275 = scalar_select %p274, %s273, 127
        %s276 = smul.addr %s275, 2
        %s277 = smul.addr %s276, 8
        %s278 = scalar_lea.vmem %s1, %s277
        %s279 = smul.u32 32, %s20
        %s280 = smul.u32 32, %s20
        %v281 = vld [vmem:[%s278] sm:$0xff]
        %v282 = vld [vmem:[%s278 + $0x8] sm:$0xff]
        %v283 = vld [vmem:[%s278 + $0x10] sm:$0xff]
        %v284 = vld [vmem:[%s278 + $0x18] sm:$0xff]
        %v285 = vld [vmem:[%s278 + $0x20] sm:$0xff]
        %v286 = vld [vmem:[%s278 + $0x28] sm:$0xff]
        %v287 = vld [vmem:[%s278 + $0x30] sm:$0xff]
        %v288 = vld [vmem:[%s278 + $0x38] sm:$0xff]
        %v289 = vld [vmem:[%s278 + $0x40] sm:$0xff]
        %v290 = vld [vmem:[%s278 + $0x48] sm:$0xff]
        %v291 = vld [vmem:[%s278 + $0x50] sm:$0xff]
        %v292 = vld [vmem:[%s278 + $0x58] sm:$0xff]
        %v293 = vld [vmem:[%s278 + $0x60] sm:$0xff]
        %v294 = vld [vmem:[%s278 + $0x68] sm:$0xff]
        %v295 = vld [vmem:[%s278 + $0x70] sm:$0xff]
        %v296 = vld [vmem:[%s278 + $0x78] sm:$0xff]
        %v297 = vld [vmem:[%s278 + $0x80] sm:$0xff]
        %v298 = vld [vmem:[%s278 + $0x88] sm:$0xff]
        %v299 = vld [vmem:[%s278 + $0x90] sm:$0xff]
        %v300 = vld [vmem:[%s278 + $0x98] sm:$0xff]
        %v301 = vld [vmem:[%s278 + $0xa0] sm:$0xff]
        %v302 = vld [vmem:[%s278 + $0xa8] sm:$0xff]
        %v303 = vld [vmem:[%s278 + $0xb0] sm:$0xff]
        %v304 = vld [vmem:[%s278 + $0xb8] sm:$0xff]
        %v305 = vld [vmem:[%s278 + $0xc0] sm:$0xff]
        %v306 = vld [vmem:[%s278 + $0xc8] sm:$0xff]
        %v307 = vld [vmem:[%s278 + $0xd0] sm:$0xff]
        %v308 = vld [vmem:[%s278 + $0xd8] sm:$0xff]
        %v309 = vld [vmem:[%s278 + $0xe0] sm:$0xff]
        %v310 = vld [vmem:[%s278 + $0xe8] sm:$0xff]
        %v311 = vld [vmem:[%s278 + $0xf0] sm:$0xff]
        %v312 = vld [vmem:[%s278 + $0xf8] sm:$0xff]
        %v313 = vld [vmem:[%s278 + $0x100] sm:$0xff]
        %v314 = vld [vmem:[%s278 + $0x108] sm:$0xff]
        %v315 = vld [vmem:[%s278 + $0x110] sm:$0xff]
        %v316 = vld [vmem:[%s278 + $0x118] sm:$0xff]
        %v317 = vld [vmem:[%s278 + $0x120] sm:$0xff]
        %v318 = vld [vmem:[%s278 + $0x128] sm:$0xff]
        %v319 = vld [vmem:[%s278 + $0x130] sm:$0xff]
        %v320 = vld [vmem:[%s278 + $0x138] sm:$0xff]
        %v321 = vld [vmem:[%s278 + $0x140] sm:$0xff]
        %v322 = vld [vmem:[%s278 + $0x148] sm:$0xff]
        %v323 = vld [vmem:[%s278 + $0x150] sm:$0xff]
        %v324 = vld [vmem:[%s278 + $0x158] sm:$0xff]
        %v325 = vld [vmem:[%s278 + $0x160] sm:$0xff]
        %v326 = vld [vmem:[%s278 + $0x168] sm:$0xff]
        %v327 = vld [vmem:[%s278 + $0x170] sm:$0xff]
        %v328 = vld [vmem:[%s278 + $0x178] sm:$0xff]
        %v329 = vld [vmem:[%s278 + $0x180] sm:$0xff]
        %v330 = vld [vmem:[%s278 + $0x188] sm:$0xff]
        %v331 = vld [vmem:[%s278 + $0x190] sm:$0xff]
        %v332 = vld [vmem:[%s278 + $0x198] sm:$0xff]
        %v333 = vld [vmem:[%s278 + $0x1a0] sm:$0xff]
        %v334 = vld [vmem:[%s278 + $0x1a8] sm:$0xff]
        %v335 = vld [vmem:[%s278 + $0x1b0] sm:$0xff]
        %v336 = vld [vmem:[%s278 + $0x1b8] sm:$0xff]
        %v337 = vld [vmem:[%s278 + $0x1c0] sm:$0xff]
        %v338 = vld [vmem:[%s278 + $0x1c8] sm:$0xff]
        %v339 = vld [vmem:[%s278 + $0x1d0] sm:$0xff]
        %v340 = vld [vmem:[%s278 + $0x1d8] sm:$0xff]
        %v341 = vld [vmem:[%s278 + $0x1e0] sm:$0xff]
        %v342 = vld [vmem:[%s278 + $0x1e8] sm:$0xff]
        %v343 = vld [vmem:[%s278 + $0x1f0] sm:$0xff]
        %v344 = vld [vmem:[%s278 + $0x1f8] sm:$0xff]
        %v345 = vld [vmem:[%s271] sm:$0xff]
        %v346 = vld [vmem:[%s271 + $0x8] sm:$0xff]
        %v347 = vld [vmem:[%s271 + $0x10] sm:$0xff]
        %v348 = vld [vmem:[%s271 + $0x18] sm:$0xff]
        %v349 = vld [vmem:[%s271 + $0x20] sm:$0xff]
        %v350 = vld [vmem:[%s271 + $0x28] sm:$0xff]
        %v351 = vld [vmem:[%s271 + $0x30] sm:$0xff]
        %v352 = vld [vmem:[%s271 + $0x38] sm:$0xff]
        %v353 = vld [vmem:[%s271 + $0x40] sm:$0xff]
        %v354 = vld [vmem:[%s271 + $0x48] sm:$0xff]
        %v355 = vld [vmem:[%s271 + $0x50] sm:$0xff]
        %v356 = vld [vmem:[%s271 + $0x58] sm:$0xff]
        %v357 = vld [vmem:[%s271 + $0x60] sm:$0xff]
        %v358 = vld [vmem:[%s271 + $0x68] sm:$0xff]
        %v359 = vld [vmem:[%s271 + $0x70] sm:$0xff]
        %v360 = vld [vmem:[%s271 + $0x78] sm:$0xff]
        %v361 = vld [vmem:[%s271 + $0x80] sm:$0xff]
        %v362 = vld [vmem:[%s271 + $0x88] sm:$0xff]
        %v363 = vld [vmem:[%s271 + $0x90] sm:$0xff]
        %v364 = vld [vmem:[%s271 + $0x98] sm:$0xff]
        %v365 = vld [vmem:[%s271 + $0xa0] sm:$0xff]
        %v366 = vld [vmem:[%s271 + $0xa8] sm:$0xff]
        %v367 = vld [vmem:[%s271 + $0xb0] sm:$0xff]
        %v368 = vld [vmem:[%s271 + $0xb8] sm:$0xff]
        %v369 = vld [vmem:[%s271 + $0xc0] sm:$0xff]
        %v370 = vld [vmem:[%s271 + $0xc8] sm:$0xff]
        %v371 = vld [vmem:[%s271 + $0xd0] sm:$0xff]
        %v372 = vld [vmem:[%s271 + $0xd8] sm:$0xff]
        %v373 = vld [vmem:[%s271 + $0xe0] sm:$0xff]
        %v374 = vld [vmem:[%s271 + $0xe8] sm:$0xff]
        %v375 = vld [vmem:[%s271 + $0xf0] sm:$0xff]
        %v376 = vld [vmem:[%s271 + $0xf8] sm:$0xff]
        %v377 = vld [vmem:[%s271 + $0x100] sm:$0xff]
        %v378 = vld [vmem:[%s271 + $0x108] sm:$0xff]
        %v379 = vld [vmem:[%s271 + $0x110] sm:$0xff]
        %v380 = vld [vmem:[%s271 + $0x118] sm:$0xff]
        %v381 = vld [vmem:[%s271 + $0x120] sm:$0xff]
        %v382 = vld [vmem:[%s271 + $0x128] sm:$0xff]
        %v383 = vld [vmem:[%s271 + $0x130] sm:$0xff]
        %v384 = vld [vmem:[%s271 + $0x138] sm:$0xff]
        %v385 = vld [vmem:[%s271 + $0x140] sm:$0xff]
        %v386 = vld [vmem:[%s271 + $0x148] sm:$0xff]
        %v387 = vld [vmem:[%s271 + $0x150] sm:$0xff]
        %v388 = vld [vmem:[%s271 + $0x158] sm:$0xff]
        %v389 = vld [vmem:[%s271 + $0x160] sm:$0xff]
        %v390 = vld [vmem:[%s271 + $0x168] sm:$0xff]
        %v391 = vld [vmem:[%s271 + $0x170] sm:$0xff]
        %v392 = vld [vmem:[%s271 + $0x178] sm:$0xff]
        %v393 = vld [vmem:[%s271 + $0x180] sm:$0xff]
        %v394 = vld [vmem:[%s271 + $0x188] sm:$0xff]
        %v395 = vld [vmem:[%s271 + $0x190] sm:$0xff]
        %v396 = vld [vmem:[%s271 + $0x198] sm:$0xff]
        %v397 = vld [vmem:[%s271 + $0x1a0] sm:$0xff]
        %v398 = vld [vmem:[%s271 + $0x1a8] sm:$0xff]
        %v399 = vld [vmem:[%s271 + $0x1b0] sm:$0xff]
        %v400 = vld [vmem:[%s271 + $0x1b8] sm:$0xff]
        %v401 = vld [vmem:[%s271 + $0x1c0] sm:$0xff]
        %v402 = vld [vmem:[%s271 + $0x1c8] sm:$0xff]
        %v403 = vld [vmem:[%s271 + $0x1d0] sm:$0xff]
        %v404 = vld [vmem:[%s271 + $0x1d8] sm:$0xff]
        %v405 = vld [vmem:[%s271 + $0x1e0] sm:$0xff]
        %v406 = vld [vmem:[%s271 + $0x1e8] sm:$0xff]
        %v407 = vld [vmem:[%s271 + $0x1f0] sm:$0xff]
        %v408 = vld [vmem:[%s271 + $0x1f8] sm:$0xff]
        %v409 = vld [vmem:[%s2] sm:$0x3]
        %v411 = vlaneseq
        %v412 = vshrl.u32 %v411, 7
        %v413 = vsub.s32 0, %v412
        %v414 = vrot.slane %v409, %v413
        %v415 = vlaneseq
        %v416 = vshrl.u32 %v415, 7
        %v417 = vsub.s32 1, %v416
        %v418 = vrot.slane %v409, %v417
        %v421 = vmul.f32 %v345, %v414
        %v422 = vmul.f32 %v346, %v418
        %v423 = vmul.f32 %v347, %v414
        %v424 = vmul.f32 %v348, %v418
        %v425 = vmul.f32 %v349, %v414
        %v426 = vmul.f32 %v350, %v418
        %v427 = vmul.f32 %v351, %v414
        %v428 = vmul.f32 %v352, %v418
        %v429 = vmul.f32 %v353, %v414
        %v430 = vmul.f32 %v354, %v418
        %v431 = vmul.f32 %v355, %v414
        %v432 = vmul.f32 %v356, %v418
        %v433 = vmul.f32 %v357, %v414
        %v434 = vmul.f32 %v358, %v418
        %v435 = vmul.f32 %v359, %v414
        %v436 = vmul.f32 %v360, %v418
        %v437 = vmul.f32 %v361, %v414
        %v438 = vmul.f32 %v362, %v418
        %v439 = vmul.f32 %v363, %v414
        %v440 = vmul.f32 %v364, %v418
        %v441 = vmul.f32 %v365, %v414
        %v442 = vmul.f32 %v366, %v418
        %v443 = vmul.f32 %v367, %v414
        %v444 = vmul.f32 %v368, %v418
        %v445 = vmul.f32 %v369, %v414
        %v446 = vmul.f32 %v370, %v418
        %v447 = vmul.f32 %v371, %v414
        %v448 = vmul.f32 %v372, %v418
        %v449 = vmul.f32 %v373, %v414
        %v450 = vmul.f32 %v374, %v418
        %v451 = vmul.f32 %v375, %v414
        %v452 = vmul.f32 %v376, %v418
        %v453 = vmul.f32 %v377, %v414
        %v454 = vmul.f32 %v378, %v418
        %v455 = vmul.f32 %v379, %v414
        %v456 = vmul.f32 %v380, %v418
        %v457 = vmul.f32 %v381, %v414
        %v458 = vmul.f32 %v382, %v418
        %v459 = vmul.f32 %v383, %v414
        %v460 = vmul.f32 %v384, %v418
        %v461 = vmul.f32 %v385, %v414
        %v462 = vmul.f32 %v386, %v418
        %v463 = vmul.f32 %v387, %v414
        %v464 = vmul.f32 %v388, %v418
        %v465 = vmul.f32 %v389, %v414
        %v466 = vmul.f32 %v390, %v418
        %v467 = vmul.f32 %v391, %v414
        %v468 = vmul.f32 %v392, %v418
        %v469 = vmul.f32 %v393, %v414
        %v470 = vmul.f32 %v394, %v418
        %v471 = vmul.f32 %v395, %v414
        %v472 = vmul.f32 %v396, %v418
        %v473 = vmul.f32 %v397, %v414
        %v474 = vmul.f32 %v398, %v418
        %v475 = vmul.f32 %v399, %v414
        %v476 = vmul.f32 %v400, %v418
        %v477 = vmul.f32 %v401, %v414
        %v478 = vmul.f32 %v402, %v418
        %v479 = vmul.f32 %v403, %v414
        %v480 = vmul.f32 %v404, %v418
        %v481 = vmul.f32 %v405, %v414
        %v482 = vmul.f32 %v406, %v418
        %v483 = vmul.f32 %v407, %v414
        %v484 = vmul.f32 %v408, %v418
        %v485 = vld [vmem:[%s3] sm:$0x3]
        %v487 = vlaneseq
        %v488 = vshrl.u32 %v487, 7
        %v489 = vsub.s32 0, %v488
        %v490 = vrot.slane %v485, %v489
        %v491 = vlaneseq
        %v492 = vshrl.u32 %v491, 7
        %v493 = vsub.s32 1, %v492
        %v494 = vrot.slane %v485, %v493
        %v497 = vadd.f32 %v421, %v490
        %v498 = vadd.f32 %v422, %v494
        %v499 = vadd.f32 %v423, %v490
        %v500 = vadd.f32 %v424, %v494
        %v501 = vadd.f32 %v425, %v490
        %v502 = vadd.f32 %v426, %v494
        %v503 = vadd.f32 %v427, %v490
        %v504 = vadd.f32 %v428, %v494
        %v505 = vadd.f32 %v429, %v490
        %v506 = vadd.f32 %v430, %v494
        %v507 = vadd.f32 %v431, %v490
        %v508 = vadd.f32 %v432, %v494
        %v509 = vadd.f32 %v433, %v490
        %v510 = vadd.f32 %v434, %v494
        %v511 = vadd.f32 %v435, %v490
        %v512 = vadd.f32 %v436, %v494
        %v513 = vadd.f32 %v437, %v490
        %v514 = vadd.f32 %v438, %v494
        %v515 = vadd.f32 %v439, %v490
        %v516 = vadd.f32 %v440, %v494
        %v517 = vadd.f32 %v441, %v490
        %v518 = vadd.f32 %v442, %v494
        %v519 = vadd.f32 %v443, %v490
        %v520 = vadd.f32 %v444, %v494
        %v521 = vadd.f32 %v445, %v490
        %v522 = vadd.f32 %v446, %v494
        %v523 = vadd.f32 %v447, %v490
        %v524 = vadd.f32 %v448, %v494
        %v525 = vadd.f32 %v449, %v490
        %v526 = vadd.f32 %v450, %v494
        %v527 = vadd.f32 %v451, %v490
        %v528 = vadd.f32 %v452, %v494
        %v529 = vadd.f32 %v453, %v490
        %v530 = vadd.f32 %v454, %v494
        %v531 = vadd.f32 %v455, %v490
        %v532 = vadd.f32 %v456, %v494
        %v533 = vadd.f32 %v457, %v490
        %v534 = vadd.f32 %v458, %v494
        %v535 = vadd.f32 %v459, %v490
        %v536 = vadd.f32 %v460, %v494
        %v537 = vadd.f32 %v461, %v490
        %v538 = vadd.f32 %v462, %v494
        %v539 = vadd.f32 %v463, %v490
        %v540 = vadd.f32 %v464, %v494
        %v541 = vadd.f32 %v465, %v490
        %v542 = vadd.f32 %v466, %v494
        %v543 = vadd.f32 %v467, %v490
        %v544 = vadd.f32 %v468, %v494
        %v545 = vadd.f32 %v469, %v490
        %v546 = vadd.f32 %v470, %v494
        %v547 = vadd.f32 %v471, %v490
        %v548 = vadd.f32 %v472, %v494
        %v549 = vadd.f32 %v473, %v490
        %v550 = vadd.f32 %v474, %v494
        %v551 = vadd.f32 %v475, %v490
        %v552 = vadd.f32 %v476, %v494
        %v553 = vadd.f32 %v477, %v490
        %v554 = vadd.f32 %v478, %v494
        %v555 = vadd.f32 %v479, %v490
        %v556 = vadd.f32 %v480, %v494
        %v557 = vadd.f32 %v481, %v490
        %v558 = vadd.f32 %v482, %v494
        %v559 = vadd.f32 %v483, %v490
        %v560 = vadd.f32 %v484, %v494
        %v561 = vmax.f32 %v497, 0.0
        %v562 = vmax.f32 %v498, 0.0
        %v563 = vmax.f32 %v499, 0.0
        %v564 = vmax.f32 %v500, 0.0
        %v565 = vmax.f32 %v501, 0.0
        %v566 = vmax.f32 %v502, 0.0
        %v567 = vmax.f32 %v503, 0.0
        %v568 = vmax.f32 %v504, 0.0
        %v569 = vmax.f32 %v505, 0.0
        %v570 = vmax.f32 %v506, 0.0
        %v571 = vmax.f32 %v507, 0.0
        %v572 = vmax.f32 %v508, 0.0
        %v573 = vmax.f32 %v509, 0.0
        %v574 = vmax.f32 %v510, 0.0
        %v575 = vmax.f32 %v511, 0.0
        %v576 = vmax.f32 %v512, 0.0
        %v577 = vmax.f32 %v513, 0.0
        %v578 = vmax.f32 %v514, 0.0
        %v579 = vmax.f32 %v515, 0.0
        %v580 = vmax.f32 %v516, 0.0
        %v581 = vmax.f32 %v517, 0.0
        %v582 = vmax.f32 %v518, 0.0
        %v583 = vmax.f32 %v519, 0.0
        %v584 = vmax.f32 %v520, 0.0
        %v585 = vmax.f32 %v521, 0.0
        %v586 = vmax.f32 %v522, 0.0
        %v587 = vmax.f32 %v523, 0.0
        %v588 = vmax.f32 %v524, 0.0
        %v589 = vmax.f32 %v525, 0.0
        %v590 = vmax.f32 %v526, 0.0
        %v591 = vmax.f32 %v527, 0.0
        %v592 = vmax.f32 %v528, 0.0
        %v593 = vmax.f32 %v529, 0.0
        %v594 = vmax.f32 %v530, 0.0
        %v595 = vmax.f32 %v531, 0.0
        %v596 = vmax.f32 %v532, 0.0
        %v597 = vmax.f32 %v533, 0.0
        %v598 = vmax.f32 %v534, 0.0
        %v599 = vmax.f32 %v535, 0.0
        %v600 = vmax.f32 %v536, 0.0
        %v601 = vmax.f32 %v537, 0.0
        %v602 = vmax.f32 %v538, 0.0
        %v603 = vmax.f32 %v539, 0.0
        %v604 = vmax.f32 %v540, 0.0
        %v605 = vmax.f32 %v541, 0.0
        %v606 = vmax.f32 %v542, 0.0
        %v607 = vmax.f32 %v543, 0.0
        %v608 = vmax.f32 %v544, 0.0
        %v609 = vmax.f32 %v545, 0.0
        %v610 = vmax.f32 %v546, 0.0
        %v611 = vmax.f32 %v547, 0.0
        %v612 = vmax.f32 %v548, 0.0
        %v613 = vmax.f32 %v549, 0.0
        %v614 = vmax.f32 %v550, 0.0
        %v615 = vmax.f32 %v551, 0.0
        %v616 = vmax.f32 %v552, 0.0
        %v617 = vmax.f32 %v553, 0.0
        %v618 = vmax.f32 %v554, 0.0
        %v619 = vmax.f32 %v555, 0.0
        %v620 = vmax.f32 %v556, 0.0
        %v621 = vmax.f32 %v557, 0.0
        %v622 = vmax.f32 %v558, 0.0
        %v623 = vmax.f32 %v559, 0.0
        %v624 = vmax.f32 %v560, 0.0
        %v625 = vadd.f32 %v281, %v561
        %v626 = vadd.f32 %v282, %v562
        %v627 = vadd.f32 %v283, %v563
        %v628 = vadd.f32 %v284, %v564
        %v629 = vadd.f32 %v285, %v565
        %v630 = vadd.f32 %v286, %v566
        %v631 = vadd.f32 %v287, %v567
        %v632 = vadd.f32 %v288, %v568
        %v633 = vadd.f32 %v289, %v569
        %v634 = vadd.f32 %v290, %v570
        %v635 = vadd.f32 %v291, %v571
        %v636 = vadd.f32 %v292, %v572
        %v637 = vadd.f32 %v293, %v573
        %v638 = vadd.f32 %v294, %v574
        %v639 = vadd.f32 %v295, %v575
        %v640 = vadd.f32 %v296, %v576
        %v641 = vadd.f32 %v297, %v577
        %v642 = vadd.f32 %v298, %v578
        %v643 = vadd.f32 %v299, %v579
        %v644 = vadd.f32 %v300, %v580
        %v645 = vadd.f32 %v301, %v581
        %v646 = vadd.f32 %v302, %v582
        %v647 = vadd.f32 %v303, %v583
        %v648 = vadd.f32 %v304, %v584
        %v649 = vadd.f32 %v305, %v585
        %v650 = vadd.f32 %v306, %v586
        %v651 = vadd.f32 %v307, %v587
        %v652 = vadd.f32 %v308, %v588
        %v653 = vadd.f32 %v309, %v589
        %v654 = vadd.f32 %v310, %v590
        %v655 = vadd.f32 %v311, %v591
        %v656 = vadd.f32 %v312, %v592
        %v657 = vadd.f32 %v313, %v593
        %v658 = vadd.f32 %v314, %v594
        %v659 = vadd.f32 %v315, %v595
        %v660 = vadd.f32 %v316, %v596
        %v661 = vadd.f32 %v317, %v597
        %v662 = vadd.f32 %v318, %v598
        %v663 = vadd.f32 %v319, %v599
        %v664 = vadd.f32 %v320, %v600
        %v665 = vadd.f32 %v321, %v601
        %v666 = vadd.f32 %v322, %v602
        %v667 = vadd.f32 %v323, %v603
        %v668 = vadd.f32 %v324, %v604
        %v669 = vadd.f32 %v325, %v605
        %v670 = vadd.f32 %v326, %v606
        %v671 = vadd.f32 %v327, %v607
        %v672 = vadd.f32 %v328, %v608
        %v673 = vadd.f32 %v329, %v609
        %v674 = vadd.f32 %v330, %v610
        %v675 = vadd.f32 %v331, %v611
        %v676 = vadd.f32 %v332, %v612
        %v677 = vadd.f32 %v333, %v613
        %v678 = vadd.f32 %v334, %v614
        %v679 = vadd.f32 %v335, %v615
        %v680 = vadd.f32 %v336, %v616
        %v681 = vadd.f32 %v337, %v617
        %v682 = vadd.f32 %v338, %v618
        %v683 = vadd.f32 %v339, %v619
        %v684 = vadd.f32 %v340, %v620
        %v685 = vadd.f32 %v341, %v621
        %v686 = vadd.f32 %v342, %v622
        %v687 = vadd.f32 %v343, %v623
        %v688 = vadd.f32 %v344, %v624
        %v689 = vpack.c.bf16 %v627, %v625
        %v690 = vpack.c.bf16 %v628, %v626
        %v691 = vpack.c.bf16 %v631, %v629
        %v692 = vpack.c.bf16 %v632, %v630
        %v693 = vpack.c.bf16 %v635, %v633
        %v694 = vpack.c.bf16 %v636, %v634
        %v695 = vpack.c.bf16 %v639, %v637
        %v696 = vpack.c.bf16 %v640, %v638
        %v697 = vpack.c.bf16 %v643, %v641
        %v698 = vpack.c.bf16 %v644, %v642
        %v699 = vpack.c.bf16 %v647, %v645
        %v700 = vpack.c.bf16 %v648, %v646
        %v701 = vpack.c.bf16 %v651, %v649
        %v702 = vpack.c.bf16 %v652, %v650
        %v703 = vpack.c.bf16 %v655, %v653
        %v704 = vpack.c.bf16 %v656, %v654
        %v705 = vpack.c.bf16 %v659, %v657
        %v706 = vpack.c.bf16 %v660, %v658
        %v707 = vpack.c.bf16 %v663, %v661
        %v708 = vpack.c.bf16 %v664, %v662
        %v709 = vpack.c.bf16 %v667, %v665
        %v710 = vpack.c.bf16 %v668, %v666
        %v711 = vpack.c.bf16 %v671, %v669
        %v712 = vpack.c.bf16 %v672, %v670
        %v713 = vpack.c.bf16 %v675, %v673
        %v714 = vpack.c.bf16 %v676, %v674
        %v715 = vpack.c.bf16 %v679, %v677
        %v716 = vpack.c.bf16 %v680, %v678
        %v717 = vpack.c.bf16 %v683, %v681
        %v718 = vpack.c.bf16 %v684, %v682
        %v719 = vpack.c.bf16 %v687, %v685
        %v720 = vpack.c.bf16 %v688, %v686
        %v721 = vld [vmem:[%s4] sm:$0xff]
        %v722 = vld [vmem:[%s4 + $0x8] sm:$0xff]
        %v723 = vld [vmem:[%s4 + $0x10] sm:$0xff]
        %v724 = vld [vmem:[%s4 + $0x18] sm:$0xff]
        %v725 = vld [vmem:[%s4 + $0x20] sm:$0xff]
        %v726 = vld [vmem:[%s4 + $0x28] sm:$0xff]
        %v727 = vld [vmem:[%s4 + $0x30] sm:$0xff]
        %v728 = vld [vmem:[%s4 + $0x38] sm:$0xff]
        %v729 = vld [vmem:[%s4 + $0x40] sm:$0xff]
        %v730 = vld [vmem:[%s4 + $0x48] sm:$0xff]
        %v731 = vld [vmem:[%s4 + $0x50] sm:$0xff]
        %v732 = vld [vmem:[%s4 + $0x58] sm:$0xff]
        %v733 = vld [vmem:[%s4 + $0x60] sm:$0xff]
        %v734 = vld [vmem:[%s4 + $0x68] sm:$0xff]
        %v735 = vld [vmem:[%s4 + $0x70] sm:$0xff]
        %v736 = vld [vmem:[%s4 + $0x78] sm:$0xff]
        %v737 = vld [vmem:[%s4 + $0x80] sm:$0xff]
        %v738 = vld [vmem:[%s4 + $0x88] sm:$0xff]
        %v739 = vld [vmem:[%s4 + $0x90] sm:$0xff]
        %v740 = vld [vmem:[%s4 + $0x98] sm:$0xff]
        %v741 = vld [vmem:[%s4 + $0xa0] sm:$0xff]
        %v742 = vld [vmem:[%s4 + $0xa8] sm:$0xff]
        %v743 = vld [vmem:[%s4 + $0xb0] sm:$0xff]
        %v744 = vld [vmem:[%s4 + $0xb8] sm:$0xff]
        %v745 = vld [vmem:[%s4 + $0xc0] sm:$0xff]
        %v746 = vld [vmem:[%s4 + $0xc8] sm:$0xff]
        %v747 = vld [vmem:[%s4 + $0xd0] sm:$0xff]
        %v748 = vld [vmem:[%s4 + $0xd8] sm:$0xff]
        %v749 = vld [vmem:[%s4 + $0xe0] sm:$0xff]
        %v750 = vld [vmem:[%s4 + $0xe8] sm:$0xff]
        %v751 = vld [vmem:[%s4 + $0xf0] sm:$0xff]
        %v752 = vld [vmem:[%s4 + $0xf8] sm:$0xff]
        %v753 = vld [vmem:[%s5] sm:$0x3]
        %v755 = vlaneseq
        %v756 = vshrl.u32 %v755, 7
        %v757 = vsub.s32 0, %v756
        %v758 = vrot.slane %v753, %v757
        %v759 = vlaneseq
        %v760 = vshrl.u32 %v759, 7
        %v761 = vsub.s32 1, %v760
        %v762 = vrot.slane %v753, %v761
        %v797 = vunpack.c.l.b16 %v721
        %v798 = vunpack.c.h.b16 %v721
        %v799 = vunpack.c.l.b16 %v722
        %v800 = vunpack.c.h.b16 %v722
        %v801 = vunpack.c.l.b16 %v723
        %v802 = vunpack.c.h.b16 %v723
        %v803 = vunpack.c.l.b16 %v724
        %v804 = vunpack.c.h.b16 %v724
        %v805 = vunpack.c.l.b16 %v725
        %v806 = vunpack.c.h.b16 %v725
        %v807 = vunpack.c.l.b16 %v726
        %v808 = vunpack.c.h.b16 %v726
        %v809 = vunpack.c.l.b16 %v727
        %v810 = vunpack.c.h.b16 %v727
        %v811 = vunpack.c.l.b16 %v728
        %v812 = vunpack.c.h.b16 %v728
        %v813 = vunpack.c.l.b16 %v729
        %v814 = vunpack.c.h.b16 %v729
        %v815 = vunpack.c.l.b16 %v730
        %v816 = vunpack.c.h.b16 %v730
        %v817 = vunpack.c.l.b16 %v731
        %v818 = vunpack.c.h.b16 %v731
        %v819 = vunpack.c.l.b16 %v732
        %v820 = vunpack.c.h.b16 %v732
        %v821 = vunpack.c.l.b16 %v733
        %v822 = vunpack.c.h.b16 %v733
        %v823 = vunpack.c.l.b16 %v734
        %v824 = vunpack.c.h.b16 %v734
        %v825 = vunpack.c.l.b16 %v735
        %v826 = vunpack.c.h.b16 %v735
        %v827 = vunpack.c.l.b16 %v736
        %v828 = vunpack.c.h.b16 %v736
        %v829 = vunpack.c.l.b16 %v737
        %v830 = vunpack.c.h.b16 %v737
        %v831 = vunpack.c.l.b16 %v738
        %v832 = vunpack.c.h.b16 %v738
        %v833 = vunpack.c.l.b16 %v739
        %v834 = vunpack.c.h.b16 %v739
        %v835 = vunpack.c.l.b16 %v740
        %v836 = vunpack.c.h.b16 %v740
        %v837 = vunpack.c.l.b16 %v741
        %v838 = vunpack.c.h.b16 %v741
        %v839 = vunpack.c.l.b16 %v742
        %v840 = vunpack.c.h.b16 %v742
        %v841 = vunpack.c.l.b16 %v743
        %v842 = vunpack.c.h.b16 %v743
        %v843 = vunpack.c.l.b16 %v744
        %v844 = vunpack.c.h.b16 %v744
        %v845 = vunpack.c.l.b16 %v745
        %v846 = vunpack.c.h.b16 %v745
        %v847 = vunpack.c.l.b16 %v746
        %v848 = vunpack.c.h.b16 %v746
        %v849 = vunpack.c.l.b16 %v747
        %v850 = vunpack.c.h.b16 %v747
        %v851 = vunpack.c.l.b16 %v748
        %v852 = vunpack.c.h.b16 %v748
        %v853 = vunpack.c.l.b16 %v749
        %v854 = vunpack.c.h.b16 %v749
        %v855 = vunpack.c.l.b16 %v750
        %v856 = vunpack.c.h.b16 %v750
        %v857 = vunpack.c.l.b16 %v751
        %v858 = vunpack.c.h.b16 %v751
        %v859 = vunpack.c.l.b16 %v752
        %v860 = vunpack.c.h.b16 %v752
        %v861 = vpack.c.b16 %v799, %v797
        %v862 = vpack.c.b16 %v800, %v798
        %v863 = vpack.c.b16 %v803, %v801
        %v864 = vpack.c.b16 %v804, %v802
        %v865 = vpack.c.b16 %v807, %v805
        %v866 = vpack.c.b16 %v808, %v806
        %v867 = vpack.c.b16 %v811, %v809
        %v868 = vpack.c.b16 %v812, %v810
        %v869 = vpack.c.b16 %v815, %v813
        %v870 = vpack.c.b16 %v816, %v814
        %v871 = vpack.c.b16 %v819, %v817
        %v872 = vpack.c.b16 %v820, %v818
        %v873 = vpack.c.b16 %v823, %v821
        %v874 = vpack.c.b16 %v824, %v822
        %v875 = vpack.c.b16 %v827, %v825
        %v876 = vpack.c.b16 %v828, %v826
        %v877 = vpack.c.b16 %v831, %v829
        %v878 = vpack.c.b16 %v832, %v830
        %v879 = vpack.c.b16 %v835, %v833
        %v880 = vpack.c.b16 %v836, %v834
        %v881 = vpack.c.b16 %v839, %v837
        %v882 = vpack.c.b16 %v840, %v838
        %v883 = vpack.c.b16 %v843, %v841
        %v884 = vpack.c.b16 %v844, %v842
        %v885 = vpack.c.b16 %v847, %v845
        %v886 = vpack.c.b16 %v848, %v846
        %v887 = vpack.c.b16 %v851, %v849
        %v888 = vpack.c.b16 %v852, %v850
        %v889 = vpack.c.b16 %v855, %v853
        %v890 = vpack.c.b16 %v856, %v854
        %v891 = vpack.c.b16 %v859, %v857
        %v892 = vpack.c.b16 %v860, %v858
        %925 = vmatprep.subr.bf16.mxu0 %v876
        %926 = vmatpush1.bf16.msra.mxu0 %v875
        %927 = vmatprep.subr.bf16.mxu0 %v874
        %928 = vmatpush1.bf16.msra.mxu0 %v873
        %929 = vmatprep.subr.bf16.mxu0 %v872
        %930 = vmatpush1.bf16.msra.mxu0 %v871
        %931 = vmatprep.subr.bf16.mxu0 %v870
        %932 = vmatpush1.bf16.msra.mxu0 %v869
        %933 = vmatprep.subr.bf16.mxu0 %v868
        %934 = vmatpush1.bf16.msra.mxu0 %v867
        %935 = vmatprep.subr.bf16.mxu0 %v866
        %936 = vmatpush1.bf16.msra.mxu0 %v865
        %937 = vmatprep.subr.bf16.mxu0 %v864
        %938 = vmatpush1.bf16.msra.mxu0 %v863
        %939 = vmatprep.subr.bf16.mxu0 %v862
        %940 = vmatpush1.bf16.msra.mxu0 %v861
        %941 = vmatprep.subr.bf16.mxu0 %v892
        %942 = vmatpush2.bf16.msra.mxu0 %v891
        %943 = vmatprep.subr.bf16.mxu0 %v890
        %944 = vmatpush2.bf16.msra.mxu0 %v889
        %945 = vmatprep.subr.bf16.mxu0 %v888
        %946 = vmatpush2.bf16.msra.mxu0 %v887
        %947 = vmatprep.subr.bf16.mxu0 %v886
        %948 = vmatpush2.bf16.msra.mxu0 %v885
        %949 = vmatprep.subr.bf16.mxu0 %v884
        %950 = vmatpush2.bf16.msra.mxu0 %v883
        %951 = vmatprep.subr.bf16.mxu0 %v882
        %952 = vmatpush2.bf16.msra.mxu0 %v881
        %953 = vmatprep.subr.bf16.mxu0 %v880
        %954 = vmatpush2.bf16.msra.mxu0 %v879
        %955 = vmatprep.subr.bf16.mxu0 %v878
        %956 = vmatpush2.bf16.msra.mxu0 %v877
        %957 = vmatprep.mubr.bf16.mxu0 %v690
        %958 = vmatmul.mubr.bf16.gmra.mxu0 %v689
        %v959 = vpop.f32.mrf.mxu0
        %v960 = vadd.f32 %v758, %v959
        %v961 = vpop.f32.mrf.mxu0
        %v962 = vadd.f32 %v762, %v961
        %v963 = vpop.f32.mrf.mxu0
        %v964 = vadd.f32 %v758, %v963
        %v965 = vpop.f32.mrf.mxu0
        %v966 = vadd.f32 %v762, %v965
        %967 = vmatprep.mubr.bf16.mxu0 %v692
        %968 = vmatmul.mubr.bf16.gmra.mxu0 %v691
        %v969 = vpop.f32.mrf.mxu0
        %v970 = vadd.f32 %v758, %v969
        %v971 = vpop.f32.mrf.mxu0
        %v972 = vadd.f32 %v762, %v971
        %v973 = vpop.f32.mrf.mxu0
        %v974 = vadd.f32 %v758, %v973
        %v975 = vpop.f32.mrf.mxu0
        %v976 = vadd.f32 %v762, %v975
        %977 = vmatprep.mubr.bf16.mxu0 %v694
        %978 = vmatmul.mubr.bf16.gmra.mxu0 %v693
        %v979 = vpop.f32.mrf.mxu0
        %v980 = vadd.f32 %v758, %v979
        %v981 = vpop.f32.mrf.mxu0
        %v982 = vadd.f32 %v762, %v981
        %v983 = vpop.f32.mrf.mxu0
        %v984 = vadd.f32 %v758, %v983
        %v985 = vpop.f32.mrf.mxu0
        %v986 = vadd.f32 %v762, %v985
        %987 = vmatprep.mubr.bf16.mxu0 %v696
        %988 = vmatmul.mubr.bf16.gmra.mxu0 %v695
        %v989 = vpop.f32.mrf.mxu0
        %v990 = vadd.f32 %v758, %v989
        %v991 = vpop.f32.mrf.mxu0
        %v992 = vadd.f32 %v762, %v991
        %v993 = vpop.f32.mrf.mxu0
        %v994 = vadd.f32 %v758, %v993
        %v995 = vpop.f32.mrf.mxu0
        %v996 = vadd.f32 %v762, %v995
        %997 = vmatprep.mubr.bf16.mxu0 %v698
        %998 = vmatmul.mubr.bf16.gmra.mxu0 %v697
        %v999 = vpop.f32.mrf.mxu0
        %v1000 = vadd.f32 %v758, %v999
        %v1001 = vpop.f32.mrf.mxu0
        %v1002 = vadd.f32 %v762, %v1001
        %v1003 = vpop.f32.mrf.mxu0
        %v1004 = vadd.f32 %v758, %v1003
        %v1005 = vpop.f32.mrf.mxu0
        %v1006 = vadd.f32 %v762, %v1005
        %1007 = vmatprep.mubr.bf16.mxu0 %v700
        %1008 = vmatmul.mubr.bf16.gmra.mxu0 %v699
        %v1009 = vpop.f32.mrf.mxu0
        %v1010 = vadd.f32 %v758, %v1009
        %v1011 = vpop.f32.mrf.mxu0
        %v1012 = vadd.f32 %v762, %v1011
        %v1013 = vpop.f32.mrf.mxu0
        %v1014 = vadd.f32 %v758, %v1013
        %v1015 = vpop.f32.mrf.mxu0
        %v1016 = vadd.f32 %v762, %v1015
        %1017 = vmatprep.mubr.bf16.mxu0 %v702
        %1018 = vmatmul.mubr.bf16.gmra.mxu0 %v701
        %v1019 = vpop.f32.mrf.mxu0
        %v1020 = vadd.f32 %v758, %v1019
        %v1021 = vpop.f32.mrf.mxu0
        %v1022 = vadd.f32 %v762, %v1021
        %v1023 = vpop.f32.mrf.mxu0
        %v1024 = vadd.f32 %v758, %v1023
        %v1025 = vpop.f32.mrf.mxu0
        %v1026 = vadd.f32 %v762, %v1025
        %1027 = vmatprep.mubr.bf16.mxu0 %v704
        %1028 = vmatmul.mubr.bf16.gmra.mxu0 %v703
        %v1029 = vpop.f32.mrf.mxu0
        %v1030 = vadd.f32 %v758, %v1029
        %v1031 = vpop.f32.mrf.mxu0
        %v1032 = vadd.f32 %v762, %v1031
        %v1033 = vpop.f32.mrf.mxu0
        %v1034 = vadd.f32 %v758, %v1033
        %v1035 = vpop.f32.mrf.mxu0
        %v1036 = vadd.f32 %v762, %v1035
        %1037 = vmatprep.mubr.bf16.mxu0 %v706
        %1038 = vmatmul.mubr.bf16.gmra.mxu0 %v705
        %v1039 = vpop.f32.mrf.mxu0
        %v1040 = vadd.f32 %v758, %v1039
        %v1041 = vpop.f32.mrf.mxu0
        %v1042 = vadd.f32 %v762, %v1041
        %v1043 = vpop.f32.mrf.mxu0
        %v1044 = vadd.f32 %v758, %v1043
        %v1045 = vpop.f32.mrf.mxu0
        %v1046 = vadd.f32 %v762, %v1045
        %1047 = vmatprep.mubr.bf16.mxu0 %v708
        %1048 = vmatmul.mubr.bf16.gmra.mxu0 %v707
        %v1049 = vpop.f32.mrf.mxu0
        %v1050 = vadd.f32 %v758, %v1049
        %v1051 = vpop.f32.mrf.mxu0
        %v1052 = vadd.f32 %v762, %v1051
        %v1053 = vpop.f32.mrf.mxu0
        %v1054 = vadd.f32 %v758, %v1053
        %v1055 = vpop.f32.mrf.mxu0
        %v1056 = vadd.f32 %v762, %v1055
        %1057 = vmatprep.mubr.bf16.mxu0 %v710
        %1058 = vmatmul.mubr.bf16.gmra.mxu0 %v709
        %v1059 = vpop.f32.mrf.mxu0
        %v1060 = vadd.f32 %v758, %v1059
        %v1061 = vpop.f32.mrf.mxu0
        %v1062 = vadd.f32 %v762, %v1061
        %v1063 = vpop.f32.mrf.mxu0
        %v1064 = vadd.f32 %v758, %v1063
        %v1065 = vpop.f32.mrf.mxu0
        %v1066 = vadd.f32 %v762, %v1065
        %1067 = vmatprep.mubr.bf16.mxu0 %v712
        %1068 = vmatmul.mubr.bf16.gmra.mxu0 %v711
        %v1069 = vpop.f32.mrf.mxu0
        %v1070 = vadd.f32 %v758, %v1069
        %v1071 = vpop.f32.mrf.mxu0
        %v1072 = vadd.f32 %v762, %v1071
        %v1073 = vpop.f32.mrf.mxu0
        %v1074 = vadd.f32 %v758, %v1073
        %v1075 = vpop.f32.mrf.mxu0
        %v1076 = vadd.f32 %v762, %v1075
        %1077 = vmatprep.mubr.bf16.mxu0 %v714
        %1078 = vmatmul.mubr.bf16.gmra.mxu0 %v713
        %v1079 = vpop.f32.mrf.mxu0
        %v1080 = vadd.f32 %v758, %v1079
        %v1081 = vpop.f32.mrf.mxu0
        %v1082 = vadd.f32 %v762, %v1081
        %v1083 = vpop.f32.mrf.mxu0
        %v1084 = vadd.f32 %v758, %v1083
        %v1085 = vpop.f32.mrf.mxu0
        %v1086 = vadd.f32 %v762, %v1085
        %1087 = vmatprep.mubr.bf16.mxu0 %v716
        %1088 = vmatmul.mubr.bf16.gmra.mxu0 %v715
        %v1089 = vpop.f32.mrf.mxu0
        %v1090 = vadd.f32 %v758, %v1089
        %v1091 = vpop.f32.mrf.mxu0
        %v1092 = vadd.f32 %v762, %v1091
        %v1093 = vpop.f32.mrf.mxu0
        %v1094 = vadd.f32 %v758, %v1093
        %v1095 = vpop.f32.mrf.mxu0
        %v1096 = vadd.f32 %v762, %v1095
        %1097 = vmatprep.mubr.bf16.mxu0 %v718
        %1098 = vmatmul.mubr.bf16.gmra.mxu0 %v717
        %v1099 = vpop.f32.mrf.mxu0
        %v1100 = vadd.f32 %v758, %v1099
        %v1101 = vpop.f32.mrf.mxu0
        %v1102 = vadd.f32 %v762, %v1101
        %v1103 = vpop.f32.mrf.mxu0
        %v1104 = vadd.f32 %v758, %v1103
        %v1105 = vpop.f32.mrf.mxu0
        %v1106 = vadd.f32 %v762, %v1105
        %1107 = vmatprep.mubr.bf16.mxu0 %v720
        %1108 = vmatmul.mubr.bf16.gmra.mxu0 %v719
        %v1109 = vpop.f32.mrf.mxu0
        %v1110 = vadd.f32 %v758, %v1109
        %v1111 = vpop.f32.mrf.mxu0
        %v1112 = vadd.f32 %v762, %v1111
        %v1113 = vpop.f32.mrf.mxu0
        %v1114 = vadd.f32 %v758, %v1113
        %v1115 = vpop.f32.mrf.mxu0
        %v1116 = vadd.f32 %v762, %v1115
        %1117 = vdwg.mxu0
        %1118 = vst [vmem:[%s265] sm:$0xff] %v960
        %1119 = vst [vmem:[%s265 + $0x8] sm:$0xff] %v962
        %1120 = vst [vmem:[%s265 + $0x10] sm:$0xff] %v964
        %1121 = vst [vmem:[%s265 + $0x18] sm:$0xff] %v966
        %1122 = vst [vmem:[%s265 + $0x20] sm:$0xff] %v970
        %1123 = vst [vmem:[%s265 + $0x28] sm:$0xff] %v972
        %1124 = vst [vmem:[%s265 + $0x30] sm:$0xff] %v974
        %1125 = vst [vmem:[%s265 + $0x38] sm:$0xff] %v976
        %1126 = vst [vmem:[%s265 + $0x40] sm:$0xff] %v980
        %1127 = vst [vmem:[%s265 + $0x48] sm:$0xff] %v982
        %1128 = vst [vmem:[%s265 + $0x50] sm:$0xff] %v984
        %1129 = vst [vmem:[%s265 + $0x58] sm:$0xff] %v986
        %1130 = vst [vmem:[%s265 + $0x60] sm:$0xff] %v990
        %1131 = vst [vmem:[%s265 + $0x68] sm:$0xff] %v992
        %1132 = vst [vmem:[%s265 + $0x70] sm:$0xff] %v994
        %1133 = vst [vmem:[%s265 + $0x78] sm:$0xff] %v996
        %1134 = vst [vmem:[%s265 + $0x80] sm:$0xff] %v1000
        %1135 = vst [vmem:[%s265 + $0x88] sm:$0xff] %v1002
        %1136 = vst [vmem:[%s265 + $0x90] sm:$0xff] %v1004
        %1137 = vst [vmem:[%s265 + $0x98] sm:$0xff] %v1006
        %1138 = vst [vmem:[%s265 + $0xa0] sm:$0xff] %v1010
        %1139 = vst [vmem:[%s265 + $0xa8] sm:$0xff] %v1012
        %1140 = vst [vmem:[%s265 + $0xb0] sm:$0xff] %v1014
        %1141 = vst [vmem:[%s265 + $0xb8] sm:$0xff] %v1016
        %1142 = vst [vmem:[%s265 + $0xc0] sm:$0xff] %v1020
        %1143 = vst [vmem:[%s265 + $0xc8] sm:$0xff] %v1022
        %1144 = vst [vmem:[%s265 + $0xd0] sm:$0xff] %v1024
        %1145 = vst [vmem:[%s265 + $0xd8] sm:$0xff] %v1026
        %1146 = vst [vmem:[%s265 + $0xe0] sm:$0xff] %v1030
        %1147 = vst [vmem:[%s265 + $0xe8] sm:$0xff] %v1032
        %1148 = vst [vmem:[%s265 + $0xf0] sm:$0xff] %v1034
        %1149 = vst [vmem:[%s265 + $0xf8] sm:$0xff] %v1036
        %1150 = vst [vmem:[%s265 + $0x100] sm:$0xff] %v1040
        %1151 = vst [vmem:[%s265 + $0x108] sm:$0xff] %v1042
        %1152 = vst [vmem:[%s265 + $0x110] sm:$0xff] %v1044
        %1153 = vst [vmem:[%s265 + $0x118] sm:$0xff] %v1046
        %1154 = vst [vmem:[%s265 + $0x120] sm:$0xff] %v1050
        %1155 = vst [vmem:[%s265 + $0x128] sm:$0xff] %v1052
        %1156 = vst [vmem:[%s265 + $0x130] sm:$0xff] %v1054
        %1157 = vst [vmem:[%s265 + $0x138] sm:$0xff] %v1056
        %1158 = vst [vmem:[%s265 + $0x140] sm:$0xff] %v1060
        %1159 = vst [vmem:[%s265 + $0x148] sm:$0xff] %v1062
        %1160 = vst [vmem:[%s265 + $0x150] sm:$0xff] %v1064
        %1161 = vst [vmem:[%s265 + $0x158] sm:$0xff] %v1066
        %1162 = vst [vmem:[%s265 + $0x160] sm:$0xff] %v1070
        %1163 = vst [vmem:[%s265 + $0x168] sm:$0xff] %v1072
        %1164 = vst [vmem:[%s265 + $0x170] sm:$0xff] %v1074
        %1165 = vst [vmem:[%s265 + $0x178] sm:$0xff] %v1076
        %1166 = vst [vmem:[%s265 + $0x180] sm:$0xff] %v1080
        %1167 = vst [vmem:[%s265 + $0x188] sm:$0xff] %v1082
        %1168 = vst [vmem:[%s265 + $0x190] sm:$0xff] %v1084
        %1169 = vst [vmem:[%s265 + $0x198] sm:$0xff] %v1086
        %1170 = vst [vmem:[%s265 + $0x1a0] sm:$0xff] %v1090
        %1171 = vst [vmem:[%s265 + $0x1a8] sm:$0xff] %v1092
        %1172 = vst [vmem:[%s265 + $0x1b0] sm:$0xff] %v1094
        %1173 = vst [vmem:[%s265 + $0x1b8] sm:$0xff] %v1096
        %1174 = vst [vmem:[%s265 + $0x1c0] sm:$0xff] %v1100
        %1175 = vst [vmem:[%s265 + $0x1c8] sm:$0xff] %v1102
        %1176 = vst [vmem:[%s265 + $0x1d0] sm:$0xff] %v1104
        %1177 = vst [vmem:[%s265 + $0x1d8] sm:$0xff] %v1106
        %1178 = vst [vmem:[%s265 + $0x1e0] sm:$0xff] %v1110
        %1179 = vst [vmem:[%s265 + $0x1e8] sm:$0xff] %v1112
        %1180 = vst [vmem:[%s265 + $0x1f0] sm:$0xff] %v1114
        %1181 = vst [vmem:[%s265 + $0x1f8] sm:$0xff] %v1116
        %s1182 = sand.u32 %s164, 1
        %s1183 = scalar_lea.sflag [#allocation3], %s1182
        %s1184 = sand.u32 %s164, 1
        %s1185 = smul.addr %s1184, 512
        %s1186 = scalar_lea.vmem [#allocation2], %s1185
        // Predicated region
        $region45: #{resnet3d_block.5} parent=43 // pred_check
          %p1187 = pneg %p174
        $region46: #{resnet3d_block.5} parent=43 // pred_check_branch
          %1189 = sbr.rel (%p1187) target = $region48
        $region47: #{resnet3d_block.5} parent=43 // pred_region
          %s1190 = smul.u32 32, %s20
          %s1192 = ssub.s32 8192, 8192
          %1193 = vsyncadd %s1183, %s1192
          %s1194 = smul.addr %s1190, 2
          %s1195 = smul.addr %s1194, 128
          %s1196 = scalar_lea.hbm %s6, %s1195
          %s1197 = sshll.u32 %s1186, 4
          %s1198 = int_to_ptr.vmem [resolvable:$true] %s1197
          %1203 = dma.vmem_to_hbm [thread:$0]  %s1198, 8192, %s1196, %s1183, 256, 256, 16
        $region48: #{resnet3d_block.5} parent=43 // pred_fallthru
          _
      $region44: #{resnet3d_block.5} parent=5 // pred_fallthru
        _
      %p1204 = scmp.le.s32.totalorder 2, %s15
      // Predicated region
      $region49: #{resnet3d_block.5} parent=5 // pred_check
        %p1205 = pneg %p1204
      $region50: #{resnet3d_block.5} parent=5 // pred_check_branch
        %1207 = sbr.rel (%p1205) target = $region52
      $region51: #{resnet3d_block.5} parent=5 // pred_region
        %s1208 = ssub.s32 %s15, 2
        // Predicated region
        $region53: #{resnet3d_block.5} parent=51 // pred_check
          %p1209 = pneg %p180
        $region54: #{resnet3d_block.5} parent=51 // pred_check_branch
          %1211 = sbr.rel (%p1209) target = $region56
        $region55: #{resnet3d_block.5} parent=51 // pred_region
          %s1212 = sand.u32 %s165, 1
          %s1213 = scalar_lea.sflag [#allocation3], %s1212
          %s1214 = sand.u32 %s165, 1
          %s1215 = smul.addr %s1214, 512
          %s1216 = scalar_lea.vmem [#allocation2], %s1215
          %1217 = dma.done %s1213, 8192
        $region56: #{resnet3d_block.5} parent=51 // pred_fallthru
          _
      $region52: #{resnet3d_block.5} parent=5 // pred_fallthru
        _
    $region6: #{resnet3d_block.5} parent=1 // loop_footer
      %s19 = sadd.s32 1, %s15
    $region7: #{resnet3d_block.5} parent=1 // loop_footer_branch
      %14 = sbr.rel target = $region3
    $region8: #{resnet3d_block.5} parent=1 // loop_exit
      _
    %1218 = vsyncpa [#allocation3], 1
    %s1219 = scalar_lea.sflag [#allocation3], 1
    %1220 = vsyncpa %s1219, 1

// kernel: resnet3d_block.4
$region0: #{resnet3d_block.4}
  #allocation0 [shape = 'u32[]', space=smem, size = 0x4, offset = 0x4, fixed_abs, tag = 'smem constant byte address 0x4 - core index']
  #allocation1 [shape = 'u32[144,128]{1,0:T(1,128)}', space=vmem, size = 0x12000, scoped, tag = 'internal scratch']
  %s0 = inlined_call_operand.vmem [shape: f32[2,10,10,10,128], index: 0, kind: input, shape index: {}, may-alias: {0,1,2}]
  %s1 = inlined_call_operand.vmem [shape: f32[2,10,10,10,128], index: 1, kind: input, shape index: {}, may-alias: {0,1,2}]
  %s2 = inlined_call_operand.vmem [shape: f32[2,10,10,10,128], index: 2, kind: input, shape index: {}, may-alias: {0,1,2}]
  %s3 = inlined_call_operand.vmem [shape: f32[10,10,128], index: 3, kind: input, shape index: {}]
  %s4 = inlined_call_operand.vmem [shape: f32[1,128], index: 4, kind: input, shape index: {}]
  %s5 = inlined_call_operand.vmem [shape: f32[1,128], index: 5, kind: input, shape index: {}]
  %s6 = inlined_call_operand.vmem [shape: bf16[3,3,384,256], index: 6, kind: input, shape index: {}]
  %s7 = inlined_call_operand.vmem [shape: f32[1,256], index: 7, kind: input, shape index: {}]
  %s8 = inlined_call_operand.vmem [shape: f32[2,8,8,8,256], index: 8, kind: output, shape index: {0}]
  %s9 = inlined_call_operand.vmem [shape: f32[2,8,8,256], index: 9, kind: output, shape index: {1}]
  %10 = xla_tuple %s8, %s9
  %s11 = sld [smem:[#allocation0]]
  $region73: #{resnet3d_block.4} parent=0
    _
  %s13 = ssub.s32 1, %s11
  %s14 = scalar_select 0, %s13, %s11
  loop: start=0, step=1, limit=18
  $region2: #{resnet3d_block.4} parent=0 // loop_pre_header
    _
  $region3: #{resnet3d_block.4} parent=0 // loop_header
    %s16 = sphi 0, %s20
    %p17 = scmp.ge.s32.totalorder %s16, 18
    %s23 = sphi 0, %s35
    %s24 = sphi 0, %s31
    %s25 = sphi 0, %s23
    %s26 = sphi 0, %s24
    %s27 = sphi 0, %s25
    %s28 = sphi 0, %s26
    %s40 = sphi 0, %s42
    %s43 = sphi 0, %s40
    %s44 = sphi 0, %s43
    %s60 = sphi 0, %s44
    %s70 = sphi 0, %s72
    %s73 = sphi 0, %s70
    %s74 = sphi 0, %s73
    %s90 = sphi 0, %s74
    %s100 = sphi 0, %s102
    %s103 = sphi 0, %s100
    %s104 = sphi 0, %s103
    %s120 = sphi 0, %s104
    %s124 = sphi 0, %s124
    %s126 = sphi 0, %s124
    %s127 = sphi 0, %s126
    %s141 = sphi 0, %s127
    %s145 = sphi 0, %s145
    %s147 = sphi 0, %s145
    %s148 = sphi 0, %s147
    %s162 = sphi 0, %s148
    %s166 = sphi 0, %s166
    %s168 = sphi 0, %s166
    %s169 = sphi 0, %s168
    %s183 = sphi 0, %s169
    %s187 = sphi 0, %s187
    %s189 = sphi 0, %s187
    %s190 = sphi 0, %s189
    %s204 = sphi 0, %s190
    %s208 = sphi 0, %s208
    %s210 = sphi 0, %s208
    %s211 = sphi 0, %s210
    %s225 = sphi 0, %s211
    %s233 = sphi 0, %s235
    %s236 = sphi 0, %s233
    %s237 = sphi 0, %s236
    %s253 = sphi 0, %s237
    %s261 = sphi 0, %s263
    %s264 = sphi 0, %s261
    %s265 = sphi 0, %s264
    %s281 = sphi 0, %s265
  $region4: #{resnet3d_block.4} parent=0 // loop_header_branch
    %19 = sbr.rel (%p17) target = $region8
  $region5: #{resnet3d_block.4} parent=0 // loop_body
    %s21 = ssub.s32 %s16, 1
    %s22 = ssub.s32 %s16, 2
    %s29 = sadd.s32 1, %s24
    %p30 = scmp.ge.s32.totalorder %s29, 8
    %s31 = scalar_select %p30, 0, %s29
    %s32 = sadd.s32 1, %s23
    %s33 = scalar_select %p30, %s32, %s23
    %p34 = scmp.ge.s32.totalorder %s33, 2
    %s35 = scalar_select %p34, 0, %s33
    %s36 = ssub.s32 %s23, %s35
    %s37 = ssub.s32 %s24, %s31
    %s38 = sor.u32 %s36, %s37
    %p39 = scmp.eq.s32.totalorder %s38, 0
    %s41 = sadd.s32 %s40, 1
    %s42 = scalar_select %p39, %s40, %s41
    %p45 = pneg %p39
    %p46 = scmp.eq.s32.totalorder %s16, 15
    %p47 = por %p45, %p46
    %p48 = scmp.ne.s32.totalorder %s40, %s43
    %p49 = scmp.eq.s32.totalorder %s16, 0
    %p50 = por %p48, %p49
    %p51 = scmp.ne.s32.totalorder %s40, %s43
    %p52 = scmp.eq.s32.totalorder %s21, 15
    %p53 = por %p51, %p52
    %p54 = scmp.ne.s32.totalorder %s43, %s44
    %p55 = scmp.eq.s32.totalorder %s21, 0
    %p56 = por %p54, %p55
    %p57 = scmp.ne.s32.totalorder %s43, %s44
    %p58 = scmp.eq.s32.totalorder %s22, 15
    %p59 = por %p57, %p58
    %p61 = scmp.ne.s32.totalorder %s44, %s60
    %p62 = scmp.eq.s32.totalorder %s22, 0
    %p63 = por %p61, %p62
    %s64 = sadd.s32 %s24, 1
    %s65 = sadd.s32 %s31, 1
    %s66 = ssub.s32 %s23, %s35
    %s67 = ssub.s32 %s64, %s65
    %s68 = sor.u32 %s66, %s67
    %p69 = scmp.eq.s32.totalorder %s68, 0
    %s71 = sadd.s32 %s70, 1
    %s72 = scalar_select %p69, %s70, %s71
    %p75 = pneg %p69
    %p76 = scmp.eq.s32.totalorder %s16, 15
    %p77 = por %p75, %p76
    %p78 = scmp.ne.s32.totalorder %s70, %s73
    %p79 = scmp.eq.s32.totalorder %s16, 0
    %p80 = por %p78, %p79
    %p81 = scmp.ne.s32.totalorder %s70, %s73
    %p82 = scmp.eq.s32.totalorder %s21, 15
    %p83 = por %p81, %p82
    %p84 = scmp.ne.s32.totalorder %s73, %s74
    %p85 = scmp.eq.s32.totalorder %s21, 0
    %p86 = por %p84, %p85
    %p87 = scmp.ne.s32.totalorder %s73, %s74
    %p88 = scmp.eq.s32.totalorder %s22, 15
    %p89 = por %p87, %p88
    %p91 = scmp.ne.s32.totalorder %s74, %s90
    %p92 = scmp.eq.s32.totalorder %s22, 0
    %p93 = por %p91, %p92
    %s94 = sadd.s32 %s24, 2
    %s95 = sadd.s32 %s31, 2
    %s96 = ssub.s32 %s23, %s35
    %s97 = ssub.s32 %s94, %s95
    %s98 = sor.u32 %s96, %s97
    %p99 = scmp.eq.s32.totalorder %s98, 0
    %s101 = sadd.s32 %s100, 1
    %s102 = scalar_select %p99, %s100, %s101
    %p105 = pneg %p99
    %p106 = scmp.eq.s32.totalorder %s16, 15
    %p107 = por %p105, %p106
    %p108 = scmp.ne.s32.totalorder %s100, %s103
    %p109 = scmp.eq.s32.totalorder %s16, 0
    %p110 = por %p108, %p109
    %p111 = scmp.ne.s32.totalorder %s100, %s103
    %p112 = scmp.eq.s32.totalorder %s21, 15
    %p113 = por %p111, %p112
    %p114 = scmp.ne.s32.totalorder %s103, %s104
    %p115 = scmp.eq.s32.totalorder %s21, 0
    %p116 = por %p114, %p115
    %p117 = scmp.ne.s32.totalorder %s103, %s104
    %p118 = scmp.eq.s32.totalorder %s22, 15
    %p119 = por %p117, %p118
    %p121 = scmp.ne.s32.totalorder %s104, %s120
    %p122 = scmp.eq.s32.totalorder %s22, 0
    %p123 = por %p121, %p122
    %s125 = sadd.s32 %s124, 1
    %p128 = scmp.eq.s32.totalorder %s16, 15
    %p129 = scmp.ne.s32.totalorder %s124, %s126
    %p130 = scmp.eq.s32.totalorder %s16, 0
    %p131 = por %p129, %p130
    %p132 = scmp.ne.s32.totalorder %s124, %s126
    %p133 = scmp.eq.s32.totalorder %s21, 15
    %p134 = por %p132, %p133
    %p135 = scmp.ne.s32.totalorder %s126, %s127
    %p136 = scmp.eq.s32.totalorder %s21, 0
    %p137 = por %p135, %p136
    %p138 = scmp.ne.s32.totalorder %s126, %s127
    %p139 = scmp.eq.s32.totalorder %s22, 15
    %p140 = por %p138, %p139
    %p142 = scmp.ne.s32.totalorder %s127, %s141
    %p143 = scmp.eq.s32.totalorder %s22, 0
    %p144 = por %p142, %p143
    %s146 = sadd.s32 %s145, 1
    %p149 = scmp.eq.s32.totalorder %s16, 15
    %p150 = scmp.ne.s32.totalorder %s145, %s147
    %p151 = scmp.eq.s32.totalorder %s16, 0
    %p152 = por %p150, %p151
    %p153 = scmp.ne.s32.totalorder %s145, %s147
    %p154 = scmp.eq.s32.totalorder %s21, 15
    %p155 = por %p153, %p154
    %p156 = scmp.ne.s32.totalorder %s147, %s148
    %p157 = scmp.eq.s32.totalorder %s21, 0
    %p158 = por %p156, %p157
    %p159 = scmp.ne.s32.totalorder %s147, %s148
    %p160 = scmp.eq.s32.totalorder %s22, 15
    %p161 = por %p159, %p160
    %p163 = scmp.ne.s32.totalorder %s148, %s162
    %p164 = scmp.eq.s32.totalorder %s22, 0
    %p165 = por %p163, %p164
    %s167 = sadd.s32 %s166, 1
    %p170 = scmp.eq.s32.totalorder %s16, 15
    %p171 = scmp.ne.s32.totalorder %s166, %s168
    %p172 = scmp.eq.s32.totalorder %s16, 0
    %p173 = por %p171, %p172
    %p174 = scmp.ne.s32.totalorder %s166, %s168
    %p175 = scmp.eq.s32.totalorder %s21, 15
    %p176 = por %p174, %p175
    %p177 = scmp.ne.s32.totalorder %s168, %s169
    %p178 = scmp.eq.s32.totalorder %s21, 0
    %p179 = por %p177, %p178
    %p180 = scmp.ne.s32.totalorder %s168, %s169
    %p181 = scmp.eq.s32.totalorder %s22, 15
    %p182 = por %p180, %p181
    %p184 = scmp.ne.s32.totalorder %s169, %s183
    %p185 = scmp.eq.s32.totalorder %s22, 0
    %p186 = por %p184, %p185
    %s188 = sadd.s32 %s187, 1
    %p191 = scmp.eq.s32.totalorder %s16, 15
    %p192 = scmp.ne.s32.totalorder %s187, %s189
    %p193 = scmp.eq.s32.totalorder %s16, 0
    %p194 = por %p192, %p193
    %p195 = scmp.ne.s32.totalorder %s187, %s189
    %p196 = scmp.eq.s32.totalorder %s21, 15
    %p197 = por %p195, %p196
    %p198 = scmp.ne.s32.totalorder %s189, %s190
    %p199 = scmp.eq.s32.totalorder %s21, 0
    %p200 = por %p198, %p199
    %p201 = scmp.ne.s32.totalorder %s189, %s190
    %p202 = scmp.eq.s32.totalorder %s22, 15
    %p203 = por %p201, %p202
    %p205 = scmp.ne.s32.totalorder %s190, %s204
    %p206 = scmp.eq.s32.totalorder %s22, 0
    %p207 = por %p205, %p206
    %s209 = sadd.s32 %s208, 1
    %p212 = scmp.eq.s32.totalorder %s16, 15
    %p213 = scmp.ne.s32.totalorder %s208, %s210
    %p214 = scmp.eq.s32.totalorder %s16, 0
    %p215 = por %p213, %p214
    %p216 = scmp.ne.s32.totalorder %s208, %s210
    %p217 = scmp.eq.s32.totalorder %s21, 15
    %p218 = por %p216, %p217
    %p219 = scmp.ne.s32.totalorder %s210, %s211
    %p220 = scmp.eq.s32.totalorder %s21, 0
    %p221 = por %p219, %p220
    %p222 = scmp.ne.s32.totalorder %s210, %s211
    %p223 = scmp.eq.s32.totalorder %s22, 15
    %p224 = por %p222, %p223
    %p226 = scmp.ne.s32.totalorder %s211, %s225
    %p227 = scmp.eq.s32.totalorder %s22, 0
    %p228 = por %p226, %p227
    %s229 = ssub.s32 %s23, %s35
    %s230 = ssub.s32 %s24, %s31
    %s231 = sor.u32 %s229, %s230
    %p232 = scmp.eq.s32.totalorder %s231, 0
    %s234 = sadd.s32 %s233, 1
    %s235 = scalar_select %p232, %s233, %s234
    %p238 = pneg %p232
    %p239 = scmp.eq.s32.totalorder %s16, 15
    %p240 = por %p238, %p239
    %p241 = scmp.ne.s32.totalorder %s233, %s236
    %p242 = scmp.eq.s32.totalorder %s16, 0
    %p243 = por %p241, %p242
    %p244 = scmp.ne.s32.totalorder %s233, %s236
    %p245 = scmp.eq.s32.totalorder %s21, 15
    %p246 = por %p244, %p245
    %p247 = scmp.ne.s32.totalorder %s236, %s237
    %p248 = scmp.eq.s32.totalorder %s21, 0
    %p249 = por %p247, %p248
    %p250 = scmp.ne.s32.totalorder %s236, %s237
    %p251 = scmp.eq.s32.totalorder %s22, 15
    %p252 = por %p250, %p251
    %p254 = scmp.ne.s32.totalorder %s237, %s253
    %p255 = scmp.eq.s32.totalorder %s22, 0
    %p256 = por %p254, %p255
    %s257 = ssub.s32 %s23, %s35
    %s258 = ssub.s32 %s24, %s31
    %s259 = sor.u32 %s257, %s258
    %p260 = scmp.eq.s32.totalorder %s259, 0
    %s262 = sadd.s32 %s261, 1
    %s263 = scalar_select %p260, %s261, %s262
    %p266 = pneg %p260
    %p267 = scmp.eq.s32.totalorder %s16, 15
    %p268 = por %p266, %p267
    %p269 = scmp.ne.s32.totalorder %s261, %s264
    %p270 = scmp.eq.s32.totalorder %s16, 0
    %p271 = por %p269, %p270
    %p272 = scmp.ne.s32.totalorder %s261, %s264
    %p273 = scmp.eq.s32.totalorder %s21, 15
    %p274 = por %p272, %p273
    %p275 = scmp.ne.s32.totalorder %s264, %s265
    %p276 = scmp.eq.s32.totalorder %s21, 0
    %p277 = por %p275, %p276
    %p278 = scmp.ne.s32.totalorder %s264, %s265
    %p279 = scmp.eq.s32.totalorder %s22, 15
    %p280 = por %p278, %p279
    %p282 = scmp.ne.s32.totalorder %s265, %s281
    %p283 = scmp.eq.s32.totalorder %s22, 0
    %p284 = por %p282, %p283
    %p285 = scmp.le.s32.totalorder 1, %s16
    %p286 = scmp.lt.s32.totalorder %s16, 17
    %p287 = pnand %p285, %p286
    %p288 = pneg %p287
    // Predicated region
    $region9: #{resnet3d_block.4} parent=5 // pred_check
      _
    $region10: #{resnet3d_block.4} parent=5 // pred_check_branch
      %290 = sbr.rel (%p287) target = $region12
    $region11: #{resnet3d_block.4} parent=5 // pred_region
      %s291 = ssub.s32 %s16, 1
      // Predicated region
      $region13: #{resnet3d_block.4} parent=11 // pred_check
        %p292 = pneg %p137
      $region14: #{resnet3d_block.4} parent=11 // pred_check_branch
        %294 = sbr.rel (%p292) target = $region16
      $region15: #{resnet3d_block.4} parent=11 // pred_region
        _
      $region16: #{resnet3d_block.4} parent=11 // pred_fallthru
        _
      // Predicated region
      $region17: #{resnet3d_block.4} parent=11 // pred_check
        %p295 = pneg %p158
      $region18: #{resnet3d_block.4} parent=11 // pred_check_branch
        %297 = sbr.rel (%p295) target = $region20
      $region19: #{resnet3d_block.4} parent=11 // pred_region
        _
      $region20: #{resnet3d_block.4} parent=11 // pred_fallthru
        _
      // Predicated region
      $region21: #{resnet3d_block.4} parent=11 // pred_check
        %p298 = pneg %p179
      $region22: #{resnet3d_block.4} parent=11 // pred_check_branch
        %300 = sbr.rel (%p298) target = $region24
      $region23: #{resnet3d_block.4} parent=11 // pred_region
        _
      $region24: #{resnet3d_block.4} parent=11 // pred_fallthru
        _
      // Predicated region
      $region25: #{resnet3d_block.4} parent=11 // pred_check
        %p301 = pneg %p200
      $region26: #{resnet3d_block.4} parent=11 // pred_check_branch
        %303 = sbr.rel (%p301) target = $region28
      $region27: #{resnet3d_block.4} parent=11 // pred_region
        _
      $region28: #{resnet3d_block.4} parent=11 // pred_fallthru
        _
      // Predicated region
      $region29: #{resnet3d_block.4} parent=11 // pred_check
        %p304 = pneg %p221
      $region30: #{resnet3d_block.4} parent=11 // pred_check_branch
        %306 = sbr.rel (%p304) target = $region32
      $region31: #{resnet3d_block.4} parent=11 // pred_region
        _
      $region32: #{resnet3d_block.4} parent=11 // pred_fallthru
        _
    $region12: #{resnet3d_block.4} parent=5 // pred_fallthru
      _
    %p307 = scmp.lt.s32.totalorder %s16, 16
    // Predicated region
    $region33: #{resnet3d_block.4} parent=5 // pred_check
      %p308 = pneg %p307
    $region34: #{resnet3d_block.4} parent=5 // pred_check_branch
      %310 = sbr.rel (%p308) target = $region36
    $region35: #{resnet3d_block.4} parent=5 // pred_region
      // Predicated region
      $region37: #{resnet3d_block.4} parent=35 // pred_check
        %p311 = pneg %p50
      $region38: #{resnet3d_block.4} parent=35 // pred_check_branch
        %313 = sbr.rel (%p311) target = $region40
      $region39: #{resnet3d_block.4} parent=35 // pred_region
        %p314 = scmp.lt.s32.totalorder %s23, 1
        %s315 = scalar_select %p314, %s23, 1
        %p316 = scmp.lt.s32.totalorder %s24, 9
        %s317 = scalar_select %p316, %s24, 9
        %s318 = smul.addr %s317, 20
        %s319 = smul.addr %s315, 200
        %s320 = sadd.s32 %s318, %s319
        %s321 = smul.addr %s320, 8
        %s322 = scalar_lea.vmem %s0, %s321
      $region40: #{resnet3d_block.4} parent=35 // pred_fallthru
        _
      // Predicated region
      $region41: #{resnet3d_block.4} parent=35 // pred_check
        %p323 = pneg %p80
      $region42: #{resnet3d_block.4} parent=35 // pred_check_branch
        %325 = sbr.rel (%p323) target = $region44
      $region43: #{resnet3d_block.4} parent=35 // pred_region
        %s326 = sadd.s32 %s24, 1
        %p327 = scmp.lt.s32.totalorder %s23, 1
        %s328 = scalar_select %p327, %s23, 1
        %p329 = scmp.lt.s32.totalorder %s326, 9
        %s330 = scalar_select %p329, %s326, 9
        %s331 = smul.addr %s330, 20
        %s332 = smul.addr %s328, 200
        %s333 = sadd.s32 %s331, %s332
        %s334 = smul.addr %s333, 8
        %s335 = scalar_lea.vmem %s1, %s334
        %s336 = sadd.s32 %s24, 1
      $region44: #{resnet3d_block.4} parent=35 // pred_fallthru
        _
      // Predicated region
      $region45: #{resnet3d_block.4} parent=35 // pred_check
        %p337 = pneg %p110
      $region46: #{resnet3d_block.4} parent=35 // pred_check_branch
        %339 = sbr.rel (%p337) target = $region48
      $region47: #{resnet3d_block.4} parent=35 // pred_region
        %s340 = sadd.s32 %s24, 2
        %p341 = scmp.lt.s32.totalorder %s23, 1
        %s342 = scalar_select %p341, %s23, 1
        %p343 = scmp.lt.s32.totalorder %s340, 9
        %s344 = scalar_select %p343, %s340, 9
        %s345 = smul.addr %s344, 20
        %s346 = smul.addr %s342, 200
        %s347 = sadd.s32 %s345, %s346
        %s348 = smul.addr %s347, 8
        %s349 = scalar_lea.vmem %s2, %s348
        %s350 = sadd.s32 %s24, 2
      $region48: #{resnet3d_block.4} parent=35 // pred_fallthru
        _
    $region36: #{resnet3d_block.4} parent=5 // pred_fallthru
      _
    %p351 = scmp.le.s32.totalorder 1, %s16
    %p352 = scmp.lt.s32.totalorder %s16, 17
    %p353 = pnand %p351, %p352
    %p354 = pneg %p353
    // Predicated region
    $region49: #{resnet3d_block.4} parent=5 // pred_check
      _
    $region50: #{resnet3d_block.4} parent=5 // pred_check_branch
      %356 = sbr.rel (%p353) target = $region52
    $region51: #{resnet3d_block.4} parent=5 // pred_region
      %s357 = ssub.s32 %s16, 1
      %p358 = scmp.lt.s32.totalorder %s25, 1
      %s359 = scalar_select %p358, %s25, 1
      %p360 = scmp.lt.s32.totalorder %s26, 9
      %s361 = scalar_select %p360, %s26, 9
      %s362 = smul.addr %s361, 20
      %s363 = smul.addr %s359, 200
      %s364 = sadd.s32 %s362, %s363
      %s365 = smul.addr %s364, 8
      %s366 = scalar_lea.vmem %s0, %s365
      %p367 = pneg %p56
      %p368 = pneg %p53
      %s369 = sadd.s32 %s26, 1
      %p370 = scmp.lt.s32.totalorder %s25, 1
      %s371 = scalar_select %p370, %s25, 1
      %p372 = scmp.lt.s32.totalorder %s369, 9
      %s373 = scalar_select %p372, %s369, 9
      %s374 = smul.addr %s373, 20
      %s375 = smul.addr %s371, 200
      %s376 = sadd.s32 %s374, %s375
      %s377 = smul.addr %s376, 8
      %s378 = scalar_lea.vmem %s1, %s377
      %p379 = pneg %p86
      %p380 = pneg %p83
      %s381 = sadd.s32 %s26, 2
      %p382 = scmp.lt.s32.totalorder %s25, 1
      %s383 = scalar_select %p382, %s25, 1
      %p384 = scmp.lt.s32.totalorder %s381, 9
      %s385 = scalar_select %p384, %s381, 9
      %s386 = smul.addr %s385, 20
      %s387 = smul.addr %s383, 200
      %s388 = sadd.s32 %s386, %s387
      %s389 = smul.addr %s388, 8
      %s390 = scalar_lea.vmem %s2, %s389
      %p391 = pneg %p116
      %p392 = pneg %p113
      %p393 = pneg %p137
      %p394 = pneg %p134
      %p395 = pneg %p158
      %p396 = pneg %p155
      %p397 = pneg %p179
      %p398 = pneg %p176
      %p399 = pneg %p200
      %p400 = pneg %p197
      %p401 = pneg %p221
      %p402 = pneg %p218
      %p403 = pneg %p249
      %p404 = pneg %p246
      %p405 = scmp.lt.s32.totalorder %s25, 1
      %s406 = scalar_select %p405, %s25, 1
      %p407 = scmp.lt.s32.totalorder %s26, 7
      %s408 = scalar_select %p407, %s26, 7
      %s409 = smul.addr %s408, 16
      %s410 = smul.addr %s406, 128
      %s411 = sadd.s32 %s409, %s410
      %s412 = smul.addr %s411, 8
      %s413 = scalar_lea.vmem %s8, %s412
      %p414 = pneg %p277
      %p415 = pneg %p274
      %p416 = scmp.lt.s32.totalorder %s25, 1
      %s417 = scalar_select %p416, %s25, 1
      %p418 = scmp.lt.s32.totalorder %s26, 7
      %s419 = scalar_select %p418, %s26, 7
      %s420 = smul.addr %s419, 2
      %s421 = smul.addr %s417, 16
      %s422 = sadd.s32 %s420, %s421
      %s423 = smul.addr %s422, 8
      %s424 = scalar_lea.vmem %s9, %s423
      %p425 = scmp.lt.s32.totalorder %s25, 1
      %s426 = scalar_select %p425, %s25, 1
      %p427 = scmp.lt.s32.totalorder %s26, 9
      %s428 = scalar_select %p427, %s26, 9
      %s429 = smul.addr %s428, 20
      %s430 = smul.addr %s426, 200
      %s431 = sadd.s32 %s429, %s430
      %s432 = smul.addr %s431, 8
      %s433 = scalar_lea.vmem %s0, %s432
      %s434 = sadd.s32 %s26, 1
      %p435 = scmp.lt.s32.totalorder %s25, 1
      %s436 = scalar_select %p435, %s25, 1
      %p437 = scmp.lt.s32.totalorder %s434, 9
      %s438 = scalar_select %p437, %s434, 9
      %s439 = smul.addr %s438, 20
      %s440 = smul.addr %s436, 200
      %s441 = sadd.s32 %s439, %s440
      %s442 = smul.addr %s441, 8
      %s443 = scalar_lea.vmem %s1, %s442
      %s444 = sadd.s32 %s26, 1
      %s445 = sadd.s32 %s26, 2
      %p446 = scmp.lt.s32.totalorder %s25, 1
      %s447 = scalar_select %p446, %s25, 1
      %p448 = scmp.lt.s32.totalorder %s445, 9
      %s449 = scalar_select %p448, %s445, 9
      %s450 = smul.addr %s449, 20
      %s451 = smul.addr %s447, 200
      %s452 = sadd.s32 %s450, %s451
      %s453 = smul.addr %s452, 8
      %s454 = scalar_lea.vmem %s2, %s453
      %s455 = sadd.s32 %s26, 2
      %p456 = scmp.lt.s32.totalorder %s25, 1
      %s457 = scalar_select %p456, %s25, 1
      %p458 = scmp.lt.s32.totalorder %s26, 7
      %s459 = scalar_select %p458, %s26, 7
      %s460 = smul.addr %s459, 16
      %s461 = smul.addr %s457, 128
      %s462 = sadd.s32 %s460, %s461
      %s463 = smul.addr %s462, 8
      %s464 = scalar_lea.vmem %s8, %s463
      %p465 = scmp.lt.s32.totalorder %s25, 1
      %s466 = scalar_select %p465, %s25, 1
      %p467 = scmp.lt.s32.totalorder %s26, 7
      %s468 = scalar_select %p467, %s26, 7
      %s469 = smul.addr %s468, 2
      %s470 = smul.addr %s466, 16
      %s471 = sadd.s32 %s469, %s470
      %s472 = smul.addr %s471, 8
      %s473 = scalar_lea.vmem %s9, %s472
      %v475 = vld [vmem:[%s3] sm:$0xff]
      %v476 = vld [vmem:[%s3 + $0x8] sm:$0x3]
      %v477 = vld [vmem:[%s3 + $0x10] sm:$0xff]
      %v478 = vld [vmem:[%s3 + $0x18] sm:$0x3]
      %v479 = vld [vmem:[%s3 + $0x20] sm:$0xff]
      %v480 = vld [vmem:[%s3 + $0x28] sm:$0x3]
      %v481 = vld [vmem:[%s3 + $0x30] sm:$0xff]
      %v482 = vld [vmem:[%s3 + $0x38] sm:$0x3]
      %v483 = vld [vmem:[%s3 + $0x40] sm:$0xff]
      %v484 = vld [vmem:[%s3 + $0x48] sm:$0x3]
      %v485 = vld [vmem:[%s3 + $0x50] sm:$0xff]
      %v486 = vld [vmem:[%s3 + $0x58] sm:$0x3]
      %v487 = vld [vmem:[%s3 + $0x60] sm:$0xff]
      %v488 = vld [vmem:[%s3 + $0x68] sm:$0x3]
      %v489 = vld [vmem:[%s3 + $0x70] sm:$0xff]
      %v490 = vld [vmem:[%s3 + $0x78] sm:$0x3]
      %v491 = vld [vmem:[%s3 + $0x80] sm:$0xff]
      %v492 = vld [vmem:[%s3 + $0x88] sm:$0x3]
      %v493 = vld [vmem:[%s3 + $0x90] sm:$0xff]
      %v494 = vld [vmem:[%s3 + $0x98] sm:$0x3]
      %v495 = vld [vmem:[%s4] sm:$0x1]
      %v496 = vld [vmem:[%s5] sm:$0x1]
      %v497 = vld [vmem:[%s433] sm:$0xff]
      %v498 = vld [vmem:[%s433 + $0x8] sm:$0x3]
      %v499 = vld [vmem:[%s433 + $0x10] sm:$0xff]
      %v500 = vld [vmem:[%s433 + $0x18] sm:$0x3]
      %v501 = vld [vmem:[%s433 + $0x20] sm:$0xff]
      %v502 = vld [vmem:[%s433 + $0x28] sm:$0x3]
      %v503 = vld [vmem:[%s433 + $0x30] sm:$0xff]
      %v504 = vld [vmem:[%s433 + $0x38] sm:$0x3]
      %v505 = vld [vmem:[%s433 + $0x40] sm:$0xff]
      %v506 = vld [vmem:[%s433 + $0x48] sm:$0x3]
      %v507 = vld [vmem:[%s433 + $0x50] sm:$0xff]
      %v508 = vld [vmem:[%s433 + $0x58] sm:$0x3]
      %v509 = vld [vmem:[%s433 + $0x60] sm:$0xff]
      %v510 = vld [vmem:[%s433 + $0x68] sm:$0x3]
      %v511 = vld [vmem:[%s433 + $0x70] sm:$0xff]
      %v512 = vld [vmem:[%s433 + $0x78] sm:$0x3]
      %v513 = vld [vmem:[%s433 + $0x80] sm:$0xff]
      %v514 = vld [vmem:[%s433 + $0x88] sm:$0x3]
      %v515 = vld [vmem:[%s433 + $0x90] sm:$0xff]
      %v516 = vld [vmem:[%s433 + $0x98] sm:$0x3]
      %v518 = vlaneseq
      %v519 = vshrl.u32 %v518, 7
      %v520 = vsub.s32 0, %v519
      %v521 = vrot.slane %v495, %v520
      %v523 = vmul.f32 %v497, %v521
      %v524 = vmul.f32 %v498, %v521
      %v525 = vmul.f32 %v499, %v521
      %v526 = vmul.f32 %v500, %v521
      %v527 = vmul.f32 %v501, %v521
      %v528 = vmul.f32 %v502, %v521
      %v529 = vmul.f32 %v503, %v521
      %v530 = vmul.f32 %v504, %v521
      %v531 = vmul.f32 %v505, %v521
      %v532 = vmul.f32 %v506, %v521
      %v533 = vmul.f32 %v507, %v521
      %v534 = vmul.f32 %v508, %v521
      %v535 = vmul.f32 %v509, %v521
      %v536 = vmul.f32 %v510, %v521
      %v537 = vmul.f32 %v511, %v521
      %v538 = vmul.f32 %v512, %v521
      %v539 = vmul.f32 %v513, %v521
      %v540 = vmul.f32 %v514, %v521
      %v541 = vmul.f32 %v515, %v521
      %v542 = vmul.f32 %v516, %v521
      %v544 = vlaneseq
      %v545 = vshrl.u32 %v544, 7
      %v546 = vsub.s32 0, %v545
      %v547 = vrot.slane %v496, %v546
      %v549 = vadd.f32 %v523, %v547
      %v550 = vadd.f32 %v524, %v547
      %v551 = vadd.f32 %v525, %v547
      %v552 = vadd.f32 %v526, %v547
      %v553 = vadd.f32 %v527, %v547
      %v554 = vadd.f32 %v528, %v547
      %v555 = vadd.f32 %v529, %v547
      %v556 = vadd.f32 %v530, %v547
      %v557 = vadd.f32 %v531, %v547
      %v558 = vadd.f32 %v532, %v547
      %v559 = vadd.f32 %v533, %v547
      %v560 = vadd.f32 %v534, %v547
      %v561 = vadd.f32 %v535, %v547
      %v562 = vadd.f32 %v536, %v547
      %v563 = vadd.f32 %v537, %v547
      %v564 = vadd.f32 %v538, %v547
      %v565 = vadd.f32 %v539, %v547
      %v566 = vadd.f32 %v540, %v547
      %v567 = vadd.f32 %v541, %v547
      %v568 = vadd.f32 %v542, %v547
      %v569 = vmax.f32 %v549, 0.0
      %v570 = vmax.f32 %v550, 0.0
      %v571 = vmax.f32 %v551, 0.0
      %v572 = vmax.f32 %v552, 0.0
      %v573 = vmax.f32 %v553, 0.0
      %v574 = vmax.f32 %v554, 0.0
      %v575 = vmax.f32 %v555, 0.0
      %v576 = vmax.f32 %v556, 0.0
      %v577 = vmax.f32 %v557, 0.0
      %v578 = vmax.f32 %v558, 0.0
      %v579 = vmax.f32 %v559, 0.0
      %v580 = vmax.f32 %v560, 0.0
      %v581 = vmax.f32 %v561, 0.0
      %v582 = vmax.f32 %v562, 0.0
      %v583 = vmax.f32 %v563, 0.0
      %v584 = vmax.f32 %v564, 0.0
      %v585 = vmax.f32 %v565, 0.0
      %v586 = vmax.f32 %v566, 0.0
      %v587 = vmax.f32 %v567, 0.0
      %v588 = vmax.f32 %v568, 0.0
      %v589 = vmul.f32 %v569, %v475
      %v590 = vmul.f32 %v570, %v476
      %v591 = vmul.f32 %v571, %v477
      %v592 = vmul.f32 %v572, %v478
      %v593 = vmul.f32 %v573, %v479
      %v594 = vmul.f32 %v574, %v480
      %v595 = vmul.f32 %v575, %v481
      %v596 = vmul.f32 %v576, %v482
      %v597 = vmul.f32 %v577, %v483
      %v598 = vmul.f32 %v578, %v484
      %v599 = vmul.f32 %v579, %v485
      %v600 = vmul.f32 %v580, %v486
      %v601 = vmul.f32 %v581, %v487
      %v602 = vmul.f32 %v582, %v488
      %v603 = vmul.f32 %v583, %v489
      %v604 = vmul.f32 %v584, %v490
      %v605 = vmul.f32 %v585, %v491
      %v606 = vmul.f32 %v586, %v492
      %v607 = vmul.f32 %v587, %v493
      %v608 = vmul.f32 %v588, %v494
      %p609 = scmp.ge.s32.totalorder %s26, 1
      %p610 = scmp.le.s32.totalorder %s26, 8
      %p611 = pnand %p609, %p610
      %p612 = pneg %p611
      %s613 = scalar_select %p612, 1, 0
      %s614 = scvt.s32.f32 %s613
      %v615 = vstv %s614
      %v616 = vmul.f32 %v589, %v615
      %v617 = vmul.f32 %v590, %v615
      %v618 = vmul.f32 %v591, %v615
      %v619 = vmul.f32 %v592, %v615
      %v620 = vmul.f32 %v593, %v615
      %v621 = vmul.f32 %v594, %v615
      %v622 = vmul.f32 %v595, %v615
      %v623 = vmul.f32 %v596, %v615
      %v624 = vmul.f32 %v597, %v615
      %v625 = vmul.f32 %v598, %v615
      %v626 = vmul.f32 %v599, %v615
      %v627 = vmul.f32 %v600, %v615
      %v628 = vmul.f32 %v601, %v615
      %v629 = vmul.f32 %v602, %v615
      %v630 = vmul.f32 %v603, %v615
      %v631 = vmul.f32 %v604, %v615
      %v632 = vmul.f32 %v605, %v615
      %v633 = vmul.f32 %v606, %v615
      %v634 = vmul.f32 %v607, %v615
      %v635 = vmul.f32 %v608, %v615
      %v636 = vpack.c.bf16 %v617, %v616
      %v637 = vpack.c.bf16 %v619, %v618
      %v638 = vpack.c.bf16 %v621, %v620
      %v639 = vpack.c.bf16 %v623, %v622
      %v640 = vpack.c.bf16 %v625, %v624
      %v641 = vpack.c.bf16 %v627, %v626
      %v642 = vpack.c.bf16 %v629, %v628
      %v643 = vpack.c.bf16 %v631, %v630
      %v644 = vpack.c.bf16 %v633, %v632
      %v645 = vpack.c.bf16 %v635, %v634
      %v646 = vld [vmem:[%s443] sm:$0xff]
      %v647 = vld [vmem:[%s443 + $0x8] sm:$0x3]
      %v648 = vld [vmem:[%s443 + $0x10] sm:$0xff]
      %v649 = vld [vmem:[%s443 + $0x18] sm:$0x3]
      %v650 = vld [vmem:[%s443 + $0x20] sm:$0xff]
      %v651 = vld [vmem:[%s443 + $0x28] sm:$0x3]
      %v652 = vld [vmem:[%s443 + $0x30] sm:$0xff]
      %v653 = vld [vmem:[%s443 + $0x38] sm:$0x3]
      %v654 = vld [vmem:[%s443 + $0x40] sm:$0xff]
      %v655 = vld [vmem:[%s443 + $0x48] sm:$0x3]
      %v656 = vld [vmem:[%s443 + $0x50] sm:$0xff]
      %v657 = vld [vmem:[%s443 + $0x58] sm:$0x3]
      %v658 = vld [vmem:[%s443 + $0x60] sm:$0xff]
      %v659 = vld [vmem:[%s443 + $0x68] sm:$0x3]
      %v660 = vld [vmem:[%s443 + $0x70] sm:$0xff]
      %v661 = vld [vmem:[%s443 + $0x78] sm:$0x3]
      %v662 = vld [vmem:[%s443 + $0x80] sm:$0xff]
      %v663 = vld [vmem:[%s443 + $0x88] sm:$0x3]
      %v664 = vld [vmem:[%s443 + $0x90] sm:$0xff]
      %v665 = vld [vmem:[%s443 + $0x98] sm:$0x3]
      %v666 = vmul.f32 %v646, %v521
      %v667 = vmul.f32 %v647, %v521
      %v668 = vmul.f32 %v648, %v521
      %v669 = vmul.f32 %v649, %v521
      %v670 = vmul.f32 %v650, %v521
      %v671 = vmul.f32 %v651, %v521
      %v672 = vmul.f32 %v652, %v521
      %v673 = vmul.f32 %v653, %v521
      %v674 = vmul.f32 %v654, %v521
      %v675 = vmul.f32 %v655, %v521
      %v676 = vmul.f32 %v656, %v521
      %v677 = vmul.f32 %v657, %v521
      %v678 = vmul.f32 %v658, %v521
      %v679 = vmul.f32 %v659, %v521
      %v680 = vmul.f32 %v660, %v521
      %v681 = vmul.f32 %v661, %v521
      %v682 = vmul.f32 %v662, %v521
      %v683 = vmul.f32 %v663, %v521
      %v684 = vmul.f32 %v664, %v521
      %v685 = vmul.f32 %v665, %v521
      %v686 = vadd.f32 %v666, %v547
      %v687 = vadd.f32 %v667, %v547
      %v688 = vadd.f32 %v668, %v547
      %v689 = vadd.f32 %v669, %v547
      %v690 = vadd.f32 %v670, %v547
      %v691 = vadd.f32 %v671, %v547
      %v692 = vadd.f32 %v672, %v547
      %v693 = vadd.f32 %v673, %v547
      %v694 = vadd.f32 %v674, %v547
      %v695 = vadd.f32 %v675, %v547
      %v696 = vadd.f32 %v676, %v547
      %v697 = vadd.f32 %v677, %v547
      %v698 = vadd.f32 %v678, %v547
      %v699 = vadd.f32 %v679, %v547
      %v700 = vadd.f32 %v680, %v547
      %v701 = vadd.f32 %v681, %v547
      %v702 = vadd.f32 %v682, %v547
      %v703 = vadd.f32 %v683, %v547
      %v704 = vadd.f32 %v684, %v547
      %v705 = vadd.f32 %v685, %v547
      %v706 = vmax.f32 %v686, 0.0
      %v707 = vmax.f32 %v687, 0.0
      %v708 = vmax.f32 %v688, 0.0
      %v709 = vmax.f32 %v689, 0.0
      %v710 = vmax.f32 %v690, 0.0
      %v711 = vmax.f32 %v691, 0.0
      %v712 = vmax.f32 %v692, 0.0
      %v713 = vmax.f32 %v693, 0.0
      %v714 = vmax.f32 %v694, 0.0
      %v715 = vmax.f32 %v695, 0.0
      %v716 = vmax.f32 %v696, 0.0
      %v717 = vmax.f32 %v697, 0.0
      %v718 = vmax.f32 %v698, 0.0
      %v719 = vmax.f32 %v699, 0.0
      %v720 = vmax.f32 %v700, 0.0
      %v721 = vmax.f32 %v701, 0.0
      %v722 = vmax.f32 %v702, 0.0
      %v723 = vmax.f32 %v703, 0.0
      %v724 = vmax.f32 %v704, 0.0
      %v725 = vmax.f32 %v705, 0.0
      %v726 = vmul.f32 %v706, %v475
      %v727 = vmul.f32 %v707, %v476
      %v728 = vmul.f32 %v708, %v477
      %v729 = vmul.f32 %v709, %v478
      %v730 = vmul.f32 %v710, %v479
      %v731 = vmul.f32 %v711, %v480
      %v732 = vmul.f32 %v712, %v481
      %v733 = vmul.f32 %v713, %v482
      %v734 = vmul.f32 %v714, %v483
      %v735 = vmul.f32 %v715, %v484
      %v736 = vmul.f32 %v716, %v485
      %v737 = vmul.f32 %v717, %v486
      %v738 = vmul.f32 %v718, %v487
      %v739 = vmul.f32 %v719, %v488
      %v740 = vmul.f32 %v720, %v489
      %v741 = vmul.f32 %v721, %v490
      %v742 = vmul.f32 %v722, %v491
      %v743 = vmul.f32 %v723, %v492
      %v744 = vmul.f32 %v724, %v493
      %v745 = vmul.f32 %v725, %v494
      %s746 = sadd.s32 %s26, 1
      %p747 = scmp.ge.s32.totalorder %s746, 1
      %p748 = scmp.le.s32.totalorder %s746, 8
      %p749 = pnand %p747, %p748
      %p750 = pneg %p749
      %s751 = scalar_select %p750, 1, 0
      %s752 = scvt.s32.f32 %s751
      %v753 = vstv %s752
      %v754 = vmul.f32 %v726, %v753
      %v755 = vmul.f32 %v727, %v753
      %v756 = vmul.f32 %v728, %v753
      %v757 = vmul.f32 %v729, %v753
      %v758 = vmul.f32 %v730, %v753
      %v759 = vmul.f32 %v731, %v753
      %v760 = vmul.f32 %v732, %v753
      %v761 = vmul.f32 %v733, %v753
      %v762 = vmul.f32 %v734, %v753
      %v763 = vmul.f32 %v735, %v753
      %v764 = vmul.f32 %v736, %v753
      %v765 = vmul.f32 %v737, %v753
      %v766 = vmul.f32 %v738, %v753
      %v767 = vmul.f32 %v739, %v753
      %v768 = vmul.f32 %v740, %v753
      %v769 = vmul.f32 %v741, %v753
      %v770 = vmul.f32 %v742, %v753
      %v771 = vmul.f32 %v743, %v753
      %v772 = vmul.f32 %v744, %v753
      %v773 = vmul.f32 %v745, %v753
      %v774 = vpack.c.bf16 %v755, %v754
      %v775 = vpack.c.bf16 %v757, %v756
      %v776 = vpack.c.bf16 %v759, %v758
      %v777 = vpack.c.bf16 %v761, %v760
      %v778 = vpack.c.bf16 %v763, %v762
      %v779 = vpack.c.bf16 %v765, %v764
      %v780 = vpack.c.bf16 %v767, %v766
      %v781 = vpack.c.bf16 %v769, %v768
      %v782 = vpack.c.bf16 %v771, %v770
      %v783 = vpack.c.bf16 %v773, %v772
      %v784 = vld [vmem:[%s454] sm:$0xff]
      %v785 = vld [vmem:[%s454 + $0x8] sm:$0x3]
      %v786 = vld [vmem:[%s454 + $0x10] sm:$0xff]
      %v787 = vld [vmem:[%s454 + $0x18] sm:$0x3]
      %v788 = vld [vmem:[%s454 + $0x20] sm:$0xff]
      %v789 = vld [vmem:[%s454 + $0x28] sm:$0x3]
      %v790 = vld [vmem:[%s454 + $0x30] sm:$0xff]
      %v791 = vld [vmem:[%s454 + $0x38] sm:$0x3]
      %v792 = vld [vmem:[%s454 + $0x40] sm:$0xff]
      %v793 = vld [vmem:[%s454 + $0x48] sm:$0x3]
      %v794 = vld [vmem:[%s454 + $0x50] sm:$0xff]
      %v795 = vld [vmem:[%s454 + $0x58] sm:$0x3]
      %v796 = vld [vmem:[%s454 + $0x60] sm:$0xff]
      %v797 = vld [vmem:[%s454 + $0x68] sm:$0x3]
      %v798 = vld [vmem:[%s454 + $0x70] sm:$0xff]
      %v799 = vld [vmem:[%s454 + $0x78] sm:$0x3]
      %v800 = vld [vmem:[%s454 + $0x80] sm:$0xff]
      %v801 = vld [vmem:[%s454 + $0x88] sm:$0x3]
      %v802 = vld [vmem:[%s454 + $0x90] sm:$0xff]
      %v803 = vld [vmem:[%s454 + $0x98] sm:$0x3]
      %v804 = vmul.f32 %v784, %v521
      %v805 = vmul.f32 %v785, %v521
      %v806 = vmul.f32 %v786, %v521
      %v807 = vmul.f32 %v787, %v521
      %v808 = vmul.f32 %v788, %v521
      %v809 = vmul.f32 %v789, %v521
      %v810 = vmul.f32 %v790, %v521
      %v811 = vmul.f32 %v791, %v521
      %v812 = vmul.f32 %v792, %v521
      %v813 = vmul.f32 %v793, %v521
      %v814 = vmul.f32 %v794, %v521
      %v815 = vmul.f32 %v795, %v521
      %v816 = vmul.f32 %v796, %v521
      %v817 = vmul.f32 %v797, %v521
      %v818 = vmul.f32 %v798, %v521
      %v819 = vmul.f32 %v799, %v521
      %v820 = vmul.f32 %v800, %v521
      %v821 = vmul.f32 %v801, %v521
      %v822 = vmul.f32 %v802, %v521
      %v823 = vmul.f32 %v803, %v521
      %v824 = vadd.f32 %v804, %v547
      %v825 = vadd.f32 %v805, %v547
      %v826 = vadd.f32 %v806, %v547
      %v827 = vadd.f32 %v807, %v547
      %v828 = vadd.f32 %v808, %v547
      %v829 = vadd.f32 %v809, %v547
      %v830 = vadd.f32 %v810, %v547
      %v831 = vadd.f32 %v811, %v547
      %v832 = vadd.f32 %v812, %v547
      %v833 = vadd.f32 %v813, %v547
      %v834 = vadd.f32 %v814, %v547
      %v835 = vadd.f32 %v815, %v547
      %v836 = vadd.f32 %v816, %v547
      %v837 = vadd.f32 %v817, %v547
      %v838 = vadd.f32 %v818, %v547
      %v839 = vadd.f32 %v819, %v547
      %v840 = vadd.f32 %v820, %v547
      %v841 = vadd.f32 %v821, %v547
      %v842 = vadd.f32 %v822, %v547
      %v843 = vadd.f32 %v823, %v547
      %v844 = vmax.f32 %v824, 0.0
      %v845 = vmax.f32 %v825, 0.0
      %v846 = vmax.f32 %v826, 0.0
      %v847 = vmax.f32 %v827, 0.0
      %v848 = vmax.f32 %v828, 0.0
      %v849 = vmax.f32 %v829, 0.0
      %v850 = vmax.f32 %v830, 0.0
      %v851 = vmax.f32 %v831, 0.0
      %v852 = vmax.f32 %v832, 0.0
      %v853 = vmax.f32 %v833, 0.0
      %v854 = vmax.f32 %v834, 0.0
      %v855 = vmax.f32 %v835, 0.0
      %v856 = vmax.f32 %v836, 0.0
      %v857 = vmax.f32 %v837, 0.0
      %v858 = vmax.f32 %v838, 0.0
      %v859 = vmax.f32 %v839, 0.0
      %v860 = vmax.f32 %v840, 0.0
      %v861 = vmax.f32 %v841, 0.0
      %v862 = vmax.f32 %v842, 0.0
      %v863 = vmax.f32 %v843, 0.0
      %v864 = vmul.f32 %v844, %v475
      %v865 = vmul.f32 %v845, %v476
      %v866 = vmul.f32 %v846, %v477
      %v867 = vmul.f32 %v847, %v478
      %v868 = vmul.f32 %v848, %v479
      %v869 = vmul.f32 %v849, %v480
      %v870 = vmul.f32 %v850, %v481
      %v871 = vmul.f32 %v851, %v482
      %v872 = vmul.f32 %v852, %v483
      %v873 = vmul.f32 %v853, %v484
      %v874 = vmul.f32 %v854, %v485
      %v875 = vmul.f32 %v855, %v486
      %v876 = vmul.f32 %v856, %v487
      %v877 = vmul.f32 %v857, %v488
      %v878 = vmul.f32 %v858, %v489
      %v879 = vmul.f32 %v859, %v490
      %v880 = vmul.f32 %v860, %v491
      %v881 = vmul.f32 %v861, %v492
      %v882 = vmul.f32 %v862, %v493
      %v883 = vmul.f32 %v863, %v494
      %s884 = sadd.s32 %s26, 2
      %p885 = scmp.ge.s32.totalorder %s884, 1
      %p886 = scmp.le.s32.totalorder %s884, 8
      %p887 = pnand %p885, %p886
      %p888 = pneg %p887
      %s889 = scalar_select %p888, 1, 0
      %s890 = scvt.s32.f32 %s889
      %v891 = vstv %s890
      %v892 = vmul.f32 %v864, %v891
      %v893 = vmul.f32 %v865, %v891
      %v894 = vmul.f32 %v866, %v891
      %v895 = vmul.f32 %v867, %v891
      %v896 = vmul.f32 %v868, %v891
      %v897 = vmul.f32 %v869, %v891
      %v898 = vmul.f32 %v870, %v891
      %v899 = vmul.f32 %v871, %v891
      %v900 = vmul.f32 %v872, %v891
      %v901 = vmul.f32 %v873, %v891
      %v902 = vmul.f32 %v874, %v891
      %v903 = vmul.f32 %v875, %v891
      %v904 = vmul.f32 %v876, %v891
      %v905 = vmul.f32 %v877, %v891
      %v906 = vmul.f32 %v878, %v891
      %v907 = vmul.f32 %v879, %v891
      %v908 = vmul.f32 %v880, %v891
      %v909 = vmul.f32 %v881, %v891
      %v910 = vmul.f32 %v882, %v891
      %v911 = vmul.f32 %v883, %v891
      %v912 = vpack.c.bf16 %v893, %v892
      %v913 = vpack.c.bf16 %v895, %v894
      %v914 = vpack.c.bf16 %v897, %v896
      %v915 = vpack.c.bf16 %v899, %v898
      %v916 = vpack.c.bf16 %v901, %v900
      %v917 = vpack.c.bf16 %v903, %v902
      %v918 = vpack.c.bf16 %v905, %v904
      %v919 = vpack.c.bf16 %v907, %v906
      %v920 = vpack.c.bf16 %v909, %v908
      %v921 = vpack.c.bf16 %v911, %v910
      %v946 = vunpack.c.l.b16 %v636
      %v947 = vunpack.c.l.b16 %v774
      %v948 = vunpack.c.l.b16 %v912
      %v949 = vunpack.c.l.b16 %v637
      %v950 = vunpack.c.l.b16 %v775
      %v951 = vunpack.c.l.b16 %v913
      %v952 = vunpack.c.l.b16 %v638
      %v953 = vunpack.c.l.b16 %v776
      %v954 = vunpack.c.l.b16 %v914
      %v955 = vunpack.c.l.b16 %v639
      %v956 = vunpack.c.l.b16 %v777
      %v957 = vunpack.c.l.b16 %v915
      %v958 = vunpack.c.l.b16 %v640
      %v959 = vunpack.c.l.b16 %v778
      %v960 = vunpack.c.l.b16 %v916
      %v961 = vunpack.c.l.b16 %v641
      %v962 = vunpack.c.l.b16 %v779
      %v963 = vunpack.c.l.b16 %v917
      %v964 = vunpack.c.l.b16 %v642
      %v965 = vunpack.c.l.b16 %v780
      %v966 = vunpack.c.l.b16 %v918
      %v967 = vunpack.c.l.b16 %v643
      %v968 = vunpack.c.l.b16 %v781
      %v969 = vunpack.c.l.b16 %v919
      %v970 = vld [vmem:[%s6] sm:$0xff]
      %v971 = vld [vmem:[%s6 + $0x8] sm:$0xff]
      %v972 = vld [vmem:[%s6 + $0x10] sm:$0xff]
      %v973 = vld [vmem:[%s6 + $0x18] sm:$0xff]
      %v974 = vld [vmem:[%s6 + $0x20] sm:$0xff]
      %v975 = vld [vmem:[%s6 + $0x28] sm:$0xff]
      %v976 = vld [vmem:[%s6 + $0x30] sm:$0xff]
      %v977 = vld [vmem:[%s6 + $0x38] sm:$0xff]
      %v978 = vld [vmem:[%s6 + $0x40] sm:$0xff]
      %v979 = vld [vmem:[%s6 + $0x48] sm:$0xff]
      %v980 = vld [vmem:[%s6 + $0x50] sm:$0xff]
      %v981 = vld [vmem:[%s6 + $0x58] sm:$0xff]
      %v982 = vld [vmem:[%s6 + $0x60] sm:$0xff]
      %v983 = vld [vmem:[%s6 + $0x68] sm:$0xff]
      %v984 = vld [vmem:[%s6 + $0x70] sm:$0xff]
      %v985 = vld [vmem:[%s6 + $0x78] sm:$0xff]
      %v986 = vld [vmem:[%s6 + $0x80] sm:$0xff]
      %v987 = vld [vmem:[%s6 + $0x88] sm:$0xff]
      %v988 = vld [vmem:[%s6 + $0x90] sm:$0xff]
      %v989 = vld [vmem:[%s6 + $0x98] sm:$0xff]
      %v990 = vld [vmem:[%s6 + $0xa0] sm:$0xff]
      %v991 = vld [vmem:[%s6 + $0xa8] sm:$0xff]
      %v992 = vld [vmem:[%s6 + $0xb0] sm:$0xff]
      %v993 = vld [vmem:[%s6 + $0xb8] sm:$0xff]
      %v994 = vld [vmem:[%s6 + $0xc0] sm:$0xff]
      %v995 = vld [vmem:[%s6 + $0xc8] sm:$0xff]
      %v996 = vld [vmem:[%s6 + $0xd0] sm:$0xff]
      %v997 = vld [vmem:[%s6 + $0xd8] sm:$0xff]
      %v998 = vld [vmem:[%s6 + $0xe0] sm:$0xff]
      %v999 = vld [vmem:[%s6 + $0xe8] sm:$0xff]
      %v1000 = vld [vmem:[%s6 + $0xf0] sm:$0xff]
      %v1001 = vld [vmem:[%s6 + $0xf8] sm:$0xff]
      %v1002 = vld [vmem:[%s6 + $0x100] sm:$0xff]
      %v1003 = vld [vmem:[%s6 + $0x108] sm:$0xff]
      %v1004 = vld [vmem:[%s6 + $0x110] sm:$0xff]
      %v1005 = vld [vmem:[%s6 + $0x118] sm:$0xff]
      %v1006 = vld [vmem:[%s6 + $0x120] sm:$0xff]
      %v1007 = vld [vmem:[%s6 + $0x128] sm:$0xff]
      %v1008 = vld [vmem:[%s6 + $0x130] sm:$0xff]
      %v1009 = vld [vmem:[%s6 + $0x138] sm:$0xff]
      %v1010 = vld [vmem:[%s6 + $0x140] sm:$0xff]
      %v1011 = vld [vmem:[%s6 + $0x148] sm:$0xff]
      %v1012 = vld [vmem:[%s6 + $0x150] sm:$0xff]
      %v1013 = vld [vmem:[%s6 + $0x158] sm:$0xff]
      %v1014 = vld [vmem:[%s6 + $0x160] sm:$0xff]
      %v1015 = vld [vmem:[%s6 + $0x168] sm:$0xff]
      %v1016 = vld [vmem:[%s6 + $0x170] sm:$0xff]
      %v1017 = vld [vmem:[%s6 + $0x178] sm:$0xff]
      %v1018 = vunpack.c.h.b16 %v636
      %v1019 = vunpack.c.h.b16 %v774
      %v1020 = vunpack.c.h.b16 %v912
      %v1021 = vunpack.c.h.b16 %v637
      %v1022 = vunpack.c.h.b16 %v775
      %v1023 = vunpack.c.h.b16 %v913
      %v1024 = vunpack.c.h.b16 %v638
      %v1025 = vunpack.c.h.b16 %v776
      %v1026 = vunpack.c.h.b16 %v914
      %v1027 = vunpack.c.h.b16 %v639
      %v1028 = vunpack.c.h.b16 %v777
      %v1029 = vunpack.c.h.b16 %v915
      %v1030 = vunpack.c.h.b16 %v640
      %v1031 = vunpack.c.h.b16 %v778
      %v1032 = vunpack.c.h.b16 %v916
      %v1033 = vunpack.c.h.b16 %v641
      %v1034 = vunpack.c.h.b16 %v779
      %v1035 = vunpack.c.h.b16 %v917
      %v1036 = vunpack.c.h.b16 %v642
      %v1037 = vunpack.c.h.b16 %v780
      %v1038 = vunpack.c.h.b16 %v918
      %v1039 = vunpack.c.h.b16 %v643
      %v1040 = vunpack.c.h.b16 %v781
      %v1041 = vunpack.c.h.b16 %v919
      %v1042 = vpack.c.b16 %v947, %v946
      %v1043 = vpack.c.b16 %v948, %v948
      %v1044 = vpack.c.b16 %v1019, %v1018
      %v1045 = vpack.c.b16 %v1020, %v1020
      %v1046 = vpack.c.b16 %v950, %v949
      %v1047 = vpack.c.b16 %v951, %v951
      %v1048 = vpack.c.b16 %v1022, %v1021
      %v1049 = vpack.c.b16 %v1023, %v1023
      %v1050 = vpack.c.b16 %v953, %v952
      %v1051 = vpack.c.b16 %v954, %v954
      %v1052 = vpack.c.b16 %v1025, %v1024
      %v1053 = vpack.c.b16 %v1026, %v1026
      %v1054 = vpack.c.b16 %v956, %v955
      %v1055 = vpack.c.b16 %v957, %v957
      %v1056 = vpack.c.b16 %v1028, %v1027
      %v1057 = vpack.c.b16 %v1029, %v1029
      %v1058 = vpack.c.b16 %v959, %v958
      %v1059 = vpack.c.b16 %v960, %v960
      %v1060 = vpack.c.b16 %v1031, %v1030
      %v1061 = vpack.c.b16 %v1032, %v1032
      %v1062 = vpack.c.b16 %v962, %v961
      %v1063 = vpack.c.b16 %v963, %v963
      %v1064 = vpack.c.b16 %v1034, %v1033
      %v1065 = vpack.c.b16 %v1035, %v1035
      %v1066 = vpack.c.b16 %v965, %v964
      %v1067 = vpack.c.b16 %v966, %v966
      %v1068 = vpack.c.b16 %v1037, %v1036
      %v1069 = vpack.c.b16 %v1038, %v1038
      %v1070 = vpack.c.b16 %v968, %v967
      %v1071 = vpack.c.b16 %v969, %v969
      %v1072 = vpack.c.b16 %v1040, %v1039
      %v1073 = vpack.c.b16 %v1041, %v1041
      %vm1074 = vsmask.f32 3328
      %vm1075 = vsmask.f32 7440
      %vm1076 = vmor %vm1074, %vm1075
      %v1078 = vshrl.u32 %v1042, 16
      %v1080 = vrot.slane %v1078, 4
      %v1081 = vshll.u32 %v1042, 16
      %v1083 = vrot.slane %v1081, 5
      %v1084 = vor.u32 %v1080, %v1083
      %v1085 = vrot.slane %v1084, 4
      %v1087 = vshll.u32 %v1044, 16
      %v1089 = vrot.slane %v1087, 5
      %v1090 = vsel %vm1076, %v1085, %v1089
      %v1092 = vshrl.u32 %v1043, 16
      %v1094 = vrot.slane %v1092, 4
      %v1095 = vshll.u32 %v1043, 16
      %v1097 = vrot.slane %v1095, 5
      %v1098 = vor.u32 %v1094, %v1097
      %v1099 = vrot.slane %v1098, 4
      %v1101 = vshll.u32 %v1045, 16
      %v1103 = vrot.slane %v1101, 5
      %v1104 = vsel %vm1076, %v1099, %v1103
      %v1106 = vshrl.u32 %v1046, 16
      %v1108 = vrot.slane %v1106, 4
      %v1109 = vshll.u32 %v1046, 16
      %v1111 = vrot.slane %v1109, 5
      %v1112 = vor.u32 %v1108, %v1111
      %v1113 = vrot.slane %v1112, 4
      %v1115 = vshll.u32 %v1048, 16
      %v1117 = vrot.slane %v1115, 5
      %v1118 = vsel %vm1076, %v1113, %v1117
      %v1120 = vshrl.u32 %v1047, 16
      %v1122 = vrot.slane %v1120, 4
      %v1123 = vshll.u32 %v1047, 16
      %v1125 = vrot.slane %v1123, 5
      %v1126 = vor.u32 %v1122, %v1125
      %v1127 = vrot.slane %v1126, 4
      %v1129 = vshll.u32 %v1049, 16
      %v1131 = vrot.slane %v1129, 5
      %v1132 = vsel %vm1076, %v1127, %v1131
      %v1134 = vshrl.u32 %v1050, 16
      %v1136 = vrot.slane %v1134, 4
      %v1137 = vshll.u32 %v1050, 16
      %v1139 = vrot.slane %v1137, 5
      %v1140 = vor.u32 %v1136, %v1139
      %v1141 = vrot.slane %v1140, 4
      %v1143 = vshll.u32 %v1052, 16
      %v1145 = vrot.slane %v1143, 5
      %v1146 = vsel %vm1076, %v1141, %v1145
      %v1148 = vshrl.u32 %v1051, 16
      %v1150 = vrot.slane %v1148, 4
      %v1151 = vshll.u32 %v1051, 16
      %v1153 = vrot.slane %v1151, 5
      %v1154 = vor.u32 %v1150, %v1153
      %v1155 = vrot.slane %v1154, 4
      %v1157 = vshll.u32 %v1053, 16
      %v1159 = vrot.slane %v1157, 5
      %v1160 = vsel %vm1076, %v1155, %v1159
      %v1162 = vshrl.u32 %v1054, 16
      %v1164 = vrot.slane %v1162, 4
      %v1165 = vshll.u32 %v1054, 16
      %v1167 = vrot.slane %v1165, 5
      %v1168 = vor.u32 %v1164, %v1167
      %v1169 = vrot.slane %v1168, 4
      %v1171 = vshll.u32 %v1056, 16
      %v1173 = vrot.slane %v1171, 5
      %v1174 = vsel %vm1076, %v1169, %v1173
      %v1176 = vshrl.u32 %v1055, 16
      %v1178 = vrot.slane %v1176, 4
      %v1179 = vshll.u32 %v1055, 16
      %v1181 = vrot.slane %v1179, 5
      %v1182 = vor.u32 %v1178, %v1181
      %v1183 = vrot.slane %v1182, 4
      %v1185 = vshll.u32 %v1057, 16
      %v1187 = vrot.slane %v1185, 5
      %v1188 = vsel %vm1076, %v1183, %v1187
      %v1190 = vshrl.u32 %v1058, 16
      %v1192 = vrot.slane %v1190, 4
      %v1193 = vshll.u32 %v1058, 16
      %v1195 = vrot.slane %v1193, 5
      %v1196 = vor.u32 %v1192, %v1195
      %v1197 = vrot.slane %v1196, 4
      %v1199 = vshll.u32 %v1060, 16
      %v1201 = vrot.slane %v1199, 5
      %v1202 = vsel %vm1076, %v1197, %v1201
      %v1204 = vshrl.u32 %v1059, 16
      %v1206 = vrot.slane %v1204, 4
      %v1207 = vshll.u32 %v1059, 16
      %v1209 = vrot.slane %v1207, 5
      %v1210 = vor.u32 %v1206, %v1209
      %v1211 = vrot.slane %v1210, 4
      %v1213 = vshll.u32 %v1061, 16
      %v1215 = vrot.slane %v1213, 5
      %v1216 = vsel %vm1076, %v1211, %v1215
      %v1218 = vshrl.u32 %v1062, 16
      %v1220 = vrot.slane %v1218, 4
      %v1221 = vshll.u32 %v1062, 16
      %v1223 = vrot.slane %v1221, 5
      %v1224 = vor.u32 %v1220, %v1223
      %v1225 = vrot.slane %v1224, 4
      %v1227 = vshll.u32 %v1064, 16
      %v1229 = vrot.slane %v1227, 5
      %v1230 = vsel %vm1076, %v1225, %v1229
      %v1232 = vshrl.u32 %v1063, 16
      %v1234 = vrot.slane %v1232, 4
      %v1235 = vshll.u32 %v1063, 16
      %v1237 = vrot.slane %v1235, 5
      %v1238 = vor.u32 %v1234, %v1237
      %v1239 = vrot.slane %v1238, 4
      %v1241 = vshll.u32 %v1065, 16
      %v1243 = vrot.slane %v1241, 5
      %v1244 = vsel %vm1076, %v1239, %v1243
      %v1246 = vshrl.u32 %v1066, 16
      %v1248 = vrot.slane %v1246, 4
      %v1249 = vshll.u32 %v1066, 16
      %v1251 = vrot.slane %v1249, 5
      %v1252 = vor.u32 %v1248, %v1251
      %v1253 = vrot.slane %v1252, 4
      %v1255 = vshll.u32 %v1068, 16
      %v1257 = vrot.slane %v1255, 5
      %v1258 = vsel %vm1076, %v1253, %v1257
      %v1260 = vshrl.u32 %v1067, 16
      %v1262 = vrot.slane %v1260, 4
      %v1263 = vshll.u32 %v1067, 16
      %v1265 = vrot.slane %v1263, 5
      %v1266 = vor.u32 %v1262, %v1265
      %v1267 = vrot.slane %v1266, 4
      %v1269 = vshll.u32 %v1069, 16
      %v1271 = vrot.slane %v1269, 5
      %v1272 = vsel %vm1076, %v1267, %v1271
      %v1274 = vshrl.u32 %v1070, 16
      %v1276 = vrot.slane %v1274, 4
      %v1277 = vshll.u32 %v1070, 16
      %v1279 = vrot.slane %v1277, 5
      %v1280 = vor.u32 %v1276, %v1279
      %v1281 = vrot.slane %v1280, 4
      %v1283 = vshll.u32 %v1072, 16
      %v1285 = vrot.slane %v1283, 5
      %v1286 = vsel %vm1076, %v1281, %v1285
      %v1288 = vshrl.u32 %v1071, 16
      %v1290 = vrot.slane %v1288, 4
      %v1291 = vshll.u32 %v1071, 16
      %v1293 = vrot.slane %v1291, 5
      %v1294 = vor.u32 %v1290, %v1293
      %v1295 = vrot.slane %v1294, 4
      %v1297 = vshll.u32 %v1073, 16
      %v1299 = vrot.slane %v1297, 5
      %v1300 = vsel %vm1076, %v1295, %v1299
      %s1301 = scalar_lea.vmem %s6, 384
      %v1302 = vld [vmem:[%s1301] sm:$0xff]
      %v1303 = vld [vmem:[%s1301 + $0x8] sm:$0xff]
      %v1304 = vld [vmem:[%s1301 + $0x10] sm:$0xff]
      %v1305 = vld [vmem:[%s1301 + $0x18] sm:$0xff]
      %v1306 = vld [vmem:[%s1301 + $0x20] sm:$0xff]
      %v1307 = vld [vmem:[%s1301 + $0x28] sm:$0xff]
      %v1308 = vld [vmem:[%s1301 + $0x30] sm:$0xff]
      %v1309 = vld [vmem:[%s1301 + $0x38] sm:$0xff]
      %v1310 = vld [vmem:[%s1301 + $0x40] sm:$0xff]
      %v1311 = vld [vmem:[%s1301 + $0x48] sm:$0xff]
      %v1312 = vld [vmem:[%s1301 + $0x50] sm:$0xff]
      %v1313 = vld [vmem:[%s1301 + $0x58] sm:$0xff]
      %v1314 = vld [vmem:[%s1301 + $0x60] sm:$0xff]
      %v1315 = vld [vmem:[%s1301 + $0x68] sm:$0xff]
      %v1316 = vld [vmem:[%s1301 + $0x70] sm:$0xff]
      %v1317 = vld [vmem:[%s1301 + $0x78] sm:$0xff]
      %v1318 = vld [vmem:[%s1301 + $0x80] sm:$0xff]
      %v1319 = vld [vmem:[%s1301 + $0x88] sm:$0xff]
      %v1320 = vld [vmem:[%s1301 + $0x90] sm:$0xff]
      %v1321 = vld [vmem:[%s1301 + $0x98] sm:$0xff]
      %v1322 = vld [vmem:[%s1301 + $0xa0] sm:$0xff]
      %v1323 = vld [vmem:[%s1301 + $0xa8] sm:$0xff]
      %v1324 = vld [vmem:[%s1301 + $0xb0] sm:$0xff]
      %v1325 = vld [vmem:[%s1301 + $0xb8] sm:$0xff]
      %v1326 = vld [vmem:[%s1301 + $0xc0] sm:$0xff]
      %v1327 = vld [vmem:[%s1301 + $0xc8] sm:$0xff]
      %v1328 = vld [vmem:[%s1301 + $0xd0] sm:$0xff]
      %v1329 = vld [vmem:[%s1301 + $0xd8] sm:$0xff]
      %v1330 = vld [vmem:[%s1301 + $0xe0] sm:$0xff]
      %v1331 = vld [vmem:[%s1301 + $0xe8] sm:$0xff]
      %v1332 = vld [vmem:[%s1301 + $0xf0] sm:$0xff]
      %v1333 = vld [vmem:[%s1301 + $0xf8] sm:$0xff]
      %v1334 = vld [vmem:[%s1301 + $0x100] sm:$0xff]
      %v1335 = vld [vmem:[%s1301 + $0x108] sm:$0xff]
      %v1336 = vld [vmem:[%s1301 + $0x110] sm:$0xff]
      %v1337 = vld [vmem:[%s1301 + $0x118] sm:$0xff]
      %v1338 = vld [vmem:[%s1301 + $0x120] sm:$0xff]
      %v1339 = vld [vmem:[%s1301 + $0x128] sm:$0xff]
      %v1340 = vld [vmem:[%s1301 + $0x130] sm:$0xff]
      %v1341 = vld [vmem:[%s1301 + $0x138] sm:$0xff]
      %v1342 = vld [vmem:[%s1301 + $0x140] sm:$0xff]
      %v1343 = vld [vmem:[%s1301 + $0x148] sm:$0xff]
      %v1344 = vld [vmem:[%s1301 + $0x150] sm:$0xff]
      %v1345 = vld [vmem:[%s1301 + $0x158] sm:$0xff]
      %v1346 = vld [vmem:[%s1301 + $0x160] sm:$0xff]
      %v1347 = vld [vmem:[%s1301 + $0x168] sm:$0xff]
      %v1348 = vld [vmem:[%s1301 + $0x170] sm:$0xff]
      %v1349 = vld [vmem:[%s1301 + $0x178] sm:$0xff]
      %v1350 = vunpack.c.l.b16 %v1090
      %v1351 = vunpack.c.h.b16 %v1090
      %v1352 = vunpack.c.l.b16 %v1104
      %v1353 = vunpack.c.l.b16 %v1118
      %v1354 = vunpack.c.h.b16 %v1118
      %v1355 = vunpack.c.l.b16 %v1132
      %v1356 = vunpack.c.l.b16 %v1146
      %v1357 = vunpack.c.h.b16 %v1146
      %v1358 = vunpack.c.l.b16 %v1160
      %v1359 = vunpack.c.l.b16 %v1174
      %v1360 = vunpack.c.h.b16 %v1174
      %v1361 = vunpack.c.l.b16 %v1188
      %v1362 = vunpack.c.l.b16 %v1202
      %v1363 = vunpack.c.h.b16 %v1202
      %v1364 = vunpack.c.l.b16 %v1216
      %v1365 = vunpack.c.l.b16 %v1230
      %v1366 = vunpack.c.h.b16 %v1230
      %v1367 = vunpack.c.l.b16 %v1244
      %v1368 = vunpack.c.l.b16 %v1258
      %v1369 = vunpack.c.h.b16 %v1258
      %v1370 = vunpack.c.l.b16 %v1272
      %v1371 = vunpack.c.l.b16 %v1286
      %v1372 = vunpack.c.h.b16 %v1286
      %v1373 = vunpack.c.l.b16 %v1300
      %v1374 = vpack.c.b16 %v1353, %v1350
      %v1375 = vpack.c.b16 %v1354, %v1351
      %v1376 = vpack.c.b16 %v1355, %v1352
      %v1377 = vpack.c.b16 %v1359, %v1356
      %v1378 = vpack.c.b16 %v1360, %v1357
      %v1379 = vpack.c.b16 %v1361, %v1358
      %v1380 = vpack.c.b16 %v1365, %v1362
      %v1381 = vpack.c.b16 %v1366, %v1363
      %v1382 = vpack.c.b16 %v1367, %v1364
      %v1383 = vpack.c.b16 %v1371, %v1368
      %v1384 = vpack.c.b16 %v1372, %v1369
      %v1385 = vpack.c.b16 %v1373, %v1370
      %v1446 = vunpack.c.l.b16 %v1302
      %v1447 = vunpack.c.h.b16 %v1302
      %v1448 = vunpack.c.l.b16 %v1303
      %v1449 = vunpack.c.h.b16 %v1303
      %v1450 = vunpack.c.l.b16 %v1304
      %v1451 = vunpack.c.h.b16 %v1304
      %v1452 = vunpack.c.l.b16 %v1305
      %v1453 = vunpack.c.h.b16 %v1305
      %v1454 = vunpack.c.l.b16 %v1306
      %v1455 = vunpack.c.h.b16 %v1306
      %v1456 = vunpack.c.l.b16 %v1307
      %v1457 = vunpack.c.h.b16 %v1307
      %v1458 = vunpack.c.l.b16 %v1308
      %v1459 = vunpack.c.h.b16 %v1308
      %v1460 = vunpack.c.l.b16 %v1309
      %v1461 = vunpack.c.h.b16 %v1309
      %v1462 = vunpack.c.l.b16 %v1310
      %v1463 = vunpack.c.h.b16 %v1310
      %v1464 = vunpack.c.l.b16 %v1311
      %v1465 = vunpack.c.h.b16 %v1311
      %v1466 = vunpack.c.l.b16 %v1312
      %v1467 = vunpack.c.h.b16 %v1312
      %v1468 = vunpack.c.l.b16 %v1313
      %v1469 = vunpack.c.h.b16 %v1313
      %v1470 = vunpack.c.l.b16 %v1314
      %v1471 = vunpack.c.h.b16 %v1314
      %v1472 = vunpack.c.l.b16 %v1315
      %v1473 = vunpack.c.h.b16 %v1315
      %v1474 = vunpack.c.l.b16 %v1316
      %v1475 = vunpack.c.h.b16 %v1316
      %v1476 = vunpack.c.l.b16 %v1317
      %v1477 = vunpack.c.h.b16 %v1317
      %v1478 = vunpack.c.l.b16 %v1318
      %v1479 = vunpack.c.h.b16 %v1318
      %v1480 = vunpack.c.l.b16 %v1319
      %v1481 = vunpack.c.h.b16 %v1319
      %v1482 = vunpack.c.l.b16 %v1320
      %v1483 = vunpack.c.h.b16 %v1320
      %v1484 = vunpack.c.l.b16 %v1321
      %v1485 = vunpack.c.h.b16 %v1321
      %v1486 = vunpack.c.l.b16 %v1322
      %v1487 = vunpack.c.h.b16 %v1322
      %v1488 = vunpack.c.l.b16 %v1323
      %v1489 = vunpack.c.h.b16 %v1323
      %v1490 = vunpack.c.l.b16 %v1324
      %v1491 = vunpack.c.h.b16 %v1324
      %v1492 = vunpack.c.l.b16 %v1325
      %v1493 = vunpack.c.h.b16 %v1325
      %v1494 = vunpack.c.l.b16 %v1326
      %v1495 = vunpack.c.h.b16 %v1326
      %v1496 = vunpack.c.l.b16 %v1327
      %v1497 = vunpack.c.h.b16 %v1327
      %v1498 = vunpack.c.l.b16 %v1328
      %v1499 = vunpack.c.h.b16 %v1328
      %v1500 = vunpack.c.l.b16 %v1329
      %v1501 = vunpack.c.h.b16 %v1329
      %v1502 = vunpack.c.l.b16 %v1330
      %v1503 = vunpack.c.h.b16 %v1330
      %v1504 = vunpack.c.l.b16 %v1331
      %v1505 = vunpack.c.h.b16 %v1331
      %v1506 = vunpack.c.l.b16 %v1332
      %v1507 = vunpack.c.h.b16 %v1332
      %v1508 = vunpack.c.l.b16 %v1333
      %v1509 = vunpack.c.h.b16 %v1333
      %v1510 = vunpack.c.l.b16 %v1334
      %v1511 = vunpack.c.h.b16 %v1334
      %v1512 = vunpack.c.l.b16 %v1335
      %v1513 = vunpack.c.h.b16 %v1335
      %v1514 = vunpack.c.l.b16 %v1336
      %v1515 = vunpack.c.h.b16 %v1336
      %v1516 = vunpack.c.l.b16 %v1337
      %v1517 = vunpack.c.h.b16 %v1337
      %v1518 = vunpack.c.l.b16 %v1338
      %v1519 = vunpack.c.h.b16 %v1338
      %v1520 = vunpack.c.l.b16 %v1339
      %v1521 = vunpack.c.h.b16 %v1339
      %v1522 = vunpack.c.l.b16 %v1340
      %v1523 = vunpack.c.h.b16 %v1340
      %v1524 = vunpack.c.l.b16 %v1341
      %v1525 = vunpack.c.h.b16 %v1341
      %v1526 = vunpack.c.l.b16 %v1342
      %v1527 = vunpack.c.h.b16 %v1342
      %v1528 = vunpack.c.l.b16 %v1343
      %v1529 = vunpack.c.h.b16 %v1343
      %v1530 = vunpack.c.l.b16 %v1344
      %v1531 = vunpack.c.h.b16 %v1344
      %v1532 = vunpack.c.l.b16 %v1345
      %v1533 = vunpack.c.h.b16 %v1345
      %v1534 = vunpack.c.l.b16 %v1346
      %v1535 = vunpack.c.h.b16 %v1346
      %v1536 = vunpack.c.l.b16 %v1347
      %v1537 = vunpack.c.h.b16 %v1347
      %v1538 = vunpack.c.l.b16 %v1348
      %v1539 = vunpack.c.h.b16 %v1348
      %v1540 = vunpack.c.l.b16 %v1349
      %v1541 = vunpack.c.h.b16 %v1349
      %v1542 = vpack.c.b16 %v1448, %v1446
      %v1543 = vpack.c.b16 %v1449, %v1447
      %v1544 = vpack.c.b16 %v1452, %v1450
      %v1545 = vpack.c.b16 %v1453, %v1451
      %v1546 = vpack.c.b16 %v1456, %v1454
      %v1547 = vpack.c.b16 %v1457, %v1455
      %v1548 = vpack.c.b16 %v1460, %v1458
      %v1549 = vpack.c.b16 %v1461, %v1459
      %v1550 = vpack.c.b16 %v1464, %v1462
      %v1551 = vpack.c.b16 %v1465, %v1463
      %v1552 = vpack.c.b16 %v1468, %v1466
      %v1553 = vpack.c.b16 %v1469, %v1467
      %v1554 = vpack.c.b16 %v1472, %v1470
      %v1555 = vpack.c.b16 %v1473, %v1471
      %v1556 = vpack.c.b16 %v1476, %v1474
      %v1557 = vpack.c.b16 %v1477, %v1475
      %v1558 = vpack.c.b16 %v1480, %v1478
      %v1559 = vpack.c.b16 %v1481, %v1479
      %v1560 = vpack.c.b16 %v1484, %v1482
      %v1561 = vpack.c.b16 %v1485, %v1483
      %v1562 = vpack.c.b16 %v1488, %v1486
      %v1563 = vpack.c.b16 %v1489, %v1487
      %v1564 = vpack.c.b16 %v1492, %v1490
      %v1565 = vpack.c.b16 %v1493, %v1491
      %v1566 = vpack.c.b16 %v1496, %v1494
      %v1567 = vpack.c.b16 %v1497, %v1495
      %v1568 = vpack.c.b16 %v1500, %v1498
      %v1569 = vpack.c.b16 %v1501, %v1499
      %v1570 = vpack.c.b16 %v1504, %v1502
      %v1571 = vpack.c.b16 %v1505, %v1503
      %v1572 = vpack.c.b16 %v1508, %v1506
      %v1573 = vpack.c.b16 %v1509, %v1507
      %v1574 = vpack.c.b16 %v1512, %v1510
      %v1575 = vpack.c.b16 %v1513, %v1511
      %v1576 = vpack.c.b16 %v1516, %v1514
      %v1577 = vpack.c.b16 %v1517, %v1515
      %v1578 = vpack.c.b16 %v1520, %v1518
      %v1579 = vpack.c.b16 %v1521, %v1519
      %v1580 = vpack.c.b16 %v1524, %v1522
      %v1581 = vpack.c.b16 %v1525, %v1523
      %v1582 = vpack.c.b16 %v1528, %v1526
      %v1583 = vpack.c.b16 %v1529, %v1527
      %v1584 = vpack.c.b16 %v1532, %v1530
      %v1585 = vpack.c.b16 %v1533, %v1531
      %v1586 = vpack.c.b16 %v1536, %v1534
      %v1587 = vpack.c.b16 %v1537, %v1535
      %v1588 = vpack.c.b16 %v1540, %v1538
      %v1589 = vpack.c.b16 %v1541, %v1539
      %1638 = vmatprep.subr.bf16.mxu0 %v1557
      %1639 = vmatpush1.bf16.msra.mxu0 %v1556
      %1640 = vmatprep.subr.bf16.mxu0 %v1555
      %1641 = vmatpush1.bf16.msra.mxu0 %v1554
      %1642 = vmatprep.subr.bf16.mxu0 %v1553
      %1643 = vmatpush1.bf16.msra.mxu0 %v1552
      %1644 = vmatprep.subr.bf16.mxu0 %v1551
      %1645 = vmatpush1.bf16.msra.mxu0 %v1550
      %1646 = vmatprep.subr.bf16.mxu0 %v1549
      %1647 = vmatpush1.bf16.msra.mxu0 %v1548
      %1648 = vmatprep.subr.bf16.mxu0 %v1547
      %1649 = vmatpush1.bf16.msra.mxu0 %v1546
      %1650 = vmatprep.subr.bf16.mxu0 %v1545
      %1651 = vmatpush1.bf16.msra.mxu0 %v1544
      %1652 = vmatprep.subr.bf16.mxu0 %v1543
      %1653 = vmatpush1.bf16.msra.mxu0 %v1542
      %1654 = vmatprep.subr.bf16.mxu0 %v1573
      %1655 = vmatpush2.bf16.msra.mxu0 %v1572
      %1656 = vmatprep.subr.bf16.mxu0 %v1571
      %1657 = vmatpush2.bf16.msra.mxu0 %v1570
      %1658 = vmatprep.subr.bf16.mxu0 %v1569
      %1659 = vmatpush2.bf16.msra.mxu0 %v1568
      %1660 = vmatprep.subr.bf16.mxu0 %v1567
      %1661 = vmatpush2.bf16.msra.mxu0 %v1566
      %1662 = vmatprep.subr.bf16.mxu0 %v1565
      %1663 = vmatpush2.bf16.msra.mxu0 %v1564
      %1664 = vmatprep.subr.bf16.mxu0 %v1563
      %1665 = vmatpush2.bf16.msra.mxu0 %v1562
      %1666 = vmatprep.subr.bf16.mxu0 %v1561
      %1667 = vmatpush2.bf16.msra.mxu0 %v1560
      %1668 = vmatprep.subr.bf16.mxu0 %v1559
      %1669 = vmatpush2.bf16.msra.mxu0 %v1558
      %1670 = vmatprep.mubr.bf16.mxu0 %v1375
      %1671 = vmatmul.mubr.bf16.gmra.mxu0 %v1374
      %v1672 = vpop.f32.mrf.mxu0
      %v1673 = vadd.f32 0.0, %v1672
      %v1674 = vpop.f32.mrf.mxu0
      %v1675 = vadd.f32 0.0, %v1674
      %v1676 = vpop.f32.mrf.mxu0
      %v1677 = vadd.f32 0.0, %v1676
      %v1678 = vpop.f32.mrf.mxu0
      %v1679 = vadd.f32 0.0, %v1678
      %1680 = vmatprep.mubr.bf16.mxu0 %v1378
      %1681 = vmatmul.mubr.bf16.gmra.mxu0 %v1377
      %v1682 = vpop.f32.mrf.mxu0
      %v1683 = vadd.f32 0.0, %v1682
      %v1684 = vpop.f32.mrf.mxu0
      %v1685 = vadd.f32 0.0, %v1684
      %v1686 = vpop.f32.mrf.mxu0
      %v1687 = vadd.f32 0.0, %v1686
      %v1688 = vpop.f32.mrf.mxu0
      %v1689 = vadd.f32 0.0, %v1688
      %1690 = vmatprep.mubr.bf16.mxu0 %v1381
      %1691 = vmatmul.mubr.bf16.gmra.mxu0 %v1380
      %v1692 = vpop.f32.mrf.mxu0
      %v1693 = vadd.f32 0.0, %v1692
      %v1694 = vpop.f32.mrf.mxu0
      %v1695 = vadd.f32 0.0, %v1694
      %v1696 = vpop.f32.mrf.mxu0
      %v1697 = vadd.f32 0.0, %v1696
      %v1698 = vpop.f32.mrf.mxu0
      %v1699 = vadd.f32 0.0, %v1698
      %1700 = vmatprep.mubr.bf16.mxu0 %v1384
      %1701 = vmatmul.mubr.bf16.gmra.mxu0 %v1383
      %v1702 = vpop.f32.mrf.mxu0
      %v1703 = vadd.f32 0.0, %v1702
      %v1704 = vpop.f32.mrf.mxu0
      %v1705 = vadd.f32 0.0, %v1704
      %v1706 = vpop.f32.mrf.mxu0
      %v1707 = vadd.f32 0.0, %v1706
      %v1708 = vpop.f32.mrf.mxu0
      %v1709 = vadd.f32 0.0, %v1708
      %1710 = vdwg.mxu0
      %1711 = vmatprep.subr.bf16.mxu0 %v1589
      %1712 = vmatpush1.bf16.msra.mxu0 %v1588
      %1713 = vmatprep.subr.bf16.mxu0 %v1587
      %1714 = vmatpush1.bf16.msra.mxu0 %v1586
      %1715 = vmatprep.subr.bf16.mxu0 %v1585
      %1716 = vmatpush1.bf16.msra.mxu0 %v1584
      %1717 = vmatprep.subr.bf16.mxu0 %v1583
      %1718 = vmatpush1.bf16.msra.mxu0 %v1582
      %1719 = vmatprep.subr.bf16.mxu0 %v1581
      %1720 = vmatpush1.bf16.msra.mxu0 %v1580
      %1721 = vmatprep.subr.bf16.mxu0 %v1579
      %1722 = vmatpush1.bf16.msra.mxu0 %v1578
      %1723 = vmatprep.subr.bf16.mxu0 %v1577
      %1724 = vmatpush1.bf16.msra.mxu0 %v1576
      %1725 = vmatprep.subr.bf16.mxu0 %v1575
      %1726 = vmatpush1.bf16.msra.mxu0 %v1574
      %1727 = vmatprep.subr.bf16.mxu0 0
      %1728 = vmatpush2.bf16.msra.mxu0 0
      %1729 = vmatprep.subr.bf16.mxu0 0
      %1730 = vmatpush2.bf16.msra.mxu0 0
      %1731 = vmatprep.subr.bf16.mxu0 0
      %1732 = vmatpush2.bf16.msra.mxu0 0
      %1733 = vmatprep.subr.bf16.mxu0 0
      %1734 = vmatpush2.bf16.msra.mxu0 0
      %1735 = vmatprep.subr.bf16.mxu0 0
      %1736 = vmatpush2.bf16.msra.mxu0 0
      %1737 = vmatprep.subr.bf16.mxu0 0
      %1738 = vmatpush2.bf16.msra.mxu0 0
      %1739 = vmatprep.subr.bf16.mxu0 0
      %1740 = vmatpush2.bf16.msra.mxu0 0
      %1741 = vmatprep.subr.bf16.mxu0 0
      %1742 = vmatpush2.bf16.msra.mxu0 0
      %1743 = vmatprep.mubr.bf16.mxu0 0
      %1744 = vmatmul.mubr.bf16.gmra.mxu0 %v1376
      %v1745 = vpop.f32.mrf.mxu0
      %v1746 = vadd.f32 %v1673, %v1745
      %v1747 = vpop.f32.mrf.mxu0
      %v1748 = vadd.f32 %v1675, %v1747
      %v1749 = vpop.f32.mrf.mxu0
      %v1750 = vadd.f32 %v1677, %v1749
      %v1751 = vpop.f32.mrf.mxu0
      %v1752 = vadd.f32 %v1679, %v1751
      %1753 = vmatprep.mubr.bf16.mxu0 0
      %1754 = vmatmul.mubr.bf16.gmra.mxu0 %v1379
      %v1755 = vpop.f32.mrf.mxu0
      %v1756 = vadd.f32 %v1683, %v1755
      %v1757 = vpop.f32.mrf.mxu0
      %v1758 = vadd.f32 %v1685, %v1757
      %v1759 = vpop.f32.mrf.mxu0
      %v1760 = vadd.f32 %v1687, %v1759
      %v1761 = vpop.f32.mrf.mxu0
      %v1762 = vadd.f32 %v1689, %v1761
      %1763 = vmatprep.mubr.bf16.mxu0 0
      %1764 = vmatmul.mubr.bf16.gmra.mxu0 %v1382
      %v1765 = vpop.f32.mrf.mxu0
      %v1766 = vadd.f32 %v1693, %v1765
      %v1767 = vpop.f32.mrf.mxu0
      %v1768 = vadd.f32 %v1695, %v1767
      %v1769 = vpop.f32.mrf.mxu0
      %v1770 = vadd.f32 %v1697, %v1769
      %v1771 = vpop.f32.mrf.mxu0
      %v1772 = vadd.f32 %v1699, %v1771
      %1773 = vmatprep.mubr.bf16.mxu0 0
      %1774 = vmatmul.mubr.bf16.gmra.mxu0 %v1385
      %v1775 = vpop.f32.mrf.mxu0
      %v1776 = vadd.f32 %v1703, %v1775
      %v1777 = vpop.f32.mrf.mxu0
      %v1778 = vadd.f32 %v1705, %v1777
      %v1779 = vpop.f32.mrf.mxu0
      %v1780 = vadd.f32 %v1707, %v1779
      %v1781 = vpop.f32.mrf.mxu0
      %v1782 = vadd.f32 %v1709, %v1781
      %1783 = vdwg.mxu0
      %v1784 = vpack.c.b16 %v949, %v946
      %v1785 = vpack.c.b16 %v950, %v947
      %v1786 = vpack.c.b16 %v951, %v948
      %v1787 = vpack.c.b16 %v955, %v952
      %v1788 = vpack.c.b16 %v956, %v953
      %v1789 = vpack.c.b16 %v957, %v954
      %v1790 = vpack.c.b16 %v961, %v958
      %v1791 = vpack.c.b16 %v962, %v959
      %v1792 = vpack.c.b16 %v963, %v960
      %v1793 = vpack.c.b16 %v967, %v964
      %v1794 = vpack.c.b16 %v968, %v965
      %v1795 = vpack.c.b16 %v969, %v966
      %v1856 = vunpack.c.l.b16 %v970
      %v1857 = vunpack.c.h.b16 %v970
      %v1858 = vunpack.c.l.b16 %v971
      %v1859 = vunpack.c.h.b16 %v971
      %v1860 = vunpack.c.l.b16 %v972
      %v1861 = vunpack.c.h.b16 %v972
      %v1862 = vunpack.c.l.b16 %v973
      %v1863 = vunpack.c.h.b16 %v973
      %v1864 = vunpack.c.l.b16 %v974
      %v1865 = vunpack.c.h.b16 %v974
      %v1866 = vunpack.c.l.b16 %v975
      %v1867 = vunpack.c.h.b16 %v975
      %v1868 = vunpack.c.l.b16 %v976
      %v1869 = vunpack.c.h.b16 %v976
      %v1870 = vunpack.c.l.b16 %v977
      %v1871 = vunpack.c.h.b16 %v977
      %v1872 = vunpack.c.l.b16 %v978
      %v1873 = vunpack.c.h.b16 %v978
      %v1874 = vunpack.c.l.b16 %v979
      %v1875 = vunpack.c.h.b16 %v979
      %v1876 = vunpack.c.l.b16 %v980
      %v1877 = vunpack.c.h.b16 %v980
      %v1878 = vunpack.c.l.b16 %v981
      %v1879 = vunpack.c.h.b16 %v981
      %v1880 = vunpack.c.l.b16 %v982
      %v1881 = vunpack.c.h.b16 %v982
      %v1882 = vunpack.c.l.b16 %v983
      %v1883 = vunpack.c.h.b16 %v983
      %v1884 = vunpack.c.l.b16 %v984
      %v1885 = vunpack.c.h.b16 %v984
      %v1886 = vunpack.c.l.b16 %v985
      %v1887 = vunpack.c.h.b16 %v985
      %v1888 = vunpack.c.l.b16 %v986
      %v1889 = vunpack.c.h.b16 %v986
      %v1890 = vunpack.c.l.b16 %v987
      %v1891 = vunpack.c.h.b16 %v987
      %v1892 = vunpack.c.l.b16 %v988
      %v1893 = vunpack.c.h.b16 %v988
      %v1894 = vunpack.c.l.b16 %v989
      %v1895 = vunpack.c.h.b16 %v989
      %v1896 = vunpack.c.l.b16 %v990
      %v1897 = vunpack.c.h.b16 %v990
      %v1898 = vunpack.c.l.b16 %v991
      %v1899 = vunpack.c.h.b16 %v991
      %v1900 = vunpack.c.l.b16 %v992
      %v1901 = vunpack.c.h.b16 %v992
      %v1902 = vunpack.c.l.b16 %v993
      %v1903 = vunpack.c.h.b16 %v993
      %v1904 = vunpack.c.l.b16 %v994
      %v1905 = vunpack.c.h.b16 %v994
      %v1906 = vunpack.c.l.b16 %v995
      %v1907 = vunpack.c.h.b16 %v995
      %v1908 = vunpack.c.l.b16 %v996
      %v1909 = vunpack.c.h.b16 %v996
      %v1910 = vunpack.c.l.b16 %v997
      %v1911 = vunpack.c.h.b16 %v997
      %v1912 = vunpack.c.l.b16 %v998
      %v1913 = vunpack.c.h.b16 %v998
      %v1914 = vunpack.c.l.b16 %v999
      %v1915 = vunpack.c.h.b16 %v999
      %v1916 = vunpack.c.l.b16 %v1000
      %v1917 = vunpack.c.h.b16 %v1000
      %v1918 = vunpack.c.l.b16 %v1001
      %v1919 = vunpack.c.h.b16 %v1001
      %v1920 = vunpack.c.l.b16 %v1002
      %v1921 = vunpack.c.h.b16 %v1002
      %v1922 = vunpack.c.l.b16 %v1003
      %v1923 = vunpack.c.h.b16 %v1003
      %v1924 = vunpack.c.l.b16 %v1004
      %v1925 = vunpack.c.h.b16 %v1004
      %v1926 = vunpack.c.l.b16 %v1005
      %v1927 = vunpack.c.h.b16 %v1005
      %v1928 = vunpack.c.l.b16 %v1006
      %v1929 = vunpack.c.h.b16 %v1006
      %v1930 = vunpack.c.l.b16 %v1007
      %v1931 = vunpack.c.h.b16 %v1007
      %v1932 = vunpack.c.l.b16 %v1008
      %v1933 = vunpack.c.h.b16 %v1008
      %v1934 = vunpack.c.l.b16 %v1009
      %v1935 = vunpack.c.h.b16 %v1009
      %v1936 = vunpack.c.l.b16 %v1010
      %v1937 = vunpack.c.h.b16 %v1010
      %v1938 = vunpack.c.l.b16 %v1011
      %v1939 = vunpack.c.h.b16 %v1011
      %v1940 = vunpack.c.l.b16 %v1012
      %v1941 = vunpack.c.h.b16 %v1012
      %v1942 = vunpack.c.l.b16 %v1013
      %v1943 = vunpack.c.h.b16 %v1013
      %v1944 = vunpack.c.l.b16 %v1014
      %v1945 = vunpack.c.h.b16 %v1014
      %v1946 = vunpack.c.l.b16 %v1015
      %v1947 = vunpack.c.h.b16 %v1015
      %v1948 = vunpack.c.l.b16 %v1016
      %v1949 = vunpack.c.h.b16 %v1016
      %v1950 = vunpack.c.l.b16 %v1017
      %v1951 = vunpack.c.h.b16 %v1017
      %v1952 = vpack.c.b16 %v1858, %v1856
      %v1953 = vpack.c.b16 %v1859, %v1857
      %v1954 = vpack.c.b16 %v1862, %v1860
      %v1955 = vpack.c.b16 %v1863, %v1861
      %v1956 = vpack.c.b16 %v1866, %v1864
      %v1957 = vpack.c.b16 %v1867, %v1865
      %v1958 = vpack.c.b16 %v1870, %v1868
      %v1959 = vpack.c.b16 %v1871, %v1869
      %v1960 = vpack.c.b16 %v1874, %v1872
      %v1961 = vpack.c.b16 %v1875, %v1873
      %v1962 = vpack.c.b16 %v1878, %v1876
      %v1963 = vpack.c.b16 %v1879, %v1877
      %v1964 = vpack.c.b16 %v1882, %v1880
      %v1965 = vpack.c.b16 %v1883, %v1881
      %v1966 = vpack.c.b16 %v1886, %v1884
      %v1967 = vpack.c.b16 %v1887, %v1885
      %v1968 = vpack.c.b16 %v1890, %v1888
      %v1969 = vpack.c.b16 %v1891, %v1889
      %v1970 = vpack.c.b16 %v1894, %v1892
      %v1971 = vpack.c.b16 %v1895, %v1893
      %v1972 = vpack.c.b16 %v1898, %v1896
      %v1973 = vpack.c.b16 %v1899, %v1897
      %v1974 = vpack.c.b16 %v1902, %v1900
      %v1975 = vpack.c.b16 %v1903, %v1901
      %v1976 = vpack.c.b16 %v1906, %v1904
      %v1977 = vpack.c.b16 %v1907, %v1905
      %v1978 = vpack.c.b16 %v1910, %v1908
      %v1979 = vpack.c.b16 %v1911, %v1909
      %v1980 = vpack.c.b16 %v1914, %v1912
      %v1981 = vpack.c.b16 %v1915, %v1913
      %v1982 = vpack.c.b16 %v1918, %v1916
      %v1983 = vpack.c.b16 %v1919, %v1917
      %v1984 = vpack.c.b16 %v1922, %v1920
      %v1985 = vpack.c.b16 %v1923, %v1921
      %v1986 = vpack.c.b16 %v1926, %v1924
      %v1987 = vpack.c.b16 %v1927, %v1925
      %v1988 = vpack.c.b16 %v1930, %v1928
      %v1989 = vpack.c.b16 %v1931, %v1929
      %v1990 = vpack.c.b16 %v1934, %v1932
      %v1991 = vpack.c.b16 %v1935, %v1933
      %v1992 = vpack.c.b16 %v1938, %v1936
      %v1993 = vpack.c.b16 %v1939, %v1937
      %v1994 = vpack.c.b16 %v1942, %v1940
      %v1995 = vpack.c.b16 %v1943, %v1941
      %v1996 = vpack.c.b16 %v1946, %v1944
      %v1997 = vpack.c.b16 %v1947, %v1945
      %v1998 = vpack.c.b16 %v1950, %v1948
      %v1999 = vpack.c.b16 %v1951, %v1949
      %2048 = vmatprep.subr.bf16.mxu0 %v1967
      %2049 = vmatpush1.bf16.msra.mxu0 %v1966
      %2050 = vmatprep.subr.bf16.mxu0 %v1965
      %2051 = vmatpush1.bf16.msra.mxu0 %v1964
      %2052 = vmatprep.subr.bf16.mxu0 %v1963
      %2053 = vmatpush1.bf16.msra.mxu0 %v1962
      %2054 = vmatprep.subr.bf16.mxu0 %v1961
      %2055 = vmatpush1.bf16.msra.mxu0 %v1960
      %2056 = vmatprep.subr.bf16.mxu0 %v1959
      %2057 = vmatpush1.bf16.msra.mxu0 %v1958
      %2058 = vmatprep.subr.bf16.mxu0 %v1957
      %2059 = vmatpush1.bf16.msra.mxu0 %v1956
      %2060 = vmatprep.subr.bf16.mxu0 %v1955
      %2061 = vmatpush1.bf16.msra.mxu0 %v1954
      %2062 = vmatprep.subr.bf16.mxu0 %v1953
      %2063 = vmatpush1.bf16.msra.mxu0 %v1952
      %2064 = vmatprep.subr.bf16.mxu0 %v1983
      %2065 = vmatpush2.bf16.msra.mxu0 %v1982
      %2066 = vmatprep.subr.bf16.mxu0 %v1981
      %2067 = vmatpush2.bf16.msra.mxu0 %v1980
      %2068 = vmatprep.subr.bf16.mxu0 %v1979
      %2069 = vmatpush2.bf16.msra.mxu0 %v1978
      %2070 = vmatprep.subr.bf16.mxu0 %v1977
      %2071 = vmatpush2.bf16.msra.mxu0 %v1976
      %2072 = vmatprep.subr.bf16.mxu0 %v1975
      %2073 = vmatpush2.bf16.msra.mxu0 %v1974
      %2074 = vmatprep.subr.bf16.mxu0 %v1973
      %2075 = vmatpush2.bf16.msra.mxu0 %v1972
      %2076 = vmatprep.subr.bf16.mxu0 %v1971
      %2077 = vmatpush2.bf16.msra.mxu0 %v1970
      %2078 = vmatprep.subr.bf16.mxu0 %v1969
      %2079 = vmatpush2.bf16.msra.mxu0 %v1968
      %2080 = vmatprep.mubr.bf16.mxu0 %v1785
      %2081 = vmatmul.mubr.bf16.gmra.mxu0 %v1784
      %v2082 = vpop.f32.mrf.mxu0
      %v2083 = vadd.f32 %v1746, %v2082
      %v2084 = vpop.f32.mrf.mxu0
      %v2085 = vadd.f32 %v1748, %v2084
      %v2086 = vpop.f32.mrf.mxu0
      %v2087 = vadd.f32 %v1750, %v2086
      %v2088 = vpop.f32.mrf.mxu0
      %v2089 = vadd.f32 %v1752, %v2088
      %2090 = vmatprep.mubr.bf16.mxu0 %v1788
      %2091 = vmatmul.mubr.bf16.gmra.mxu0 %v1787
      %v2092 = vpop.f32.mrf.mxu0
      %v2093 = vadd.f32 %v1756, %v2092
      %v2094 = vpop.f32.mrf.mxu0
      %v2095 = vadd.f32 %v1758, %v2094
      %v2096 = vpop.f32.mrf.mxu0
      %v2097 = vadd.f32 %v1760, %v2096
      %v2098 = vpop.f32.mrf.mxu0
      %v2099 = vadd.f32 %v1762, %v2098
      %2100 = vmatprep.mubr.bf16.mxu0 %v1791
      %2101 = vmatmul.mubr.bf16.gmra.mxu0 %v1790
      %v2102 = vpop.f32.mrf.mxu0
      %v2103 = vadd.f32 %v1766, %v2102
      %v2104 = vpop.f32.mrf.mxu0
      %v2105 = vadd.f32 %v1768, %v2104
      %v2106 = vpop.f32.mrf.mxu0
      %v2107 = vadd.f32 %v1770, %v2106
      %v2108 = vpop.f32.mrf.mxu0
      %v2109 = vadd.f32 %v1772, %v2108
      %2110 = vmatprep.mubr.bf16.mxu0 %v1794
      %2111 = vmatmul.mubr.bf16.gmra.mxu0 %v1793
      %v2112 = vpop.f32.mrf.mxu0
      %v2113 = vadd.f32 %v1776, %v2112
      %v2114 = vpop.f32.mrf.mxu0
      %v2115 = vadd.f32 %v1778, %v2114
      %v2116 = vpop.f32.mrf.mxu0
      %v2117 = vadd.f32 %v1780, %v2116
      %v2118 = vpop.f32.mrf.mxu0
      %v2119 = vadd.f32 %v1782, %v2118
      %2120 = vdwg.mxu0
      %2121 = vmatprep.subr.bf16.mxu0 %v1999
      %2122 = vmatpush1.bf16.msra.mxu0 %v1998
      %2123 = vmatprep.subr.bf16.mxu0 %v1997
      %2124 = vmatpush1.bf16.msra.mxu0 %v1996
      %2125 = vmatprep.subr.bf16.mxu0 %v1995
      %2126 = vmatpush1.bf16.msra.mxu0 %v1994
      %2127 = vmatprep.subr.bf16.mxu0 %v1993
      %2128 = vmatpush1.bf16.msra.mxu0 %v1992
      %2129 = vmatprep.subr.bf16.mxu0 %v1991
      %2130 = vmatpush1.bf16.msra.mxu0 %v1990
      %2131 = vmatprep.subr.bf16.mxu0 %v1989
      %2132 = vmatpush1.bf16.msra.mxu0 %v1988
      %2133 = vmatprep.subr.bf16.mxu0 %v1987
      %2134 = vmatpush1.bf16.msra.mxu0 %v1986
      %2135 = vmatprep.subr.bf16.mxu0 %v1985
      %2136 = vmatpush1.bf16.msra.mxu0 %v1984
      %2137 = vmatprep.subr.bf16.mxu0 0
      %2138 = vmatpush2.bf16.msra.mxu0 0
      %2139 = vmatprep.subr.bf16.mxu0 0
      %2140 = vmatpush2.bf16.msra.mxu0 0
      %2141 = vmatprep.subr.bf16.mxu0 0
      %2142 = vmatpush2.bf16.msra.mxu0 0
      %2143 = vmatprep.subr.bf16.mxu0 0
      %2144 = vmatpush2.bf16.msra.mxu0 0
      %2145 = vmatprep.subr.bf16.mxu0 0
      %2146 = vmatpush2.bf16.msra.mxu0 0
      %2147 = vmatprep.subr.bf16.mxu0 0
      %2148 = vmatpush2.bf16.msra.mxu0 0
      %2149 = vmatprep.subr.bf16.mxu0 0
      %2150 = vmatpush2.bf16.msra.mxu0 0
      %2151 = vmatprep.subr.bf16.mxu0 0
      %2152 = vmatpush2.bf16.msra.mxu0 0
      %2153 = vmatprep.mubr.bf16.mxu0 0
      %2154 = vmatmul.mubr.bf16.gmra.mxu0 %v1786
      %v2155 = vpop.f32.mrf.mxu0
      %v2156 = vadd.f32 %v2083, %v2155
      %v2157 = vpop.f32.mrf.mxu0
      %v2158 = vadd.f32 %v2085, %v2157
      %v2159 = vpop.f32.mrf.mxu0
      %v2160 = vadd.f32 %v2087, %v2159
      %v2161 = vpop.f32.mrf.mxu0
      %v2162 = vadd.f32 %v2089, %v2161
      %2163 = vmatprep.mubr.bf16.mxu0 0
      %2164 = vmatmul.mubr.bf16.gmra.mxu0 %v1789
      %v2165 = vpop.f32.mrf.mxu0
      %v2166 = vadd.f32 %v2093, %v2165
      %v2167 = vpop.f32.mrf.mxu0
      %v2168 = vadd.f32 %v2095, %v2167
      %v2169 = vpop.f32.mrf.mxu0
      %v2170 = vadd.f32 %v2097, %v2169
      %v2171 = vpop.f32.mrf.mxu0
      %v2172 = vadd.f32 %v2099, %v2171
      %2173 = vmatprep.mubr.bf16.mxu0 0
      %2174 = vmatmul.mubr.bf16.gmra.mxu0 %v1792
      %v2175 = vpop.f32.mrf.mxu0
      %v2176 = vadd.f32 %v2103, %v2175
      %v2177 = vpop.f32.mrf.mxu0
      %v2178 = vadd.f32 %v2105, %v2177
      %v2179 = vpop.f32.mrf.mxu0
      %v2180 = vadd.f32 %v2107, %v2179
      %v2181 = vpop.f32.mrf.mxu0
      %v2182 = vadd.f32 %v2109, %v2181
      %2183 = vmatprep.mubr.bf16.mxu0 0
      %2184 = vmatmul.mubr.bf16.gmra.mxu0 %v1795
      %v2185 = vpop.f32.mrf.mxu0
      %v2186 = vadd.f32 %v2113, %v2185
      %v2187 = vpop.f32.mrf.mxu0
      %v2188 = vadd.f32 %v2115, %v2187
      %v2189 = vpop.f32.mrf.mxu0
      %v2190 = vadd.f32 %v2117, %v2189
      %v2191 = vpop.f32.mrf.mxu0
      %v2192 = vadd.f32 %v2119, %v2191
      %2193 = vdwg.mxu0
      %vm2194 = vcmask 1042432
      %vm2195 = vcmask 1046532
      %vm2196 = vmor %vm2194, %vm2195
      %v2197 = vrot.slane %v1042, 5
      %v2198 = vrot.slane %v2197, 4
      %v2199 = vrot.slane %v1044, 5
      %v2200 = vsel %vm2196, %v2198, %v2199
      %v2201 = vrot.slane %v1043, 5
      %v2202 = vrot.slane %v2201, 4
      %v2203 = vrot.slane %v1045, 5
      %v2204 = vsel %vm2196, %v2202, %v2203
      %v2205 = vrot.slane %v1046, 5
      %v2206 = vrot.slane %v2205, 4
      %v2207 = vrot.slane %v1048, 5
      %v2208 = vsel %vm2196, %v2206, %v2207
      %v2209 = vrot.slane %v1047, 5
      %v2210 = vrot.slane %v2209, 4
      %v2211 = vrot.slane %v1049, 5
      %v2212 = vsel %vm2196, %v2210, %v2211
      %v2213 = vrot.slane %v1050, 5
      %v2214 = vrot.slane %v2213, 4
      %v2215 = vrot.slane %v1052, 5
      %v2216 = vsel %vm2196, %v2214, %v2215
      %v2217 = vrot.slane %v1051, 5
      %v2218 = vrot.slane %v2217, 4
      %v2219 = vrot.slane %v1053, 5
      %v2220 = vsel %vm2196, %v2218, %v2219
      %v2221 = vrot.slane %v1054, 5
      %v2222 = vrot.slane %v2221, 4
      %v2223 = vrot.slane %v1056, 5
      %v2224 = vsel %vm2196, %v2222, %v2223
      %v2225 = vrot.slane %v1055, 5
      %v2226 = vrot.slane %v2225, 4
      %v2227 = vrot.slane %v1057, 5
      %v2228 = vsel %vm2196, %v2226, %v2227
      %v2229 = vrot.slane %v1058, 5
      %v2230 = vrot.slane %v2229, 4
      %v2231 = vrot.slane %v1060, 5
      %v2232 = vsel %vm2196, %v2230, %v2231
      %v2233 = vrot.slane %v1059, 5
      %v2234 = vrot.slane %v2233, 4
      %v2235 = vrot.slane %v1061, 5
      %v2236 = vsel %vm2196, %v2234, %v2235
      %v2237 = vrot.slane %v1062, 5
      %v2238 = vrot.slane %v2237, 4
      %v2239 = vrot.slane %v1064, 5
      %v2240 = vsel %vm2196, %v2238, %v2239
      %v2241 = vrot.slane %v1063, 5
      %v2242 = vrot.slane %v2241, 4
      %v2243 = vrot.slane %v1065, 5
      %v2244 = vsel %vm2196, %v2242, %v2243
      %v2245 = vrot.slane %v1066, 5
      %v2246 = vrot.slane %v2245, 4
      %v2247 = vrot.slane %v1068, 5
      %v2248 = vsel %vm2196, %v2246, %v2247
      %v2249 = vrot.slane %v1067, 5
      %v2250 = vrot.slane %v2249, 4
      %v2251 = vrot.slane %v1069, 5
      %v2252 = vsel %vm2196, %v2250, %v2251
      %v2253 = vrot.slane %v1070, 5
      %v2254 = vrot.slane %v2253, 4
      %v2255 = vrot.slane %v1072, 5
      %v2256 = vsel %vm2196, %v2254, %v2255
      %v2257 = vrot.slane %v1071, 5
      %v2258 = vrot.slane %v2257, 4
      %v2259 = vrot.slane %v1073, 5
      %v2260 = vsel %vm2196, %v2258, %v2259
      %s2261 = scalar_lea.vmem %s6, 768
      %v2262 = vld [vmem:[%s2261] sm:$0xff]
      %v2263 = vld [vmem:[%s2261 + $0x8] sm:$0xff]
      %v2264 = vld [vmem:[%s2261 + $0x10] sm:$0xff]
      %v2265 = vld [vmem:[%s2261 + $0x18] sm:$0xff]
      %v2266 = vld [vmem:[%s2261 + $0x20] sm:$0xff]
      %v2267 = vld [vmem:[%s2261 + $0x28] sm:$0xff]
      %v2268 = vld [vmem:[%s2261 + $0x30] sm:$0xff]
      %v2269 = vld [vmem:[%s2261 + $0x38] sm:$0xff]
      %v2270 = vld [vmem:[%s2261 + $0x40] sm:$0xff]
      %v2271 = vld [vmem:[%s2261 + $0x48] sm:$0xff]
      %v2272 = vld [vmem:[%s2261 + $0x50] sm:$0xff]
      %v2273 = vld [vmem:[%s2261 + $0x58] sm:$0xff]
      %v2274 = vld [vmem:[%s2261 + $0x60] sm:$0xff]
      %v2275 = vld [vmem:[%s2261 + $0x68] sm:$0xff]
      %v2276 = vld [vmem:[%s2261 + $0x70] sm:$0xff]
      %v2277 = vld [vmem:[%s2261 + $0x78] sm:$0xff]
      %v2278 = vld [vmem:[%s2261 + $0x80] sm:$0xff]
      %v2279 = vld [vmem:[%s2261 + $0x88] sm:$0xff]
      %v2280 = vld [vmem:[%s2261 + $0x90] sm:$0xff]
      %v2281 = vld [vmem:[%s2261 + $0x98] sm:$0xff]
      %v2282 = vld [vmem:[%s2261 + $0xa0] sm:$0xff]
      %v2283 = vld [vmem:[%s2261 + $0xa8] sm:$0xff]
      %v2284 = vld [vmem:[%s2261 + $0xb0] sm:$0xff]
      %v2285 = vld [vmem:[%s2261 + $0xb8] sm:$0xff]
      %v2286 = vld [vmem:[%s2261 + $0xc0] sm:$0xff]
      %v2287 = vld [vmem:[%s2261 + $0xc8] sm:$0xff]
      %v2288 = vld [vmem:[%s2261 + $0xd0] sm:$0xff]
      %v2289 = vld [vmem:[%s2261 + $0xd8] sm:$0xff]
      %v2290 = vld [vmem:[%s2261 + $0xe0] sm:$0xff]
      %v2291 = vld [vmem:[%s2261 + $0xe8] sm:$0xff]
      %v2292 = vld [vmem:[%s2261 + $0xf0] sm:$0xff]
      %v2293 = vld [vmem:[%s2261 + $0xf8] sm:$0xff]
      %v2294 = vld [vmem:[%s2261 + $0x100] sm:$0xff]
      %v2295 = vld [vmem:[%s2261 + $0x108] sm:$0xff]
      %v2296 = vld [vmem:[%s2261 + $0x110] sm:$0xff]
      %v2297 = vld [vmem:[%s2261 + $0x118] sm:$0xff]
      %v2298 = vld [vmem:[%s2261 + $0x120] sm:$0xff]
      %v2299 = vld [vmem:[%s2261 + $0x128] sm:$0xff]
      %v2300 = vld [vmem:[%s2261 + $0x130] sm:$0xff]
      %v2301 = vld [vmem:[%s2261 + $0x138] sm:$0xff]
      %v2302 = vld [vmem:[%s2261 + $0x140] sm:$0xff]
      %v2303 = vld [vmem:[%s2261 + $0x148] sm:$0xff]
      %v2304 = vld [vmem:[%s2261 + $0x150] sm:$0xff]
      %v2305 = vld [vmem:[%s2261 + $0x158] sm:$0xff]
      %v2306 = vld [vmem:[%s2261 + $0x160] sm:$0xff]
      %v2307 = vld [vmem:[%s2261 + $0x168] sm:$0xff]
      %v2308 = vld [vmem:[%s2261 + $0x170] sm:$0xff]
      %v2309 = vld [vmem:[%s2261 + $0x178] sm:$0xff]
      %v2310 = vunpack.c.l.b16 %v2200
      %v2311 = vunpack.c.h.b16 %v2200
      %v2312 = vunpack.c.l.b16 %v2204
      %v2313 = vunpack.c.l.b16 %v2208
      %v2314 = vunpack.c.h.b16 %v2208
      %v2315 = vunpack.c.l.b16 %v2212
      %v2316 = vunpack.c.l.b16 %v2216
      %v2317 = vunpack.c.h.b16 %v2216
      %v2318 = vunpack.c.l.b16 %v2220
      %v2319 = vunpack.c.l.b16 %v2224
      %v2320 = vunpack.c.h.b16 %v2224
      %v2321 = vunpack.c.l.b16 %v2228
      %v2322 = vunpack.c.l.b16 %v2232
      %v2323 = vunpack.c.h.b16 %v2232
      %v2324 = vunpack.c.l.b16 %v2236
      %v2325 = vunpack.c.l.b16 %v2240
      %v2326 = vunpack.c.h.b16 %v2240
      %v2327 = vunpack.c.l.b16 %v2244
      %v2328 = vunpack.c.l.b16 %v2248
      %v2329 = vunpack.c.h.b16 %v2248
      %v2330 = vunpack.c.l.b16 %v2252
      %v2331 = vunpack.c.l.b16 %v2256
      %v2332 = vunpack.c.h.b16 %v2256
      %v2333 = vunpack.c.l.b16 %v2260
      %v2334 = vpack.c.b16 %v2313, %v2310
      %v2335 = vpack.c.b16 %v2314, %v2311
      %v2336 = vpack.c.b16 %v2315, %v2312
      %v2337 = vpack.c.b16 %v2319, %v2316
      %v2338 = vpack.c.b16 %v2320, %v2317
      %v2339 = vpack.c.b16 %v2321, %v2318
      %v2340 = vpack.c.b16 %v2325, %v2322
      %v2341 = vpack.c.b16 %v2326, %v2323
      %v2342 = vpack.c.b16 %v2327, %v2324
      %v2343 = vpack.c.b16 %v2331, %v2328
      %v2344 = vpack.c.b16 %v2332, %v2329
      %v2345 = vpack.c.b16 %v2333, %v2330
      %v2406 = vunpack.c.l.b16 %v2262
      %v2407 = vunpack.c.h.b16 %v2262
      %v2408 = vunpack.c.l.b16 %v2263
      %v2409 = vunpack.c.h.b16 %v2263
      %v2410 = vunpack.c.l.b16 %v2264
      %v2411 = vunpack.c.h.b16 %v2264
      %v2412 = vunpack.c.l.b16 %v2265
      %v2413 = vunpack.c.h.b16 %v2265
      %v2414 = vunpack.c.l.b16 %v2266
      %v2415 = vunpack.c.h.b16 %v2266
      %v2416 = vunpack.c.l.b16 %v2267
      %v2417 = vunpack.c.h.b16 %v2267
      %v2418 = vunpack.c.l.b16 %v2268
      %v2419 = vunpack.c.h.b16 %v2268
      %v2420 = vunpack.c.l.b16 %v2269
      %v2421 = vunpack.c.h.b16 %v2269
      %v2422 = vunpack.c.l.b16 %v2270
      %v2423 = vunpack.c.h.b16 %v2270
      %v2424 = vunpack.c.l.b16 %v2271
      %v2425 = vunpack.c.h.b16 %v2271
      %v2426 = vunpack.c.l.b16 %v2272
      %v2427 = vunpack.c.h.b16 %v2272
      %v2428 = vunpack.c.l.b16 %v2273
      %v2429 = vunpack.c.h.b16 %v2273
      %v2430 = vunpack.c.l.b16 %v2274
      %v2431 = vunpack.c.h.b16 %v2274
      %v2432 = vunpack.c.l.b16 %v2275
      %v2433 = vunpack.c.h.b16 %v2275
      %v2434 = vunpack.c.l.b16 %v2276
      %v2435 = vunpack.c.h.b16 %v2276
      %v2436 = vunpack.c.l.b16 %v2277
      %v2437 = vunpack.c.h.b16 %v2277
      %v2438 = vunpack.c.l.b16 %v2278
      %v2439 = vunpack.c.h.b16 %v2278
      %v2440 = vunpack.c.l.b16 %v2279
      %v2441 = vunpack.c.h.b16 %v2279
      %v2442 = vunpack.c.l.b16 %v2280
      %v2443 = vunpack.c.h.b16 %v2280
      %v2444 = vunpack.c.l.b16 %v2281
      %v2445 = vunpack.c.h.b16 %v2281
      %v2446 = vunpack.c.l.b16 %v2282
      %v2447 = vunpack.c.h.b16 %v2282
      %v2448 = vunpack.c.l.b16 %v2283
      %v2449 = vunpack.c.h.b16 %v2283
      %v2450 = vunpack.c.l.b16 %v2284
      %v2451 = vunpack.c.h.b16 %v2284
      %v2452 = vunpack.c.l.b16 %v2285
      %v2453 = vunpack.c.h.b16 %v2285
      %v2454 = vunpack.c.l.b16 %v2286
      %v2455 = vunpack.c.h.b16 %v2286
      %v2456 = vunpack.c.l.b16 %v2287
      %v2457 = vunpack.c.h.b16 %v2287
      %v2458 = vunpack.c.l.b16 %v2288
      %v2459 = vunpack.c.h.b16 %v2288
      %v2460 = vunpack.c.l.b16 %v2289
      %v2461 = vunpack.c.h.b16 %v2289
      %v2462 = vunpack.c.l.b16 %v2290
      %v2463 = vunpack.c.h.b16 %v2290
      %v2464 = vunpack.c.l.b16 %v2291
      %v2465 = vunpack.c.h.b16 %v2291
      %v2466 = vunpack.c.l.b16 %v2292
      %v2467 = vunpack.c.h.b16 %v2292
      %v2468 = vunpack.c.l.b16 %v2293
      %v2469 = vunpack.c.h.b16 %v2293
      %v2470 = vunpack.c.l.b16 %v2294
      %v2471 = vunpack.c.h.b16 %v2294
      %v2472 = vunpack.c.l.b16 %v2295
      %v2473 = vunpack.c.h.b16 %v2295
      %v2474 = vunpack.c.l.b16 %v2296
      %v2475 = vunpack.c.h.b16 %v2296
      %v2476 = vunpack.c.l.b16 %v2297
      %v2477 = vunpack.c.h.b16 %v2297
      %v2478 = vunpack.c.l.b16 %v2298
      %v2479 = vunpack.c.h.b16 %v2298
      %v2480 = vunpack.c.l.b16 %v2299
      %v2481 = vunpack.c.h.b16 %v2299
      %v2482 = vunpack.c.l.b16 %v2300
      %v2483 = vunpack.c.h.b16 %v2300
      %v2484 = vunpack.c.l.b16 %v2301
      %v2485 = vunpack.c.h.b16 %v2301
      %v2486 = vunpack.c.l.b16 %v2302
      %v2487 = vunpack.c.h.b16 %v2302
      %v2488 = vunpack.c.l.b16 %v2303
      %v2489 = vunpack.c.h.b16 %v2303
      %v2490 = vunpack.c.l.b16 %v2304
      %v2491 = vunpack.c.h.b16 %v2304
      %v2492 = vunpack.c.l.b16 %v2305
      %v2493 = vunpack.c.h.b16 %v2305
      %v2494 = vunpack.c.l.b16 %v2306
      %v2495 = vunpack.c.h.b16 %v2306
      %v2496 = vunpack.c.l.b16 %v2307
      %v2497 = vunpack.c.h.b16 %v2307
      %v2498 = vunpack.c.l.b16 %v2308
      %v2499 = vunpack.c.h.b16 %v2308
      %v2500 = vunpack.c.l.b16 %v2309
      %v2501 = vunpack.c.h.b16 %v2309
      %v2502 = vpack.c.b16 %v2408, %v2406
      %v2503 = vpack.c.b16 %v2409, %v2407
      %v2504 = vpack.c.b16 %v2412, %v2410
      %v2505 = vpack.c.b16 %v2413, %v2411
      %v2506 = vpack.c.b16 %v2416, %v2414
      %v2507 = vpack.c.b16 %v2417, %v2415
      %v2508 = vpack.c.b16 %v2420, %v2418
      %v2509 = vpack.c.b16 %v2421, %v2419
      %v2510 = vpack.c.b16 %v2424, %v2422
      %v2511 = vpack.c.b16 %v2425, %v2423
      %v2512 = vpack.c.b16 %v2428, %v2426
      %v2513 = vpack.c.b16 %v2429, %v2427
      %v2514 = vpack.c.b16 %v2432, %v2430
      %v2515 = vpack.c.b16 %v2433, %v2431
      %v2516 = vpack.c.b16 %v2436, %v2434
      %v2517 = vpack.c.b16 %v2437, %v2435
      %v2518 = vpack.c.b16 %v2440, %v2438
      %v2519 = vpack.c.b16 %v2441, %v2439
      %v2520 = vpack.c.b16 %v2444, %v2442
      %v2521 = vpack.c.b16 %v2445, %v2443
      %v2522 = vpack.c.b16 %v2448, %v2446
      %v2523 = vpack.c.b16 %v2449, %v2447
      %v2524 = vpack.c.b16 %v2452, %v2450
      %v2525 = vpack.c.b16 %v2453, %v2451
      %v2526 = vpack.c.b16 %v2456, %v2454
      %v2527 = vpack.c.b16 %v2457, %v2455
      %v2528 = vpack.c.b16 %v2460, %v2458
      %v2529 = vpack.c.b16 %v2461, %v2459
      %v2530 = vpack.c.b16 %v2464, %v2462
      %v2531 = vpack.c.b16 %v2465, %v2463
      %v2532 = vpack.c.b16 %v2468, %v2466
      %v2533 = vpack.c.b16 %v2469, %v2467
      %v2534 = vpack.c.b16 %v2472, %v2470
      %v2535 = vpack.c.b16 %v2473, %v2471
      %v2536 = vpack.c.b16 %v2476, %v2474
      %v2537 = vpack.c.b16 %v2477, %v2475
      %v2538 = vpack.c.b16 %v2480, %v2478
      %v2539 = vpack.c.b16 %v2481, %v2479
      %v2540 = vpack.c.b16 %v2484, %v2482
      %v2541 = vpack.c.b16 %v2485, %v2483
      %v2542 = vpack.c.b16 %v2488, %v2486
      %v2543 = vpack.c.b16 %v2489, %v2487
      %v2544 = vpack.c.b16 %v2492, %v2490
      %v2545 = vpack.c.b16 %v2493, %v2491
      %v2546 = vpack.c.b16 %v2496, %v2494
      %v2547 = vpack.c.b16 %v2497, %v2495
      %v2548 = vpack.c.b16 %v2500, %v2498
      %v2549 = vpack.c.b16 %v2501, %v2499
      %2598 = vmatprep.subr.bf16.mxu0 %v2517
      %2599 = vmatpush1.bf16.msra.mxu0 %v2516
      %2600 = vmatprep.subr.bf16.mxu0 %v2515
      %2601 = vmatpush1.bf16.msra.mxu0 %v2514
      %2602 = vmatprep.subr.bf16.mxu0 %v2513
      %2603 = vmatpush1.bf16.msra.mxu0 %v2512
      %2604 = vmatprep.subr.bf16.mxu0 %v2511
      %2605 = vmatpush1.bf16.msra.mxu0 %v2510
      %2606 = vmatprep.subr.bf16.mxu0 %v2509
      %2607 = vmatpush1.bf16.msra.mxu0 %v2508
      %2608 = vmatprep.subr.bf16.mxu0 %v2507
      %2609 = vmatpush1.bf16.msra.mxu0 %v2506
      %2610 = vmatprep.subr.bf16.mxu0 %v2505
      %2611 = vmatpush1.bf16.msra.mxu0 %v2504
      %2612 = vmatprep.subr.bf16.mxu0 %v2503
      %2613 = vmatpush1.bf16.msra.mxu0 %v2502
      %2614 = vmatprep.subr.bf16.mxu0 %v2533
      %2615 = vmatpush2.bf16.msra.mxu0 %v2532
      %2616 = vmatprep.subr.bf16.mxu0 %v2531
      %2617 = vmatpush2.bf16.msra.mxu0 %v2530
      %2618 = vmatprep.subr.bf16.mxu0 %v2529
      %2619 = vmatpush2.bf16.msra.mxu0 %v2528
      %2620 = vmatprep.subr.bf16.mxu0 %v2527
      %2621 = vmatpush2.bf16.msra.mxu0 %v2526
      %2622 = vmatprep.subr.bf16.mxu0 %v2525
      %2623 = vmatpush2.bf16.msra.mxu0 %v2524
      %2624 = vmatprep.subr.bf16.mxu0 %v2523
      %2625 = vmatpush2.bf16.msra.mxu0 %v2522
      %2626 = vmatprep.subr.bf16.mxu0 %v2521
      %2627 = vmatpush2.bf16.msra.mxu0 %v2520
      %2628 = vmatprep.subr.bf16.mxu0 %v2519
      %2629 = vmatpush2.bf16.msra.mxu0 %v2518
      %2630 = vmatprep.mubr.bf16.mxu0 %v2335
      %2631 = vmatmul.mubr.bf16.gmra.mxu0 %v2334
      %v2632 = vpop.f32.mrf.mxu0
      %v2633 = vadd.f32 0.0, %v2632
      %v2634 = vpop.f32.mrf.mxu0
      %v2635 = vadd.f32 0.0, %v2634
      %v2636 = vpop.f32.mrf.mxu0
      %v2637 = vadd.f32 0.0, %v2636
      %v2638 = vpop.f32.mrf.mxu0
      %v2639 = vadd.f32 0.0, %v2638
      %2640 = vmatprep.mubr.bf16.mxu0 %v2338
      %2641 = vmatmul.mubr.bf16.gmra.mxu0 %v2337
      %v2642 = vpop.f32.mrf.mxu0
      %v2643 = vadd.f32 0.0, %v2642
      %v2644 = vpop.f32.mrf.mxu0
      %v2645 = vadd.f32 0.0, %v2644
      %v2646 = vpop.f32.mrf.mxu0
      %v2647 = vadd.f32 0.0, %v2646
      %v2648 = vpop.f32.mrf.mxu0
      %v2649 = vadd.f32 0.0, %v2648
      %2650 = vmatprep.mubr.bf16.mxu0 %v2341
      %2651 = vmatmul.mubr.bf16.gmra.mxu0 %v2340
      %v2652 = vpop.f32.mrf.mxu0
      %v2653 = vadd.f32 0.0, %v2652
      %v2654 = vpop.f32.mrf.mxu0
      %v2655 = vadd.f32 0.0, %v2654
      %v2656 = vpop.f32.mrf.mxu0
      %v2657 = vadd.f32 0.0, %v2656
      %v2658 = vpop.f32.mrf.mxu0
      %v2659 = vadd.f32 0.0, %v2658
      %2660 = vmatprep.mubr.bf16.mxu0 %v2344
      %2661 = vmatmul.mubr.bf16.gmra.mxu0 %v2343
      %v2662 = vpop.f32.mrf.mxu0
      %v2663 = vadd.f32 0.0, %v2662
      %v2664 = vpop.f32.mrf.mxu0
      %v2665 = vadd.f32 0.0, %v2664
      %v2666 = vpop.f32.mrf.mxu0
      %v2667 = vadd.f32 0.0, %v2666
      %v2668 = vpop.f32.mrf.mxu0
      %v2669 = vadd.f32 0.0, %v2668
      %2670 = vdwg.mxu0
      %2671 = vmatprep.subr.bf16.mxu0 %v2549
      %2672 = vmatpush1.bf16.msra.mxu0 %v2548
      %2673 = vmatprep.subr.bf16.mxu0 %v2547
      %2674 = vmatpush1.bf16.msra.mxu0 %v2546
      %2675 = vmatprep.subr.bf16.mxu0 %v2545
      %2676 = vmatpush1.bf16.msra.mxu0 %v2544
      %2677 = vmatprep.subr.bf16.mxu0 %v2543
      %2678 = vmatpush1.bf16.msra.mxu0 %v2542
      %2679 = vmatprep.subr.bf16.mxu0 %v2541
      %2680 = vmatpush1.bf16.msra.mxu0 %v2540
      %2681 = vmatprep.subr.bf16.mxu0 %v2539
      %2682 = vmatpush1.bf16.msra.mxu0 %v2538
      %2683 = vmatprep.subr.bf16.mxu0 %v2537
      %2684 = vmatpush1.bf16.msra.mxu0 %v2536
      %2685 = vmatprep.subr.bf16.mxu0 %v2535
      %2686 = vmatpush1.bf16.msra.mxu0 %v2534
      %2687 = vmatprep.subr.bf16.mxu0 0
      %2688 = vmatpush2.bf16.msra.mxu0 0
      %2689 = vmatprep.subr.bf16.mxu0 0
      %2690 = vmatpush2.bf16.msra.mxu0 0
      %2691 = vmatprep.subr.bf16.mxu0 0
      %2692 = vmatpush2.bf16.msra.mxu0 0
      %2693 = vmatprep.subr.bf16.mxu0 0
      %2694 = vmatpush2.bf16.msra.mxu0 0
      %2695 = vmatprep.subr.bf16.mxu0 0
      %2696 = vmatpush2.bf16.msra.mxu0 0
      %2697 = vmatprep.subr.bf16.mxu0 0
      %2698 = vmatpush2.bf16.msra.mxu0 0
      %2699 = vmatprep.subr.bf16.mxu0 0
      %2700 = vmatpush2.bf16.msra.mxu0 0
      %2701 = vmatprep.subr.bf16.mxu0 0
      %2702 = vmatpush2.bf16.msra.mxu0 0
      %2703 = vmatprep.mubr.bf16.mxu0 0
      %2704 = vmatmul.mubr.bf16.gmra.mxu0 %v2336
      %v2705 = vpop.f32.mrf.mxu0
      %v2706 = vadd.f32 %v2633, %v2705
      %v2707 = vpop.f32.mrf.mxu0
      %v2708 = vadd.f32 %v2635, %v2707
      %v2709 = vpop.f32.mrf.mxu0
      %v2710 = vadd.f32 %v2637, %v2709
      %v2711 = vpop.f32.mrf.mxu0
      %v2712 = vadd.f32 %v2639, %v2711
      %2713 = vmatprep.mubr.bf16.mxu0 0
      %2714 = vmatmul.mubr.bf16.gmra.mxu0 %v2339
      %v2715 = vpop.f32.mrf.mxu0
      %v2716 = vadd.f32 %v2643, %v2715
      %v2717 = vpop.f32.mrf.mxu0
      %v2718 = vadd.f32 %v2645, %v2717
      %v2719 = vpop.f32.mrf.mxu0
      %v2720 = vadd.f32 %v2647, %v2719
      %v2721 = vpop.f32.mrf.mxu0
      %v2722 = vadd.f32 %v2649, %v2721
      %2723 = vmatprep.mubr.bf16.mxu0 0
      %2724 = vmatmul.mubr.bf16.gmra.mxu0 %v2342
      %v2725 = vpop.f32.mrf.mxu0
      %v2726 = vadd.f32 %v2653, %v2725
      %v2727 = vpop.f32.mrf.mxu0
      %v2728 = vadd.f32 %v2655, %v2727
      %v2729 = vpop.f32.mrf.mxu0
      %v2730 = vadd.f32 %v2657, %v2729
      %v2731 = vpop.f32.mrf.mxu0
      %v2732 = vadd.f32 %v2659, %v2731
      %2733 = vmatprep.mubr.bf16.mxu0 0
      %2734 = vmatmul.mubr.bf16.gmra.mxu0 %v2345
      %v2735 = vpop.f32.mrf.mxu0
      %v2736 = vadd.f32 %v2663, %v2735
      %v2737 = vpop.f32.mrf.mxu0
      %v2738 = vadd.f32 %v2665, %v2737
      %v2739 = vpop.f32.mrf.mxu0
      %v2740 = vadd.f32 %v2667, %v2739
      %v2741 = vpop.f32.mrf.mxu0
      %v2742 = vadd.f32 %v2669, %v2741
      %2743 = vdwg.mxu0
      %v2744 = vadd.f32 %v2156, %v2706
      %v2745 = vadd.f32 %v2158, %v2708
      %v2746 = vadd.f32 %v2160, %v2710
      %v2747 = vadd.f32 %v2162, %v2712
      %v2748 = vadd.f32 %v2166, %v2716
      %v2749 = vadd.f32 %v2168, %v2718
      %v2750 = vadd.f32 %v2170, %v2720
      %v2751 = vadd.f32 %v2172, %v2722
      %v2752 = vadd.f32 %v2176, %v2726
      %v2753 = vadd.f32 %v2178, %v2728
      %v2754 = vadd.f32 %v2180, %v2730
      %v2755 = vadd.f32 %v2182, %v2732
      %v2756 = vadd.f32 %v2186, %v2736
      %v2757 = vadd.f32 %v2188, %v2738
      %v2758 = vadd.f32 %v2190, %v2740
      %v2759 = vadd.f32 %v2192, %v2742
      %v2763 = vunpack.c.l.b16 %v644
      %v2764 = vunpack.c.l.b16 %v782
      %v2765 = vunpack.c.l.b16 %v920
      %s2766 = scalar_lea.vmem %s6, 1152
      %v2767 = vld [vmem:[%s2766] sm:$0xff]
      %v2768 = vld [vmem:[%s2766 + $0x8] sm:$0xff]
      %v2769 = vld [vmem:[%s2766 + $0x10] sm:$0xff]
      %v2770 = vld [vmem:[%s2766 + $0x18] sm:$0xff]
      %v2771 = vld [vmem:[%s2766 + $0x20] sm:$0xff]
      %v2772 = vld [vmem:[%s2766 + $0x28] sm:$0xff]
      %v2773 = vld [vmem:[%s2766 + $0x30] sm:$0xff]
      %v2774 = vld [vmem:[%s2766 + $0x38] sm:$0xff]
      %v2775 = vld [vmem:[%s2766 + $0x40] sm:$0xff]
      %v2776 = vld [vmem:[%s2766 + $0x48] sm:$0xff]
      %v2777 = vld [vmem:[%s2766 + $0x50] sm:$0xff]
      %v2778 = vld [vmem:[%s2766 + $0x58] sm:$0xff]
      %v2779 = vld [vmem:[%s2766 + $0x60] sm:$0xff]
      %v2780 = vld [vmem:[%s2766 + $0x68] sm:$0xff]
      %v2781 = vld [vmem:[%s2766 + $0x70] sm:$0xff]
      %v2782 = vld [vmem:[%s2766 + $0x78] sm:$0xff]
      %v2783 = vld [vmem:[%s2766 + $0x80] sm:$0xff]
      %v2784 = vld [vmem:[%s2766 + $0x88] sm:$0xff]
      %v2785 = vld [vmem:[%s2766 + $0x90] sm:$0xff]
      %v2786 = vld [vmem:[%s2766 + $0x98] sm:$0xff]
      %v2787 = vld [vmem:[%s2766 + $0xa0] sm:$0xff]
      %v2788 = vld [vmem:[%s2766 + $0xa8] sm:$0xff]
      %v2789 = vld [vmem:[%s2766 + $0xb0] sm:$0xff]
      %v2790 = vld [vmem:[%s2766 + $0xb8] sm:$0xff]
      %v2791 = vld [vmem:[%s2766 + $0xc0] sm:$0xff]
      %v2792 = vld [vmem:[%s2766 + $0xc8] sm:$0xff]
      %v2793 = vld [vmem:[%s2766 + $0xd0] sm:$0xff]
      %v2794 = vld [vmem:[%s2766 + $0xd8] sm:$0xff]
      %v2795 = vld [vmem:[%s2766 + $0xe0] sm:$0xff]
      %v2796 = vld [vmem:[%s2766 + $0xe8] sm:$0xff]
      %v2797 = vld [vmem:[%s2766 + $0xf0] sm:$0xff]
      %v2798 = vld [vmem:[%s2766 + $0xf8] sm:$0xff]
      %v2799 = vld [vmem:[%s2766 + $0x100] sm:$0xff]
      %v2800 = vld [vmem:[%s2766 + $0x108] sm:$0xff]
      %v2801 = vld [vmem:[%s2766 + $0x110] sm:$0xff]
      %v2802 = vld [vmem:[%s2766 + $0x118] sm:$0xff]
      %v2803 = vld [vmem:[%s2766 + $0x120] sm:$0xff]
      %v2804 = vld [vmem:[%s2766 + $0x128] sm:$0xff]
      %v2805 = vld [vmem:[%s2766 + $0x130] sm:$0xff]
      %v2806 = vld [vmem:[%s2766 + $0x138] sm:$0xff]
      %v2807 = vld [vmem:[%s2766 + $0x140] sm:$0xff]
      %v2808 = vld [vmem:[%s2766 + $0x148] sm:$0xff]
      %v2809 = vld [vmem:[%s2766 + $0x150] sm:$0xff]
      %v2810 = vld [vmem:[%s2766 + $0x158] sm:$0xff]
      %v2811 = vld [vmem:[%s2766 + $0x160] sm:$0xff]
      %v2812 = vld [vmem:[%s2766 + $0x168] sm:$0xff]
      %v2813 = vld [vmem:[%s2766 + $0x170] sm:$0xff]
      %v2814 = vld [vmem:[%s2766 + $0x178] sm:$0xff]
      %v2815 = vpack.c.b16 %v952, %v949
      %v2816 = vpack.c.b16 %v953, %v950
      %v2817 = vpack.c.b16 %v954, %v951
      %v2818 = vpack.c.b16 %v958, %v955
      %v2819 = vpack.c.b16 %v959, %v956
      %v2820 = vpack.c.b16 %v960, %v957
      %v2821 = vpack.c.b16 %v964, %v961
      %v2822 = vpack.c.b16 %v965, %v962
      %v2823 = vpack.c.b16 %v966, %v963
      %v2824 = vpack.c.b16 %v2763, %v967
      %v2825 = vpack.c.b16 %v2764, %v968
      %v2826 = vpack.c.b16 %v2765, %v969
      %v2887 = vunpack.c.l.b16 %v2767
      %v2888 = vunpack.c.h.b16 %v2767
      %v2889 = vunpack.c.l.b16 %v2768
      %v2890 = vunpack.c.h.b16 %v2768
      %v2891 = vunpack.c.l.b16 %v2769
      %v2892 = vunpack.c.h.b16 %v2769
      %v2893 = vunpack.c.l.b16 %v2770
      %v2894 = vunpack.c.h.b16 %v2770
      %v2895 = vunpack.c.l.b16 %v2771
      %v2896 = vunpack.c.h.b16 %v2771
      %v2897 = vunpack.c.l.b16 %v2772
      %v2898 = vunpack.c.h.b16 %v2772
      %v2899 = vunpack.c.l.b16 %v2773
      %v2900 = vunpack.c.h.b16 %v2773
      %v2901 = vunpack.c.l.b16 %v2774
      %v2902 = vunpack.c.h.b16 %v2774
      %v2903 = vunpack.c.l.b16 %v2775
      %v2904 = vunpack.c.h.b16 %v2775
      %v2905 = vunpack.c.l.b16 %v2776
      %v2906 = vunpack.c.h.b16 %v2776
      %v2907 = vunpack.c.l.b16 %v2777
      %v2908 = vunpack.c.h.b16 %v2777
      %v2909 = vunpack.c.l.b16 %v2778
      %v2910 = vunpack.c.h.b16 %v2778
      %v2911 = vunpack.c.l.b16 %v2779
      %v2912 = vunpack.c.h.b16 %v2779
      %v2913 = vunpack.c.l.b16 %v2780
      %v2914 = vunpack.c.h.b16 %v2780
      %v2915 = vunpack.c.l.b16 %v2781
      %v2916 = vunpack.c.h.b16 %v2781
      %v2917 = vunpack.c.l.b16 %v2782
      %v2918 = vunpack.c.h.b16 %v2782
      %v2919 = vunpack.c.l.b16 %v2783
      %v2920 = vunpack.c.h.b16 %v2783
      %v2921 = vunpack.c.l.b16 %v2784
      %v2922 = vunpack.c.h.b16 %v2784
      %v2923 = vunpack.c.l.b16 %v2785
      %v2924 = vunpack.c.h.b16 %v2785
      %v2925 = vunpack.c.l.b16 %v2786
      %v2926 = vunpack.c.h.b16 %v2786
      %v2927 = vunpack.c.l.b16 %v2787
      %v2928 = vunpack.c.h.b16 %v2787
      %v2929 = vunpack.c.l.b16 %v2788
      %v2930 = vunpack.c.h.b16 %v2788
      %v2931 = vunpack.c.l.b16 %v2789
      %v2932 = vunpack.c.h.b16 %v2789
      %v2933 = vunpack.c.l.b16 %v2790
      %v2934 = vunpack.c.h.b16 %v2790
      %v2935 = vunpack.c.l.b16 %v2791
      %v2936 = vunpack.c.h.b16 %v2791
      %v2937 = vunpack.c.l.b16 %v2792
      %v2938 = vunpack.c.h.b16 %v2792
      %v2939 = vunpack.c.l.b16 %v2793
      %v2940 = vunpack.c.h.b16 %v2793
      %v2941 = vunpack.c.l.b16 %v2794
      %v2942 = vunpack.c.h.b16 %v2794
      %v2943 = vunpack.c.l.b16 %v2795
      %v2944 = vunpack.c.h.b16 %v2795
      %v2945 = vunpack.c.l.b16 %v2796
      %v2946 = vunpack.c.h.b16 %v2796
      %v2947 = vunpack.c.l.b16 %v2797
      %v2948 = vunpack.c.h.b16 %v2797
      %v2949 = vunpack.c.l.b16 %v2798
      %v2950 = vunpack.c.h.b16 %v2798
      %v2951 = vunpack.c.l.b16 %v2799
      %v2952 = vunpack.c.h.b16 %v2799
      %v2953 = vunpack.c.l.b16 %v2800
      %v2954 = vunpack.c.h.b16 %v2800
      %v2955 = vunpack.c.l.b16 %v2801
      %v2956 = vunpack.c.h.b16 %v2801
      %v2957 = vunpack.c.l.b16 %v2802
      %v2958 = vunpack.c.h.b16 %v2802
      %v2959 = vunpack.c.l.b16 %v2803
      %v2960 = vunpack.c.h.b16 %v2803
      %v2961 = vunpack.c.l.b16 %v2804
      %v2962 = vunpack.c.h.b16 %v2804
      %v2963 = vunpack.c.l.b16 %v2805
      %v2964 = vunpack.c.h.b16 %v2805
      %v2965 = vunpack.c.l.b16 %v2806
      %v2966 = vunpack.c.h.b16 %v2806
      %v2967 = vunpack.c.l.b16 %v2807
      %v2968 = vunpack.c.h.b16 %v2807
      %v2969 = vunpack.c.l.b16 %v2808
      %v2970 = vunpack.c.h.b16 %v2808
      %v2971 = vunpack.c.l.b16 %v2809
      %v2972 = vunpack.c.h.b16 %v2809
      %v2973 = vunpack.c.l.b16 %v2810
      %v2974 = vunpack.c.h.b16 %v2810
      %v2975 = vunpack.c.l.b16 %v2811
      %v2976 = vunpack.c.h.b16 %v2811
      %v2977 = vunpack.c.l.b16 %v2812
      %v2978 = vunpack.c.h.b16 %v2812
      %v2979 = vunpack.c.l.b16 %v2813
      %v2980 = vunpack.c.h.b16 %v2813
      %v2981 = vunpack.c.l.b16 %v2814
      %v2982 = vunpack.c.h.b16 %v2814
      %v2983 = vpack.c.b16 %v2889, %v2887
      %v2984 = vpack.c.b16 %v2890, %v2888
      %v2985 = vpack.c.b16 %v2893, %v2891
      %v2986 = vpack.c.b16 %v2894, %v2892
      %v2987 = vpack.c.b16 %v2897, %v2895
      %v2988 = vpack.c.b16 %v2898, %v2896
      %v2989 = vpack.c.b16 %v2901, %v2899
      %v2990 = vpack.c.b16 %v2902, %v2900
      %v2991 = vpack.c.b16 %v2905, %v2903
      %v2992 = vpack.c.b16 %v2906, %v2904
      %v2993 = vpack.c.b16 %v2909, %v2907
      %v2994 = vpack.c.b16 %v2910, %v2908
      %v2995 = vpack.c.b16 %v2913, %v2911
      %v2996 = vpack.c.b16 %v2914, %v2912
      %v2997 = vpack.c.b16 %v2917, %v2915
      %v2998 = vpack.c.b16 %v2918, %v2916
      %v2999 = vpack.c.b16 %v2921, %v2919
      %v3000 = vpack.c.b16 %v2922, %v2920
      %v3001 = vpack.c.b16 %v2925, %v2923
      %v3002 = vpack.c.b16 %v2926, %v2924
      %v3003 = vpack.c.b16 %v2929, %v2927
      %v3004 = vpack.c.b16 %v2930, %v2928
      %v3005 = vpack.c.b16 %v2933, %v2931
      %v3006 = vpack.c.b16 %v2934, %v2932
      %v3007 = vpack.c.b16 %v2937, %v2935
      %v3008 = vpack.c.b16 %v2938, %v2936
      %v3009 = vpack.c.b16 %v2941, %v2939
      %v3010 = vpack.c.b16 %v2942, %v2940
      %v3011 = vpack.c.b16 %v2945, %v2943
      %v3012 = vpack.c.b16 %v2946, %v2944
      %v3013 = vpack.c.b16 %v2949, %v2947
      %v3014 = vpack.c.b16 %v2950, %v2948
      %v3015 = vpack.c.b16 %v2953, %v2951
      %v3016 = vpack.c.b16 %v2954, %v2952
      %v3017 = vpack.c.b16 %v2957, %v2955
      %v3018 = vpack.c.b16 %v2958, %v2956
      %v3019 = vpack.c.b16 %v2961, %v2959
      %v3020 = vpack.c.b16 %v2962, %v2960
      %v3021 = vpack.c.b16 %v2965, %v2963
      %v3022 = vpack.c.b16 %v2966, %v2964
      %v3023 = vpack.c.b16 %v2969, %v2967
      %v3024 = vpack.c.b16 %v2970, %v2968
      %v3025 = vpack.c.b16 %v2973, %v2971
      %v3026 = vpack.c.b16 %v2974, %v2972
      %v3027 = vpack.c.b16 %v2977, %v2975
      %v3028 = vpack.c.b16 %v2978, %v2976
      %v3029 = vpack.c.b16 %v2981, %v2979
      %v3030 = vpack.c.b16 %v2982, %v2980
      %3079 = vmatprep.subr.bf16.mxu0 %v2998
      %3080 = vmatpush1.bf16.msra.mxu0 %v2997
      %3081 = vmatprep.subr.bf16.mxu0 %v2996
      %3082 = vmatpush1.bf16.msra.mxu0 %v2995
      %3083 = vmatprep.subr.bf16.mxu0 %v2994
      %3084 = vmatpush1.bf16.msra.mxu0 %v2993
      %3085 = vmatprep.subr.bf16.mxu0 %v2992
      %3086 = vmatpush1.bf16.msra.mxu0 %v2991
      %3087 = vmatprep.subr.bf16.mxu0 %v2990
      %3088 = vmatpush1.bf16.msra.mxu0 %v2989
      %3089 = vmatprep.subr.bf16.mxu0 %v2988
      %3090 = vmatpush1.bf16.msra.mxu0 %v2987
      %3091 = vmatprep.subr.bf16.mxu0 %v2986
      %3092 = vmatpush1.bf16.msra.mxu0 %v2985
      %3093 = vmatprep.subr.bf16.mxu0 %v2984
      %3094 = vmatpush1.bf16.msra.mxu0 %v2983
      %3095 = vmatprep.subr.bf16.mxu0 %v3014
      %3096 = vmatpush2.bf16.msra.mxu0 %v3013
      %3097 = vmatprep.subr.bf16.mxu0 %v3012
      %3098 = vmatpush2.bf16.msra.mxu0 %v3011
      %3099 = vmatprep.subr.bf16.mxu0 %v3010
      %3100 = vmatpush2.bf16.msra.mxu0 %v3009
      %3101 = vmatprep.subr.bf16.mxu0 %v3008
      %3102 = vmatpush2.bf16.msra.mxu0 %v3007
      %3103 = vmatprep.subr.bf16.mxu0 %v3006
      %3104 = vmatpush2.bf16.msra.mxu0 %v3005
      %3105 = vmatprep.subr.bf16.mxu0 %v3004
      %3106 = vmatpush2.bf16.msra.mxu0 %v3003
      %3107 = vmatprep.subr.bf16.mxu0 %v3002
      %3108 = vmatpush2.bf16.msra.mxu0 %v3001
      %3109 = vmatprep.subr.bf16.mxu0 %v3000
      %3110 = vmatpush2.bf16.msra.mxu0 %v2999
      %3111 = vmatprep.mubr.bf16.mxu0 %v2816
      %3112 = vmatmul.mubr.bf16.gmra.mxu0 %v2815
      %v3113 = vpop.f32.mrf.mxu0
      %v3114 = vadd.f32 0.0, %v3113
      %v3115 = vpop.f32.mrf.mxu0
      %v3116 = vadd.f32 0.0, %v3115
      %v3117 = vpop.f32.mrf.mxu0
      %v3118 = vadd.f32 0.0, %v3117
      %v3119 = vpop.f32.mrf.mxu0
      %v3120 = vadd.f32 0.0, %v3119
      %3121 = vmatprep.mubr.bf16.mxu0 %v2819
      %3122 = vmatmul.mubr.bf16.gmra.mxu0 %v2818
      %v3123 = vpop.f32.mrf.mxu0
      %v3124 = vadd.f32 0.0, %v3123
      %v3125 = vpop.f32.mrf.mxu0
      %v3126 = vadd.f32 0.0, %v3125
      %v3127 = vpop.f32.mrf.mxu0
      %v3128 = vadd.f32 0.0, %v3127
      %v3129 = vpop.f32.mrf.mxu0
      %v3130 = vadd.f32 0.0, %v3129
      %3131 = vmatprep.mubr.bf16.mxu0 %v2822
      %3132 = vmatmul.mubr.bf16.gmra.mxu0 %v2821
      %v3133 = vpop.f32.mrf.mxu0
      %v3134 = vadd.f32 0.0, %v3133
      %v3135 = vpop.f32.mrf.mxu0
      %v3136 = vadd.f32 0.0, %v3135
      %v3137 = vpop.f32.mrf.mxu0
      %v3138 = vadd.f32 0.0, %v3137
      %v3139 = vpop.f32.mrf.mxu0
      %v3140 = vadd.f32 0.0, %v3139
      %3141 = vmatprep.mubr.bf16.mxu0 %v2825
      %3142 = vmatmul.mubr.bf16.gmra.mxu0 %v2824
      %v3143 = vpop.f32.mrf.mxu0
      %v3144 = vadd.f32 0.0, %v3143
      %v3145 = vpop.f32.mrf.mxu0
      %v3146 = vadd.f32 0.0, %v3145
      %v3147 = vpop.f32.mrf.mxu0
      %v3148 = vadd.f32 0.0, %v3147
      %v3149 = vpop.f32.mrf.mxu0
      %v3150 = vadd.f32 0.0, %v3149
      %3151 = vdwg.mxu0
      %3152 = vmatprep.subr.bf16.mxu0 %v3030
      %3153 = vmatpush1.bf16.msra.mxu0 %v3029
      %3154 = vmatprep.subr.bf16.mxu0 %v3028
      %3155 = vmatpush1.bf16.msra.mxu0 %v3027
      %3156 = vmatprep.subr.bf16.mxu0 %v3026
      %3157 = vmatpush1.bf16.msra.mxu0 %v3025
      %3158 = vmatprep.subr.bf16.mxu0 %v3024
      %3159 = vmatpush1.bf16.msra.mxu0 %v3023
      %3160 = vmatprep.subr.bf16.mxu0 %v3022
      %3161 = vmatpush1.bf16.msra.mxu0 %v3021
      %3162 = vmatprep.subr.bf16.mxu0 %v3020
      %3163 = vmatpush1.bf16.msra.mxu0 %v3019
      %3164 = vmatprep.subr.bf16.mxu0 %v3018
      %3165 = vmatpush1.bf16.msra.mxu0 %v3017
      %3166 = vmatprep.subr.bf16.mxu0 %v3016
      %3167 = vmatpush1.bf16.msra.mxu0 %v3015
      %3168 = vmatprep.subr.bf16.mxu0 0
      %3169 = vmatpush2.bf16.msra.mxu0 0
      %3170 = vmatprep.subr.bf16.mxu0 0
      %3171 = vmatpush2.bf16.msra.mxu0 0
      %3172 = vmatprep.subr.bf16.mxu0 0
      %3173 = vmatpush2.bf16.msra.mxu0 0
      %3174 = vmatprep.subr.bf16.mxu0 0
      %3175 = vmatpush2.bf16.msra.mxu0 0
      %3176 = vmatprep.subr.bf16.mxu0 0
      %3177 = vmatpush2.bf16.msra.mxu0 0
      %3178 = vmatprep.subr.bf16.mxu0 0
      %3179 = vmatpush2.bf16.msra.mxu0 0
      %3180 = vmatprep.subr.bf16.mxu0 0
      %3181 = vmatpush2.bf16.msra.mxu0 0
      %3182 = vmatprep.subr.bf16.mxu0 0
      %3183 = vmatpush2.bf16.msra.mxu0 0
      %3184 = vmatprep.mubr.bf16.mxu0 0
      %3185 = vmatmul.mubr.bf16.gmra.mxu0 %v2817
      %v3186 = vpop.f32.mrf.mxu0
      %v3187 = vadd.f32 %v3114, %v3186
      %v3188 = vpop.f32.mrf.mxu0
      %v3189 = vadd.f32 %v3116, %v3188
      %v3190 = vpop.f32.mrf.mxu0
      %v3191 = vadd.f32 %v3118, %v3190
      %v3192 = vpop.f32.mrf.mxu0
      %v3193 = vadd.f32 %v3120, %v3192
      %3194 = vmatprep.mubr.bf16.mxu0 0
      %3195 = vmatmul.mubr.bf16.gmra.mxu0 %v2820
      %v3196 = vpop.f32.mrf.mxu0
      %v3197 = vadd.f32 %v3124, %v3196
      %v3198 = vpop.f32.mrf.mxu0
      %v3199 = vadd.f32 %v3126, %v3198
      %v3200 = vpop.f32.mrf.mxu0
      %v3201 = vadd.f32 %v3128, %v3200
      %v3202 = vpop.f32.mrf.mxu0
      %v3203 = vadd.f32 %v3130, %v3202
      %3204 = vmatprep.mubr.bf16.mxu0 0
      %3205 = vmatmul.mubr.bf16.gmra.mxu0 %v2823
      %v3206 = vpop.f32.mrf.mxu0
      %v3207 = vadd.f32 %v3134, %v3206
      %v3208 = vpop.f32.mrf.mxu0
      %v3209 = vadd.f32 %v3136, %v3208
      %v3210 = vpop.f32.mrf.mxu0
      %v3211 = vadd.f32 %v3138, %v3210
      %v3212 = vpop.f32.mrf.mxu0
      %v3213 = vadd.f32 %v3140, %v3212
      %3214 = vmatprep.mubr.bf16.mxu0 0
      %3215 = vmatmul.mubr.bf16.gmra.mxu0 %v2826
      %v3216 = vpop.f32.mrf.mxu0
      %v3217 = vadd.f32 %v3144, %v3216
      %v3218 = vpop.f32.mrf.mxu0
      %v3219 = vadd.f32 %v3146, %v3218
      %v3220 = vpop.f32.mrf.mxu0
      %v3221 = vadd.f32 %v3148, %v3220
      %v3222 = vpop.f32.mrf.mxu0
      %v3223 = vadd.f32 %v3150, %v3222
      %3224 = vdwg.mxu0
      %v3225 = vadd.f32 %v2744, %v3187
      %v3226 = vadd.f32 %v2745, %v3189
      %v3227 = vadd.f32 %v2746, %v3191
      %v3228 = vadd.f32 %v2747, %v3193
      %v3229 = vadd.f32 %v2748, %v3197
      %v3230 = vadd.f32 %v2749, %v3199
      %v3231 = vadd.f32 %v2750, %v3201
      %v3232 = vadd.f32 %v2751, %v3203
      %v3233 = vadd.f32 %v2752, %v3207
      %v3234 = vadd.f32 %v2753, %v3209
      %v3235 = vadd.f32 %v2754, %v3211
      %v3236 = vadd.f32 %v2755, %v3213
      %v3237 = vadd.f32 %v2756, %v3217
      %v3238 = vadd.f32 %v2757, %v3219
      %v3239 = vadd.f32 %v2758, %v3221
      %v3240 = vadd.f32 %v2759, %v3223
      %v3241 = vunpack.c.h.b16 %v644
      %v3242 = vunpack.c.h.b16 %v782
      %v3243 = vunpack.c.h.b16 %v920
      %v3244 = vpack.c.b16 %v2764, %v2763
      %v3245 = vpack.c.b16 %v2765, %v2765
      %v3246 = vpack.c.b16 %v3242, %v3241
      %v3247 = vpack.c.b16 %v3243, %v3243
      %v3249 = vshrl.u32 %v3244, 16
      %v3251 = vrot.slane %v3249, 4
      %v3252 = vshll.u32 %v3244, 16
      %v3254 = vrot.slane %v3252, 5
      %v3255 = vor.u32 %v3251, %v3254
      %v3256 = vrot.slane %v3255, 4
      %v3258 = vshll.u32 %v3246, 16
      %v3260 = vrot.slane %v3258, 5
      %v3261 = vsel %vm1076, %v3256, %v3260
      %v3263 = vshrl.u32 %v3245, 16
      %v3265 = vrot.slane %v3263, 4
      %v3266 = vshll.u32 %v3245, 16
      %v3268 = vrot.slane %v3266, 5
      %v3269 = vor.u32 %v3265, %v3268
      %v3270 = vrot.slane %v3269, 4
      %v3272 = vshll.u32 %v3247, 16
      %v3274 = vrot.slane %v3272, 5
      %v3275 = vsel %vm1076, %v3270, %v3274
      %s3276 = scalar_lea.vmem %s6, 1536
      %v3277 = vld [vmem:[%s3276] sm:$0xff]
      %v3278 = vld [vmem:[%s3276 + $0x8] sm:$0xff]
      %v3279 = vld [vmem:[%s3276 + $0x10] sm:$0xff]
      %v3280 = vld [vmem:[%s3276 + $0x18] sm:$0xff]
      %v3281 = vld [vmem:[%s3276 + $0x20] sm:$0xff]
      %v3282 = vld [vmem:[%s3276 + $0x28] sm:$0xff]
      %v3283 = vld [vmem:[%s3276 + $0x30] sm:$0xff]
      %v3284 = vld [vmem:[%s3276 + $0x38] sm:$0xff]
      %v3285 = vld [vmem:[%s3276 + $0x40] sm:$0xff]
      %v3286 = vld [vmem:[%s3276 + $0x48] sm:$0xff]
      %v3287 = vld [vmem:[%s3276 + $0x50] sm:$0xff]
      %v3288 = vld [vmem:[%s3276 + $0x58] sm:$0xff]
      %v3289 = vld [vmem:[%s3276 + $0x60] sm:$0xff]
      %v3290 = vld [vmem:[%s3276 + $0x68] sm:$0xff]
      %v3291 = vld [vmem:[%s3276 + $0x70] sm:$0xff]
      %v3292 = vld [vmem:[%s3276 + $0x78] sm:$0xff]
      %v3293 = vld [vmem:[%s3276 + $0x80] sm:$0xff]
      %v3294 = vld [vmem:[%s3276 + $0x88] sm:$0xff]
      %v3295 = vld [vmem:[%s3276 + $0x90] sm:$0xff]
      %v3296 = vld [vmem:[%s3276 + $0x98] sm:$0xff]
      %v3297 = vld [vmem:[%s3276 + $0xa0] sm:$0xff]
      %v3298 = vld [vmem:[%s3276 + $0xa8] sm:$0xff]
      %v3299 = vld [vmem:[%s3276 + $0xb0] sm:$0xff]
      %v3300 = vld [vmem:[%s3276 + $0xb8] sm:$0xff]
      %v3301 = vld [vmem:[%s3276 + $0xc0] sm:$0xff]
      %v3302 = vld [vmem:[%s3276 + $0xc8] sm:$0xff]
      %v3303 = vld [vmem:[%s3276 + $0xd0] sm:$0xff]
      %v3304 = vld [vmem:[%s3276 + $0xd8] sm:$0xff]
      %v3305 = vld [vmem:[%s3276 + $0xe0] sm:$0xff]
      %v3306 = vld [vmem:[%s3276 + $0xe8] sm:$0xff]
      %v3307 = vld [vmem:[%s3276 + $0xf0] sm:$0xff]
      %v3308 = vld [vmem:[%s3276 + $0xf8] sm:$0xff]
      %v3309 = vld [vmem:[%s3276 + $0x100] sm:$0xff]
      %v3310 = vld [vmem:[%s3276 + $0x108] sm:$0xff]
      %v3311 = vld [vmem:[%s3276 + $0x110] sm:$0xff]
      %v3312 = vld [vmem:[%s3276 + $0x118] sm:$0xff]
      %v3313 = vld [vmem:[%s3276 + $0x120] sm:$0xff]
      %v3314 = vld [vmem:[%s3276 + $0x128] sm:$0xff]
      %v3315 = vld [vmem:[%s3276 + $0x130] sm:$0xff]
      %v3316 = vld [vmem:[%s3276 + $0x138] sm:$0xff]
      %v3317 = vld [vmem:[%s3276 + $0x140] sm:$0xff]
      %v3318 = vld [vmem:[%s3276 + $0x148] sm:$0xff]
      %v3319 = vld [vmem:[%s3276 + $0x150] sm:$0xff]
      %v3320 = vld [vmem:[%s3276 + $0x158] sm:$0xff]
      %v3321 = vld [vmem:[%s3276 + $0x160] sm:$0xff]
      %v3322 = vld [vmem:[%s3276 + $0x168] sm:$0xff]
      %v3323 = vld [vmem:[%s3276 + $0x170] sm:$0xff]
      %v3324 = vld [vmem:[%s3276 + $0x178] sm:$0xff]
      %v3325 = vunpack.c.l.b16 %v3261
      %v3326 = vunpack.c.h.b16 %v3261
      %v3327 = vunpack.c.l.b16 %v3275
      %v3328 = vpack.c.b16 %v1356, %v1353
      %v3329 = vpack.c.b16 %v1357, %v1354
      %v3330 = vpack.c.b16 %v1358, %v1355
      %v3331 = vpack.c.b16 %v1362, %v1359
      %v3332 = vpack.c.b16 %v1363, %v1360
      %v3333 = vpack.c.b16 %v1364, %v1361
      %v3334 = vpack.c.b16 %v1368, %v1365
      %v3335 = vpack.c.b16 %v1369, %v1366
      %v3336 = vpack.c.b16 %v1370, %v1367
      %v3337 = vpack.c.b16 %v3325, %v1371
      %v3338 = vpack.c.b16 %v3326, %v1372
      %v3339 = vpack.c.b16 %v3327, %v1373
      %v3400 = vunpack.c.l.b16 %v3277
      %v3401 = vunpack.c.h.b16 %v3277
      %v3402 = vunpack.c.l.b16 %v3278
      %v3403 = vunpack.c.h.b16 %v3278
      %v3404 = vunpack.c.l.b16 %v3279
      %v3405 = vunpack.c.h.b16 %v3279
      %v3406 = vunpack.c.l.b16 %v3280
      %v3407 = vunpack.c.h.b16 %v3280
      %v3408 = vunpack.c.l.b16 %v3281
      %v3409 = vunpack.c.h.b16 %v3281
      %v3410 = vunpack.c.l.b16 %v3282
      %v3411 = vunpack.c.h.b16 %v3282
      %v3412 = vunpack.c.l.b16 %v3283
      %v3413 = vunpack.c.h.b16 %v3283
      %v3414 = vunpack.c.l.b16 %v3284
      %v3415 = vunpack.c.h.b16 %v3284
      %v3416 = vunpack.c.l.b16 %v3285
      %v3417 = vunpack.c.h.b16 %v3285
      %v3418 = vunpack.c.l.b16 %v3286
      %v3419 = vunpack.c.h.b16 %v3286
      %v3420 = vunpack.c.l.b16 %v3287
      %v3421 = vunpack.c.h.b16 %v3287
      %v3422 = vunpack.c.l.b16 %v3288
      %v3423 = vunpack.c.h.b16 %v3288
      %v3424 = vunpack.c.l.b16 %v3289
      %v3425 = vunpack.c.h.b16 %v3289
      %v3426 = vunpack.c.l.b16 %v3290
      %v3427 = vunpack.c.h.b16 %v3290
      %v3428 = vunpack.c.l.b16 %v3291
      %v3429 = vunpack.c.h.b16 %v3291
      %v3430 = vunpack.c.l.b16 %v3292
      %v3431 = vunpack.c.h.b16 %v3292
      %v3432 = vunpack.c.l.b16 %v3293
      %v3433 = vunpack.c.h.b16 %v3293
      %v3434 = vunpack.c.l.b16 %v3294
      %v3435 = vunpack.c.h.b16 %v3294
      %v3436 = vunpack.c.l.b16 %v3295
      %v3437 = vunpack.c.h.b16 %v3295
      %v3438 = vunpack.c.l.b16 %v3296
      %v3439 = vunpack.c.h.b16 %v3296
      %v3440 = vunpack.c.l.b16 %v3297
      %v3441 = vunpack.c.h.b16 %v3297
      %v3442 = vunpack.c.l.b16 %v3298
      %v3443 = vunpack.c.h.b16 %v3298
      %v3444 = vunpack.c.l.b16 %v3299
      %v3445 = vunpack.c.h.b16 %v3299
      %v3446 = vunpack.c.l.b16 %v3300
      %v3447 = vunpack.c.h.b16 %v3300
      %v3448 = vunpack.c.l.b16 %v3301
      %v3449 = vunpack.c.h.b16 %v3301
      %v3450 = vunpack.c.l.b16 %v3302
      %v3451 = vunpack.c.h.b16 %v3302
      %v3452 = vunpack.c.l.b16 %v3303
      %v3453 = vunpack.c.h.b16 %v3303
      %v3454 = vunpack.c.l.b16 %v3304
      %v3455 = vunpack.c.h.b16 %v3304
      %v3456 = vunpack.c.l.b16 %v3305
      %v3457 = vunpack.c.h.b16 %v3305
      %v3458 = vunpack.c.l.b16 %v3306
      %v3459 = vunpack.c.h.b16 %v3306
      %v3460 = vunpack.c.l.b16 %v3307
      %v3461 = vunpack.c.h.b16 %v3307
      %v3462 = vunpack.c.l.b16 %v3308
      %v3463 = vunpack.c.h.b16 %v3308
      %v3464 = vunpack.c.l.b16 %v3309
      %v3465 = vunpack.c.h.b16 %v3309
      %v3466 = vunpack.c.l.b16 %v3310
      %v3467 = vunpack.c.h.b16 %v3310
      %v3468 = vunpack.c.l.b16 %v3311
      %v3469 = vunpack.c.h.b16 %v3311
      %v3470 = vunpack.c.l.b16 %v3312
      %v3471 = vunpack.c.h.b16 %v3312
      %v3472 = vunpack.c.l.b16 %v3313
      %v3473 = vunpack.c.h.b16 %v3313
      %v3474 = vunpack.c.l.b16 %v3314
      %v3475 = vunpack.c.h.b16 %v3314
      %v3476 = vunpack.c.l.b16 %v3315
      %v3477 = vunpack.c.h.b16 %v3315
      %v3478 = vunpack.c.l.b16 %v3316
      %v3479 = vunpack.c.h.b16 %v3316
      %v3480 = vunpack.c.l.b16 %v3317
      %v3481 = vunpack.c.h.b16 %v3317
      %v3482 = vunpack.c.l.b16 %v3318
      %v3483 = vunpack.c.h.b16 %v3318
      %v3484 = vunpack.c.l.b16 %v3319
      %v3485 = vunpack.c.h.b16 %v3319
      %v3486 = vunpack.c.l.b16 %v3320
      %v3487 = vunpack.c.h.b16 %v3320
      %v3488 = vunpack.c.l.b16 %v3321
      %v3489 = vunpack.c.h.b16 %v3321
      %v3490 = vunpack.c.l.b16 %v3322
      %v3491 = vunpack.c.h.b16 %v3322
      %v3492 = vunpack.c.l.b16 %v3323
      %v3493 = vunpack.c.h.b16 %v3323
      %v3494 = vunpack.c.l.b16 %v3324
      %v3495 = vunpack.c.h.b16 %v3324
      %v3496 = vpack.c.b16 %v3402, %v3400
      %v3497 = vpack.c.b16 %v3403, %v3401
      %v3498 = vpack.c.b16 %v3406, %v3404
      %v3499 = vpack.c.b16 %v3407, %v3405
      %v3500 = vpack.c.b16 %v3410, %v3408
      %v3501 = vpack.c.b16 %v3411, %v3409
      %v3502 = vpack.c.b16 %v3414, %v3412
      %v3503 = vpack.c.b16 %v3415, %v3413
      %v3504 = vpack.c.b16 %v3418, %v3416
      %v3505 = vpack.c.b16 %v3419, %v3417
      %v3506 = vpack.c.b16 %v3422, %v3420
      %v3507 = vpack.c.b16 %v3423, %v3421
      %v3508 = vpack.c.b16 %v3426, %v3424
      %v3509 = vpack.c.b16 %v3427, %v3425
      %v3510 = vpack.c.b16 %v3430, %v3428
      %v3511 = vpack.c.b16 %v3431, %v3429
      %v3512 = vpack.c.b16 %v3434, %v3432
      %v3513 = vpack.c.b16 %v3435, %v3433
      %v3514 = vpack.c.b16 %v3438, %v3436
      %v3515 = vpack.c.b16 %v3439, %v3437
      %v3516 = vpack.c.b16 %v3442, %v3440
      %v3517 = vpack.c.b16 %v3443, %v3441
      %v3518 = vpack.c.b16 %v3446, %v3444
      %v3519 = vpack.c.b16 %v3447, %v3445
      %v3520 = vpack.c.b16 %v3450, %v3448
      %v3521 = vpack.c.b16 %v3451, %v3449
      %v3522 = vpack.c.b16 %v3454, %v3452
      %v3523 = vpack.c.b16 %v3455, %v3453
      %v3524 = vpack.c.b16 %v3458, %v3456
      %v3525 = vpack.c.b16 %v3459, %v3457
      %v3526 = vpack.c.b16 %v3462, %v3460
      %v3527 = vpack.c.b16 %v3463, %v3461
      %v3528 = vpack.c.b16 %v3466, %v3464
      %v3529 = vpack.c.b16 %v3467, %v3465
      %v3530 = vpack.c.b16 %v3470, %v3468
      %v3531 = vpack.c.b16 %v3471, %v3469
      %v3532 = vpack.c.b16 %v3474, %v3472
      %v3533 = vpack.c.b16 %v3475, %v3473
      %v3534 = vpack.c.b16 %v3478, %v3476
      %v3535 = vpack.c.b16 %v3479, %v3477
      %v3536 = vpack.c.b16 %v3482, %v3480
      %v3537 = vpack.c.b16 %v3483, %v3481
      %v3538 = vpack.c.b16 %v3486, %v3484
      %v3539 = vpack.c.b16 %v3487, %v3485
      %v3540 = vpack.c.b16 %v3490, %v3488
      %v3541 = vpack.c.b16 %v3491, %v3489
      %v3542 = vpack.c.b16 %v3494, %v3492
      %v3543 = vpack.c.b16 %v3495, %v3493
      %3592 = vmatprep.subr.bf16.mxu0 %v3511
      %3593 = vmatpush1.bf16.msra.mxu0 %v3510
      %3594 = vmatprep.subr.bf16.mxu0 %v3509
      %3595 = vmatpush1.bf16.msra.mxu0 %v3508
      %3596 = vmatprep.subr.bf16.mxu0 %v3507
      %3597 = vmatpush1.bf16.msra.mxu0 %v3506
      %3598 = vmatprep.subr.bf16.mxu0 %v3505
      %3599 = vmatpush1.bf16.msra.mxu0 %v3504
      %3600 = vmatprep.subr.bf16.mxu0 %v3503
      %3601 = vmatpush1.bf16.msra.mxu0 %v3502
      %3602 = vmatprep.subr.bf16.mxu0 %v3501
      %3603 = vmatpush1.bf16.msra.mxu0 %v3500
      %3604 = vmatprep.subr.bf16.mxu0 %v3499
      %3605 = vmatpush1.bf16.msra.mxu0 %v3498
      %3606 = vmatprep.subr.bf16.mxu0 %v3497
      %3607 = vmatpush1.bf16.msra.mxu0 %v3496
      %3608 = vmatprep.subr.bf16.mxu0 %v3527
      %3609 = vmatpush2.bf16.msra.mxu0 %v3526
      %3610 = vmatprep.subr.bf16.mxu0 %v3525
      %3611 = vmatpush2.bf16.msra.mxu0 %v3524
      %3612 = vmatprep.subr.bf16.mxu0 %v3523
      %3613 = vmatpush2.bf16.msra.mxu0 %v3522
      %3614 = vmatprep.subr.bf16.mxu0 %v3521
      %3615 = vmatpush2.bf16.msra.mxu0 %v3520
      %3616 = vmatprep.subr.bf16.mxu0 %v3519
      %3617 = vmatpush2.bf16.msra.mxu0 %v3518
      %3618 = vmatprep.subr.bf16.mxu0 %v3517
      %3619 = vmatpush2.bf16.msra.mxu0 %v3516
      %3620 = vmatprep.subr.bf16.mxu0 %v3515
      %3621 = vmatpush2.bf16.msra.mxu0 %v3514
      %3622 = vmatprep.subr.bf16.mxu0 %v3513
      %3623 = vmatpush2.bf16.msra.mxu0 %v3512
      %3624 = vmatprep.mubr.bf16.mxu0 %v3329
      %3625 = vmatmul.mubr.bf16.gmra.mxu0 %v3328
      %v3626 = vpop.f32.mrf.mxu0
      %v3627 = vadd.f32 0.0, %v3626
      %v3628 = vpop.f32.mrf.mxu0
      %v3629 = vadd.f32 0.0, %v3628
      %v3630 = vpop.f32.mrf.mxu0
      %v3631 = vadd.f32 0.0, %v3630
      %v3632 = vpop.f32.mrf.mxu0
      %v3633 = vadd.f32 0.0, %v3632
      %3634 = vmatprep.mubr.bf16.mxu0 %v3332
      %3635 = vmatmul.mubr.bf16.gmra.mxu0 %v3331
      %v3636 = vpop.f32.mrf.mxu0
      %v3637 = vadd.f32 0.0, %v3636
      %v3638 = vpop.f32.mrf.mxu0
      %v3639 = vadd.f32 0.0, %v3638
      %v3640 = vpop.f32.mrf.mxu0
      %v3641 = vadd.f32 0.0, %v3640
      %v3642 = vpop.f32.mrf.mxu0
      %v3643 = vadd.f32 0.0, %v3642
      %3644 = vmatprep.mubr.bf16.mxu0 %v3335
      %3645 = vmatmul.mubr.bf16.gmra.mxu0 %v3334
      %v3646 = vpop.f32.mrf.mxu0
      %v3647 = vadd.f32 0.0, %v3646
      %v3648 = vpop.f32.mrf.mxu0
      %v3649 = vadd.f32 0.0, %v3648
      %v3650 = vpop.f32.mrf.mxu0
      %v3651 = vadd.f32 0.0, %v3650
      %v3652 = vpop.f32.mrf.mxu0
      %v3653 = vadd.f32 0.0, %v3652
      %3654 = vmatprep.mubr.bf16.mxu0 %v3338
      %3655 = vmatmul.mubr.bf16.gmra.mxu0 %v3337
      %v3656 = vpop.f32.mrf.mxu0
      %v3657 = vadd.f32 0.0, %v3656
      %v3658 = vpop.f32.mrf.mxu0
      %v3659 = vadd.f32 0.0, %v3658
      %v3660 = vpop.f32.mrf.mxu0
      %v3661 = vadd.f32 0.0, %v3660
      %v3662 = vpop.f32.mrf.mxu0
      %v3663 = vadd.f32 0.0, %v3662
      %3664 = vdwg.mxu0
      %3665 = vmatprep.subr.bf16.mxu0 %v3543
      %3666 = vmatpush1.bf16.msra.mxu0 %v3542
      %3667 = vmatprep.subr.bf16.mxu0 %v3541
      %3668 = vmatpush1.bf16.msra.mxu0 %v3540
      %3669 = vmatprep.subr.bf16.mxu0 %v3539
      %3670 = vmatpush1.bf16.msra.mxu0 %v3538
      %3671 = vmatprep.subr.bf16.mxu0 %v3537
      %3672 = vmatpush1.bf16.msra.mxu0 %v3536
      %3673 = vmatprep.subr.bf16.mxu0 %v3535
      %3674 = vmatpush1.bf16.msra.mxu0 %v3534
      %3675 = vmatprep.subr.bf16.mxu0 %v3533
      %3676 = vmatpush1.bf16.msra.mxu0 %v3532
      %3677 = vmatprep.subr.bf16.mxu0 %v3531
      %3678 = vmatpush1.bf16.msra.mxu0 %v3530
      %3679 = vmatprep.subr.bf16.mxu0 %v3529
      %3680 = vmatpush1.bf16.msra.mxu0 %v3528
      %3681 = vmatprep.subr.bf16.mxu0 0
      %3682 = vmatpush2.bf16.msra.mxu0 0
      %3683 = vmatprep.subr.bf16.mxu0 0
      %3684 = vmatpush2.bf16.msra.mxu0 0
      %3685 = vmatprep.subr.bf16.mxu0 0
      %3686 = vmatpush2.bf16.msra.mxu0 0
      %3687 = vmatprep.subr.bf16.mxu0 0
      %3688 = vmatpush2.bf16.msra.mxu0 0
      %3689 = vmatprep.subr.bf16.mxu0 0
      %3690 = vmatpush2.bf16.msra.mxu0 0
      %3691 = vmatprep.subr.bf16.mxu0 0
      %3692 = vmatpush2.bf16.msra.mxu0 0
      %3693 = vmatprep.subr.bf16.mxu0 0
      %3694 = vmatpush2.bf16.msra.mxu0 0
      %3695 = vmatprep.subr.bf16.mxu0 0
      %3696 = vmatpush2.bf16.msra.mxu0 0
      %3697 = vmatprep.mubr.bf16.mxu0 0
      %3698 = vmatmul.mubr.bf16.gmra.mxu0 %v3330
      %v3699 = vpop.f32.mrf.mxu0
      %v3700 = vadd.f32 %v3627, %v3699
      %v3701 = vpop.f32.mrf.mxu0
      %v3702 = vadd.f32 %v3629, %v3701
      %v3703 = vpop.f32.mrf.mxu0
      %v3704 = vadd.f32 %v3631, %v3703
      %v3705 = vpop.f32.mrf.mxu0
      %v3706 = vadd.f32 %v3633, %v3705
      %3707 = vmatprep.mubr.bf16.mxu0 0
      %3708 = vmatmul.mubr.bf16.gmra.mxu0 %v3333
      %v3709 = vpop.f32.mrf.mxu0
      %v3710 = vadd.f32 %v3637, %v3709
      %v3711 = vpop.f32.mrf.mxu0
      %v3712 = vadd.f32 %v3639, %v3711
      %v3713 = vpop.f32.mrf.mxu0
      %v3714 = vadd.f32 %v3641, %v3713
      %v3715 = vpop.f32.mrf.mxu0
      %v3716 = vadd.f32 %v3643, %v3715
      %3717 = vmatprep.mubr.bf16.mxu0 0
      %3718 = vmatmul.mubr.bf16.gmra.mxu0 %v3336
      %v3719 = vpop.f32.mrf.mxu0
      %v3720 = vadd.f32 %v3647, %v3719
      %v3721 = vpop.f32.mrf.mxu0
      %v3722 = vadd.f32 %v3649, %v3721
      %v3723 = vpop.f32.mrf.mxu0
      %v3724 = vadd.f32 %v3651, %v3723
      %v3725 = vpop.f32.mrf.mxu0
      %v3726 = vadd.f32 %v3653, %v3725
      %3727 = vmatprep.mubr.bf16.mxu0 0
      %3728 = vmatmul.mubr.bf16.gmra.mxu0 %v3339
      %v3729 = vpop.f32.mrf.mxu0
      %v3730 = vadd.f32 %v3657, %v3729
      %v3731 = vpop.f32.mrf.mxu0
      %v3732 = vadd.f32 %v3659, %v3731
      %v3733 = vpop.f32.mrf.mxu0
      %v3734 = vadd.f32 %v3661, %v3733
      %v3735 = vpop.f32.mrf.mxu0
      %v3736 = vadd.f32 %v3663, %v3735
      %3737 = vdwg.mxu0
      %v3738 = vadd.f32 %v3225, %v3700
      %v3739 = vadd.f32 %v3226, %v3702
      %v3740 = vadd.f32 %v3227, %v3704
      %v3741 = vadd.f32 %v3228, %v3706
      %v3742 = vadd.f32 %v3229, %v3710
      %v3743 = vadd.f32 %v3230, %v3712
      %v3744 = vadd.f32 %v3231, %v3714
      %v3745 = vadd.f32 %v3232, %v3716
      %v3746 = vadd.f32 %v3233, %v3720
      %v3747 = vadd.f32 %v3234, %v3722
      %v3748 = vadd.f32 %v3235, %v3724
      %v3749 = vadd.f32 %v3236, %v3726
      %v3750 = vadd.f32 %v3237, %v3730
      %v3751 = vadd.f32 %v3238, %v3732
      %v3752 = vadd.f32 %v3239, %v3734
      %v3753 = vadd.f32 %v3240, %v3736
      %v3754 = vrot.slane %v3244, 5
      %v3755 = vrot.slane %v3754, 4
      %v3756 = vrot.slane %v3246, 5
      %v3757 = vsel %vm2196, %v3755, %v3756
      %v3758 = vrot.slane %v3245, 5
      %v3759 = vrot.slane %v3758, 4
      %v3760 = vrot.slane %v3247, 5
      %v3761 = vsel %vm2196, %v3759, %v3760
      %s3762 = scalar_lea.vmem %s6, 1920
      %v3763 = vld [vmem:[%s3762] sm:$0xff]
      %v3764 = vld [vmem:[%s3762 + $0x8] sm:$0xff]
      %v3765 = vld [vmem:[%s3762 + $0x10] sm:$0xff]
      %v3766 = vld [vmem:[%s3762 + $0x18] sm:$0xff]
      %v3767 = vld [vmem:[%s3762 + $0x20] sm:$0xff]
      %v3768 = vld [vmem:[%s3762 + $0x28] sm:$0xff]
      %v3769 = vld [vmem:[%s3762 + $0x30] sm:$0xff]
      %v3770 = vld [vmem:[%s3762 + $0x38] sm:$0xff]
      %v3771 = vld [vmem:[%s3762 + $0x40] sm:$0xff]
      %v3772 = vld [vmem:[%s3762 + $0x48] sm:$0xff]
      %v3773 = vld [vmem:[%s3762 + $0x50] sm:$0xff]
      %v3774 = vld [vmem:[%s3762 + $0x58] sm:$0xff]
      %v3775 = vld [vmem:[%s3762 + $0x60] sm:$0xff]
      %v3776 = vld [vmem:[%s3762 + $0x68] sm:$0xff]
      %v3777 = vld [vmem:[%s3762 + $0x70] sm:$0xff]
      %v3778 = vld [vmem:[%s3762 + $0x78] sm:$0xff]
      %v3779 = vld [vmem:[%s3762 + $0x80] sm:$0xff]
      %v3780 = vld [vmem:[%s3762 + $0x88] sm:$0xff]
      %v3781 = vld [vmem:[%s3762 + $0x90] sm:$0xff]
      %v3782 = vld [vmem:[%s3762 + $0x98] sm:$0xff]
      %v3783 = vld [vmem:[%s3762 + $0xa0] sm:$0xff]
      %v3784 = vld [vmem:[%s3762 + $0xa8] sm:$0xff]
      %v3785 = vld [vmem:[%s3762 + $0xb0] sm:$0xff]
      %v3786 = vld [vmem:[%s3762 + $0xb8] sm:$0xff]
      %v3787 = vld [vmem:[%s3762 + $0xc0] sm:$0xff]
      %v3788 = vld [vmem:[%s3762 + $0xc8] sm:$0xff]
      %v3789 = vld [vmem:[%s3762 + $0xd0] sm:$0xff]
      %v3790 = vld [vmem:[%s3762 + $0xd8] sm:$0xff]
      %v3791 = vld [vmem:[%s3762 + $0xe0] sm:$0xff]
      %v3792 = vld [vmem:[%s3762 + $0xe8] sm:$0xff]
      %v3793 = vld [vmem:[%s3762 + $0xf0] sm:$0xff]
      %v3794 = vld [vmem:[%s3762 + $0xf8] sm:$0xff]
      %v3795 = vld [vmem:[%s3762 + $0x100] sm:$0xff]
      %v3796 = vld [vmem:[%s3762 + $0x108] sm:$0xff]
      %v3797 = vld [vmem:[%s3762 + $0x110] sm:$0xff]
      %v3798 = vld [vmem:[%s3762 + $0x118] sm:$0xff]
      %v3799 = vld [vmem:[%s3762 + $0x120] sm:$0xff]
      %v3800 = vld [vmem:[%s3762 + $0x128] sm:$0xff]
      %v3801 = vld [vmem:[%s3762 + $0x130] sm:$0xff]
      %v3802 = vld [vmem:[%s3762 + $0x138] sm:$0xff]
      %v3803 = vld [vmem:[%s3762 + $0x140] sm:$0xff]
      %v3804 = vld [vmem:[%s3762 + $0x148] sm:$0xff]
      %v3805 = vld [vmem:[%s3762 + $0x150] sm:$0xff]
      %v3806 = vld [vmem:[%s3762 + $0x158] sm:$0xff]
      %v3807 = vld [vmem:[%s3762 + $0x160] sm:$0xff]
      %v3808 = vld [vmem:[%s3762 + $0x168] sm:$0xff]
      %v3809 = vld [vmem:[%s3762 + $0x170] sm:$0xff]
      %v3810 = vld [vmem:[%s3762 + $0x178] sm:$0xff]
      %v3811 = vunpack.c.l.b16 %v3757
      %v3812 = vunpack.c.h.b16 %v3757
      %v3813 = vunpack.c.l.b16 %v3761
      %v3814 = vpack.c.b16 %v2316, %v2313
      %v3815 = vpack.c.b16 %v2317, %v2314
      %v3816 = vpack.c.b16 %v2318, %v2315
      %v3817 = vpack.c.b16 %v2322, %v2319
      %v3818 = vpack.c.b16 %v2323, %v2320
      %v3819 = vpack.c.b16 %v2324, %v2321
      %v3820 = vpack.c.b16 %v2328, %v2325
      %v3821 = vpack.c.b16 %v2329, %v2326
      %v3822 = vpack.c.b16 %v2330, %v2327
      %v3823 = vpack.c.b16 %v3811, %v2331
      %v3824 = vpack.c.b16 %v3812, %v2332
      %v3825 = vpack.c.b16 %v3813, %v2333
      %v3886 = vunpack.c.l.b16 %v3763
      %v3887 = vunpack.c.h.b16 %v3763
      %v3888 = vunpack.c.l.b16 %v3764
      %v3889 = vunpack.c.h.b16 %v3764
      %v3890 = vunpack.c.l.b16 %v3765
      %v3891 = vunpack.c.h.b16 %v3765
      %v3892 = vunpack.c.l.b16 %v3766
      %v3893 = vunpack.c.h.b16 %v3766
      %v3894 = vunpack.c.l.b16 %v3767
      %v3895 = vunpack.c.h.b16 %v3767
      %v3896 = vunpack.c.l.b16 %v3768
      %v3897 = vunpack.c.h.b16 %v3768
      %v3898 = vunpack.c.l.b16 %v3769
      %v3899 = vunpack.c.h.b16 %v3769
      %v3900 = vunpack.c.l.b16 %v3770
      %v3901 = vunpack.c.h.b16 %v3770
      %v3902 = vunpack.c.l.b16 %v3771
      %v3903 = vunpack.c.h.b16 %v3771
      %v3904 = vunpack.c.l.b16 %v3772
      %v3905 = vunpack.c.h.b16 %v3772
      %v3906 = vunpack.c.l.b16 %v3773
      %v3907 = vunpack.c.h.b16 %v3773
      %v3908 = vunpack.c.l.b16 %v3774
      %v3909 = vunpack.c.h.b16 %v3774
      %v3910 = vunpack.c.l.b16 %v3775
      %v3911 = vunpack.c.h.b16 %v3775
      %v3912 = vunpack.c.l.b16 %v3776
      %v3913 = vunpack.c.h.b16 %v3776
      %v3914 = vunpack.c.l.b16 %v3777
      %v3915 = vunpack.c.h.b16 %v3777
      %v3916 = vunpack.c.l.b16 %v3778
      %v3917 = vunpack.c.h.b16 %v3778
      %v3918 = vunpack.c.l.b16 %v3779
      %v3919 = vunpack.c.h.b16 %v3779
      %v3920 = vunpack.c.l.b16 %v3780
      %v3921 = vunpack.c.h.b16 %v3780
      %v3922 = vunpack.c.l.b16 %v3781
      %v3923 = vunpack.c.h.b16 %v3781
      %v3924 = vunpack.c.l.b16 %v3782
      %v3925 = vunpack.c.h.b16 %v3782
      %v3926 = vunpack.c.l.b16 %v3783
      %v3927 = vunpack.c.h.b16 %v3783
      %v3928 = vunpack.c.l.b16 %v3784
      %v3929 = vunpack.c.h.b16 %v3784
      %v3930 = vunpack.c.l.b16 %v3785
      %v3931 = vunpack.c.h.b16 %v3785
      %v3932 = vunpack.c.l.b16 %v3786
      %v3933 = vunpack.c.h.b16 %v3786
      %v3934 = vunpack.c.l.b16 %v3787
      %v3935 = vunpack.c.h.b16 %v3787
      %v3936 = vunpack.c.l.b16 %v3788
      %v3937 = vunpack.c.h.b16 %v3788
      %v3938 = vunpack.c.l.b16 %v3789
      %v3939 = vunpack.c.h.b16 %v3789
      %v3940 = vunpack.c.l.b16 %v3790
      %v3941 = vunpack.c.h.b16 %v3790
      %v3942 = vunpack.c.l.b16 %v3791
      %v3943 = vunpack.c.h.b16 %v3791
      %v3944 = vunpack.c.l.b16 %v3792
      %v3945 = vunpack.c.h.b16 %v3792
      %v3946 = vunpack.c.l.b16 %v3793
      %v3947 = vunpack.c.h.b16 %v3793
      %v3948 = vunpack.c.l.b16 %v3794
      %v3949 = vunpack.c.h.b16 %v3794
      %v3950 = vunpack.c.l.b16 %v3795
      %v3951 = vunpack.c.h.b16 %v3795
      %v3952 = vunpack.c.l.b16 %v3796
      %v3953 = vunpack.c.h.b16 %v3796
      %v3954 = vunpack.c.l.b16 %v3797
      %v3955 = vunpack.c.h.b16 %v3797
      %v3956 = vunpack.c.l.b16 %v3798
      %v3957 = vunpack.c.h.b16 %v3798
      %v3958 = vunpack.c.l.b16 %v3799
      %v3959 = vunpack.c.h.b16 %v3799
      %v3960 = vunpack.c.l.b16 %v3800
      %v3961 = vunpack.c.h.b16 %v3800
      %v3962 = vunpack.c.l.b16 %v3801
      %v3963 = vunpack.c.h.b16 %v3801
      %v3964 = vunpack.c.l.b16 %v3802
      %v3965 = vunpack.c.h.b16 %v3802
      %v3966 = vunpack.c.l.b16 %v3803
      %v3967 = vunpack.c.h.b16 %v3803
      %v3968 = vunpack.c.l.b16 %v3804
      %v3969 = vunpack.c.h.b16 %v3804
      %v3970 = vunpack.c.l.b16 %v3805
      %v3971 = vunpack.c.h.b16 %v3805
      %v3972 = vunpack.c.l.b16 %v3806
      %v3973 = vunpack.c.h.b16 %v3806
      %v3974 = vunpack.c.l.b16 %v3807
      %v3975 = vunpack.c.h.b16 %v3807
      %v3976 = vunpack.c.l.b16 %v3808
      %v3977 = vunpack.c.h.b16 %v3808
      %v3978 = vunpack.c.l.b16 %v3809
      %v3979 = vunpack.c.h.b16 %v3809
      %v3980 = vunpack.c.l.b16 %v3810
      %v3981 = vunpack.c.h.b16 %v3810
      %v3982 = vpack.c.b16 %v3888, %v3886
      %v3983 = vpack.c.b16 %v3889, %v3887
      %v3984 = vpack.c.b16 %v3892, %v3890
      %v3985 = vpack.c.b16 %v3893, %v3891
      %v3986 = vpack.c.b16 %v3896, %v3894
      %v3987 = vpack.c.b16 %v3897, %v3895
      %v3988 = vpack.c.b16 %v3900, %v3898
      %v3989 = vpack.c.b16 %v3901, %v3899
      %v3990 = vpack.c.b16 %v3904, %v3902
      %v3991 = vpack.c.b16 %v3905, %v3903
      %v3992 = vpack.c.b16 %v3908, %v3906
      %v3993 = vpack.c.b16 %v3909, %v3907
      %v3994 = vpack.c.b16 %v3912, %v3910
      %v3995 = vpack.c.b16 %v3913, %v3911
      %v3996 = vpack.c.b16 %v3916, %v3914
      %v3997 = vpack.c.b16 %v3917, %v3915
      %v3998 = vpack.c.b16 %v3920, %v3918
      %v3999 = vpack.c.b16 %v3921, %v3919
      %v4000 = vpack.c.b16 %v3924, %v3922
      %v4001 = vpack.c.b16 %v3925, %v3923
      %v4002 = vpack.c.b16 %v3928, %v3926
      %v4003 = vpack.c.b16 %v3929, %v3927
      %v4004 = vpack.c.b16 %v3932, %v3930
      %v4005 = vpack.c.b16 %v3933, %v3931
      %v4006 = vpack.c.b16 %v3936, %v3934
      %v4007 = vpack.c.b16 %v3937, %v3935
      %v4008 = vpack.c.b16 %v3940, %v3938
      %v4009 = vpack.c.b16 %v3941, %v3939
      %v4010 = vpack.c.b16 %v3944, %v3942
      %v4011 = vpack.c.b16 %v3945, %v3943
      %v4012 = vpack.c.b16 %v3948, %v3946
      %v4013 = vpack.c.b16 %v3949, %v3947
      %v4014 = vpack.c.b16 %v3952, %v3950
      %v4015 = vpack.c.b16 %v3953, %v3951
      %v4016 = vpack.c.b16 %v3956, %v3954
      %v4017 = vpack.c.b16 %v3957, %v3955
      %v4018 = vpack.c.b16 %v3960, %v3958
      %v4019 = vpack.c.b16 %v3961, %v3959
      %v4020 = vpack.c.b16 %v3964, %v3962
      %v4021 = vpack.c.b16 %v3965, %v3963
      %v4022 = vpack.c.b16 %v3968, %v3966
      %v4023 = vpack.c.b16 %v3969, %v3967
      %v4024 = vpack.c.b16 %v3972, %v3970
      %v4025 = vpack.c.b16 %v3973, %v3971
      %v4026 = vpack.c.b16 %v3976, %v3974
      %v4027 = vpack.c.b16 %v3977, %v3975
      %v4028 = vpack.c.b16 %v3980, %v3978
      %v4029 = vpack.c.b16 %v3981, %v3979
      %4078 = vmatprep.subr.bf16.mxu0 %v3997
      %4079 = vmatpush1.bf16.msra.mxu0 %v3996
      %4080 = vmatprep.subr.bf16.mxu0 %v3995
      %4081 = vmatpush1.bf16.msra.mxu0 %v3994
      %4082 = vmatprep.subr.bf16.mxu0 %v3993
      %4083 = vmatpush1.bf16.msra.mxu0 %v3992
      %4084 = vmatprep.subr.bf16.mxu0 %v3991
      %4085 = vmatpush1.bf16.msra.mxu0 %v3990
      %4086 = vmatprep.subr.bf16.mxu0 %v3989
      %4087 = vmatpush1.bf16.msra.mxu0 %v3988
      %4088 = vmatprep.subr.bf16.mxu0 %v3987
      %4089 = vmatpush1.bf16.msra.mxu0 %v3986
      %4090 = vmatprep.subr.bf16.mxu0 %v3985
      %4091 = vmatpush1.bf16.msra.mxu0 %v3984
      %4092 = vmatprep.subr.bf16.mxu0 %v3983
      %4093 = vmatpush1.bf16.msra.mxu0 %v3982
      %4094 = vmatprep.subr.bf16.mxu0 %v4013
      %4095 = vmatpush2.bf16.msra.mxu0 %v4012
      %4096 = vmatprep.subr.bf16.mxu0 %v4011
      %4097 = vmatpush2.bf16.msra.mxu0 %v4010
      %4098 = vmatprep.subr.bf16.mxu0 %v4009
      %4099 = vmatpush2.bf16.msra.mxu0 %v4008
      %4100 = vmatprep.subr.bf16.mxu0 %v4007
      %4101 = vmatpush2.bf16.msra.mxu0 %v4006
      %4102 = vmatprep.subr.bf16.mxu0 %v4005
      %4103 = vmatpush2.bf16.msra.mxu0 %v4004
      %4104 = vmatprep.subr.bf16.mxu0 %v4003
      %4105 = vmatpush2.bf16.msra.mxu0 %v4002
      %4106 = vmatprep.subr.bf16.mxu0 %v4001
      %4107 = vmatpush2.bf16.msra.mxu0 %v4000
      %4108 = vmatprep.subr.bf16.mxu0 %v3999
      %4109 = vmatpush2.bf16.msra.mxu0 %v3998
      %4110 = vmatprep.mubr.bf16.mxu0 %v3815
      %4111 = vmatmul.mubr.bf16.gmra.mxu0 %v3814
      %v4112 = vpop.f32.mrf.mxu0
      %v4113 = vadd.f32 0.0, %v4112
      %v4114 = vpop.f32.mrf.mxu0
      %v4115 = vadd.f32 0.0, %v4114
      %v4116 = vpop.f32.mrf.mxu0
      %v4117 = vadd.f32 0.0, %v4116
      %v4118 = vpop.f32.mrf.mxu0
      %v4119 = vadd.f32 0.0, %v4118
      %4120 = vmatprep.mubr.bf16.mxu0 %v3818
      %4121 = vmatmul.mubr.bf16.gmra.mxu0 %v3817
      %v4122 = vpop.f32.mrf.mxu0
      %v4123 = vadd.f32 0.0, %v4122
      %v4124 = vpop.f32.mrf.mxu0
      %v4125 = vadd.f32 0.0, %v4124
      %v4126 = vpop.f32.mrf.mxu0
      %v4127 = vadd.f32 0.0, %v4126
      %v4128 = vpop.f32.mrf.mxu0
      %v4129 = vadd.f32 0.0, %v4128
      %4130 = vmatprep.mubr.bf16.mxu0 %v3821
      %4131 = vmatmul.mubr.bf16.gmra.mxu0 %v3820
      %v4132 = vpop.f32.mrf.mxu0
      %v4133 = vadd.f32 0.0, %v4132
      %v4134 = vpop.f32.mrf.mxu0
      %v4135 = vadd.f32 0.0, %v4134
      %v4136 = vpop.f32.mrf.mxu0
      %v4137 = vadd.f32 0.0, %v4136
      %v4138 = vpop.f32.mrf.mxu0
      %v4139 = vadd.f32 0.0, %v4138
      %4140 = vmatprep.mubr.bf16.mxu0 %v3824
      %4141 = vmatmul.mubr.bf16.gmra.mxu0 %v3823
      %v4142 = vpop.f32.mrf.mxu0
      %v4143 = vadd.f32 0.0, %v4142
      %v4144 = vpop.f32.mrf.mxu0
      %v4145 = vadd.f32 0.0, %v4144
      %v4146 = vpop.f32.mrf.mxu0
      %v4147 = vadd.f32 0.0, %v4146
      %v4148 = vpop.f32.mrf.mxu0
      %v4149 = vadd.f32 0.0, %v4148
      %4150 = vdwg.mxu0
      %4151 = vmatprep.subr.bf16.mxu0 %v4029
      %4152 = vmatpush1.bf16.msra.mxu0 %v4028
      %4153 = vmatprep.subr.bf16.mxu0 %v4027
      %4154 = vmatpush1.bf16.msra.mxu0 %v4026
      %4155 = vmatprep.subr.bf16.mxu0 %v4025
      %4156 = vmatpush1.bf16.msra.mxu0 %v4024
      %4157 = vmatprep.subr.bf16.mxu0 %v4023
      %4158 = vmatpush1.bf16.msra.mxu0 %v4022
      %4159 = vmatprep.subr.bf16.mxu0 %v4021
      %4160 = vmatpush1.bf16.msra.mxu0 %v4020
      %4161 = vmatprep.subr.bf16.mxu0 %v4019
      %4162 = vmatpush1.bf16.msra.mxu0 %v4018
      %4163 = vmatprep.subr.bf16.mxu0 %v4017
      %4164 = vmatpush1.bf16.msra.mxu0 %v4016
      %4165 = vmatprep.subr.bf16.mxu0 %v4015
      %4166 = vmatpush1.bf16.msra.mxu0 %v4014
      %4167 = vmatprep.subr.bf16.mxu0 0
      %4168 = vmatpush2.bf16.msra.mxu0 0
      %4169 = vmatprep.subr.bf16.mxu0 0
      %4170 = vmatpush2.bf16.msra.mxu0 0
      %4171 = vmatprep.subr.bf16.mxu0 0
      %4172 = vmatpush2.bf16.msra.mxu0 0
      %4173 = vmatprep.subr.bf16.mxu0 0
      %4174 = vmatpush2.bf16.msra.mxu0 0
      %4175 = vmatprep.subr.bf16.mxu0 0
      %4176 = vmatpush2.bf16.msra.mxu0 0
      %4177 = vmatprep.subr.bf16.mxu0 0
      %4178 = vmatpush2.bf16.msra.mxu0 0
      %4179 = vmatprep.subr.bf16.mxu0 0
      %4180 = vmatpush2.bf16.msra.mxu0 0
      %4181 = vmatprep.subr.bf16.mxu0 0
      %4182 = vmatpush2.bf16.msra.mxu0 0
      %4183 = vmatprep.mubr.bf16.mxu0 0
      %4184 = vmatmul.mubr.bf16.gmra.mxu0 %v3816
      %v4185 = vpop.f32.mrf.mxu0
      %v4186 = vadd.f32 %v4113, %v4185
      %v4187 = vpop.f32.mrf.mxu0
      %v4188 = vadd.f32 %v4115, %v4187
      %v4189 = vpop.f32.mrf.mxu0
      %v4190 = vadd.f32 %v4117, %v4189
      %v4191 = vpop.f32.mrf.mxu0
      %v4192 = vadd.f32 %v4119, %v4191
      %4193 = vmatprep.mubr.bf16.mxu0 0
      %4194 = vmatmul.mubr.bf16.gmra.mxu0 %v3819
      %v4195 = vpop.f32.mrf.mxu0
      %v4196 = vadd.f32 %v4123, %v4195
      %v4197 = vpop.f32.mrf.mxu0
      %v4198 = vadd.f32 %v4125, %v4197
      %v4199 = vpop.f32.mrf.mxu0
      %v4200 = vadd.f32 %v4127, %v4199
      %v4201 = vpop.f32.mrf.mxu0
      %v4202 = vadd.f32 %v4129, %v4201
      %4203 = vmatprep.mubr.bf16.mxu0 0
      %4204 = vmatmul.mubr.bf16.gmra.mxu0 %v3822
      %v4205 = vpop.f32.mrf.mxu0
      %v4206 = vadd.f32 %v4133, %v4205
      %v4207 = vpop.f32.mrf.mxu0
      %v4208 = vadd.f32 %v4135, %v4207
      %v4209 = vpop.f32.mrf.mxu0
      %v4210 = vadd.f32 %v4137, %v4209
      %v4211 = vpop.f32.mrf.mxu0
      %v4212 = vadd.f32 %v4139, %v4211
      %4213 = vmatprep.mubr.bf16.mxu0 0
      %4214 = vmatmul.mubr.bf16.gmra.mxu0 %v3825
      %v4215 = vpop.f32.mrf.mxu0
      %v4216 = vadd.f32 %v4143, %v4215
      %v4217 = vpop.f32.mrf.mxu0
      %v4218 = vadd.f32 %v4145, %v4217
      %v4219 = vpop.f32.mrf.mxu0
      %v4220 = vadd.f32 %v4147, %v4219
      %v4221 = vpop.f32.mrf.mxu0
      %v4222 = vadd.f32 %v4149, %v4221
      %4223 = vdwg.mxu0
      %v4224 = vadd.f32 %v3738, %v4186
      %v4225 = vadd.f32 %v3739, %v4188
      %v4226 = vadd.f32 %v3740, %v4190
      %v4227 = vadd.f32 %v3741, %v4192
      %v4228 = vadd.f32 %v3742, %v4196
      %v4229 = vadd.f32 %v3743, %v4198
      %v4230 = vadd.f32 %v3744, %v4200
      %v4231 = vadd.f32 %v3745, %v4202
      %v4232 = vadd.f32 %v3746, %v4206
      %v4233 = vadd.f32 %v3747, %v4208
      %v4234 = vadd.f32 %v3748, %v4210
      %v4235 = vadd.f32 %v3749, %v4212
      %v4236 = vadd.f32 %v3750, %v4216
      %v4237 = vadd.f32 %v3751, %v4218
      %v4238 = vadd.f32 %v3752, %v4220
      %v4239 = vadd.f32 %v3753, %v4222
      %v4243 = vunpack.c.l.b16 %v645
      %v4244 = vunpack.c.l.b16 %v783
      %v4245 = vunpack.c.l.b16 %v921
      %s4246 = scalar_lea.vmem %s6, 2304
      %v4247 = vld [vmem:[%s4246] sm:$0xff]
      %v4248 = vld [vmem:[%s4246 + $0x8] sm:$0xff]
      %v4249 = vld [vmem:[%s4246 + $0x10] sm:$0xff]
      %v4250 = vld [vmem:[%s4246 + $0x18] sm:$0xff]
      %v4251 = vld [vmem:[%s4246 + $0x20] sm:$0xff]
      %v4252 = vld [vmem:[%s4246 + $0x28] sm:$0xff]
      %v4253 = vld [vmem:[%s4246 + $0x30] sm:$0xff]
      %v4254 = vld [vmem:[%s4246 + $0x38] sm:$0xff]
      %v4255 = vld [vmem:[%s4246 + $0x40] sm:$0xff]
      %v4256 = vld [vmem:[%s4246 + $0x48] sm:$0xff]
      %v4257 = vld [vmem:[%s4246 + $0x50] sm:$0xff]
      %v4258 = vld [vmem:[%s4246 + $0x58] sm:$0xff]
      %v4259 = vld [vmem:[%s4246 + $0x60] sm:$0xff]
      %v4260 = vld [vmem:[%s4246 + $0x68] sm:$0xff]
      %v4261 = vld [vmem:[%s4246 + $0x70] sm:$0xff]
      %v4262 = vld [vmem:[%s4246 + $0x78] sm:$0xff]
      %v4263 = vld [vmem:[%s4246 + $0x80] sm:$0xff]
      %v4264 = vld [vmem:[%s4246 + $0x88] sm:$0xff]
      %v4265 = vld [vmem:[%s4246 + $0x90] sm:$0xff]
      %v4266 = vld [vmem:[%s4246 + $0x98] sm:$0xff]
      %v4267 = vld [vmem:[%s4246 + $0xa0] sm:$0xff]
      %v4268 = vld [vmem:[%s4246 + $0xa8] sm:$0xff]
      %v4269 = vld [vmem:[%s4246 + $0xb0] sm:$0xff]
      %v4270 = vld [vmem:[%s4246 + $0xb8] sm:$0xff]
      %v4271 = vld [vmem:[%s4246 + $0xc0] sm:$0xff]
      %v4272 = vld [vmem:[%s4246 + $0xc8] sm:$0xff]
      %v4273 = vld [vmem:[%s4246 + $0xd0] sm:$0xff]
      %v4274 = vld [vmem:[%s4246 + $0xd8] sm:$0xff]
      %v4275 = vld [vmem:[%s4246 + $0xe0] sm:$0xff]
      %v4276 = vld [vmem:[%s4246 + $0xe8] sm:$0xff]
      %v4277 = vld [vmem:[%s4246 + $0xf0] sm:$0xff]
      %v4278 = vld [vmem:[%s4246 + $0xf8] sm:$0xff]
      %v4279 = vld [vmem:[%s4246 + $0x100] sm:$0xff]
      %v4280 = vld [vmem:[%s4246 + $0x108] sm:$0xff]
      %v4281 = vld [vmem:[%s4246 + $0x110] sm:$0xff]
      %v4282 = vld [vmem:[%s4246 + $0x118] sm:$0xff]
      %v4283 = vld [vmem:[%s4246 + $0x120] sm:$0xff]
      %v4284 = vld [vmem:[%s4246 + $0x128] sm:$0xff]
      %v4285 = vld [vmem:[%s4246 + $0x130] sm:$0xff]
      %v4286 = vld [vmem:[%s4246 + $0x138] sm:$0xff]
      %v4287 = vld [vmem:[%s4246 + $0x140] sm:$0xff]
      %v4288 = vld [vmem:[%s4246 + $0x148] sm:$0xff]
      %v4289 = vld [vmem:[%s4246 + $0x150] sm:$0xff]
      %v4290 = vld [vmem:[%s4246 + $0x158] sm:$0xff]
      %v4291 = vld [vmem:[%s4246 + $0x160] sm:$0xff]
      %v4292 = vld [vmem:[%s4246 + $0x168] sm:$0xff]
      %v4293 = vld [vmem:[%s4246 + $0x170] sm:$0xff]
      %v4294 = vld [vmem:[%s4246 + $0x178] sm:$0xff]
      %v4295 = vpack.c.b16 %v4243, %v2763
      %v4296 = vpack.c.b16 %v4244, %v2764
      %v4297 = vpack.c.b16 %v4245, %v2765
      %v4349 = vunpack.c.l.b16 %v4247
      %v4350 = vunpack.c.h.b16 %v4247
      %v4351 = vunpack.c.l.b16 %v4248
      %v4352 = vunpack.c.h.b16 %v4248
      %v4353 = vunpack.c.l.b16 %v4249
      %v4354 = vunpack.c.h.b16 %v4249
      %v4355 = vunpack.c.l.b16 %v4250
      %v4356 = vunpack.c.h.b16 %v4250
      %v4357 = vunpack.c.l.b16 %v4251
      %v4358 = vunpack.c.h.b16 %v4251
      %v4359 = vunpack.c.l.b16 %v4252
      %v4360 = vunpack.c.h.b16 %v4252
      %v4361 = vunpack.c.l.b16 %v4253
      %v4362 = vunpack.c.h.b16 %v4253
      %v4363 = vunpack.c.l.b16 %v4254
      %v4364 = vunpack.c.h.b16 %v4254
      %v4365 = vunpack.c.l.b16 %v4255
      %v4366 = vunpack.c.h.b16 %v4255
      %v4367 = vunpack.c.l.b16 %v4256
      %v4368 = vunpack.c.h.b16 %v4256
      %v4369 = vunpack.c.l.b16 %v4257
      %v4370 = vunpack.c.h.b16 %v4257
      %v4371 = vunpack.c.l.b16 %v4258
      %v4372 = vunpack.c.h.b16 %v4258
      %v4373 = vunpack.c.l.b16 %v4259
      %v4374 = vunpack.c.h.b16 %v4259
      %v4375 = vunpack.c.l.b16 %v4260
      %v4376 = vunpack.c.h.b16 %v4260
      %v4377 = vunpack.c.l.b16 %v4261
      %v4378 = vunpack.c.h.b16 %v4261
      %v4379 = vunpack.c.l.b16 %v4262
      %v4380 = vunpack.c.h.b16 %v4262
      %v4381 = vunpack.c.l.b16 %v4263
      %v4382 = vunpack.c.h.b16 %v4263
      %v4383 = vunpack.c.l.b16 %v4264
      %v4384 = vunpack.c.h.b16 %v4264
      %v4385 = vunpack.c.l.b16 %v4265
      %v4386 = vunpack.c.h.b16 %v4265
      %v4387 = vunpack.c.l.b16 %v4266
      %v4388 = vunpack.c.h.b16 %v4266
      %v4389 = vunpack.c.l.b16 %v4267
      %v4390 = vunpack.c.h.b16 %v4267
      %v4391 = vunpack.c.l.b16 %v4268
      %v4392 = vunpack.c.h.b16 %v4268
      %v4393 = vunpack.c.l.b16 %v4269
      %v4394 = vunpack.c.h.b16 %v4269
      %v4395 = vunpack.c.l.b16 %v4270
      %v4396 = vunpack.c.h.b16 %v4270
      %v4397 = vunpack.c.l.b16 %v4271
      %v4398 = vunpack.c.h.b16 %v4271
      %v4399 = vunpack.c.l.b16 %v4272
      %v4400 = vunpack.c.h.b16 %v4272
      %v4401 = vunpack.c.l.b16 %v4273
      %v4402 = vunpack.c.h.b16 %v4273
      %v4403 = vunpack.c.l.b16 %v4274
      %v4404 = vunpack.c.h.b16 %v4274
      %v4405 = vunpack.c.l.b16 %v4275
      %v4406 = vunpack.c.h.b16 %v4275
      %v4407 = vunpack.c.l.b16 %v4276
      %v4408 = vunpack.c.h.b16 %v4276
      %v4409 = vunpack.c.l.b16 %v4277
      %v4410 = vunpack.c.h.b16 %v4277
      %v4411 = vunpack.c.l.b16 %v4278
      %v4412 = vunpack.c.h.b16 %v4278
      %v4413 = vunpack.c.l.b16 %v4279
      %v4414 = vunpack.c.h.b16 %v4279
      %v4415 = vunpack.c.l.b16 %v4280
      %v4416 = vunpack.c.h.b16 %v4280
      %v4417 = vunpack.c.l.b16 %v4281
      %v4418 = vunpack.c.h.b16 %v4281
      %v4419 = vunpack.c.l.b16 %v4282
      %v4420 = vunpack.c.h.b16 %v4282
      %v4421 = vunpack.c.l.b16 %v4283
      %v4422 = vunpack.c.h.b16 %v4283
      %v4423 = vunpack.c.l.b16 %v4284
      %v4424 = vunpack.c.h.b16 %v4284
      %v4425 = vunpack.c.l.b16 %v4285
      %v4426 = vunpack.c.h.b16 %v4285
      %v4427 = vunpack.c.l.b16 %v4286
      %v4428 = vunpack.c.h.b16 %v4286
      %v4429 = vunpack.c.l.b16 %v4287
      %v4430 = vunpack.c.h.b16 %v4287
      %v4431 = vunpack.c.l.b16 %v4288
      %v4432 = vunpack.c.h.b16 %v4288
      %v4433 = vunpack.c.l.b16 %v4289
      %v4434 = vunpack.c.h.b16 %v4289
      %v4435 = vunpack.c.l.b16 %v4290
      %v4436 = vunpack.c.h.b16 %v4290
      %v4437 = vunpack.c.l.b16 %v4291
      %v4438 = vunpack.c.h.b16 %v4291
      %v4439 = vunpack.c.l.b16 %v4292
      %v4440 = vunpack.c.h.b16 %v4292
      %v4441 = vunpack.c.l.b16 %v4293
      %v4442 = vunpack.c.h.b16 %v4293
      %v4443 = vunpack.c.l.b16 %v4294
      %v4444 = vunpack.c.h.b16 %v4294
      %v4445 = vpack.c.b16 %v4351, %v4349
      %v4446 = vpack.c.b16 %v4352, %v4350
      %v4447 = vpack.c.b16 %v4355, %v4353
      %v4448 = vpack.c.b16 %v4356, %v4354
      %v4449 = vpack.c.b16 %v4359, %v4357
      %v4450 = vpack.c.b16 %v4360, %v4358
      %v4451 = vpack.c.b16 %v4363, %v4361
      %v4452 = vpack.c.b16 %v4364, %v4362
      %v4453 = vpack.c.b16 %v4367, %v4365
      %v4454 = vpack.c.b16 %v4368, %v4366
      %v4455 = vpack.c.b16 %v4371, %v4369
      %v4456 = vpack.c.b16 %v4372, %v4370
      %v4457 = vpack.c.b16 %v4375, %v4373
      %v4458 = vpack.c.b16 %v4376, %v4374
      %v4459 = vpack.c.b16 %v4379, %v4377
      %v4460 = vpack.c.b16 %v4380, %v4378
      %v4461 = vpack.c.b16 %v4383, %v4381
      %v4462 = vpack.c.b16 %v4384, %v4382
      %v4463 = vpack.c.b16 %v4387, %v4385
      %v4464 = vpack.c.b16 %v4388, %v4386
      %v4465 = vpack.c.b16 %v4391, %v4389
      %v4466 = vpack.c.b16 %v4392, %v4390
      %v4467 = vpack.c.b16 %v4395, %v4393
      %v4468 = vpack.c.b16 %v4396, %v4394
      %v4469 = vpack.c.b16 %v4399, %v4397
      %v4470 = vpack.c.b16 %v4400, %v4398
      %v4471 = vpack.c.b16 %v4403, %v4401
      %v4472 = vpack.c.b16 %v4404, %v4402
      %v4473 = vpack.c.b16 %v4407, %v4405
      %v4474 = vpack.c.b16 %v4408, %v4406
      %v4475 = vpack.c.b16 %v4411, %v4409
      %v4476 = vpack.c.b16 %v4412, %v4410
      %v4477 = vpack.c.b16 %v4415, %v4413
      %v4478 = vpack.c.b16 %v4416, %v4414
      %v4479 = vpack.c.b16 %v4419, %v4417
      %v4480 = vpack.c.b16 %v4420, %v4418
      %v4481 = vpack.c.b16 %v4423, %v4421
      %v4482 = vpack.c.b16 %v4424, %v4422
      %v4483 = vpack.c.b16 %v4427, %v4425
      %v4484 = vpack.c.b16 %v4428, %v4426
      %v4485 = vpack.c.b16 %v4431, %v4429
      %v4486 = vpack.c.b16 %v4432, %v4430
      %v4487 = vpack.c.b16 %v4435, %v4433
      %v4488 = vpack.c.b16 %v4436, %v4434
      %v4489 = vpack.c.b16 %v4439, %v4437
      %v4490 = vpack.c.b16 %v4440, %v4438
      %v4491 = vpack.c.b16 %v4443, %v4441
      %v4492 = vpack.c.b16 %v4444, %v4442
      %4541 = vmatprep.subr.bf16.mxu0 %v4460
      %4542 = vmatpush1.bf16.msra.mxu0 %v4459
      %4543 = vmatprep.subr.bf16.mxu0 %v4458
      %4544 = vmatpush1.bf16.msra.mxu0 %v4457
      %4545 = vmatprep.subr.bf16.mxu0 %v4456
      %4546 = vmatpush1.bf16.msra.mxu0 %v4455
      %4547 = vmatprep.subr.bf16.mxu0 %v4454
      %4548 = vmatpush1.bf16.msra.mxu0 %v4453
      %4549 = vmatprep.subr.bf16.mxu0 %v4452
      %4550 = vmatpush1.bf16.msra.mxu0 %v4451
      %4551 = vmatprep.subr.bf16.mxu0 %v4450
      %4552 = vmatpush1.bf16.msra.mxu0 %v4449
      %4553 = vmatprep.subr.bf16.mxu0 %v4448
      %4554 = vmatpush1.bf16.msra.mxu0 %v4447
      %4555 = vmatprep.subr.bf16.mxu0 %v4446
      %4556 = vmatpush1.bf16.msra.mxu0 %v4445
      %4557 = vmatprep.subr.bf16.mxu0 %v4476
      %4558 = vmatpush2.bf16.msra.mxu0 %v4475
      %4559 = vmatprep.subr.bf16.mxu0 %v4474
      %4560 = vmatpush2.bf16.msra.mxu0 %v4473
      %4561 = vmatprep.subr.bf16.mxu0 %v4472
      %4562 = vmatpush2.bf16.msra.mxu0 %v4471
      %4563 = vmatprep.subr.bf16.mxu0 %v4470
      %4564 = vmatpush2.bf16.msra.mxu0 %v4469
      %4565 = vmatprep.subr.bf16.mxu0 %v4468
      %4566 = vmatpush2.bf16.msra.mxu0 %v4467
      %4567 = vmatprep.subr.bf16.mxu0 %v4466
      %4568 = vmatpush2.bf16.msra.mxu0 %v4465
      %4569 = vmatprep.subr.bf16.mxu0 %v4464
      %4570 = vmatpush2.bf16.msra.mxu0 %v4463
      %4571 = vmatprep.subr.bf16.mxu0 %v4462
      %4572 = vmatpush2.bf16.msra.mxu0 %v4461
      %4573 = vmatprep.mubr.bf16.mxu0 %v1788
      %4574 = vmatmul.mubr.bf16.gmra.mxu0 %v1787
      %v4575 = vpop.f32.mrf.mxu0
      %v4576 = vadd.f32 0.0, %v4575
      %v4577 = vpop.f32.mrf.mxu0
      %v4578 = vadd.f32 0.0, %v4577
      %v4579 = vpop.f32.mrf.mxu0
      %v4580 = vadd.f32 0.0, %v4579
      %v4581 = vpop.f32.mrf.mxu0
      %v4582 = vadd.f32 0.0, %v4581
      %4583 = vmatprep.mubr.bf16.mxu0 %v1791
      %4584 = vmatmul.mubr.bf16.gmra.mxu0 %v1790
      %v4585 = vpop.f32.mrf.mxu0
      %v4586 = vadd.f32 0.0, %v4585
      %v4587 = vpop.f32.mrf.mxu0
      %v4588 = vadd.f32 0.0, %v4587
      %v4589 = vpop.f32.mrf.mxu0
      %v4590 = vadd.f32 0.0, %v4589
      %v4591 = vpop.f32.mrf.mxu0
      %v4592 = vadd.f32 0.0, %v4591
      %4593 = vmatprep.mubr.bf16.mxu0 %v1794
      %4594 = vmatmul.mubr.bf16.gmra.mxu0 %v1793
      %v4595 = vpop.f32.mrf.mxu0
      %v4596 = vadd.f32 0.0, %v4595
      %v4597 = vpop.f32.mrf.mxu0
      %v4598 = vadd.f32 0.0, %v4597
      %v4599 = vpop.f32.mrf.mxu0
      %v4600 = vadd.f32 0.0, %v4599
      %v4601 = vpop.f32.mrf.mxu0
      %v4602 = vadd.f32 0.0, %v4601
      %4603 = vmatprep.mubr.bf16.mxu0 %v4296
      %4604 = vmatmul.mubr.bf16.gmra.mxu0 %v4295
      %v4605 = vpop.f32.mrf.mxu0
      %v4606 = vadd.f32 0.0, %v4605
      %v4607 = vpop.f32.mrf.mxu0
      %v4608 = vadd.f32 0.0, %v4607
      %v4609 = vpop.f32.mrf.mxu0
      %v4610 = vadd.f32 0.0, %v4609
      %v4611 = vpop.f32.mrf.mxu0
      %v4612 = vadd.f32 0.0, %v4611
      %4613 = vdwg.mxu0
      %4614 = vmatprep.subr.bf16.mxu0 %v4492
      %4615 = vmatpush1.bf16.msra.mxu0 %v4491
      %4616 = vmatprep.subr.bf16.mxu0 %v4490
      %4617 = vmatpush1.bf16.msra.mxu0 %v4489
      %4618 = vmatprep.subr.bf16.mxu0 %v4488
      %4619 = vmatpush1.bf16.msra.mxu0 %v4487
      %4620 = vmatprep.subr.bf16.mxu0 %v4486
      %4621 = vmatpush1.bf16.msra.mxu0 %v4485
      %4622 = vmatprep.subr.bf16.mxu0 %v4484
      %4623 = vmatpush1.bf16.msra.mxu0 %v4483
      %4624 = vmatprep.subr.bf16.mxu0 %v4482
      %4625 = vmatpush1.bf16.msra.mxu0 %v4481
      %4626 = vmatprep.subr.bf16.mxu0 %v4480
      %4627 = vmatpush1.bf16.msra.mxu0 %v4479
      %4628 = vmatprep.subr.bf16.mxu0 %v4478
      %4629 = vmatpush1.bf16.msra.mxu0 %v4477
      %4630 = vmatprep.subr.bf16.mxu0 0
      %4631 = vmatpush2.bf16.msra.mxu0 0
      %4632 = vmatprep.subr.bf16.mxu0 0
      %4633 = vmatpush2.bf16.msra.mxu0 0
      %4634 = vmatprep.subr.bf16.mxu0 0
      %4635 = vmatpush2.bf16.msra.mxu0 0
      %4636 = vmatprep.subr.bf16.mxu0 0
      %4637 = vmatpush2.bf16.msra.mxu0 0
      %4638 = vmatprep.subr.bf16.mxu0 0
      %4639 = vmatpush2.bf16.msra.mxu0 0
      %4640 = vmatprep.subr.bf16.mxu0 0
      %4641 = vmatpush2.bf16.msra.mxu0 0
      %4642 = vmatprep.subr.bf16.mxu0 0
      %4643 = vmatpush2.bf16.msra.mxu0 0
      %4644 = vmatprep.subr.bf16.mxu0 0
      %4645 = vmatpush2.bf16.msra.mxu0 0
      %4646 = vmatprep.mubr.bf16.mxu0 0
      %4647 = vmatmul.mubr.bf16.gmra.mxu0 %v1789
      %v4648 = vpop.f32.mrf.mxu0
      %v4649 = vadd.f32 %v4576, %v4648
      %v4650 = vpop.f32.mrf.mxu0
      %v4651 = vadd.f32 %v4578, %v4650
      %v4652 = vpop.f32.mrf.mxu0
      %v4653 = vadd.f32 %v4580, %v4652
      %v4654 = vpop.f32.mrf.mxu0
      %v4655 = vadd.f32 %v4582, %v4654
      %4656 = vmatprep.mubr.bf16.mxu0 0
      %4657 = vmatmul.mubr.bf16.gmra.mxu0 %v1792
      %v4658 = vpop.f32.mrf.mxu0
      %v4659 = vadd.f32 %v4586, %v4658
      %v4660 = vpop.f32.mrf.mxu0
      %v4661 = vadd.f32 %v4588, %v4660
      %v4662 = vpop.f32.mrf.mxu0
      %v4663 = vadd.f32 %v4590, %v4662
      %v4664 = vpop.f32.mrf.mxu0
      %v4665 = vadd.f32 %v4592, %v4664
      %4666 = vmatprep.mubr.bf16.mxu0 0
      %4667 = vmatmul.mubr.bf16.gmra.mxu0 %v1795
      %v4668 = vpop.f32.mrf.mxu0
      %v4669 = vadd.f32 %v4596, %v4668
      %v4670 = vpop.f32.mrf.mxu0
      %v4671 = vadd.f32 %v4598, %v4670
      %v4672 = vpop.f32.mrf.mxu0
      %v4673 = vadd.f32 %v4600, %v4672
      %v4674 = vpop.f32.mrf.mxu0
      %v4675 = vadd.f32 %v4602, %v4674
      %4676 = vmatprep.mubr.bf16.mxu0 0
      %4677 = vmatmul.mubr.bf16.gmra.mxu0 %v4297
      %v4678 = vpop.f32.mrf.mxu0
      %v4679 = vadd.f32 %v4606, %v4678
      %v4680 = vpop.f32.mrf.mxu0
      %v4681 = vadd.f32 %v4608, %v4680
      %v4682 = vpop.f32.mrf.mxu0
      %v4683 = vadd.f32 %v4610, %v4682
      %v4684 = vpop.f32.mrf.mxu0
      %v4685 = vadd.f32 %v4612, %v4684
      %4686 = vdwg.mxu0
      %v4687 = vadd.f32 %v4224, %v4649
      %v4688 = vadd.f32 %v4225, %v4651
      %v4689 = vadd.f32 %v4226, %v4653
      %v4690 = vadd.f32 %v4227, %v4655
      %v4691 = vadd.f32 %v4228, %v4659
      %v4692 = vadd.f32 %v4229, %v4661
      %v4693 = vadd.f32 %v4230, %v4663
      %v4694 = vadd.f32 %v4231, %v4665
      %v4695 = vadd.f32 %v4232, %v4669
      %v4696 = vadd.f32 %v4233, %v4671
      %v4697 = vadd.f32 %v4234, %v4673
      %v4698 = vadd.f32 %v4235, %v4675
      %v4699 = vadd.f32 %v4236, %v4679
      %v4700 = vadd.f32 %v4237, %v4681
      %v4701 = vadd.f32 %v4238, %v4683
      %v4702 = vadd.f32 %v4239, %v4685
      %v4703 = vunpack.c.h.b16 %v645
      %v4704 = vunpack.c.h.b16 %v783
      %v4705 = vunpack.c.h.b16 %v921
      %v4706 = vpack.c.b16 %v4244, %v4243
      %v4707 = vpack.c.b16 %v4245, %v4245
      %v4708 = vpack.c.b16 %v4704, %v4703
      %v4709 = vpack.c.b16 %v4705, %v4705
      %v4711 = vshrl.u32 %v4706, 16
      %v4713 = vrot.slane %v4711, 4
      %v4714 = vshll.u32 %v4706, 16
      %v4716 = vrot.slane %v4714, 5
      %v4717 = vor.u32 %v4713, %v4716
      %v4718 = vrot.slane %v4717, 4
      %v4720 = vshll.u32 %v4708, 16
      %v4722 = vrot.slane %v4720, 5
      %v4723 = vsel %vm1076, %v4718, %v4722
      %v4725 = vshrl.u32 %v4707, 16
      %v4727 = vrot.slane %v4725, 4
      %v4728 = vshll.u32 %v4707, 16
      %v4730 = vrot.slane %v4728, 5
      %v4731 = vor.u32 %v4727, %v4730
      %v4732 = vrot.slane %v4731, 4
      %v4734 = vshll.u32 %v4709, 16
      %v4736 = vrot.slane %v4734, 5
      %v4737 = vsel %vm1076, %v4732, %v4736
      %s4738 = scalar_lea.vmem %s6, 2688
      %v4739 = vld [vmem:[%s4738] sm:$0xff]
      %v4740 = vld [vmem:[%s4738 + $0x8] sm:$0xff]
      %v4741 = vld [vmem:[%s4738 + $0x10] sm:$0xff]
      %v4742 = vld [vmem:[%s4738 + $0x18] sm:$0xff]
      %v4743 = vld [vmem:[%s4738 + $0x20] sm:$0xff]
      %v4744 = vld [vmem:[%s4738 + $0x28] sm:$0xff]
      %v4745 = vld [vmem:[%s4738 + $0x30] sm:$0xff]
      %v4746 = vld [vmem:[%s4738 + $0x38] sm:$0xff]
      %v4747 = vld [vmem:[%s4738 + $0x40] sm:$0xff]
      %v4748 = vld [vmem:[%s4738 + $0x48] sm:$0xff]
      %v4749 = vld [vmem:[%s4738 + $0x50] sm:$0xff]
      %v4750 = vld [vmem:[%s4738 + $0x58] sm:$0xff]
      %v4751 = vld [vmem:[%s4738 + $0x60] sm:$0xff]
      %v4752 = vld [vmem:[%s4738 + $0x68] sm:$0xff]
      %v4753 = vld [vmem:[%s4738 + $0x70] sm:$0xff]
      %v4754 = vld [vmem:[%s4738 + $0x78] sm:$0xff]
      %v4755 = vld [vmem:[%s4738 + $0x80] sm:$0xff]
      %v4756 = vld [vmem:[%s4738 + $0x88] sm:$0xff]
      %v4757 = vld [vmem:[%s4738 + $0x90] sm:$0xff]
      %v4758 = vld [vmem:[%s4738 + $0x98] sm:$0xff]
      %v4759 = vld [vmem:[%s4738 + $0xa0] sm:$0xff]
      %v4760 = vld [vmem:[%s4738 + $0xa8] sm:$0xff]
      %v4761 = vld [vmem:[%s4738 + $0xb0] sm:$0xff]
      %v4762 = vld [vmem:[%s4738 + $0xb8] sm:$0xff]
      %v4763 = vld [vmem:[%s4738 + $0xc0] sm:$0xff]
      %v4764 = vld [vmem:[%s4738 + $0xc8] sm:$0xff]
      %v4765 = vld [vmem:[%s4738 + $0xd0] sm:$0xff]
      %v4766 = vld [vmem:[%s4738 + $0xd8] sm:$0xff]
      %v4767 = vld [vmem:[%s4738 + $0xe0] sm:$0xff]
      %v4768 = vld [vmem:[%s4738 + $0xe8] sm:$0xff]
      %v4769 = vld [vmem:[%s4738 + $0xf0] sm:$0xff]
      %v4770 = vld [vmem:[%s4738 + $0xf8] sm:$0xff]
      %v4771 = vld [vmem:[%s4738 + $0x100] sm:$0xff]
      %v4772 = vld [vmem:[%s4738 + $0x108] sm:$0xff]
      %v4773 = vld [vmem:[%s4738 + $0x110] sm:$0xff]
      %v4774 = vld [vmem:[%s4738 + $0x118] sm:$0xff]
      %v4775 = vld [vmem:[%s4738 + $0x120] sm:$0xff]
      %v4776 = vld [vmem:[%s4738 + $0x128] sm:$0xff]
      %v4777 = vld [vmem:[%s4738 + $0x130] sm:$0xff]
      %v4778 = vld [vmem:[%s4738 + $0x138] sm:$0xff]
      %v4779 = vld [vmem:[%s4738 + $0x140] sm:$0xff]
      %v4780 = vld [vmem:[%s4738 + $0x148] sm:$0xff]
      %v4781 = vld [vmem:[%s4738 + $0x150] sm:$0xff]
      %v4782 = vld [vmem:[%s4738 + $0x158] sm:$0xff]
      %v4783 = vld [vmem:[%s4738 + $0x160] sm:$0xff]
      %v4784 = vld [vmem:[%s4738 + $0x168] sm:$0xff]
      %v4785 = vld [vmem:[%s4738 + $0x170] sm:$0xff]
      %v4786 = vld [vmem:[%s4738 + $0x178] sm:$0xff]
      %v4787 = vunpack.c.l.b16 %v4723
      %v4788 = vunpack.c.h.b16 %v4723
      %v4789 = vunpack.c.l.b16 %v4737
      %v4790 = vpack.c.b16 %v4787, %v3325
      %v4791 = vpack.c.b16 %v4788, %v3326
      %v4792 = vpack.c.b16 %v4789, %v3327
      %v4844 = vunpack.c.l.b16 %v4739
      %v4845 = vunpack.c.h.b16 %v4739
      %v4846 = vunpack.c.l.b16 %v4740
      %v4847 = vunpack.c.h.b16 %v4740
      %v4848 = vunpack.c.l.b16 %v4741
      %v4849 = vunpack.c.h.b16 %v4741
      %v4850 = vunpack.c.l.b16 %v4742
      %v4851 = vunpack.c.h.b16 %v4742
      %v4852 = vunpack.c.l.b16 %v4743
      %v4853 = vunpack.c.h.b16 %v4743
      %v4854 = vunpack.c.l.b16 %v4744
      %v4855 = vunpack.c.h.b16 %v4744
      %v4856 = vunpack.c.l.b16 %v4745
      %v4857 = vunpack.c.h.b16 %v4745
      %v4858 = vunpack.c.l.b16 %v4746
      %v4859 = vunpack.c.h.b16 %v4746
      %v4860 = vunpack.c.l.b16 %v4747
      %v4861 = vunpack.c.h.b16 %v4747
      %v4862 = vunpack.c.l.b16 %v4748
      %v4863 = vunpack.c.h.b16 %v4748
      %v4864 = vunpack.c.l.b16 %v4749
      %v4865 = vunpack.c.h.b16 %v4749
      %v4866 = vunpack.c.l.b16 %v4750
      %v4867 = vunpack.c.h.b16 %v4750
      %v4868 = vunpack.c.l.b16 %v4751
      %v4869 = vunpack.c.h.b16 %v4751
      %v4870 = vunpack.c.l.b16 %v4752
      %v4871 = vunpack.c.h.b16 %v4752
      %v4872 = vunpack.c.l.b16 %v4753
      %v4873 = vunpack.c.h.b16 %v4753
      %v4874 = vunpack.c.l.b16 %v4754
      %v4875 = vunpack.c.h.b16 %v4754
      %v4876 = vunpack.c.l.b16 %v4755
      %v4877 = vunpack.c.h.b16 %v4755
      %v4878 = vunpack.c.l.b16 %v4756
      %v4879 = vunpack.c.h.b16 %v4756
      %v4880 = vunpack.c.l.b16 %v4757
      %v4881 = vunpack.c.h.b16 %v4757
      %v4882 = vunpack.c.l.b16 %v4758
      %v4883 = vunpack.c.h.b16 %v4758
      %v4884 = vunpack.c.l.b16 %v4759
      %v4885 = vunpack.c.h.b16 %v4759
      %v4886 = vunpack.c.l.b16 %v4760
      %v4887 = vunpack.c.h.b16 %v4760
      %v4888 = vunpack.c.l.b16 %v4761
      %v4889 = vunpack.c.h.b16 %v4761
      %v4890 = vunpack.c.l.b16 %v4762
      %v4891 = vunpack.c.h.b16 %v4762
      %v4892 = vunpack.c.l.b16 %v4763
      %v4893 = vunpack.c.h.b16 %v4763
      %v4894 = vunpack.c.l.b16 %v4764
      %v4895 = vunpack.c.h.b16 %v4764
      %v4896 = vunpack.c.l.b16 %v4765
      %v4897 = vunpack.c.h.b16 %v4765
      %v4898 = vunpack.c.l.b16 %v4766
      %v4899 = vunpack.c.h.b16 %v4766
      %v4900 = vunpack.c.l.b16 %v4767
      %v4901 = vunpack.c.h.b16 %v4767
      %v4902 = vunpack.c.l.b16 %v4768
      %v4903 = vunpack.c.h.b16 %v4768
      %v4904 = vunpack.c.l.b16 %v4769
      %v4905 = vunpack.c.h.b16 %v4769
      %v4906 = vunpack.c.l.b16 %v4770
      %v4907 = vunpack.c.h.b16 %v4770
      %v4908 = vunpack.c.l.b16 %v4771
      %v4909 = vunpack.c.h.b16 %v4771
      %v4910 = vunpack.c.l.b16 %v4772
      %v4911 = vunpack.c.h.b16 %v4772
      %v4912 = vunpack.c.l.b16 %v4773
      %v4913 = vunpack.c.h.b16 %v4773
      %v4914 = vunpack.c.l.b16 %v4774
      %v4915 = vunpack.c.h.b16 %v4774
      %v4916 = vunpack.c.l.b16 %v4775
      %v4917 = vunpack.c.h.b16 %v4775
      %v4918 = vunpack.c.l.b16 %v4776
      %v4919 = vunpack.c.h.b16 %v4776
      %v4920 = vunpack.c.l.b16 %v4777
      %v4921 = vunpack.c.h.b16 %v4777
      %v4922 = vunpack.c.l.b16 %v4778
      %v4923 = vunpack.c.h.b16 %v4778
      %v4924 = vunpack.c.l.b16 %v4779
      %v4925 = vunpack.c.h.b16 %v4779
      %v4926 = vunpack.c.l.b16 %v4780
      %v4927 = vunpack.c.h.b16 %v4780
      %v4928 = vunpack.c.l.b16 %v4781
      %v4929 = vunpack.c.h.b16 %v4781
      %v4930 = vunpack.c.l.b16 %v4782
      %v4931 = vunpack.c.h.b16 %v4782
      %v4932 = vunpack.c.l.b16 %v4783
      %v4933 = vunpack.c.h.b16 %v4783
      %v4934 = vunpack.c.l.b16 %v4784
      %v4935 = vunpack.c.h.b16 %v4784
      %v4936 = vunpack.c.l.b16 %v4785
      %v4937 = vunpack.c.h.b16 %v4785
      %v4938 = vunpack.c.l.b16 %v4786
      %v4939 = vunpack.c.h.b16 %v4786
      %v4940 = vpack.c.b16 %v4846, %v4844
      %v4941 = vpack.c.b16 %v4847, %v4845
      %v4942 = vpack.c.b16 %v4850, %v4848
      %v4943 = vpack.c.b16 %v4851, %v4849
      %v4944 = vpack.c.b16 %v4854, %v4852
      %v4945 = vpack.c.b16 %v4855, %v4853
      %v4946 = vpack.c.b16 %v4858, %v4856
      %v4947 = vpack.c.b16 %v4859, %v4857
      %v4948 = vpack.c.b16 %v4862, %v4860
      %v4949 = vpack.c.b16 %v4863, %v4861
      %v4950 = vpack.c.b16 %v4866, %v4864
      %v4951 = vpack.c.b16 %v4867, %v4865
      %v4952 = vpack.c.b16 %v4870, %v4868
      %v4953 = vpack.c.b16 %v4871, %v4869
      %v4954 = vpack.c.b16 %v4874, %v4872
      %v4955 = vpack.c.b16 %v4875, %v4873
      %v4956 = vpack.c.b16 %v4878, %v4876
      %v4957 = vpack.c.b16 %v4879, %v4877
      %v4958 = vpack.c.b16 %v4882, %v4880
      %v4959 = vpack.c.b16 %v4883, %v4881
      %v4960 = vpack.c.b16 %v4886, %v4884
      %v4961 = vpack.c.b16 %v4887, %v4885
      %v4962 = vpack.c.b16 %v4890, %v4888
      %v4963 = vpack.c.b16 %v4891, %v4889
      %v4964 = vpack.c.b16 %v4894, %v4892
      %v4965 = vpack.c.b16 %v4895, %v4893
      %v4966 = vpack.c.b16 %v4898, %v4896
      %v4967 = vpack.c.b16 %v4899, %v4897
      %v4968 = vpack.c.b16 %v4902, %v4900
      %v4969 = vpack.c.b16 %v4903, %v4901
      %v4970 = vpack.c.b16 %v4906, %v4904
      %v4971 = vpack.c.b16 %v4907, %v4905
      %v4972 = vpack.c.b16 %v4910, %v4908
      %v4973 = vpack.c.b16 %v4911, %v4909
      %v4974 = vpack.c.b16 %v4914, %v4912
      %v4975 = vpack.c.b16 %v4915, %v4913
      %v4976 = vpack.c.b16 %v4918, %v4916
      %v4977 = vpack.c.b16 %v4919, %v4917
      %v4978 = vpack.c.b16 %v4922, %v4920
      %v4979 = vpack.c.b16 %v4923, %v4921
      %v4980 = vpack.c.b16 %v4926, %v4924
      %v4981 = vpack.c.b16 %v4927, %v4925
      %v4982 = vpack.c.b16 %v4930, %v4928
      %v4983 = vpack.c.b16 %v4931, %v4929
      %v4984 = vpack.c.b16 %v4934, %v4932
      %v4985 = vpack.c.b16 %v4935, %v4933
      %v4986 = vpack.c.b16 %v4938, %v4936
      %v4987 = vpack.c.b16 %v4939, %v4937
      %5036 = vmatprep.subr.bf16.mxu0 %v4955
      %5037 = vmatpush1.bf16.msra.mxu0 %v4954
      %5038 = vmatprep.subr.bf16.mxu0 %v4953
      %5039 = vmatpush1.bf16.msra.mxu0 %v4952
      %5040 = vmatprep.subr.bf16.mxu0 %v4951
      %5041 = vmatpush1.bf16.msra.mxu0 %v4950
      %5042 = vmatprep.subr.bf16.mxu0 %v4949
      %5043 = vmatpush1.bf16.msra.mxu0 %v4948
      %5044 = vmatprep.subr.bf16.mxu0 %v4947
      %5045 = vmatpush1.bf16.msra.mxu0 %v4946
      %5046 = vmatprep.subr.bf16.mxu0 %v4945
      %5047 = vmatpush1.bf16.msra.mxu0 %v4944
      %5048 = vmatprep.subr.bf16.mxu0 %v4943
      %5049 = vmatpush1.bf16.msra.mxu0 %v4942
      %5050 = vmatprep.subr.bf16.mxu0 %v4941
      %5051 = vmatpush1.bf16.msra.mxu0 %v4940
      %5052 = vmatprep.subr.bf16.mxu0 %v4971
      %5053 = vmatpush2.bf16.msra.mxu0 %v4970
      %5054 = vmatprep.subr.bf16.mxu0 %v4969
      %5055 = vmatpush2.bf16.msra.mxu0 %v4968
      %5056 = vmatprep.subr.bf16.mxu0 %v4967
      %5057 = vmatpush2.bf16.msra.mxu0 %v4966
      %5058 = vmatprep.subr.bf16.mxu0 %v4965
      %5059 = vmatpush2.bf16.msra.mxu0 %v4964
      %5060 = vmatprep.subr.bf16.mxu0 %v4963
      %5061 = vmatpush2.bf16.msra.mxu0 %v4962
      %5062 = vmatprep.subr.bf16.mxu0 %v4961
      %5063 = vmatpush2.bf16.msra.mxu0 %v4960
      %5064 = vmatprep.subr.bf16.mxu0 %v4959
      %5065 = vmatpush2.bf16.msra.mxu0 %v4958
      %5066 = vmatprep.subr.bf16.mxu0 %v4957
      %5067 = vmatpush2.bf16.msra.mxu0 %v4956
      %5068 = vmatprep.mubr.bf16.mxu0 %v1378
      %5069 = vmatmul.mubr.bf16.gmra.mxu0 %v1377
      %v5070 = vpop.f32.mrf.mxu0
      %v5071 = vadd.f32 0.0, %v5070
      %v5072 = vpop.f32.mrf.mxu0
      %v5073 = vadd.f32 0.0, %v5072
      %v5074 = vpop.f32.mrf.mxu0
      %v5075 = vadd.f32 0.0, %v5074
      %v5076 = vpop.f32.mrf.mxu0
      %v5077 = vadd.f32 0.0, %v5076
      %5078 = vmatprep.mubr.bf16.mxu0 %v1381
      %5079 = vmatmul.mubr.bf16.gmra.mxu0 %v1380
      %v5080 = vpop.f32.mrf.mxu0
      %v5081 = vadd.f32 0.0, %v5080
      %v5082 = vpop.f32.mrf.mxu0
      %v5083 = vadd.f32 0.0, %v5082
      %v5084 = vpop.f32.mrf.mxu0
      %v5085 = vadd.f32 0.0, %v5084
      %v5086 = vpop.f32.mrf.mxu0
      %v5087 = vadd.f32 0.0, %v5086
      %5088 = vmatprep.mubr.bf16.mxu0 %v1384
      %5089 = vmatmul.mubr.bf16.gmra.mxu0 %v1383
      %v5090 = vpop.f32.mrf.mxu0
      %v5091 = vadd.f32 0.0, %v5090
      %v5092 = vpop.f32.mrf.mxu0
      %v5093 = vadd.f32 0.0, %v5092
      %v5094 = vpop.f32.mrf.mxu0
      %v5095 = vadd.f32 0.0, %v5094
      %v5096 = vpop.f32.mrf.mxu0
      %v5097 = vadd.f32 0.0, %v5096
      %5098 = vmatprep.mubr.bf16.mxu0 %v4791
      %5099 = vmatmul.mubr.bf16.gmra.mxu0 %v4790
      %v5100 = vpop.f32.mrf.mxu0
      %v5101 = vadd.f32 0.0, %v5100
      %v5102 = vpop.f32.mrf.mxu0
      %v5103 = vadd.f32 0.0, %v5102
      %v5104 = vpop.f32.mrf.mxu0
      %v5105 = vadd.f32 0.0, %v5104
      %v5106 = vpop.f32.mrf.mxu0
      %v5107 = vadd.f32 0.0, %v5106
      %5108 = vdwg.mxu0
      %5109 = vmatprep.subr.bf16.mxu0 %v4987
      %5110 = vmatpush1.bf16.msra.mxu0 %v4986
      %5111 = vmatprep.subr.bf16.mxu0 %v4985
      %5112 = vmatpush1.bf16.msra.mxu0 %v4984
      %5113 = vmatprep.subr.bf16.mxu0 %v4983
      %5114 = vmatpush1.bf16.msra.mxu0 %v4982
      %5115 = vmatprep.subr.bf16.mxu0 %v4981
      %5116 = vmatpush1.bf16.msra.mxu0 %v4980
      %5117 = vmatprep.subr.bf16.mxu0 %v4979
      %5118 = vmatpush1.bf16.msra.mxu0 %v4978
      %5119 = vmatprep.subr.bf16.mxu0 %v4977
      %5120 = vmatpush1.bf16.msra.mxu0 %v4976
      %5121 = vmatprep.subr.bf16.mxu0 %v4975
      %5122 = vmatpush1.bf16.msra.mxu0 %v4974
      %5123 = vmatprep.subr.bf16.mxu0 %v4973
      %5124 = vmatpush1.bf16.msra.mxu0 %v4972
      %5125 = vmatprep.subr.bf16.mxu0 0
      %5126 = vmatpush2.bf16.msra.mxu0 0
      %5127 = vmatprep.subr.bf16.mxu0 0
      %5128 = vmatpush2.bf16.msra.mxu0 0
      %5129 = vmatprep.subr.bf16.mxu0 0
      %5130 = vmatpush2.bf16.msra.mxu0 0
      %5131 = vmatprep.subr.bf16.mxu0 0
      %5132 = vmatpush2.bf16.msra.mxu0 0
      %5133 = vmatprep.subr.bf16.mxu0 0
      %5134 = vmatpush2.bf16.msra.mxu0 0
      %5135 = vmatprep.subr.bf16.mxu0 0
      %5136 = vmatpush2.bf16.msra.mxu0 0
      %5137 = vmatprep.subr.bf16.mxu0 0
      %5138 = vmatpush2.bf16.msra.mxu0 0
      %5139 = vmatprep.subr.bf16.mxu0 0
      %5140 = vmatpush2.bf16.msra.mxu0 0
      %5141 = vmatprep.mubr.bf16.mxu0 0
      %5142 = vmatmul.mubr.bf16.gmra.mxu0 %v1379
      %v5143 = vpop.f32.mrf.mxu0
      %v5144 = vadd.f32 %v5071, %v5143
      %v5145 = vpop.f32.mrf.mxu0
      %v5146 = vadd.f32 %v5073, %v5145
      %v5147 = vpop.f32.mrf.mxu0
      %v5148 = vadd.f32 %v5075, %v5147
      %v5149 = vpop.f32.mrf.mxu0
      %v5150 = vadd.f32 %v5077, %v5149
      %5151 = vmatprep.mubr.bf16.mxu0 0
      %5152 = vmatmul.mubr.bf16.gmra.mxu0 %v1382
      %v5153 = vpop.f32.mrf.mxu0
      %v5154 = vadd.f32 %v5081, %v5153
      %v5155 = vpop.f32.mrf.mxu0
      %v5156 = vadd.f32 %v5083, %v5155
      %v5157 = vpop.f32.mrf.mxu0
      %v5158 = vadd.f32 %v5085, %v5157
      %v5159 = vpop.f32.mrf.mxu0
      %v5160 = vadd.f32 %v5087, %v5159
      %5161 = vmatprep.mubr.bf16.mxu0 0
      %5162 = vmatmul.mubr.bf16.gmra.mxu0 %v1385
      %v5163 = vpop.f32.mrf.mxu0
      %v5164 = vadd.f32 %v5091, %v5163
      %v5165 = vpop.f32.mrf.mxu0
      %v5166 = vadd.f32 %v5093, %v5165
      %v5167 = vpop.f32.mrf.mxu0
      %v5168 = vadd.f32 %v5095, %v5167
      %v5169 = vpop.f32.mrf.mxu0
      %v5170 = vadd.f32 %v5097, %v5169
      %5171 = vmatprep.mubr.bf16.mxu0 0
      %5172 = vmatmul.mubr.bf16.gmra.mxu0 %v4792
      %v5173 = vpop.f32.mrf.mxu0
      %v5174 = vadd.f32 %v5101, %v5173
      %v5175 = vpop.f32.mrf.mxu0
      %v5176 = vadd.f32 %v5103, %v5175
      %v5177 = vpop.f32.mrf.mxu0
      %v5178 = vadd.f32 %v5105, %v5177
      %v5179 = vpop.f32.mrf.mxu0
      %v5180 = vadd.f32 %v5107, %v5179
      %5181 = vdwg.mxu0
      %v5182 = vadd.f32 %v4687, %v5144
      %v5183 = vadd.f32 %v4688, %v5146
      %v5184 = vadd.f32 %v4689, %v5148
      %v5185 = vadd.f32 %v4690, %v5150
      %v5186 = vadd.f32 %v4691, %v5154
      %v5187 = vadd.f32 %v4692, %v5156
      %v5188 = vadd.f32 %v4693, %v5158
      %v5189 = vadd.f32 %v4694, %v5160
      %v5190 = vadd.f32 %v4695, %v5164
      %v5191 = vadd.f32 %v4696, %v5166
      %v5192 = vadd.f32 %v4697, %v5168
      %v5193 = vadd.f32 %v4698, %v5170
      %v5194 = vadd.f32 %v4699, %v5174
      %v5195 = vadd.f32 %v4700, %v5176
      %v5196 = vadd.f32 %v4701, %v5178
      %v5197 = vadd.f32 %v4702, %v5180
      %v5198 = vrot.slane %v4706, 5
      %v5199 = vrot.slane %v5198, 4
      %v5200 = vrot.slane %v4708, 5
      %v5201 = vsel %vm2196, %v5199, %v5200
      %v5202 = vrot.slane %v4707, 5
      %v5203 = vrot.slane %v5202, 4
      %v5204 = vrot.slane %v4709, 5
      %v5205 = vsel %vm2196, %v5203, %v5204
      %s5206 = scalar_lea.vmem %s6, 3072
      %v5207 = vld [vmem:[%s5206] sm:$0xff]
      %v5208 = vld [vmem:[%s5206 + $0x8] sm:$0xff]
      %v5209 = vld [vmem:[%s5206 + $0x10] sm:$0xff]
      %v5210 = vld [vmem:[%s5206 + $0x18] sm:$0xff]
      %v5211 = vld [vmem:[%s5206 + $0x20] sm:$0xff]
      %v5212 = vld [vmem:[%s5206 + $0x28] sm:$0xff]
      %v5213 = vld [vmem:[%s5206 + $0x30] sm:$0xff]
      %v5214 = vld [vmem:[%s5206 + $0x38] sm:$0xff]
      %v5215 = vld [vmem:[%s5206 + $0x40] sm:$0xff]
      %v5216 = vld [vmem:[%s5206 + $0x48] sm:$0xff]
      %v5217 = vld [vmem:[%s5206 + $0x50] sm:$0xff]
      %v5218 = vld [vmem:[%s5206 + $0x58] sm:$0xff]
      %v5219 = vld [vmem:[%s5206 + $0x60] sm:$0xff]
      %v5220 = vld [vmem:[%s5206 + $0x68] sm:$0xff]
      %v5221 = vld [vmem:[%s5206 + $0x70] sm:$0xff]
      %v5222 = vld [vmem:[%s5206 + $0x78] sm:$0xff]
      %v5223 = vld [vmem:[%s5206 + $0x80] sm:$0xff]
      %v5224 = vld [vmem:[%s5206 + $0x88] sm:$0xff]
      %v5225 = vld [vmem:[%s5206 + $0x90] sm:$0xff]
      %v5226 = vld [vmem:[%s5206 + $0x98] sm:$0xff]
      %v5227 = vld [vmem:[%s5206 + $0xa0] sm:$0xff]
      %v5228 = vld [vmem:[%s5206 + $0xa8] sm:$0xff]
      %v5229 = vld [vmem:[%s5206 + $0xb0] sm:$0xff]
      %v5230 = vld [vmem:[%s5206 + $0xb8] sm:$0xff]
      %v5231 = vld [vmem:[%s5206 + $0xc0] sm:$0xff]
      %v5232 = vld [vmem:[%s5206 + $0xc8] sm:$0xff]
      %v5233 = vld [vmem:[%s5206 + $0xd0] sm:$0xff]
      %v5234 = vld [vmem:[%s5206 + $0xd8] sm:$0xff]
      %v5235 = vld [vmem:[%s5206 + $0xe0] sm:$0xff]
      %v5236 = vld [vmem:[%s5206 + $0xe8] sm:$0xff]
      %v5237 = vld [vmem:[%s5206 + $0xf0] sm:$0xff]
      %v5238 = vld [vmem:[%s5206 + $0xf8] sm:$0xff]
      %v5239 = vld [vmem:[%s5206 + $0x100] sm:$0xff]
      %v5240 = vld [vmem:[%s5206 + $0x108] sm:$0xff]
      %v5241 = vld [vmem:[%s5206 + $0x110] sm:$0xff]
      %v5242 = vld [vmem:[%s5206 + $0x118] sm:$0xff]
      %v5243 = vld [vmem:[%s5206 + $0x120] sm:$0xff]
      %v5244 = vld [vmem:[%s5206 + $0x128] sm:$0xff]
      %v5245 = vld [vmem:[%s5206 + $0x130] sm:$0xff]
      %v5246 = vld [vmem:[%s5206 + $0x138] sm:$0xff]
      %v5247 = vld [vmem:[%s5206 + $0x140] sm:$0xff]
      %v5248 = vld [vmem:[%s5206 + $0x148] sm:$0xff]
      %v5249 = vld [vmem:[%s5206 + $0x150] sm:$0xff]
      %v5250 = vld [vmem:[%s5206 + $0x158] sm:$0xff]
      %v5251 = vld [vmem:[%s5206 + $0x160] sm:$0xff]
      %v5252 = vld [vmem:[%s5206 + $0x168] sm:$0xff]
      %v5253 = vld [vmem:[%s5206 + $0x170] sm:$0xff]
      %v5254 = vld [vmem:[%s5206 + $0x178] sm:$0xff]
      %v5255 = vunpack.c.l.b16 %v5201
      %v5256 = vunpack.c.h.b16 %v5201
      %v5257 = vunpack.c.l.b16 %v5205
      %v5258 = vpack.c.b16 %v5255, %v3811
      %v5259 = vpack.c.b16 %v5256, %v3812
      %v5260 = vpack.c.b16 %v5257, %v3813
      %v5312 = vunpack.c.l.b16 %v5207
      %v5313 = vunpack.c.h.b16 %v5207
      %v5314 = vunpack.c.l.b16 %v5208
      %v5315 = vunpack.c.h.b16 %v5208
      %v5316 = vunpack.c.l.b16 %v5209
      %v5317 = vunpack.c.h.b16 %v5209
      %v5318 = vunpack.c.l.b16 %v5210
      %v5319 = vunpack.c.h.b16 %v5210
      %v5320 = vunpack.c.l.b16 %v5211
      %v5321 = vunpack.c.h.b16 %v5211
      %v5322 = vunpack.c.l.b16 %v5212
      %v5323 = vunpack.c.h.b16 %v5212
      %v5324 = vunpack.c.l.b16 %v5213
      %v5325 = vunpack.c.h.b16 %v5213
      %v5326 = vunpack.c.l.b16 %v5214
      %v5327 = vunpack.c.h.b16 %v5214
      %v5328 = vunpack.c.l.b16 %v5215
      %v5329 = vunpack.c.h.b16 %v5215
      %v5330 = vunpack.c.l.b16 %v5216
      %v5331 = vunpack.c.h.b16 %v5216
      %v5332 = vunpack.c.l.b16 %v5217
      %v5333 = vunpack.c.h.b16 %v5217
      %v5334 = vunpack.c.l.b16 %v5218
      %v5335 = vunpack.c.h.b16 %v5218
      %v5336 = vunpack.c.l.b16 %v5219
      %v5337 = vunpack.c.h.b16 %v5219
      %v5338 = vunpack.c.l.b16 %v5220
      %v5339 = vunpack.c.h.b16 %v5220
      %v5340 = vunpack.c.l.b16 %v5221
      %v5341 = vunpack.c.h.b16 %v5221
      %v5342 = vunpack.c.l.b16 %v5222
      %v5343 = vunpack.c.h.b16 %v5222
      %v5344 = vunpack.c.l.b16 %v5223
      %v5345 = vunpack.c.h.b16 %v5223
      %v5346 = vunpack.c.l.b16 %v5224
      %v5347 = vunpack.c.h.b16 %v5224
      %v5348 = vunpack.c.l.b16 %v5225
      %v5349 = vunpack.c.h.b16 %v5225
      %v5350 = vunpack.c.l.b16 %v5226
      %v5351 = vunpack.c.h.b16 %v5226
      %v5352 = vunpack.c.l.b16 %v5227
      %v5353 = vunpack.c.h.b16 %v5227
      %v5354 = vunpack.c.l.b16 %v5228
      %v5355 = vunpack.c.h.b16 %v5228
      %v5356 = vunpack.c.l.b16 %v5229
      %v5357 = vunpack.c.h.b16 %v5229
      %v5358 = vunpack.c.l.b16 %v5230
      %v5359 = vunpack.c.h.b16 %v5230
      %v5360 = vunpack.c.l.b16 %v5231
      %v5361 = vunpack.c.h.b16 %v5231
      %v5362 = vunpack.c.l.b16 %v5232
      %v5363 = vunpack.c.h.b16 %v5232
      %v5364 = vunpack.c.l.b16 %v5233
      %v5365 = vunpack.c.h.b16 %v5233
      %v5366 = vunpack.c.l.b16 %v5234
      %v5367 = vunpack.c.h.b16 %v5234
      %v5368 = vunpack.c.l.b16 %v5235
      %v5369 = vunpack.c.h.b16 %v5235
      %v5370 = vunpack.c.l.b16 %v5236
      %v5371 = vunpack.c.h.b16 %v5236
      %v5372 = vunpack.c.l.b16 %v5237
      %v5373 = vunpack.c.h.b16 %v5237
      %v5374 = vunpack.c.l.b16 %v5238
      %v5375 = vunpack.c.h.b16 %v5238
      %v5376 = vunpack.c.l.b16 %v5239
      %v5377 = vunpack.c.h.b16 %v5239
      %v5378 = vunpack.c.l.b16 %v5240
      %v5379 = vunpack.c.h.b16 %v5240
      %v5380 = vunpack.c.l.b16 %v5241
      %v5381 = vunpack.c.h.b16 %v5241
      %v5382 = vunpack.c.l.b16 %v5242
      %v5383 = vunpack.c.h.b16 %v5242
      %v5384 = vunpack.c.l.b16 %v5243
      %v5385 = vunpack.c.h.b16 %v5243
      %v5386 = vunpack.c.l.b16 %v5244
      %v5387 = vunpack.c.h.b16 %v5244
      %v5388 = vunpack.c.l.b16 %v5245
      %v5389 = vunpack.c.h.b16 %v5245
      %v5390 = vunpack.c.l.b16 %v5246
      %v5391 = vunpack.c.h.b16 %v5246
      %v5392 = vunpack.c.l.b16 %v5247
      %v5393 = vunpack.c.h.b16 %v5247
      %v5394 = vunpack.c.l.b16 %v5248
      %v5395 = vunpack.c.h.b16 %v5248
      %v5396 = vunpack.c.l.b16 %v5249
      %v5397 = vunpack.c.h.b16 %v5249
      %v5398 = vunpack.c.l.b16 %v5250
      %v5399 = vunpack.c.h.b16 %v5250
      %v5400 = vunpack.c.l.b16 %v5251
      %v5401 = vunpack.c.h.b16 %v5251
      %v5402 = vunpack.c.l.b16 %v5252
      %v5403 = vunpack.c.h.b16 %v5252
      %v5404 = vunpack.c.l.b16 %v5253
      %v5405 = vunpack.c.h.b16 %v5253
      %v5406 = vunpack.c.l.b16 %v5254
      %v5407 = vunpack.c.h.b16 %v5254
      %v5408 = vpack.c.b16 %v5314, %v5312
      %v5409 = vpack.c.b16 %v5315, %v5313
      %v5410 = vpack.c.b16 %v5318, %v5316
      %v5411 = vpack.c.b16 %v5319, %v5317
      %v5412 = vpack.c.b16 %v5322, %v5320
      %v5413 = vpack.c.b16 %v5323, %v5321
      %v5414 = vpack.c.b16 %v5326, %v5324
      %v5415 = vpack.c.b16 %v5327, %v5325
      %v5416 = vpack.c.b16 %v5330, %v5328
      %v5417 = vpack.c.b16 %v5331, %v5329
      %v5418 = vpack.c.b16 %v5334, %v5332
      %v5419 = vpack.c.b16 %v5335, %v5333
      %v5420 = vpack.c.b16 %v5338, %v5336
      %v5421 = vpack.c.b16 %v5339, %v5337
      %v5422 = vpack.c.b16 %v5342, %v5340
      %v5423 = vpack.c.b16 %v5343, %v5341
      %v5424 = vpack.c.b16 %v5346, %v5344
      %v5425 = vpack.c.b16 %v5347, %v5345
      %v5426 = vpack.c.b16 %v5350, %v5348
      %v5427 = vpack.c.b16 %v5351, %v5349
      %v5428 = vpack.c.b16 %v5354, %v5352
      %v5429 = vpack.c.b16 %v5355, %v5353
      %v5430 = vpack.c.b16 %v5358, %v5356
      %v5431 = vpack.c.b16 %v5359, %v5357
      %v5432 = vpack.c.b16 %v5362, %v5360
      %v5433 = vpack.c.b16 %v5363, %v5361
      %v5434 = vpack.c.b16 %v5366, %v5364
      %v5435 = vpack.c.b16 %v5367, %v5365
      %v5436 = vpack.c.b16 %v5370, %v5368
      %v5437 = vpack.c.b16 %v5371, %v5369
      %v5438 = vpack.c.b16 %v5374, %v5372
      %v5439 = vpack.c.b16 %v5375, %v5373
      %v5440 = vpack.c.b16 %v5378, %v5376
      %v5441 = vpack.c.b16 %v5379, %v5377
      %v5442 = vpack.c.b16 %v5382, %v5380
      %v5443 = vpack.c.b16 %v5383, %v5381
      %v5444 = vpack.c.b16 %v5386, %v5384
      %v5445 = vpack.c.b16 %v5387, %v5385
      %v5446 = vpack.c.b16 %v5390, %v5388
      %v5447 = vpack.c.b16 %v5391, %v5389
      %v5448 = vpack.c.b16 %v5394, %v5392
      %v5449 = vpack.c.b16 %v5395, %v5393
      %v5450 = vpack.c.b16 %v5398, %v5396
      %v5451 = vpack.c.b16 %v5399, %v5397
      %v5452 = vpack.c.b16 %v5402, %v5400
      %v5453 = vpack.c.b16 %v5403, %v5401
      %v5454 = vpack.c.b16 %v5406, %v5404
      %v5455 = vpack.c.b16 %v5407, %v5405
      %5504 = vmatprep.subr.bf16.mxu0 %v5423
      %5505 = vmatpush1.bf16.msra.mxu0 %v5422
      %5506 = vmatprep.subr.bf16.mxu0 %v5421
      %5507 = vmatpush1.bf16.msra.mxu0 %v5420
      %5508 = vmatprep.subr.bf16.mxu0 %v5419
      %5509 = vmatpush1.bf16.msra.mxu0 %v5418
      %5510 = vmatprep.subr.bf16.mxu0 %v5417
      %5511 = vmatpush1.bf16.msra.mxu0 %v5416
      %5512 = vmatprep.subr.bf16.mxu0 %v5415
      %5513 = vmatpush1.bf16.msra.mxu0 %v5414
      %5514 = vmatprep.subr.bf16.mxu0 %v5413
      %5515 = vmatpush1.bf16.msra.mxu0 %v5412
      %5516 = vmatprep.subr.bf16.mxu0 %v5411
      %5517 = vmatpush1.bf16.msra.mxu0 %v5410
      %5518 = vmatprep.subr.bf16.mxu0 %v5409
      %5519 = vmatpush1.bf16.msra.mxu0 %v5408
      %5520 = vmatprep.subr.bf16.mxu0 %v5439
      %5521 = vmatpush2.bf16.msra.mxu0 %v5438
      %5522 = vmatprep.subr.bf16.mxu0 %v5437
      %5523 = vmatpush2.bf16.msra.mxu0 %v5436
      %5524 = vmatprep.subr.bf16.mxu0 %v5435
      %5525 = vmatpush2.bf16.msra.mxu0 %v5434
      %5526 = vmatprep.subr.bf16.mxu0 %v5433
      %5527 = vmatpush2.bf16.msra.mxu0 %v5432
      %5528 = vmatprep.subr.bf16.mxu0 %v5431
      %5529 = vmatpush2.bf16.msra.mxu0 %v5430
      %5530 = vmatprep.subr.bf16.mxu0 %v5429
      %5531 = vmatpush2.bf16.msra.mxu0 %v5428
      %5532 = vmatprep.subr.bf16.mxu0 %v5427
      %5533 = vmatpush2.bf16.msra.mxu0 %v5426
      %5534 = vmatprep.subr.bf16.mxu0 %v5425
      %5535 = vmatpush2.bf16.msra.mxu0 %v5424
      %5536 = vmatprep.mubr.bf16.mxu0 %v2338
      %5537 = vmatmul.mubr.bf16.gmra.mxu0 %v2337
      %v5538 = vpop.f32.mrf.mxu0
      %v5539 = vadd.f32 0.0, %v5538
      %v5540 = vpop.f32.mrf.mxu0
      %v5541 = vadd.f32 0.0, %v5540
      %v5542 = vpop.f32.mrf.mxu0
      %v5543 = vadd.f32 0.0, %v5542
      %v5544 = vpop.f32.mrf.mxu0
      %v5545 = vadd.f32 0.0, %v5544
      %5546 = vmatprep.mubr.bf16.mxu0 %v2341
      %5547 = vmatmul.mubr.bf16.gmra.mxu0 %v2340
      %v5548 = vpop.f32.mrf.mxu0
      %v5549 = vadd.f32 0.0, %v5548
      %v5550 = vpop.f32.mrf.mxu0
      %v5551 = vadd.f32 0.0, %v5550
      %v5552 = vpop.f32.mrf.mxu0
      %v5553 = vadd.f32 0.0, %v5552
      %v5554 = vpop.f32.mrf.mxu0
      %v5555 = vadd.f32 0.0, %v5554
      %5556 = vmatprep.mubr.bf16.mxu0 %v2344
      %5557 = vmatmul.mubr.bf16.gmra.mxu0 %v2343
      %v5558 = vpop.f32.mrf.mxu0
      %v5559 = vadd.f32 0.0, %v5558
      %v5560 = vpop.f32.mrf.mxu0
      %v5561 = vadd.f32 0.0, %v5560
      %v5562 = vpop.f32.mrf.mxu0
      %v5563 = vadd.f32 0.0, %v5562
      %v5564 = vpop.f32.mrf.mxu0
      %v5565 = vadd.f32 0.0, %v5564
      %5566 = vmatprep.mubr.bf16.mxu0 %v5259
      %5567 = vmatmul.mubr.bf16.gmra.mxu0 %v5258
      %v5568 = vpop.f32.mrf.mxu0
      %v5569 = vadd.f32 0.0, %v5568
      %v5570 = vpop.f32.mrf.mxu0
      %v5571 = vadd.f32 0.0, %v5570
      %v5572 = vpop.f32.mrf.mxu0
      %v5573 = vadd.f32 0.0, %v5572
      %v5574 = vpop.f32.mrf.mxu0
      %v5575 = vadd.f32 0.0, %v5574
      %5576 = vdwg.mxu0
      %5577 = vmatprep.subr.bf16.mxu0 %v5455
      %5578 = vmatpush1.bf16.msra.mxu0 %v5454
      %5579 = vmatprep.subr.bf16.mxu0 %v5453
      %5580 = vmatpush1.bf16.msra.mxu0 %v5452
      %5581 = vmatprep.subr.bf16.mxu0 %v5451
      %5582 = vmatpush1.bf16.msra.mxu0 %v5450
      %5583 = vmatprep.subr.bf16.mxu0 %v5449
      %5584 = vmatpush1.bf16.msra.mxu0 %v5448
      %5585 = vmatprep.subr.bf16.mxu0 %v5447
      %5586 = vmatpush1.bf16.msra.mxu0 %v5446
      %5587 = vmatprep.subr.bf16.mxu0 %v5445
      %5588 = vmatpush1.bf16.msra.mxu0 %v5444
      %5589 = vmatprep.subr.bf16.mxu0 %v5443
      %5590 = vmatpush1.bf16.msra.mxu0 %v5442
      %5591 = vmatprep.subr.bf16.mxu0 %v5441
      %5592 = vmatpush1.bf16.msra.mxu0 %v5440
      %5593 = vmatprep.subr.bf16.mxu0 0
      %5594 = vmatpush2.bf16.msra.mxu0 0
      %5595 = vmatprep.subr.bf16.mxu0 0
      %5596 = vmatpush2.bf16.msra.mxu0 0
      %5597 = vmatprep.subr.bf16.mxu0 0
      %5598 = vmatpush2.bf16.msra.mxu0 0
      %5599 = vmatprep.subr.bf16.mxu0 0
      %5600 = vmatpush2.bf16.msra.mxu0 0
      %5601 = vmatprep.subr.bf16.mxu0 0
      %5602 = vmatpush2.bf16.msra.mxu0 0
      %5603 = vmatprep.subr.bf16.mxu0 0
      %5604 = vmatpush2.bf16.msra.mxu0 0
      %5605 = vmatprep.subr.bf16.mxu0 0
      %5606 = vmatpush2.bf16.msra.mxu0 0
      %5607 = vmatprep.subr.bf16.mxu0 0
      %5608 = vmatpush2.bf16.msra.mxu0 0
      %5609 = vmatprep.mubr.bf16.mxu0 0
      %5610 = vmatmul.mubr.bf16.gmra.mxu0 %v2339
      %v5611 = vpop.f32.mrf.mxu0
      %v5612 = vadd.f32 %v5539, %v5611
      %v5613 = vpop.f32.mrf.mxu0
      %v5614 = vadd.f32 %v5541, %v5613
      %v5615 = vpop.f32.mrf.mxu0
      %v5616 = vadd.f32 %v5543, %v5615
      %v5617 = vpop.f32.mrf.mxu0
      %v5618 = vadd.f32 %v5545, %v5617
      %5619 = vmatprep.mubr.bf16.mxu0 0
      %5620 = vmatmul.mubr.bf16.gmra.mxu0 %v2342
      %v5621 = vpop.f32.mrf.mxu0
      %v5622 = vadd.f32 %v5549, %v5621
      %v5623 = vpop.f32.mrf.mxu0
      %v5624 = vadd.f32 %v5551, %v5623
      %v5625 = vpop.f32.mrf.mxu0
      %v5626 = vadd.f32 %v5553, %v5625
      %v5627 = vpop.f32.mrf.mxu0
      %v5628 = vadd.f32 %v5555, %v5627
      %5629 = vmatprep.mubr.bf16.mxu0 0
      %5630 = vmatmul.mubr.bf16.gmra.mxu0 %v2345
      %v5631 = vpop.f32.mrf.mxu0
      %v5632 = vadd.f32 %v5559, %v5631
      %v5633 = vpop.f32.mrf.mxu0
      %v5634 = vadd.f32 %v5561, %v5633
      %v5635 = vpop.f32.mrf.mxu0
      %v5636 = vadd.f32 %v5563, %v5635
      %v5637 = vpop.f32.mrf.mxu0
      %v5638 = vadd.f32 %v5565, %v5637
      %5639 = vmatprep.mubr.bf16.mxu0 0
      %5640 = vmatmul.mubr.bf16.gmra.mxu0 %v5260
      %v5641 = vpop.f32.mrf.mxu0
      %v5642 = vadd.f32 %v5569, %v5641
      %v5643 = vpop.f32.mrf.mxu0
      %v5644 = vadd.f32 %v5571, %v5643
      %v5645 = vpop.f32.mrf.mxu0
      %v5646 = vadd.f32 %v5573, %v5645
      %v5647 = vpop.f32.mrf.mxu0
      %v5648 = vadd.f32 %v5575, %v5647
      %5649 = vdwg.mxu0
      %v5650 = vadd.f32 %v5182, %v5612
      %v5651 = vadd.f32 %v5183, %v5614
      %v5652 = vadd.f32 %v5184, %v5616
      %v5653 = vadd.f32 %v5185, %v5618
      %v5654 = vadd.f32 %v5186, %v5622
      %v5655 = vadd.f32 %v5187, %v5624
      %v5656 = vadd.f32 %v5188, %v5626
      %v5657 = vadd.f32 %v5189, %v5628
      %v5658 = vadd.f32 %v5190, %v5632
      %v5659 = vadd.f32 %v5191, %v5634
      %v5660 = vadd.f32 %v5192, %v5636
      %v5661 = vadd.f32 %v5193, %v5638
      %v5662 = vadd.f32 %v5194, %v5642
      %v5663 = vadd.f32 %v5195, %v5644
      %v5664 = vadd.f32 %v5196, %v5646
      %v5665 = vadd.f32 %v5197, %v5648
      %v5666 = vld [vmem:[%s7] sm:$0x3]
      %v5668 = vlaneseq
      %v5669 = vshrl.u32 %v5668, 7
      %v5670 = vsub.s32 0, %v5669
      %v5671 = vrot.slane %v5666, %v5670
      %v5672 = vlaneseq
      %v5673 = vshrl.u32 %v5672, 7
      %v5674 = vsub.s32 1, %v5673
      %v5675 = vrot.slane %v5666, %v5674
      %v5678 = vadd.f32 %v5650, %v5671
      %v5679 = vadd.f32 %v5651, %v5675
      %v5680 = vadd.f32 %v5652, %v5671
      %v5681 = vadd.f32 %v5653, %v5675
      %v5682 = vadd.f32 %v5654, %v5671
      %v5683 = vadd.f32 %v5655, %v5675
      %v5684 = vadd.f32 %v5656, %v5671
      %v5685 = vadd.f32 %v5657, %v5675
      %v5686 = vadd.f32 %v5658, %v5671
      %v5687 = vadd.f32 %v5659, %v5675
      %v5688 = vadd.f32 %v5660, %v5671
      %v5689 = vadd.f32 %v5661, %v5675
      %v5690 = vadd.f32 %v5662, %v5671
      %v5691 = vadd.f32 %v5663, %v5675
      %v5692 = vadd.f32 %v5664, %v5671
      %v5693 = vadd.f32 %v5665, %v5675
      %5694 = vst [vmem:[%s464] sm:$0xff] %v5678
      %5695 = vst [vmem:[%s464 + $0x8] sm:$0xff] %v5679
      %5696 = vst [vmem:[%s464 + $0x10] sm:$0xff] %v5680
      %5697 = vst [vmem:[%s464 + $0x18] sm:$0xff] %v5681
      %5698 = vst [vmem:[%s464 + $0x20] sm:$0xff] %v5682
      %5699 = vst [vmem:[%s464 + $0x28] sm:$0xff] %v5683
      %5700 = vst [vmem:[%s464 + $0x30] sm:$0xff] %v5684
      %5701 = vst [vmem:[%s464 + $0x38] sm:$0xff] %v5685
      %5702 = vst [vmem:[%s464 + $0x40] sm:$0xff] %v5686
      %5703 = vst [vmem:[%s464 + $0x48] sm:$0xff] %v5687
      %5704 = vst [vmem:[%s464 + $0x50] sm:$0xff] %v5688
      %5705 = vst [vmem:[%s464 + $0x58] sm:$0xff] %v5689
      %5706 = vst [vmem:[%s464 + $0x60] sm:$0xff] %v5690
      %5707 = vst [vmem:[%s464 + $0x68] sm:$0xff] %v5691
      %5708 = vst [vmem:[%s464 + $0x70] sm:$0xff] %v5692
      %5709 = vst [vmem:[%s464 + $0x78] sm:$0xff] %v5693
      %v5710 = vadd.f32 %v5678, %v5680
      %v5711 = vadd.f32 %v5710, %v5682
      %v5712 = vadd.f32 %v5711, %v5684
      %v5713 = vadd.f32 %v5712, %v5686
      %v5714 = vadd.f32 %v5713, %v5688
      %v5715 = vadd.f32 %v5714, %v5690
      %v5716 = vadd.f32 %v5715, %v5692
      %v5717 = vrot.slane %v5716, 4
      %v5718 = vadd.f32 %v5716, %v5717
      %v5719 = vrot.slane %v5718, 2
      %v5720 = vadd.f32 %v5718, %v5719
      %v5721 = vrot.slane %v5720, 1
      %v5722 = vadd.f32 %v5720, %v5721
      %v5723 = vadd.f32 %v5679, %v5681
      %v5724 = vadd.f32 %v5723, %v5683
      %v5725 = vadd.f32 %v5724, %v5685
      %v5726 = vadd.f32 %v5725, %v5687
      %v5727 = vadd.f32 %v5726, %v5689
      %v5728 = vadd.f32 %v5727, %v5691
      %v5729 = vadd.f32 %v5728, %v5693
      %v5730 = vrot.slane %v5729, 4
      %v5731 = vadd.f32 %v5729, %v5730
      %v5732 = vrot.slane %v5731, 2
      %v5733 = vadd.f32 %v5731, %v5732
      %v5734 = vrot.slane %v5733, 1
      %v5735 = vadd.f32 %v5733, %v5734
      %v5736 = vmul.f32 %v5678, %v5678
      %v5737 = vmul.f32 %v5679, %v5679
      %v5738 = vmul.f32 %v5680, %v5680
      %v5739 = vmul.f32 %v5681, %v5681
      %v5740 = vmul.f32 %v5682, %v5682
      %v5741 = vmul.f32 %v5683, %v5683
      %v5742 = vmul.f32 %v5684, %v5684
      %v5743 = vmul.f32 %v5685, %v5685
      %v5744 = vmul.f32 %v5686, %v5686
      %v5745 = vmul.f32 %v5687, %v5687
      %v5746 = vmul.f32 %v5688, %v5688
      %v5747 = vmul.f32 %v5689, %v5689
      %v5748 = vmul.f32 %v5690, %v5690
      %v5749 = vmul.f32 %v5691, %v5691
      %v5750 = vmul.f32 %v5692, %v5692
      %v5751 = vmul.f32 %v5693, %v5693
      %v5752 = vadd.f32 %v5736, %v5738
      %v5753 = vadd.f32 %v5752, %v5740
      %v5754 = vadd.f32 %v5753, %v5742
      %v5755 = vadd.f32 %v5754, %v5744
      %v5756 = vadd.f32 %v5755, %v5746
      %v5757 = vadd.f32 %v5756, %v5748
      %v5758 = vadd.f32 %v5757, %v5750
      %v5759 = vrot.slane %v5758, 4
      %v5760 = vadd.f32 %v5758, %v5759
      %v5761 = vrot.slane %v5760, 2
      %v5762 = vadd.f32 %v5760, %v5761
      %v5763 = vrot.slane %v5762, 1
      %v5764 = vadd.f32 %v5762, %v5763
      %v5765 = vadd.f32 %v5737, %v5739
      %v5766 = vadd.f32 %v5765, %v5741
      %v5767 = vadd.f32 %v5766, %v5743
      %v5768 = vadd.f32 %v5767, %v5745
      %v5769 = vadd.f32 %v5768, %v5747
      %v5770 = vadd.f32 %v5769, %v5749
      %v5771 = vadd.f32 %v5770, %v5751
      %v5772 = vrot.slane %v5771, 4
      %v5773 = vadd.f32 %v5771, %v5772
      %v5774 = vrot.slane %v5773, 2
      %v5775 = vadd.f32 %v5773, %v5774
      %v5776 = vrot.slane %v5775, 1
      %v5777 = vadd.f32 %v5775, %v5776
      %vm5778 = vcmask 1040384
      %v5779 = vsel %vm5778, %v5722, %v5764
      %v5780 = vsel %vm5778, %v5735, %v5777
      %vm5781 = vcmask 1041408
      %v5782 = vsel %vm5781, %v5779, 0.0
      %v5783 = vsel %vm5781, %v5780, 0.0
      %5784 = vst [vmem:[%s473] sm:$0xff] %v5782
      %5785 = vst [vmem:[%s473 + $0x8] sm:$0xff] %v5783
      %p5786 = scmp.lt.s32.totalorder %s25, 1
      %s5787 = scalar_select %p5786, %s25, 1
      %p5788 = scmp.lt.s32.totalorder %s26, 7
      %s5789 = scalar_select %p5788, %s26, 7
      %s5790 = smul.addr %s5789, 16
      %s5791 = smul.addr %s5787, 128
      %s5792 = sadd.s32 %s5790, %s5791
      %s5793 = smul.addr %s5792, 8
      %s5794 = scalar_lea.vmem %s8, %s5793
      %p5795 = scmp.lt.s32.totalorder %s25, 1
      %s5796 = scalar_select %p5795, %s25, 1
      %p5797 = scmp.lt.s32.totalorder %s26, 7
      %s5798 = scalar_select %p5797, %s26, 7
      %s5799 = smul.addr %s5798, 2
      %s5800 = smul.addr %s5796, 16
      %s5801 = sadd.s32 %s5799, %s5800
      %s5802 = smul.addr %s5801, 8
      %s5803 = scalar_lea.vmem %s9, %s5802
      // Predicated region
      $region53: #{resnet3d_block.4} parent=51 // pred_check
        %p5804 = pneg %p246
      $region54: #{resnet3d_block.4} parent=51 // pred_check_branch
        %5806 = sbr.rel (%p5804) target = $region56
      $region55: #{resnet3d_block.4} parent=51 // pred_region
        _
      $region56: #{resnet3d_block.4} parent=51 // pred_fallthru
        _
      // Predicated region
      $region57: #{resnet3d_block.4} parent=51 // pred_check
        %p5807 = pneg %p274
      $region58: #{resnet3d_block.4} parent=51 // pred_check_branch
        %5809 = sbr.rel (%p5807) target = $region60
      $region59: #{resnet3d_block.4} parent=51 // pred_region
        _
      $region60: #{resnet3d_block.4} parent=51 // pred_fallthru
        _
    $region52: #{resnet3d_block.4} parent=5 // pred_fallthru
      _
    %p5810 = scmp.le.s32.totalorder 2, %s16
    // Predicated region
    $region61: #{resnet3d_block.4} parent=5 // pred_check
      %p5811 = pneg %p5810
    $region62: #{resnet3d_block.4} parent=5 // pred_check_branch
      %5813 = sbr.rel (%p5811) target = $region64
    $region63: #{resnet3d_block.4} parent=5 // pred_region
      %s5814 = ssub.s32 %s16, 2
      // Predicated region
      $region65: #{resnet3d_block.4} parent=63 // pred_check
        %p5815 = pneg %p252
      $region66: #{resnet3d_block.4} parent=63 // pred_check_branch
        %5817 = sbr.rel (%p5815) target = $region68
      $region67: #{resnet3d_block.4} parent=63 // pred_region
        %p5818 = scmp.lt.s32.totalorder %s27, 1
        %s5819 = scalar_select %p5818, %s27, 1
        %p5820 = scmp.lt.s32.totalorder %s28, 7
        %s5821 = scalar_select %p5820, %s28, 7
        %s5822 = smul.addr %s5821, 16
        %s5823 = smul.addr %s5819, 128
        %s5824 = sadd.s32 %s5822, %s5823
        %s5825 = smul.addr %s5824, 8
        %s5826 = scalar_lea.vmem %s8, %s5825
      $region68: #{resnet3d_block.4} parent=63 // pred_fallthru
        _
      // Predicated region
      $region69: #{resnet3d_block.4} parent=63 // pred_check
        %p5827 = pneg %p280
      $region70: #{resnet3d_block.4} parent=63 // pred_check_branch
        %5829 = sbr.rel (%p5827) target = $region72
      $region71: #{resnet3d_block.4} parent=63 // pred_region
        %p5830 = scmp.lt.s32.totalorder %s27, 1
        %s5831 = scalar_select %p5830, %s27, 1
        %p5832 = scmp.lt.s32.totalorder %s28, 7
        %s5833 = scalar_select %p5832, %s28, 7
        %s5834 = smul.addr %s5833, 2
        %s5835 = smul.addr %s5831, 16
        %s5836 = sadd.s32 %s5834, %s5835
        %s5837 = smul.addr %s5836, 8
        %s5838 = scalar_lea.vmem %s9, %s5837
      $region72: #{resnet3d_block.4} parent=63 // pred_fallthru
        _
    $region64: #{resnet3d_block.4} parent=5 // pred_fallthru
      _
  $region6: #{resnet3d_block.4} parent=0 // loop_footer
    %s20 = sadd.s32 1, %s16
  $region7: #{resnet3d_block.4} parent=0 // loop_footer_branch
    %15 = sbr.rel target = $region3
  $region8: #{resnet3d_block.4} parent=0 // loop_exit
    _

</llo_original>
